<compile_context>
chip_gen: v6e
topology: v6e:2x2x1
jax: 0.10.0
libtpu: 0.0.40
codegen_flags: <defaults>
</compile_context>

<pallas_src>
import math

import numpy as np
import jax
import jax.numpy as jnp
from jax.experimental import pallas as pl
from jax.experimental.pallas import tpu as pltpu

H, W = 10, 11            # fixed by nn.LayerNorm([10, 11]) in the PyTorch module
HW = H * W               # 110
LANE = 128               # lane-padded spatial plane
EPS = 1e-5               # PyTorch LayerNorm default eps
INV_HW = 1.0 / HW
NUM_CONVS = 4

# Tap ordering k = kh*3 + kw; source offset in the flattened plane = (kh-1)*W + (kw-1).
# output[p] = input[p + off]  ==  roll(input, -off)  -> positive shift modulo LANE.
OFFS = [(kh - 1) * W + (kw - 1) for kh in range(3) for kw in range(3)]
SHIFTS = [(-off) % LANE for off in OFFS]


def _round_up(x, m):
    return (x + m - 1) // m * m


def _make_tap_masks():
    """(9, LANE) f32 masks: mask[k, p] = 1 iff the source pixel of tap k for output
    position p lies inside the (zero-padded) 10x11 image and p itself is a real pixel."""
    p = np.arange(LANE)
    hh, ww = p // W, p % W
    in_img = p < HW
    ms = []
    for kh in range(3):
        for kw in range(3):
            dh, dw = kh - 1, kw - 1
            valid = (in_img
                     & (hh + dh >= 0) & (hh + dh < H)
                     & (ww + dw >= 0) & (ww + dw < W))
            ms.append(valid)
    return jnp.asarray(np.stack(ms).astype(np.float32))


_TAP_MASKS = _make_tap_masks()          # (9, LANE), ~4.6 KB


# ---------------------------------------------------------------------------
# Fused DenseBlock kernel (one grid step = tile_b independent depth-slices)
# ---------------------------------------------------------------------------
def _make_dense_block_kernel(tile_b, cin_pad, cout_pad):
    """Builds the kernel with all layout constants closed over (static)."""
    c_src_pad = cin_pad + (NUM_CONVS - 1) * cout_pad      # channels that ever feed a conv
    K = 9 * c_src_pad + 8                                  # +8: 8-aligned bias/mask block
    bias_row = 9 * c_src_pad
    # channel-group starts in the dense stack (o_ref) and in the im2col scratch
    grp_stack = [0] + [cin_pad + l * cout_pad for l in range(NUM_CONVS)]
    grp_src = grp_stack[:NUM_CONVS]

    def kernel(x_ref, mask_ref, w1_ref, w2_ref, w3_ref, w4_ref, o_ref, st_ref):
        """
        x_ref  : (tile_b, cin_pad, LANE) f32   lane/channel zero-padded input slices
        mask_ref: (9, LANE) f32                per-tap border-validity masks
        wX_ref : (cout_pad, K) bf16            fixed-K flattened conv weights (+bias col)
        o_ref  : (tile_b, c_stack_pad, LANE) f32  dense channel stack (= output block)
        st_ref : (tile_b, K, LANE) bf16        persistent im2col cache (all taps/layers)
        """
        w_refs = (w1_ref, w2_ref, w3_ref, w4_ref)
        m_all = mask_ref[...]                   # (9, LANE)
        lane_mask = m_all[4:5, :]               # (1, LANE): 1 at the 110 real pixels

        # ---- per-step init -------------------------------------------------
        o_ref[:, 0:cin_pad, :] = x_ref[...]     # seed the dense stack with the input
        st_ref[...] = jnp.zeros_like(st_ref)    # not-yet-present slots must be 0
        # lane-mask row: multiplied by the bias column of W_flat it injects the conv
        # bias at valid pixels only, so pad lanes stay exactly zero after ReLU.
        st_ref[:, bias_row:bias_row + 1, :] = jnp.broadcast_to(
            lane_mask, (tile_b, 1, LANE)).astype(st_ref.dtype)

        # ---- 4 ConvBlocks with dense concat --------------------------------
        for l in range(NUM_CONVS):
            g_rows = cin_pad if l == 0 else cout_pad
            s_stack = grp_stack[l]              # new source group in the stack
            s_src = grp_src[l]                  # its slot range in the im2col cache

            # LayerNorm (per slice, per channel) over the 10x11 plane, only for the
            # NEW channel group; older groups are already cached normalized+rolled.
            cur = o_ref[:, s_stack:s_stack + g_rows, :]        # (tile_b, g, LANE) f32
            mean = jnp.sum(cur, axis=-1, keepdims=True) * INV_HW
            cen = (cur - mean) * lane_mask                     # zero pad lanes
            var = jnp.sum(cen * cen, axis=-1, keepdims=True) * INV_HW
            xn = cen * jax.lax.rsqrt(var + EPS)                # pad rows stay 0

            # gather-free im2col of the new group: 9 lane rolls + border masks,
            # written once into the fixed-stride bf16 cache (tile-aligned offsets).
            for k in range(9):
                s = SHIFTS[k]
                if s == 0:                       # center tap: always valid, pads already 0
                    sh = xn
                else:
                    sh = pltpu.roll(xn, shift=s, axis=2) * m_all[k:k + 1, :]
                r0 = k * c_src_pad + s_src
                st_ref[:, r0:r0 + g_rows, :] = sh.astype(st_ref.dtype)

            # One batched MXU matmul over all tile_b slices:
            #   (tile_b, cout_pad, K) x (tile_b, K, LANE) -> (tile_b, cout_pad, LANE)
            # bf16 x bf16 operands, f32 accumulation; bias folded via the mask row.
            wb = jnp.broadcast_to(w_refs[l][...], (tile_b, cout_pad, K))
            conv = jax.lax.dot_general(
                wb, st_ref[...],
                dimension_numbers=(((2,), (1,)), ((0,), (0,))),
                preferred_element_type=jnp.float32)

            # ReLU and append the new group to the dense stack (aligned full tiles;
            # padded output rows are exactly zero because their weight rows are zero).
            dst = grp_stack[l + 1]
            o_ref[:, dst:dst + cout_pad, :] = jnp.maximum(conv, 0.0)

    return kernel, K


# ---------------------------------------------------------------------------
# Host-side weight packing: fixed-K flattening with bias column
# ---------------------------------------------------------------------------
def _flatten_weights(params, C, c_out, cin_pad, cout_pad, c_src_pad, K):
    def slot(j):                                 # im2col slot of real source channel j
        if j < C:
            return j
        g, r = divmod(j - C, c_out)
        return cin_pad + g * cout_pad + r

    flats = []
    for wgt, b in params:
        wgt = np.asarray(wgt, dtype=np.float32)  # (c_out, c_in_l, 1, 3, 3)
        b = np.asarray(b, dtype=np.float32)
        o_real, i_real = wgt.shape[0], wgt.shape[1]
        wf = np.zeros((cout_pad, K), np.float32)
        for o in range(o_real):
            for j in range(i_real):
                s = slot(j)
                for kh in range(3):
                    for kw in range(3):
                        wf[o, (kh * 3 + kw) * c_src_pad + s] = wgt[o, j, 0, kh, kw]
            wf[o, 9 * c_src_pad] = b[o]          # bias column (paired with lane-mask row)
        flats.append(jnp.asarray(wf, dtype=jnp.bfloat16))
    return flats


# ---------------------------------------------------------------------------
# DenseBlock forward wrapper (single pallas_call)
# ---------------------------------------------------------------------------
def dense_block_pallas(x_ncdhw, params, *, tile_b=8):
    """DenseBlock forward. Input/output layout: NCDHW (PyTorch Conv3d convention)."""
    N, C, D, h, w = x_ncdhw.shape
    assert (h, w) == (H, W)
    assert len(params) == NUM_CONVS
    c_out = params[0][1].shape[0]

    cin_pad = _round_up(C, 8)
    cout_pad = _round_up(c_out, 8)
    c_stack_pad = cin_pad + NUM_CONVS * cout_pad
    c_src_pad = cin_pad + (NUM_CONVS - 1) * cout_pad

    kernel, K = _make_dense_block_kernel(tile_b, cin_pad, cout_pad)
    w_flats = _flatten_weights(params, C, c_out, cin_pad, cout_pad, c_src_pad, K)

    # depth kernel size is 1 -> depth slices are independent: fold D into batch,
    # flatten the 10x11 plane into lanes (pad 110 -> 128), pad channels to 8.
    B = N * D
    # pad the slice count to a multiple of 2*tile_b: even number of "parallel" grid
    # steps so both v7x TensorCores always get work (harmless on v5e/v6e).
    B_pad = _round_up(max(B, 1), 2 * tile_b)
    x = jnp.transpose(x_ncdhw, (0, 2, 1, 3, 4)).reshape(B, C, HW)
    x = jnp.pad(x, ((0, B_pad - B), (0, cin_pad - C), (0, LANE - HW)))

    num_tiles = B_pad // tile_b
    in_specs = (
        [pl.BlockSpec((tile_b, cin_pad, LANE), lambda g: (g, 0, 0)),
         pl.BlockSpec((9, LANE), lambda g: (0, 0))]
        + [pl.BlockSpec((cout_pad, K), lambda g: (0, 0)) for _ in range(NUM_CONVS)]
    )

    out = pl.pallas_call(
        kernel,
        out_shape=jax.ShapeDtypeStruct((B_pad, c_stack_pad, LANE), jnp.float32),
        grid_spec=pltpu.PrefetchScalarGridSpec(
            num_scalar_prefetch=0,
            grid=(num_tiles,),
            in_specs=in_specs,
            out_specs=pl.BlockSpec((tile_b, c_stack_pad, LANE), lambda g: (g, 0, 0)),
            scratch_shapes=[pltpu.VMEM((tile_b, K, LANE), jnp.bfloat16)],
        ),
        compiler_params=pltpu.CompilerParams(
            dimension_semantics=("parallel",)),
    )(x, _TAP_MASKS, *w_flats)

    # strip slice/channel/lane padding, restore torch.cat channel order and NCDHW.
    reals = [C] + [c_out] * NUM_CONVS
    pads = [cin_pad] + [cout_pad] * NUM_CONVS
    pieces, start = [], 0
    for r, p in zip(reals, pads):
        pieces.append(out[:B, start:start + r, :HW])
        start += p
    c_tot = C + NUM_CONVS * c_out
    y = jnp.concatenate(pieces, axis=1).reshape(N, D, c_tot, H, W)
    return jnp.transpose(y, (0, 2, 1, 3, 4))


def init_dense_block_params(key, in_channels, out_channels, num_convs=NUM_CONVS):
    """Deterministic Conv3d-style (kaiming-uniform-bound) parameter init."""
    params = []
    in_c = in_channels
    for _ in range(num_convs):
        key, kw_, kb_ = jax.random.split(key, 3)
        fan_in = in_c * 1 * 3 * 3
        bound = 1.0 / math.sqrt(fan_in)
        wgt = jax.random.uniform(kw_, (out_channels, in_c, 1, 3, 3),
                                 jnp.float32, -bound, bound)
        b = jax.random.uniform(kb_, (out_channels,), jnp.float32, -bound, bound)
        params.append((wgt, b))
        in_c += out_channels
    return params


# ---------------------------------------------------------------------------
# Pure-JAX reference (for correctness check only)
# ---------------------------------------------------------------------------
def _layernorm_ref(x):
    mean = jnp.mean(x, axis=(-2, -1), keepdims=True)
    var = jnp.mean((x - mean) ** 2, axis=(-2, -1), keepdims=True)
    return (x - mean) / jnp.sqrt(var + EPS)


def _conv_block_ref(x, wgt, b):
    y = _layernorm_ref(x)
    y = jax.lax.conv_general_dilated(
        y, wgt, window_strides=(1, 1, 1),
        padding=((0, 0), (1, 1), (1, 1)),
        dimension_numbers=("NCDHW", "OIDHW", "NCDHW"),
        precision=jax.lax.Precision.HIGHEST)
    return jnp.maximum(y + b.reshape(1, -1, 1, 1, 1), 0.0)


def _dense_block_ref(x, params):
    for wgt, b in params:
        y = _conv_block_ref(x, wgt, b)
        x = jnp.concatenate([x, y], axis=1)
    return x


if __name__ == "__main__":
    key = jax.random.PRNGKey(0)
    k_x, k_p = jax.random.split(key)

    N, C_in, D = 2, 4, 3
    out_channels = 4

    x = jax.random.normal(k_x, (N, C_in, D, H, W), dtype=jnp.float32)
    params = init_dense_block_params(k_p, C_in, out_channels)

    out = dense_block_pallas(x, params)
    out = jax.block_until_ready(out)

    ref = _dense_block_ref(x, params)
    assert out.shape == (N, C_in + NUM_CONVS * out_channels, D, H, W), out.shape
    # bf16 MXU operands (per v6e/v7x perf guidance) with f32 accumulation: tolerance
    # is relaxed vs. a pure-f32 pipeline but still catches any structural bug.
    max_err = float(jnp.max(jnp.abs(out - ref)))
    assert max_err < 3e-2, f"max abs err too large: {max_err}"

    print("KERNEL_OK")
</pallas_src>

<mosaic_0001>
module attributes {stable_mosaic.version = 11 : i64} {
  func.func @kernel(%arg0: i32, %arg1: memref<8x8x128xf32, #tpu.memory_space<vmem>>, %arg2: memref<9x128xf32, #tpu.memory_space<vmem>>, %arg3: memref<8x296xbf16, #tpu.memory_space<vmem>>, %arg4: memref<8x296xbf16, #tpu.memory_space<vmem>>, %arg5: memref<8x296xbf16, #tpu.memory_space<vmem>>, %arg6: memref<8x296xbf16, #tpu.memory_space<vmem>>, %arg7: memref<8x40x128xf32, #tpu.memory_space<vmem>>, %arg8: memref<8x296x128xbf16, #tpu.memory_space<vmem>>) attributes {dimension_semantics = [#tpu.dimension_semantics<parallel>], iteration_bounds = array<i64: 2>, scalar_prefetch = 0 : i64, scratch_operands = 1 : i64, tpu.core_type = #tpu.core_type<tc>, window_params = [{transform_indices = @transform_0, window_bounds = array<i64: 8, 8, 128>}, {pipeline_mode = #tpu.pipeline_mode<synchronous>, transform_indices = @transform_1, window_bounds = array<i64: 9, 128>}, {pipeline_mode = #tpu.pipeline_mode<synchronous>, transform_indices = @transform_2, window_bounds = array<i64: 8, 296>}, {pipeline_mode = #tpu.pipeline_mode<synchronous>, transform_indices = @transform_3, window_bounds = array<i64: 8, 296>}, {pipeline_mode = #tpu.pipeline_mode<synchronous>, transform_indices = @transform_4, window_bounds = array<i64: 8, 296>}, {pipeline_mode = #tpu.pipeline_mode<synchronous>, transform_indices = @transform_5, window_bounds = array<i64: 8, 296>}, {transform_indices = @transform_6, window_bounds = array<i64: 8, 40, 128>}]} {
    %c0 = arith.constant 0 : index
    %c0_0 = arith.constant 0 : index
    %0 = vector.load %arg2[%c0, %c0_0] : memref<9x128xf32, #tpu.memory_space<vmem>>, vector<9x128xf32>
    %1 = vector.extract_strided_slice %0 {offsets = [4, 0], sizes = [1, 128], strides = [1, 1]} : vector<9x128xf32> to vector<1x128xf32>
    %c0_1 = arith.constant 0 : index
    %c0_2 = arith.constant 0 : index
    %c0_3 = arith.constant 0 : index
    %2 = vector.load %arg1[%c0_1, %c0_2, %c0_3] : memref<8x8x128xf32, #tpu.memory_space<vmem>>, vector<8x8x128xf32>
    %c0_4 = arith.constant 0 : index
    %c0_5 = arith.constant 0 : index
    %c0_6 = arith.constant 0 : index
    %3 = vector.load %arg7[%c0_4, %c0_5, %c0_6] : memref<8x40x128xf32, #tpu.memory_space<vmem>>, vector<8x8x128xf32>
    tpu.vector_store %arg7[%c0_4, %c0_5, %c0_6], %2 {strides = array<i32>} : memref<8x40x128xf32, #tpu.memory_space<vmem>>, vector<8x8x128xf32>,
    %cst = arith.constant 0.000000e+00 : bf16
    %4 = vector.broadcast %cst : bf16 to vector<8x296x128xbf16>
    %c0_7 = arith.constant 0 : index
    %c0_8 = arith.constant 0 : index
    %c0_9 = arith.constant 0 : index
    %5 = vector.load %arg8[%c0_7, %c0_8, %c0_9] : memref<8x296x128xbf16, #tpu.memory_space<vmem>>, vector<8x296x128xbf16>
    tpu.vector_store %arg8[%c0_7, %c0_8, %c0_9], %4 {strides = array<i32>} : memref<8x296x128xbf16, #tpu.memory_space<vmem>>, vector<8x296x128xbf16>,
    %6 = vector.shape_cast %1 : vector<1x128xf32> to vector<1x1x128xf32>
    %7 = vector.broadcast %6 : vector<1x1x128xf32> to vector<8x1x128xf32>
    %8 = arith.truncf %7 : vector<8x1x128xf32> to vector<8x1x128xbf16>
    %c0_10 = arith.constant 0 : index
    %c288 = arith.constant 288 : index
    %c0_11 = arith.constant 0 : index
    %9 = vector.load %arg8[%c0_10, %c288, %c0_11] : memref<8x296x128xbf16, #tpu.memory_space<vmem>>, vector<8x1x128xbf16>
    tpu.vector_store %arg8[%c0_10, %c288, %c0_11], %8 {strides = array<i32>} : memref<8x296x128xbf16, #tpu.memory_space<vmem>>, vector<8x1x128xbf16>,
    %c0_12 = arith.constant 0 : index
    %c0_13 = arith.constant 0 : index
    %c0_14 = arith.constant 0 : index
    %10 = vector.load %arg7[%c0_12, %c0_13, %c0_14] : memref<8x40x128xf32, #tpu.memory_space<vmem>>, vector<8x8x128xf32>
    %cst_15 = arith.constant dense<0.000000e+00> : vector<8x8xf32>
    %11 = vector.multi_reduction <add>, %10, %cst_15 [2] : vector<8x8x128xf32> to vector<8x8xf32>
    %12 = vector.shape_cast %11 : vector<8x8xf32> to vector<8x8x1xf32>
    %cst_16 = arith.constant 0.0090909088 : f32
    %13 = vector.broadcast %cst_16 : f32 to vector<8x8x1xf32>
    %14 = arith.mulf %12, %13 : vector<8x8x1xf32>
    %15 = vector.broadcast %14 : vector<8x8x1xf32> to vector<8x8x128xf32>
    %16 = arith.subf %10, %15 : vector<8x8x128xf32>
    %17 = vector.shape_cast %1 : vector<1x128xf32> to vector<1x1x128xf32>
    %18 = vector.broadcast %17 : vector<1x1x128xf32> to vector<8x8x128xf32>
    %19 = arith.mulf %16, %18 : vector<8x8x128xf32>
    %20 = arith.mulf %19, %19 : vector<8x8x128xf32>
    %cst_17 = arith.constant dense<0.000000e+00> : vector<8x8xf32>
    %21 = vector.multi_reduction <add>, %20, %cst_17 [2] : vector<8x8x128xf32> to vector<8x8xf32>
    %22 = vector.shape_cast %21 : vector<8x8xf32> to vector<8x8x1xf32>
    %cst_18 = arith.constant 0.0090909088 : f32
    %23 = vector.broadcast %cst_18 : f32 to vector<8x8x1xf32>
    %24 = arith.mulf %22, %23 : vector<8x8x1xf32>
    %cst_19 = arith.constant 9.99999974E-6 : f32
    %25 = vector.broadcast %cst_19 : f32 to vector<8x8x1xf32>
    %26 = arith.addf %24, %25 : vector<8x8x1xf32>
    %27 = math.rsqrt %26 : vector<8x8x1xf32>
    %28 = vector.broadcast %27 : vector<8x8x1xf32> to vector<8x8x128xf32>
    %29 = arith.mulf %19, %28 : vector<8x8x128xf32>
    %c12_i32 = arith.constant 12 : i32
    %30 = tpu.dynamic_rotate %29 by %c12_i32 dim 2 : vector<8x8x128xf32>, i32 -> vector<8x8x128xf32>
    %31 = vector.extract_strided_slice %0 {offsets = [0, 0], sizes = [1, 128], strides = [1, 1]} : vector<9x128xf32> to vector<1x128xf32>
    %32 = vector.shape_cast %31 : vector<1x128xf32> to vector<1x1x128xf32>
    %33 = vector.broadcast %32 : vector<1x1x128xf32> to vector<8x8x128xf32>
    %34 = arith.mulf %30, %33 : vector<8x8x128xf32>
    %35 = arith.truncf %34 : vector<8x8x128xf32> to vector<8x8x128xbf16>
    %c0_20 = arith.constant 0 : index
    %c0_21 = arith.constant 0 : index
    %c0_22 = arith.constant 0 : index
    %36 = vector.load %arg8[%c0_20, %c0_21, %c0_22] : memref<8x296x128xbf16, #tpu.memory_space<vmem>>, vector<8x8x128xbf16>
    tpu.vector_store %arg8[%c0_20, %c0_21, %c0_22], %35 {strides = array<i32>} : memref<8x296x128xbf16, #tpu.memory_space<vmem>>, vector<8x8x128xbf16>,
    %c11_i32 = arith.constant 11 : i32
    %37 = tpu.dynamic_rotate %29 by %c11_i32 dim 2 : vector<8x8x128xf32>, i32 -> vector<8x8x128xf32>
    %38 = vector.extract_strided_slice %0 {offsets = [1, 0], sizes = [1, 128], strides = [1, 1]} : vector<9x128xf32> to vector<1x128xf32>
    %39 = vector.shape_cast %38 : vector<1x128xf32> to vector<1x1x128xf32>
    %40 = vector.broadcast %39 : vector<1x1x128xf32> to vector<8x8x128xf32>
    %41 = arith.mulf %37, %40 : vector<8x8x128xf32>
    %42 = arith.truncf %41 : vector<8x8x128xf32> to vector<8x8x128xbf16>
    %c0_23 = arith.constant 0 : index
    %c32 = arith.constant 32 : index
    %c0_24 = arith.constant 0 : index
    %43 = vector.load %arg8[%c0_23, %c32, %c0_24] : memref<8x296x128xbf16, #tpu.memory_space<vmem>>, vector<8x8x128xbf16>
    tpu.vector_store %arg8[%c0_23, %c32, %c0_24], %42 {strides = array<i32>} : memref<8x296x128xbf16, #tpu.memory_space<vmem>>, vector<8x8x128xbf16>,
    %c10_i32 = arith.constant 10 : i32
    %44 = tpu.dynamic_rotate %29 by %c10_i32 dim 2 : vector<8x8x128xf32>, i32 -> vector<8x8x128xf32>
    %45 = vector.extract_strided_slice %0 {offsets = [2, 0], sizes = [1, 128], strides = [1, 1]} : vector<9x128xf32> to vector<1x128xf32>
    %46 = vector.shape_cast %45 : vector<1x128xf32> to vector<1x1x128xf32>
    %47 = vector.broadcast %46 : vector<1x1x128xf32> to vector<8x8x128xf32>
    %48 = arith.mulf %44, %47 : vector<8x8x128xf32>
    %49 = arith.truncf %48 : vector<8x8x128xf32> to vector<8x8x128xbf16>
    %c0_25 = arith.constant 0 : index
    %c64 = arith.constant 64 : index
    %c0_26 = arith.constant 0 : index
    %50 = vector.load %arg8[%c0_25, %c64, %c0_26] : memref<8x296x128xbf16, #tpu.memory_space<vmem>>, vector<8x8x128xbf16>
    tpu.vector_store %arg8[%c0_25, %c64, %c0_26], %49 {strides = array<i32>} : memref<8x296x128xbf16, #tpu.memory_space<vmem>>, vector<8x8x128xbf16>,
    %c1_i32 = arith.constant 1 : i32
    %51 = tpu.dynamic_rotate %29 by %c1_i32 dim 2 : vector<8x8x128xf32>, i32 -> vector<8x8x128xf32>
    %52 = vector.extract_strided_slice %0 {offsets = [3, 0], sizes = [1, 128], strides = [1, 1]} : vector<9x128xf32> to vector<1x128xf32>
    %53 = vector.shape_cast %52 : vector<1x128xf32> to vector<1x1x128xf32>
    %54 = vector.broadcast %53 : vector<1x1x128xf32> to vector<8x8x128xf32>
    %55 = arith.mulf %51, %54 : vector<8x8x128xf32>
    %56 = arith.truncf %55 : vector<8x8x128xf32> to vector<8x8x128xbf16>
    %c0_27 = arith.constant 0 : index
    %c96 = arith.constant 96 : index
    %c0_28 = arith.constant 0 : index
    %57 = vector.load %arg8[%c0_27, %c96, %c0_28] : memref<8x296x128xbf16, #tpu.memory_space<vmem>>, vector<8x8x128xbf16>
    tpu.vector_store %arg8[%c0_27, %c96, %c0_28], %56 {strides = array<i32>} : memref<8x296x128xbf16, #tpu.memory_space<vmem>>, vector<8x8x128xbf16>,
    %58 = arith.truncf %29 : vector<8x8x128xf32> to vector<8x8x128xbf16>
    %c0_29 = arith.constant 0 : index
    %c128 = arith.constant 128 : index
    %c0_30 = arith.constant 0 : index
    %59 = vector.load %arg8[%c0_29, %c128, %c0_30] : memref<8x296x128xbf16, #tpu.memory_space<vmem>>, vector<8x8x128xbf16>
    tpu.vector_store %arg8[%c0_29, %c128, %c0_30], %58 {strides = array<i32>} : memref<8x296x128xbf16, #tpu.memory_space<vmem>>, vector<8x8x128xbf16>,
    %c127_i32 = arith.constant 127 : i32
    %60 = tpu.dynamic_rotate %29 by %c127_i32 dim 2 : vector<8x8x128xf32>, i32 -> vector<8x8x128xf32>
    %61 = vector.extract_strided_slice %0 {offsets = [5, 0], sizes = [1, 128], strides = [1, 1]} : vector<9x128xf32> to vector<1x128xf32>
    %62 = vector.shape_cast %61 : vector<1x128xf32> to vector<1x1x128xf32>
    %63 = vector.broadcast %62 : vector<1x1x128xf32> to vector<8x8x128xf32>
    %64 = arith.mulf %60, %63 : vector<8x8x128xf32>
    %65 = arith.truncf %64 : vector<8x8x128xf32> to vector<8x8x128xbf16>
    %c0_31 = arith.constant 0 : index
    %c160 = arith.constant 160 : index
    %c0_32 = arith.constant 0 : index
    %66 = vector.load %arg8[%c0_31, %c160, %c0_32] : memref<8x296x128xbf16, #tpu.memory_space<vmem>>, vector<8x8x128xbf16>
    tpu.vector_store %arg8[%c0_31, %c160, %c0_32], %65 {strides = array<i32>} : memref<8x296x128xbf16, #tpu.memory_space<vmem>>, vector<8x8x128xbf16>,
    %c118_i32 = arith.constant 118 : i32
    %67 = tpu.dynamic_rotate %29 by %c118_i32 dim 2 : vector<8x8x128xf32>, i32 -> vector<8x8x128xf32>
    %68 = vector.extract_strided_slice %0 {offsets = [6, 0], sizes = [1, 128], strides = [1, 1]} : vector<9x128xf32> to vector<1x128xf32>
    %69 = vector.shape_cast %68 : vector<1x128xf32> to vector<1x1x128xf32>
    %70 = vector.broadcast %69 : vector<1x1x128xf32> to vector<8x8x128xf32>
    %71 = arith.mulf %67, %70 : vector<8x8x128xf32>
    %72 = arith.truncf %71 : vector<8x8x128xf32> to vector<8x8x128xbf16>
    %c0_33 = arith.constant 0 : index
    %c192 = arith.constant 192 : index
    %c0_34 = arith.constant 0 : index
    %73 = vector.load %arg8[%c0_33, %c192, %c0_34] : memref<8x296x128xbf16, #tpu.memory_space<vmem>>, vector<8x8x128xbf16>
    tpu.vector_store %arg8[%c0_33, %c192, %c0_34], %72 {strides = array<i32>} : memref<8x296x128xbf16, #tpu.memory_space<vmem>>, vector<8x8x128xbf16>,
    %c117_i32 = arith.constant 117 : i32
    %74 = tpu.dynamic_rotate %29 by %c117_i32 dim 2 : vector<8x8x128xf32>, i32 -> vector<8x8x128xf32>
    %75 = vector.extract_strided_slice %0 {offsets = [7, 0], sizes = [1, 128], strides = [1, 1]} : vector<9x128xf32> to vector<1x128xf32>
    %76 = vector.shape_cast %75 : vector<1x128xf32> to vector<1x1x128xf32>
    %77 = vector.broadcast %76 : vector<1x1x128xf32> to vector<8x8x128xf32>
    %78 = arith.mulf %74, %77 : vector<8x8x128xf32>
    %79 = arith.truncf %78 : vector<8x8x128xf32> to vector<8x8x128xbf16>
    %c0_35 = arith.constant 0 : index
    %c224 = arith.constant 224 : index
    %c0_36 = arith.constant 0 : index
    %80 = vector.load %arg8[%c0_35, %c224, %c0_36] : memref<8x296x128xbf16, #tpu.memory_space<vmem>>, vector<8x8x128xbf16>
    tpu.vector_store %arg8[%c0_35, %c224, %c0_36], %79 {strides = array<i32>} : memref<8x296x128xbf16, #tpu.memory_space<vmem>>, vector<8x8x128xbf16>,
    %c116_i32 = arith.constant 116 : i32
    %81 = tpu.dynamic_rotate %29 by %c116_i32 dim 2 : vector<8x8x128xf32>, i32 -> vector<8x8x128xf32>
    %82 = vector.extract_strided_slice %0 {offsets = [8, 0], sizes = [1, 128], strides = [1, 1]} : vector<9x128xf32> to vector<1x128xf32>
    %83 = vector.shape_cast %82 : vector<1x128xf32> to vector<1x1x128xf32>
    %84 = vector.broadcast %83 : vector<1x1x128xf32> to vector<8x8x128xf32>
    %85 = arith.mulf %81, %84 : vector<8x8x128xf32>
    %86 = arith.truncf %85 : vector<8x8x128xf32> to vector<8x8x128xbf16>
    %c0_37 = arith.constant 0 : index
    %c256 = arith.constant 256 : index
    %c0_38 = arith.constant 0 : index
    %87 = vector.load %arg8[%c0_37, %c256, %c0_38] : memref<8x296x128xbf16, #tpu.memory_space<vmem>>, vector<8x8x128xbf16>
    tpu.vector_store %arg8[%c0_37, %c256, %c0_38], %86 {strides = array<i32>} : memref<8x296x128xbf16, #tpu.memory_space<vmem>>, vector<8x8x128xbf16>,
    %c0_39 = arith.constant 0 : index
    %c0_40 = arith.constant 0 : index
    %88 = vector.load %arg3[%c0_39, %c0_40] : memref<8x296xbf16, #tpu.memory_space<vmem>>, vector<8x296xbf16>
    %89 = vector.shape_cast %88 : vector<8x296xbf16> to vector<1x8x296xbf16>
    %90 = vector.broadcast %89 : vector<1x8x296xbf16> to vector<8x8x296xbf16>
    %c0_41 = arith.constant 0 : index
    %c0_42 = arith.constant 0 : index
    %c0_43 = arith.constant 0 : index
    %91 = vector.load %arg8[%c0_41, %c0_42, %c0_43] : memref<8x296x128xbf16, #tpu.memory_space<vmem>>, vector<8x296x128xbf16>
    %cst_44 = arith.constant dense<0.000000e+00> : vector<8x8x128xf32>
    %92 = tpu.matmul %90, %91, %cst_44 {dimension_numbers = #tpu.dot_dimension_numbers<[2], [1], [1], [2], [0, 0, 0, 1, 1, 2], [0], [0]>} : vector<8x8x296xbf16>, vector<8x296x128xbf16>, vector<8x8x128xf32> -> vector<8x8x128xf32>
    %cst_45 = arith.constant 0.000000e+00 : f32
    %93 = vector.broadcast %cst_45 : f32 to vector<8x8x128xf32>
    %94 = arith.maximumf %92, %93 : vector<8x8x128xf32>
    %c0_46 = arith.constant 0 : index
    %c8 = arith.constant 8 : index
    %c0_47 = arith.constant 0 : index
    %95 = vector.load %arg7[%c0_46, %c8, %c0_47] : memref<8x40x128xf32, #tpu.memory_space<vmem>>, vector<8x8x128xf32>
    tpu.vector_store %arg7[%c0_46, %c8, %c0_47], %94 {strides = array<i32>} : memref<8x40x128xf32, #tpu.memory_space<vmem>>, vector<8x8x128xf32>,
    %c0_48 = arith.constant 0 : index
    %c8_49 = arith.constant 8 : index
    %c0_50 = arith.constant 0 : index
    %96 = vector.load %arg7[%c0_48, %c8_49, %c0_50] : memref<8x40x128xf32, #tpu.memory_space<vmem>>, vector<8x8x128xf32>
    %cst_51 = arith.constant dense<0.000000e+00> : vector<8x8xf32>
    %97 = vector.multi_reduction <add>, %96, %cst_51 [2] : vector<8x8x128xf32> to vector<8x8xf32>
    %98 = vector.shape_cast %97 : vector<8x8xf32> to vector<8x8x1xf32>
    %cst_52 = arith.constant 0.0090909088 : f32
    %99 = vector.broadcast %cst_52 : f32 to vector<8x8x1xf32>
    %100 = arith.mulf %98, %99 : vector<8x8x1xf32>
    %101 = vector.broadcast %100 : vector<8x8x1xf32> to vector<8x8x128xf32>
    %102 = arith.subf %96, %101 : vector<8x8x128xf32>
    %103 = vector.shape_cast %1 : vector<1x128xf32> to vector<1x1x128xf32>
    %104 = vector.broadcast %103 : vector<1x1x128xf32> to vector<8x8x128xf32>
    %105 = arith.mulf %102, %104 : vector<8x8x128xf32>
    %106 = arith.mulf %105, %105 : vector<8x8x128xf32>
    %cst_53 = arith.constant dense<0.000000e+00> : vector<8x8xf32>
    %107 = vector.multi_reduction <add>, %106, %cst_53 [2] : vector<8x8x128xf32> to vector<8x8xf32>
    %108 = vector.shape_cast %107 : vector<8x8xf32> to vector<8x8x1xf32>
    %cst_54 = arith.constant 0.0090909088 : f32
    %109 = vector.broadcast %cst_54 : f32 to vector<8x8x1xf32>
    %110 = arith.mulf %108, %109 : vector<8x8x1xf32>
    %cst_55 = arith.constant 9.99999974E-6 : f32
    %111 = vector.broadcast %cst_55 : f32 to vector<8x8x1xf32>
    %112 = arith.addf %110, %111 : vector<8x8x1xf32>
    %113 = math.rsqrt %112 : vector<8x8x1xf32>
    %114 = vector.broadcast %113 : vector<8x8x1xf32> to vector<8x8x128xf32>
    %115 = arith.mulf %105, %114 : vector<8x8x128xf32>
    %c12_i32_56 = arith.constant 12 : i32
    %116 = tpu.dynamic_rotate %115 by %c12_i32_56 dim 2 : vector<8x8x128xf32>, i32 -> vector<8x8x128xf32>
    %117 = vector.extract_strided_slice %0 {offsets = [0, 0], sizes = [1, 128], strides = [1, 1]} : vector<9x128xf32> to vector<1x128xf32>
    %118 = vector.shape_cast %117 : vector<1x128xf32> to vector<1x1x128xf32>
    %119 = vector.broadcast %118 : vector<1x1x128xf32> to vector<8x8x128xf32>
    %120 = arith.mulf %116, %119 : vector<8x8x128xf32>
    %121 = arith.truncf %120 : vector<8x8x128xf32> to vector<8x8x128xbf16>
    %c0_57 = arith.constant 0 : index
    %c8_58 = arith.constant 8 : index
    %c0_59 = arith.constant 0 : index
    %122 = vector.load %arg8[%c0_57, %c8_58, %c0_59] : memref<8x296x128xbf16, #tpu.memory_space<vmem>>, vector<8x8x128xbf16>
    tpu.vector_store %arg8[%c0_57, %c8_58, %c0_59], %121 {strides = array<i32>} : memref<8x296x128xbf16, #tpu.memory_space<vmem>>, vector<8x8x128xbf16>,
    %c11_i32_60 = arith.constant 11 : i32
    %123 = tpu.dynamic_rotate %115 by %c11_i32_60 dim 2 : vector<8x8x128xf32>, i32 -> vector<8x8x128xf32>
    %124 = vector.extract_strided_slice %0 {offsets = [1, 0], sizes = [1, 128], strides = [1, 1]} : vector<9x128xf32> to vector<1x128xf32>
    %125 = vector.shape_cast %124 : vector<1x128xf32> to vector<1x1x128xf32>
    %126 = vector.broadcast %125 : vector<1x1x128xf32> to vector<8x8x128xf32>
    %127 = arith.mulf %123, %126 : vector<8x8x128xf32>
    %128 = arith.truncf %127 : vector<8x8x128xf32> to vector<8x8x128xbf16>
    %c0_61 = arith.constant 0 : index
    %c40 = arith.constant 40 : index
    %c0_62 = arith.constant 0 : index
    %129 = vector.load %arg8[%c0_61, %c40, %c0_62] : memref<8x296x128xbf16, #tpu.memory_space<vmem>>, vector<8x8x128xbf16>
    tpu.vector_store %arg8[%c0_61, %c40, %c0_62], %128 {strides = array<i32>} : memref<8x296x128xbf16, #tpu.memory_space<vmem>>, vector<8x8x128xbf16>,
    %c10_i32_63 = arith.constant 10 : i32
    %130 = tpu.dynamic_rotate %115 by %c10_i32_63 dim 2 : vector<8x8x128xf32>, i32 -> vector<8x8x128xf32>
    %131 = vector.extract_strided_slice %0 {offsets = [2, 0], sizes = [1, 128], strides = [1, 1]} : vector<9x128xf32> to vector<1x128xf32>
    %132 = vector.shape_cast %131 : vector<1x128xf32> to vector<1x1x128xf32>
    %133 = vector.broadcast %132 : vector<1x1x128xf32> to vector<8x8x128xf32>
    %134 = arith.mulf %130, %133 : vector<8x8x128xf32>
    %135 = arith.truncf %134 : vector<8x8x128xf32> to vector<8x8x128xbf16>
    %c0_64 = arith.constant 0 : index
    %c72 = arith.constant 72 : index
    %c0_65 = arith.constant 0 : index
    %136 = vector.load %arg8[%c0_64, %c72, %c0_65] : memref<8x296x128xbf16, #tpu.memory_space<vmem>>, vector<8x8x128xbf16>
    tpu.vector_store %arg8[%c0_64, %c72, %c0_65], %135 {strides = array<i32>} : memref<8x296x128xbf16, #tpu.memory_space<vmem>>, vector<8x8x128xbf16>,
    %c1_i32_66 = arith.constant 1 : i32
    %137 = tpu.dynamic_rotate %115 by %c1_i32_66 dim 2 : vector<8x8x128xf32>, i32 -> vector<8x8x128xf32>
    %138 = vector.extract_strided_slice %0 {offsets = [3, 0], sizes = [1, 128], strides = [1, 1]} : vector<9x128xf32> to vector<1x128xf32>
    %139 = vector.shape_cast %138 : vector<1x128xf32> to vector<1x1x128xf32>
    %140 = vector.broadcast %139 : vector<1x1x128xf32> to vector<8x8x128xf32>
    %141 = arith.mulf %137, %140 : vector<8x8x128xf32>
    %142 = arith.truncf %141 : vector<8x8x128xf32> to vector<8x8x128xbf16>
    %c0_67 = arith.constant 0 : index
    %c104 = arith.constant 104 : index
    %c0_68 = arith.constant 0 : index
    %143 = vector.load %arg8[%c0_67, %c104, %c0_68] : memref<8x296x128xbf16, #tpu.memory_space<vmem>>, vector<8x8x128xbf16>
    tpu.vector_store %arg8[%c0_67, %c104, %c0_68], %142 {strides = array<i32>} : memref<8x296x128xbf16, #tpu.memory_space<vmem>>, vector<8x8x128xbf16>,
    %144 = arith.truncf %115 : vector<8x8x128xf32> to vector<8x8x128xbf16>
    %c0_69 = arith.constant 0 : index
    %c136 = arith.constant 136 : index
    %c0_70 = arith.constant 0 : index
    %145 = vector.load %arg8[%c0_69, %c136, %c0_70] : memref<8x296x128xbf16, #tpu.memory_space<vmem>>, vector<8x8x128xbf16>
    tpu.vector_store %arg8[%c0_69, %c136, %c0_70], %144 {strides = array<i32>} : memref<8x296x128xbf16, #tpu.memory_space<vmem>>, vector<8x8x128xbf16>,
    %c127_i32_71 = arith.constant 127 : i32
    %146 = tpu.dynamic_rotate %115 by %c127_i32_71 dim 2 : vector<8x8x128xf32>, i32 -> vector<8x8x128xf32>
    %147 = vector.extract_strided_slice %0 {offsets = [5, 0], sizes = [1, 128], strides = [1, 1]} : vector<9x128xf32> to vector<1x128xf32>
    %148 = vector.shape_cast %147 : vector<1x128xf32> to vector<1x1x128xf32>
    %149 = vector.broadcast %148 : vector<1x1x128xf32> to vector<8x8x128xf32>
    %150 = arith.mulf %146, %149 : vector<8x8x128xf32>
    %151 = arith.truncf %150 : vector<8x8x128xf32> to vector<8x8x128xbf16>
    %c0_72 = arith.constant 0 : index
    %c168 = arith.constant 168 : index
    %c0_73 = arith.constant 0 : index
    %152 = vector.load %arg8[%c0_72, %c168, %c0_73] : memref<8x296x128xbf16, #tpu.memory_space<vmem>>, vector<8x8x128xbf16>
    tpu.vector_store %arg8[%c0_72, %c168, %c0_73], %151 {strides = array<i32>} : memref<8x296x128xbf16, #tpu.memory_space<vmem>>, vector<8x8x128xbf16>,
    %c118_i32_74 = arith.constant 118 : i32
    %153 = tpu.dynamic_rotate %115 by %c118_i32_74 dim 2 : vector<8x8x128xf32>, i32 -> vector<8x8x128xf32>
    %154 = vector.extract_strided_slice %0 {offsets = [6, 0], sizes = [1, 128], strides = [1, 1]} : vector<9x128xf32> to vector<1x128xf32>
    %155 = vector.shape_cast %154 : vector<1x128xf32> to vector<1x1x128xf32>
    %156 = vector.broadcast %155 : vector<1x1x128xf32> to vector<8x8x128xf32>
    %157 = arith.mulf %153, %156 : vector<8x8x128xf32>
    %158 = arith.truncf %157 : vector<8x8x128xf32> to vector<8x8x128xbf16>
    %c0_75 = arith.constant 0 : index
    %c200 = arith.constant 200 : index
    %c0_76 = arith.constant 0 : index
    %159 = vector.load %arg8[%c0_75, %c200, %c0_76] : memref<8x296x128xbf16, #tpu.memory_space<vmem>>, vector<8x8x128xbf16>
    tpu.vector_store %arg8[%c0_75, %c200, %c0_76], %158 {strides = array<i32>} : memref<8x296x128xbf16, #tpu.memory_space<vmem>>, vector<8x8x128xbf16>,
    %c117_i32_77 = arith.constant 117 : i32
    %160 = tpu.dynamic_rotate %115 by %c117_i32_77 dim 2 : vector<8x8x128xf32>, i32 -> vector<8x8x128xf32>
    %161 = vector.extract_strided_slice %0 {offsets = [7, 0], sizes = [1, 128], strides = [1, 1]} : vector<9x128xf32> to vector<1x128xf32>
    %162 = vector.shape_cast %161 : vector<1x128xf32> to vector<1x1x128xf32>
    %163 = vector.broadcast %162 : vector<1x1x128xf32> to vector<8x8x128xf32>
    %164 = arith.mulf %160, %163 : vector<8x8x128xf32>
    %165 = arith.truncf %164 : vector<8x8x128xf32> to vector<8x8x128xbf16>
    %c0_78 = arith.constant 0 : index
    %c232 = arith.constant 232 : index
    %c0_79 = arith.constant 0 : index
    %166 = vector.load %arg8[%c0_78, %c232, %c0_79] : memref<8x296x128xbf16, #tpu.memory_space<vmem>>, vector<8x8x128xbf16>
    tpu.vector_store %arg8[%c0_78, %c232, %c0_79], %165 {strides = array<i32>} : memref<8x296x128xbf16, #tpu.memory_space<vmem>>, vector<8x8x128xbf16>,
    %c116_i32_80 = arith.constant 116 : i32
    %167 = tpu.dynamic_rotate %115 by %c116_i32_80 dim 2 : vector<8x8x128xf32>, i32 -> vector<8x8x128xf32>
    %168 = vector.extract_strided_slice %0 {offsets = [8, 0], sizes = [1, 128], strides = [1, 1]} : vector<9x128xf32> to vector<1x128xf32>
    %169 = vector.shape_cast %168 : vector<1x128xf32> to vector<1x1x128xf32>
    %170 = vector.broadcast %169 : vector<1x1x128xf32> to vector<8x8x128xf32>
    %171 = arith.mulf %167, %170 : vector<8x8x128xf32>
    %172 = arith.truncf %171 : vector<8x8x128xf32> to vector<8x8x128xbf16>
    %c0_81 = arith.constant 0 : index
    %c264 = arith.constant 264 : index
    %c0_82 = arith.constant 0 : index
    %173 = vector.load %arg8[%c0_81, %c264, %c0_82] : memref<8x296x128xbf16, #tpu.memory_space<vmem>>, vector<8x8x128xbf16>
    tpu.vector_store %arg8[%c0_81, %c264, %c0_82], %172 {strides = array<i32>} : memref<8x296x128xbf16, #tpu.memory_space<vmem>>, vector<8x8x128xbf16>,
    %c0_83 = arith.constant 0 : index
    %c0_84 = arith.constant 0 : index
    %174 = vector.load %arg4[%c0_83, %c0_84] : memref<8x296xbf16, #tpu.memory_space<vmem>>, vector<8x296xbf16>
    %175 = vector.shape_cast %174 : vector<8x296xbf16> to vector<1x8x296xbf16>
    %176 = vector.broadcast %175 : vector<1x8x296xbf16> to vector<8x8x296xbf16>
    %c0_85 = arith.constant 0 : index
    %c0_86 = arith.constant 0 : index
    %c0_87 = arith.constant 0 : index
    %177 = vector.load %arg8[%c0_85, %c0_86, %c0_87] : memref<8x296x128xbf16, #tpu.memory_space<vmem>>, vector<8x296x128xbf16>
    %cst_88 = arith.constant dense<0.000000e+00> : vector<8x8x128xf32>
    %178 = tpu.matmul %176, %177, %cst_88 {dimension_numbers = #tpu.dot_dimension_numbers<[2], [1], [1], [2], [0, 0, 0, 1, 1, 2], [0], [0]>} : vector<8x8x296xbf16>, vector<8x296x128xbf16>, vector<8x8x128xf32> -> vector<8x8x128xf32>
    %cst_89 = arith.constant 0.000000e+00 : f32
    %179 = vector.broadcast %cst_89 : f32 to vector<8x8x128xf32>
    %180 = arith.maximumf %178, %179 : vector<8x8x128xf32>
    %c0_90 = arith.constant 0 : index
    %c16 = arith.constant 16 : index
    %c0_91 = arith.constant 0 : index
    %181 = vector.load %arg7[%c0_90, %c16, %c0_91] : memref<8x40x128xf32, #tpu.memory_space<vmem>>, vector<8x8x128xf32>
    tpu.vector_store %arg7[%c0_90, %c16, %c0_91], %180 {strides = array<i32>} : memref<8x40x128xf32, #tpu.memory_space<vmem>>, vector<8x8x128xf32>,
    %c0_92 = arith.constant 0 : index
    %c16_93 = arith.constant 16 : index
    %c0_94 = arith.constant 0 : index
    %182 = vector.load %arg7[%c0_92, %c16_93, %c0_94] : memref<8x40x128xf32, #tpu.memory_space<vmem>>, vector<8x8x128xf32>
    %cst_95 = arith.constant dense<0.000000e+00> : vector<8x8xf32>
    %183 = vector.multi_reduction <add>, %182, %cst_95 [2] : vector<8x8x128xf32> to vector<8x8xf32>
    %184 = vector.shape_cast %183 : vector<8x8xf32> to vector<8x8x1xf32>
    %cst_96 = arith.constant 0.0090909088 : f32
    %185 = vector.broadcast %cst_96 : f32 to vector<8x8x1xf32>
    %186 = arith.mulf %184, %185 : vector<8x8x1xf32>
    %187 = vector.broadcast %186 : vector<8x8x1xf32> to vector<8x8x128xf32>
    %188 = arith.subf %182, %187 : vector<8x8x128xf32>
    %189 = vector.shape_cast %1 : vector<1x128xf32> to vector<1x1x128xf32>
    %190 = vector.broadcast %189 : vector<1x1x128xf32> to vector<8x8x128xf32>
    %191 = arith.mulf %188, %190 : vector<8x8x128xf32>
    %192 = arith.mulf %191, %191 : vector<8x8x128xf32>
    %cst_97 = arith.constant dense<0.000000e+00> : vector<8x8xf32>
    %193 = vector.multi_reduction <add>, %192, %cst_97 [2] : vector<8x8x128xf32> to vector<8x8xf32>
    %194 = vector.shape_cast %193 : vector<8x8xf32> to vector<8x8x1xf32>
    %cst_98 = arith.constant 0.0090909088 : f32
    %195 = vector.broadcast %cst_98 : f32 to vector<8x8x1xf32>
    %196 = arith.mulf %194, %195 : vector<8x8x1xf32>
    %cst_99 = arith.constant 9.99999974E-6 : f32
    %197 = vector.broadcast %cst_99 : f32 to vector<8x8x1xf32>
    %198 = arith.addf %196, %197 : vector<8x8x1xf32>
    %199 = math.rsqrt %198 : vector<8x8x1xf32>
    %200 = vector.broadcast %199 : vector<8x8x1xf32> to vector<8x8x128xf32>
    %201 = arith.mulf %191, %200 : vector<8x8x128xf32>
    %c12_i32_100 = arith.constant 12 : i32
    %202 = tpu.dynamic_rotate %201 by %c12_i32_100 dim 2 : vector<8x8x128xf32>, i32 -> vector<8x8x128xf32>
    %203 = vector.extract_strided_slice %0 {offsets = [0, 0], sizes = [1, 128], strides = [1, 1]} : vector<9x128xf32> to vector<1x128xf32>
    %204 = vector.shape_cast %203 : vector<1x128xf32> to vector<1x1x128xf32>
    %205 = vector.broadcast %204 : vector<1x1x128xf32> to vector<8x8x128xf32>
    %206 = arith.mulf %202, %205 : vector<8x8x128xf32>
    %207 = arith.truncf %206 : vector<8x8x128xf32> to vector<8x8x128xbf16>
    %c0_101 = arith.constant 0 : index
    %c16_102 = arith.constant 16 : index
    %c0_103 = arith.constant 0 : index
    %208 = vector.load %arg8[%c0_101, %c16_102, %c0_103] : memref<8x296x128xbf16, #tpu.memory_space<vmem>>, vector<8x8x128xbf16>
    tpu.vector_store %arg8[%c0_101, %c16_102, %c0_103], %207 {strides = array<i32>} : memref<8x296x128xbf16, #tpu.memory_space<vmem>>, vector<8x8x128xbf16>,
    %c11_i32_104 = arith.constant 11 : i32
    %209 = tpu.dynamic_rotate %201 by %c11_i32_104 dim 2 : vector<8x8x128xf32>, i32 -> vector<8x8x128xf32>
    %210 = vector.extract_strided_slice %0 {offsets = [1, 0], sizes = [1, 128], strides = [1, 1]} : vector<9x128xf32> to vector<1x128xf32>
    %211 = vector.shape_cast %210 : vector<1x128xf32> to vector<1x1x128xf32>
    %212 = vector.broadcast %211 : vector<1x1x128xf32> to vector<8x8x128xf32>
    %213 = arith.mulf %209, %212 : vector<8x8x128xf32>
    %214 = arith.truncf %213 : vector<8x8x128xf32> to vector<8x8x128xbf16>
    %c0_105 = arith.constant 0 : index
    %c48 = arith.constant 48 : index
    %c0_106 = arith.constant 0 : index
    %215 = vector.load %arg8[%c0_105, %c48, %c0_106] : memref<8x296x128xbf16, #tpu.memory_space<vmem>>, vector<8x8x128xbf16>
    tpu.vector_store %arg8[%c0_105, %c48, %c0_106], %214 {strides = array<i32>} : memref<8x296x128xbf16, #tpu.memory_space<vmem>>, vector<8x8x128xbf16>,
    %c10_i32_107 = arith.constant 10 : i32
    %216 = tpu.dynamic_rotate %201 by %c10_i32_107 dim 2 : vector<8x8x128xf32>, i32 -> vector<8x8x128xf32>
    %217 = vector.extract_strided_slice %0 {offsets = [2, 0], sizes = [1, 128], strides = [1, 1]} : vector<9x128xf32> to vector<1x128xf32>
    %218 = vector.shape_cast %217 : vector<1x128xf32> to vector<1x1x128xf32>
    %219 = vector.broadcast %218 : vector<1x1x128xf32> to vector<8x8x128xf32>
    %220 = arith.mulf %216, %219 : vector<8x8x128xf32>
    %221 = arith.truncf %220 : vector<8x8x128xf32> to vector<8x8x128xbf16>
    %c0_108 = arith.constant 0 : index
    %c80 = arith.constant 80 : index
    %c0_109 = arith.constant 0 : index
    %222 = vector.load %arg8[%c0_108, %c80, %c0_109] : memref<8x296x128xbf16, #tpu.memory_space<vmem>>, vector<8x8x128xbf16>
    tpu.vector_store %arg8[%c0_108, %c80, %c0_109], %221 {strides = array<i32>} : memref<8x296x128xbf16, #tpu.memory_space<vmem>>, vector<8x8x128xbf16>,
    %c1_i32_110 = arith.constant 1 : i32
    %223 = tpu.dynamic_rotate %201 by %c1_i32_110 dim 2 : vector<8x8x128xf32>, i32 -> vector<8x8x128xf32>
    %224 = vector.extract_strided_slice %0 {offsets = [3, 0], sizes = [1, 128], strides = [1, 1]} : vector<9x128xf32> to vector<1x128xf32>
    %225 = vector.shape_cast %224 : vector<1x128xf32> to vector<1x1x128xf32>
    %226 = vector.broadcast %225 : vector<1x1x128xf32> to vector<8x8x128xf32>
    %227 = arith.mulf %223, %226 : vector<8x8x128xf32>
    %228 = arith.truncf %227 : vector<8x8x128xf32> to vector<8x8x128xbf16>
    %c0_111 = arith.constant 0 : index
    %c112 = arith.constant 112 : index
    %c0_112 = arith.constant 0 : index
    %229 = vector.load %arg8[%c0_111, %c112, %c0_112] : memref<8x296x128xbf16, #tpu.memory_space<vmem>>, vector<8x8x128xbf16>
    tpu.vector_store %arg8[%c0_111, %c112, %c0_112], %228 {strides = array<i32>} : memref<8x296x128xbf16, #tpu.memory_space<vmem>>, vector<8x8x128xbf16>,
    %230 = arith.truncf %201 : vector<8x8x128xf32> to vector<8x8x128xbf16>
    %c0_113 = arith.constant 0 : index
    %c144 = arith.constant 144 : index
    %c0_114 = arith.constant 0 : index
    %231 = vector.load %arg8[%c0_113, %c144, %c0_114] : memref<8x296x128xbf16, #tpu.memory_space<vmem>>, vector<8x8x128xbf16>
    tpu.vector_store %arg8[%c0_113, %c144, %c0_114], %230 {strides = array<i32>} : memref<8x296x128xbf16, #tpu.memory_space<vmem>>, vector<8x8x128xbf16>,
    %c127_i32_115 = arith.constant 127 : i32
    %232 = tpu.dynamic_rotate %201 by %c127_i32_115 dim 2 : vector<8x8x128xf32>, i32 -> vector<8x8x128xf32>
    %233 = vector.extract_strided_slice %0 {offsets = [5, 0], sizes = [1, 128], strides = [1, 1]} : vector<9x128xf32> to vector<1x128xf32>
    %234 = vector.shape_cast %233 : vector<1x128xf32> to vector<1x1x128xf32>
    %235 = vector.broadcast %234 : vector<1x1x128xf32> to vector<8x8x128xf32>
    %236 = arith.mulf %232, %235 : vector<8x8x128xf32>
    %237 = arith.truncf %236 : vector<8x8x128xf32> to vector<8x8x128xbf16>
    %c0_116 = arith.constant 0 : index
    %c176 = arith.constant 176 : index
    %c0_117 = arith.constant 0 : index
    %238 = vector.load %arg8[%c0_116, %c176, %c0_117] : memref<8x296x128xbf16, #tpu.memory_space<vmem>>, vector<8x8x128xbf16>
    tpu.vector_store %arg8[%c0_116, %c176, %c0_117], %237 {strides = array<i32>} : memref<8x296x128xbf16, #tpu.memory_space<vmem>>, vector<8x8x128xbf16>,
    %c118_i32_118 = arith.constant 118 : i32
    %239 = tpu.dynamic_rotate %201 by %c118_i32_118 dim 2 : vector<8x8x128xf32>, i32 -> vector<8x8x128xf32>
    %240 = vector.extract_strided_slice %0 {offsets = [6, 0], sizes = [1, 128], strides = [1, 1]} : vector<9x128xf32> to vector<1x128xf32>
    %241 = vector.shape_cast %240 : vector<1x128xf32> to vector<1x1x128xf32>
    %242 = vector.broadcast %241 : vector<1x1x128xf32> to vector<8x8x128xf32>
    %243 = arith.mulf %239, %242 : vector<8x8x128xf32>
    %244 = arith.truncf %243 : vector<8x8x128xf32> to vector<8x8x128xbf16>
    %c0_119 = arith.constant 0 : index
    %c208 = arith.constant 208 : index
    %c0_120 = arith.constant 0 : index
    %245 = vector.load %arg8[%c0_119, %c208, %c0_120] : memref<8x296x128xbf16, #tpu.memory_space<vmem>>, vector<8x8x128xbf16>
    tpu.vector_store %arg8[%c0_119, %c208, %c0_120], %244 {strides = array<i32>} : memref<8x296x128xbf16, #tpu.memory_space<vmem>>, vector<8x8x128xbf16>,
    %c117_i32_121 = arith.constant 117 : i32
    %246 = tpu.dynamic_rotate %201 by %c117_i32_121 dim 2 : vector<8x8x128xf32>, i32 -> vector<8x8x128xf32>
    %247 = vector.extract_strided_slice %0 {offsets = [7, 0], sizes = [1, 128], strides = [1, 1]} : vector<9x128xf32> to vector<1x128xf32>
    %248 = vector.shape_cast %247 : vector<1x128xf32> to vector<1x1x128xf32>
    %249 = vector.broadcast %248 : vector<1x1x128xf32> to vector<8x8x128xf32>
    %250 = arith.mulf %246, %249 : vector<8x8x128xf32>
    %251 = arith.truncf %250 : vector<8x8x128xf32> to vector<8x8x128xbf16>
    %c0_122 = arith.constant 0 : index
    %c240 = arith.constant 240 : index
    %c0_123 = arith.constant 0 : index
    %252 = vector.load %arg8[%c0_122, %c240, %c0_123] : memref<8x296x128xbf16, #tpu.memory_space<vmem>>, vector<8x8x128xbf16>
    tpu.vector_store %arg8[%c0_122, %c240, %c0_123], %251 {strides = array<i32>} : memref<8x296x128xbf16, #tpu.memory_space<vmem>>, vector<8x8x128xbf16>,
    %c116_i32_124 = arith.constant 116 : i32
    %253 = tpu.dynamic_rotate %201 by %c116_i32_124 dim 2 : vector<8x8x128xf32>, i32 -> vector<8x8x128xf32>
    %254 = vector.extract_strided_slice %0 {offsets = [8, 0], sizes = [1, 128], strides = [1, 1]} : vector<9x128xf32> to vector<1x128xf32>
    %255 = vector.shape_cast %254 : vector<1x128xf32> to vector<1x1x128xf32>
    %256 = vector.broadcast %255 : vector<1x1x128xf32> to vector<8x8x128xf32>
    %257 = arith.mulf %253, %256 : vector<8x8x128xf32>
    %258 = arith.truncf %257 : vector<8x8x128xf32> to vector<8x8x128xbf16>
    %c0_125 = arith.constant 0 : index
    %c272 = arith.constant 272 : index
    %c0_126 = arith.constant 0 : index
    %259 = vector.load %arg8[%c0_125, %c272, %c0_126] : memref<8x296x128xbf16, #tpu.memory_space<vmem>>, vector<8x8x128xbf16>
    tpu.vector_store %arg8[%c0_125, %c272, %c0_126], %258 {strides = array<i32>} : memref<8x296x128xbf16, #tpu.memory_space<vmem>>, vector<8x8x128xbf16>,
    %c0_127 = arith.constant 0 : index
    %c0_128 = arith.constant 0 : index
    %260 = vector.load %arg5[%c0_127, %c0_128] : memref<8x296xbf16, #tpu.memory_space<vmem>>, vector<8x296xbf16>
    %261 = vector.shape_cast %260 : vector<8x296xbf16> to vector<1x8x296xbf16>
    %262 = vector.broadcast %261 : vector<1x8x296xbf16> to vector<8x8x296xbf16>
    %c0_129 = arith.constant 0 : index
    %c0_130 = arith.constant 0 : index
    %c0_131 = arith.constant 0 : index
    %263 = vector.load %arg8[%c0_129, %c0_130, %c0_131] : memref<8x296x128xbf16, #tpu.memory_space<vmem>>, vector<8x296x128xbf16>
    %cst_132 = arith.constant dense<0.000000e+00> : vector<8x8x128xf32>
    %264 = tpu.matmul %262, %263, %cst_132 {dimension_numbers = #tpu.dot_dimension_numbers<[2], [1], [1], [2], [0, 0, 0, 1, 1, 2], [0], [0]>} : vector<8x8x296xbf16>, vector<8x296x128xbf16>, vector<8x8x128xf32> -> vector<8x8x128xf32>
    %cst_133 = arith.constant 0.000000e+00 : f32
    %265 = vector.broadcast %cst_133 : f32 to vector<8x8x128xf32>
    %266 = arith.maximumf %264, %265 : vector<8x8x128xf32>
    %c0_134 = arith.constant 0 : index
    %c24 = arith.constant 24 : index
    %c0_135 = arith.constant 0 : index
    %267 = vector.load %arg7[%c0_134, %c24, %c0_135] : memref<8x40x128xf32, #tpu.memory_space<vmem>>, vector<8x8x128xf32>
    tpu.vector_store %arg7[%c0_134, %c24, %c0_135], %266 {strides = array<i32>} : memref<8x40x128xf32, #tpu.memory_space<vmem>>, vector<8x8x128xf32>,
    %c0_136 = arith.constant 0 : index
    %c24_137 = arith.constant 24 : index
    %c0_138 = arith.constant 0 : index
    %268 = vector.load %arg7[%c0_136, %c24_137, %c0_138] : memref<8x40x128xf32, #tpu.memory_space<vmem>>, vector<8x8x128xf32>
    %cst_139 = arith.constant dense<0.000000e+00> : vector<8x8xf32>
    %269 = vector.multi_reduction <add>, %268, %cst_139 [2] : vector<8x8x128xf32> to vector<8x8xf32>
    %270 = vector.shape_cast %269 : vector<8x8xf32> to vector<8x8x1xf32>
    %cst_140 = arith.constant 0.0090909088 : f32
    %271 = vector.broadcast %cst_140 : f32 to vector<8x8x1xf32>
    %272 = arith.mulf %270, %271 : vector<8x8x1xf32>
    %273 = vector.broadcast %272 : vector<8x8x1xf32> to vector<8x8x128xf32>
    %274 = arith.subf %268, %273 : vector<8x8x128xf32>
    %275 = vector.shape_cast %1 : vector<1x128xf32> to vector<1x1x128xf32>
    %276 = vector.broadcast %275 : vector<1x1x128xf32> to vector<8x8x128xf32>
    %277 = arith.mulf %274, %276 : vector<8x8x128xf32>
    %278 = arith.mulf %277, %277 : vector<8x8x128xf32>
    %cst_141 = arith.constant dense<0.000000e+00> : vector<8x8xf32>
    %279 = vector.multi_reduction <add>, %278, %cst_141 [2] : vector<8x8x128xf32> to vector<8x8xf32>
    %280 = vector.shape_cast %279 : vector<8x8xf32> to vector<8x8x1xf32>
    %cst_142 = arith.constant 0.0090909088 : f32
    %281 = vector.broadcast %cst_142 : f32 to vector<8x8x1xf32>
    %282 = arith.mulf %280, %281 : vector<8x8x1xf32>
    %cst_143 = arith.constant 9.99999974E-6 : f32
    %283 = vector.broadcast %cst_143 : f32 to vector<8x8x1xf32>
    %284 = arith.addf %282, %283 : vector<8x8x1xf32>
    %285 = math.rsqrt %284 : vector<8x8x1xf32>
    %286 = vector.broadcast %285 : vector<8x8x1xf32> to vector<8x8x128xf32>
    %287 = arith.mulf %277, %286 : vector<8x8x128xf32>
    %c12_i32_144 = arith.constant 12 : i32
    %288 = tpu.dynamic_rotate %287 by %c12_i32_144 dim 2 : vector<8x8x128xf32>, i32 -> vector<8x8x128xf32>
    %289 = vector.extract_strided_slice %0 {offsets = [0, 0], sizes = [1, 128], strides = [1, 1]} : vector<9x128xf32> to vector<1x128xf32>
    %290 = vector.shape_cast %289 : vector<1x128xf32> to vector<1x1x128xf32>
    %291 = vector.broadcast %290 : vector<1x1x128xf32> to vector<8x8x128xf32>
    %292 = arith.mulf %288, %291 : vector<8x8x128xf32>
    %293 = arith.truncf %292 : vector<8x8x128xf32> to vector<8x8x128xbf16>
    %c0_145 = arith.constant 0 : index
    %c24_146 = arith.constant 24 : index
    %c0_147 = arith.constant 0 : index
    %294 = vector.load %arg8[%c0_145, %c24_146, %c0_147] : memref<8x296x128xbf16, #tpu.memory_space<vmem>>, vector<8x8x128xbf16>
    tpu.vector_store %arg8[%c0_145, %c24_146, %c0_147], %293 {strides = array<i32>} : memref<8x296x128xbf16, #tpu.memory_space<vmem>>, vector<8x8x128xbf16>,
    %c11_i32_148 = arith.constant 11 : i32
    %295 = tpu.dynamic_rotate %287 by %c11_i32_148 dim 2 : vector<8x8x128xf32>, i32 -> vector<8x8x128xf32>
    %296 = vector.extract_strided_slice %0 {offsets = [1, 0], sizes = [1, 128], strides = [1, 1]} : vector<9x128xf32> to vector<1x128xf32>
    %297 = vector.shape_cast %296 : vector<1x128xf32> to vector<1x1x128xf32>
    %298 = vector.broadcast %297 : vector<1x1x128xf32> to vector<8x8x128xf32>
    %299 = arith.mulf %295, %298 : vector<8x8x128xf32>
    %300 = arith.truncf %299 : vector<8x8x128xf32> to vector<8x8x128xbf16>
    %c0_149 = arith.constant 0 : index
    %c56 = arith.constant 56 : index
    %c0_150 = arith.constant 0 : index
    %301 = vector.load %arg8[%c0_149, %c56, %c0_150] : memref<8x296x128xbf16, #tpu.memory_space<vmem>>, vector<8x8x128xbf16>
    tpu.vector_store %arg8[%c0_149, %c56, %c0_150], %300 {strides = array<i32>} : memref<8x296x128xbf16, #tpu.memory_space<vmem>>, vector<8x8x128xbf16>,
    %c10_i32_151 = arith.constant 10 : i32
    %302 = tpu.dynamic_rotate %287 by %c10_i32_151 dim 2 : vector<8x8x128xf32>, i32 -> vector<8x8x128xf32>
    %303 = vector.extract_strided_slice %0 {offsets = [2, 0], sizes = [1, 128], strides = [1, 1]} : vector<9x128xf32> to vector<1x128xf32>
    %304 = vector.shape_cast %303 : vector<1x128xf32> to vector<1x1x128xf32>
    %305 = vector.broadcast %304 : vector<1x1x128xf32> to vector<8x8x128xf32>
    %306 = arith.mulf %302, %305 : vector<8x8x128xf32>
    %307 = arith.truncf %306 : vector<8x8x128xf32> to vector<8x8x128xbf16>
    %c0_152 = arith.constant 0 : index
    %c88 = arith.constant 88 : index
    %c0_153 = arith.constant 0 : index
    %308 = vector.load %arg8[%c0_152, %c88, %c0_153] : memref<8x296x128xbf16, #tpu.memory_space<vmem>>, vector<8x8x128xbf16>
    tpu.vector_store %arg8[%c0_152, %c88, %c0_153], %307 {strides = array<i32>} : memref<8x296x128xbf16, #tpu.memory_space<vmem>>, vector<8x8x128xbf16>,
    %c1_i32_154 = arith.constant 1 : i32
    %309 = tpu.dynamic_rotate %287 by %c1_i32_154 dim 2 : vector<8x8x128xf32>, i32 -> vector<8x8x128xf32>
    %310 = vector.extract_strided_slice %0 {offsets = [3, 0], sizes = [1, 128], strides = [1, 1]} : vector<9x128xf32> to vector<1x128xf32>
    %311 = vector.shape_cast %310 : vector<1x128xf32> to vector<1x1x128xf32>
    %312 = vector.broadcast %311 : vector<1x1x128xf32> to vector<8x8x128xf32>
    %313 = arith.mulf %309, %312 : vector<8x8x128xf32>
    %314 = arith.truncf %313 : vector<8x8x128xf32> to vector<8x8x128xbf16>
    %c0_155 = arith.constant 0 : index
    %c120 = arith.constant 120 : index
    %c0_156 = arith.constant 0 : index
    %315 = vector.load %arg8[%c0_155, %c120, %c0_156] : memref<8x296x128xbf16, #tpu.memory_space<vmem>>, vector<8x8x128xbf16>
    tpu.vector_store %arg8[%c0_155, %c120, %c0_156], %314 {strides = array<i32>} : memref<8x296x128xbf16, #tpu.memory_space<vmem>>, vector<8x8x128xbf16>,
    %316 = arith.truncf %287 : vector<8x8x128xf32> to vector<8x8x128xbf16>
    %c0_157 = arith.constant 0 : index
    %c152 = arith.constant 152 : index
    %c0_158 = arith.constant 0 : index
    %317 = vector.load %arg8[%c0_157, %c152, %c0_158] : memref<8x296x128xbf16, #tpu.memory_space<vmem>>, vector<8x8x128xbf16>
    tpu.vector_store %arg8[%c0_157, %c152, %c0_158], %316 {strides = array<i32>} : memref<8x296x128xbf16, #tpu.memory_space<vmem>>, vector<8x8x128xbf16>,
    %c127_i32_159 = arith.constant 127 : i32
    %318 = tpu.dynamic_rotate %287 by %c127_i32_159 dim 2 : vector<8x8x128xf32>, i32 -> vector<8x8x128xf32>
    %319 = vector.extract_strided_slice %0 {offsets = [5, 0], sizes = [1, 128], strides = [1, 1]} : vector<9x128xf32> to vector<1x128xf32>
    %320 = vector.shape_cast %319 : vector<1x128xf32> to vector<1x1x128xf32>
    %321 = vector.broadcast %320 : vector<1x1x128xf32> to vector<8x8x128xf32>
    %322 = arith.mulf %318, %321 : vector<8x8x128xf32>
    %323 = arith.truncf %322 : vector<8x8x128xf32> to vector<8x8x128xbf16>
    %c0_160 = arith.constant 0 : index
    %c184 = arith.constant 184 : index
    %c0_161 = arith.constant 0 : index
    %324 = vector.load %arg8[%c0_160, %c184, %c0_161] : memref<8x296x128xbf16, #tpu.memory_space<vmem>>, vector<8x8x128xbf16>
    tpu.vector_store %arg8[%c0_160, %c184, %c0_161], %323 {strides = array<i32>} : memref<8x296x128xbf16, #tpu.memory_space<vmem>>, vector<8x8x128xbf16>,
    %c118_i32_162 = arith.constant 118 : i32
    %325 = tpu.dynamic_rotate %287 by %c118_i32_162 dim 2 : vector<8x8x128xf32>, i32 -> vector<8x8x128xf32>
    %326 = vector.extract_strided_slice %0 {offsets = [6, 0], sizes = [1, 128], strides = [1, 1]} : vector<9x128xf32> to vector<1x128xf32>
    %327 = vector.shape_cast %326 : vector<1x128xf32> to vector<1x1x128xf32>
    %328 = vector.broadcast %327 : vector<1x1x128xf32> to vector<8x8x128xf32>
    %329 = arith.mulf %325, %328 : vector<8x8x128xf32>
    %330 = arith.truncf %329 : vector<8x8x128xf32> to vector<8x8x128xbf16>
    %c0_163 = arith.constant 0 : index
    %c216 = arith.constant 216 : index
    %c0_164 = arith.constant 0 : index
    %331 = vector.load %arg8[%c0_163, %c216, %c0_164] : memref<8x296x128xbf16, #tpu.memory_space<vmem>>, vector<8x8x128xbf16>
    tpu.vector_store %arg8[%c0_163, %c216, %c0_164], %330 {strides = array<i32>} : memref<8x296x128xbf16, #tpu.memory_space<vmem>>, vector<8x8x128xbf16>,
    %c117_i32_165 = arith.constant 117 : i32
    %332 = tpu.dynamic_rotate %287 by %c117_i32_165 dim 2 : vector<8x8x128xf32>, i32 -> vector<8x8x128xf32>
    %333 = vector.extract_strided_slice %0 {offsets = [7, 0], sizes = [1, 128], strides = [1, 1]} : vector<9x128xf32> to vector<1x128xf32>
    %334 = vector.shape_cast %333 : vector<1x128xf32> to vector<1x1x128xf32>
    %335 = vector.broadcast %334 : vector<1x1x128xf32> to vector<8x8x128xf32>
    %336 = arith.mulf %332, %335 : vector<8x8x128xf32>
    %337 = arith.truncf %336 : vector<8x8x128xf32> to vector<8x8x128xbf16>
    %c0_166 = arith.constant 0 : index
    %c248 = arith.constant 248 : index
    %c0_167 = arith.constant 0 : index
    %338 = vector.load %arg8[%c0_166, %c248, %c0_167] : memref<8x296x128xbf16, #tpu.memory_space<vmem>>, vector<8x8x128xbf16>
    tpu.vector_store %arg8[%c0_166, %c248, %c0_167], %337 {strides = array<i32>} : memref<8x296x128xbf16, #tpu.memory_space<vmem>>, vector<8x8x128xbf16>,
    %c116_i32_168 = arith.constant 116 : i32
    %339 = tpu.dynamic_rotate %287 by %c116_i32_168 dim 2 : vector<8x8x128xf32>, i32 -> vector<8x8x128xf32>
    %340 = vector.extract_strided_slice %0 {offsets = [8, 0], sizes = [1, 128], strides = [1, 1]} : vector<9x128xf32> to vector<1x128xf32>
    %341 = vector.shape_cast %340 : vector<1x128xf32> to vector<1x1x128xf32>
    %342 = vector.broadcast %341 : vector<1x1x128xf32> to vector<8x8x128xf32>
    %343 = arith.mulf %339, %342 : vector<8x8x128xf32>
    %344 = arith.truncf %343 : vector<8x8x128xf32> to vector<8x8x128xbf16>
    %c0_169 = arith.constant 0 : index
    %c280 = arith.constant 280 : index
    %c0_170 = arith.constant 0 : index
    %345 = vector.load %arg8[%c0_169, %c280, %c0_170] : memref<8x296x128xbf16, #tpu.memory_space<vmem>>, vector<8x8x128xbf16>
    tpu.vector_store %arg8[%c0_169, %c280, %c0_170], %344 {strides = array<i32>} : memref<8x296x128xbf16, #tpu.memory_space<vmem>>, vector<8x8x128xbf16>,
    %c0_171 = arith.constant 0 : index
    %c0_172 = arith.constant 0 : index
    %346 = vector.load %arg6[%c0_171, %c0_172] : memref<8x296xbf16, #tpu.memory_space<vmem>>, vector<8x296xbf16>
    %347 = vector.shape_cast %346 : vector<8x296xbf16> to vector<1x8x296xbf16>
    %348 = vector.broadcast %347 : vector<1x8x296xbf16> to vector<8x8x296xbf16>
    %c0_173 = arith.constant 0 : index
    %c0_174 = arith.constant 0 : index
    %c0_175 = arith.constant 0 : index
    %349 = vector.load %arg8[%c0_173, %c0_174, %c0_175] : memref<8x296x128xbf16, #tpu.memory_space<vmem>>, vector<8x296x128xbf16>
    %cst_176 = arith.constant dense<0.000000e+00> : vector<8x8x128xf32>
    %350 = tpu.matmul %348, %349, %cst_176 {dimension_numbers = #tpu.dot_dimension_numbers<[2], [1], [1], [2], [0, 0, 0, 1, 1, 2], [0], [0]>} : vector<8x8x296xbf16>, vector<8x296x128xbf16>, vector<8x8x128xf32> -> vector<8x8x128xf32>
    %cst_177 = arith.constant 0.000000e+00 : f32
    %351 = vector.broadcast %cst_177 : f32 to vector<8x8x128xf32>
    %352 = arith.maximumf %350, %351 : vector<8x8x128xf32>
    %c0_178 = arith.constant 0 : index
    %c32_179 = arith.constant 32 : index
    %c0_180 = arith.constant 0 : index
    %353 = vector.load %arg7[%c0_178, %c32_179, %c0_180] : memref<8x40x128xf32, #tpu.memory_space<vmem>>, vector<8x8x128xf32>
    tpu.vector_store %arg7[%c0_178, %c32_179, %c0_180], %352 {strides = array<i32>} : memref<8x40x128xf32, #tpu.memory_space<vmem>>, vector<8x8x128xf32>,
    return
  }
  func.func @transform_0(%arg0: i32) -> (i32, i32, i32) {
    %c0_i32 = arith.constant 0 : i32
    %c0_i32_0 = arith.constant 0 : i32
    %c0_i32_1 = arith.constant 0 : i32
    return %arg0, %c0_i32, %c0_i32_0 : i32, i32, i32
  }
  func.func @transform_1(%arg0: i32) -> (i32, i32) {
    %c0_i32 = arith.constant 0 : i32
    %c0_i32_0 = arith.constant 0 : i32
    %c0_i32_1 = arith.constant 0 : i32
    return %c0_i32, %c0_i32_0 : i32, i32
  }
  func.func @transform_2(%arg0: i32) -> (i32, i32) {
    %c0_i32 = arith.constant 0 : i32
    %c0_i32_0 = arith.constant 0 : i32
    %c0_i32_1 = arith.constant 0 : i32
    return %c0_i32, %c0_i32_0 : i32, i32
  }
  func.func @transform_3(%arg0: i32) -> (i32, i32) {
    %c0_i32 = arith.constant 0 : i32
    %c0_i32_0 = arith.constant 0 : i32
    %c0_i32_1 = arith.constant 0 : i32
    return %c0_i32, %c0_i32_0 : i32, i32
  }
  func.func @transform_4(%arg0: i32) -> (i32, i32) {
    %c0_i32 = arith.constant 0 : i32
    %c0_i32_0 = arith.constant 0 : i32
    %c0_i32_1 = arith.constant 0 : i32
    return %c0_i32, %c0_i32_0 : i32, i32
  }
  func.func @transform_5(%arg0: i32) -> (i32, i32) {
    %c0_i32 = arith.constant 0 : i32
    %c0_i32_0 = arith.constant 0 : i32
    %c0_i32_1 = arith.constant 0 : i32
    return %c0_i32, %c0_i32_0 : i32, i32
  }
  func.func @transform_6(%arg0: i32) -> (i32, i32, i32) {
    %c0_i32 = arith.constant 0 : i32
    %c0_i32_0 = arith.constant 0 : i32
    %c0_i32_1 = arith.constant 0 : i32
    return %arg0, %c0_i32, %c0_i32_0 : i32, i32, i32
  }
}

</mosaic_0001>

<llo_original>
// kernel: tpu_custom_call.1
$region0: #{tpu_custom_call.1}
  #allocation0 [shape = 'u32[]', space=smem, size = 0x4, offset = 0x4, fixed_abs, tag = 'smem constant byte address 0x4 - core index']
  #allocation1 [shape = 'u32[144,128]{1,0:T(1,128)}', space=vmem, size = 0x12000, scoped, tag = 'internal scratch']
  #allocation2 [shape = 'bf16[8,296,128]{2,1,0:T(8,128)(2,1)}', space=vmem, size = 0x94000, scoped, tag = 'scratch operand']
  %s0 = inlined_call_operand.hbm [shape: f32[16,8,128], index: 0, kind: input, shape index: {}]
  %s1 = inlined_call_operand.hbm [shape: f32[9,128], index: 1, kind: input, shape index: {}]
  %s2 = inlined_call_operand.hbm [shape: bf16[8,296], index: 2, kind: input, shape index: {}]
  %s3 = inlined_call_operand.hbm [shape: bf16[8,296], index: 3, kind: input, shape index: {}]
  %s4 = inlined_call_operand.hbm [shape: bf16[8,296], index: 4, kind: input, shape index: {}]
  %s5 = inlined_call_operand.hbm [shape: bf16[8,296], index: 5, kind: input, shape index: {}]
  %s6 = inlined_call_operand.hbm [shape: f32[16,40,128], index: 6, kind: output, shape index: {}]
  %s7 = sld [smem:[#allocation0]]
  $region81: #{tpu_custom_call.1} parent=0
    _
  %s9 = ssub.s32 1, %s7
  %s10 = scalar_select 0, %s9, %s7
  $region1: #{tpu_custom_call.1} parent=0
    #allocation3 [shape = 'u8[65536]{0}', space=vmem, size = 0x10000, scoped, tag = 'input window, operand 0']
    #allocation4 [shape = 's32[2]{0}', space=sflag, size = 0x8, scoped, tag = 'scoped memory for tpu_custom_call.1']
    #allocation5 [shape = 's32[2]{0}', space=sflag, size = 0x8, scoped, tag = 'scoped memory for tpu_custom_call.1']
    #allocation6 [shape = 'u8[8192]{0}', space=vmem, size = 0x2000, scoped, tag = 'input window, operand 1, single buffered']
    #allocation7 [shape = 's32[1]{0}', space=sflag, size = 0x4, scoped, tag = 'scoped memory for tpu_custom_call.1']
    #allocation8 [shape = 'u8[6144]{0}', space=vmem, size = 0x1800, scoped, tag = 'input window, operand 2, single buffered']
    #allocation9 [shape = 'u8[6144]{0}', space=vmem, size = 0x1800, scoped, tag = 'input window, operand 3, single buffered']
    #allocation10 [shape = 's32[1]{0}', space=sflag, size = 0x4, scoped, tag = 'scoped memory for tpu_custom_call.1']
    #allocation11 [shape = 'u8[6144]{0}', space=vmem, size = 0x1800, scoped, tag = 'input window, operand 4, single buffered']
    #allocation12 [shape = 'u8[6144]{0}', space=vmem, size = 0x1800, scoped, tag = 'input window, operand 5, single buffered']
    #allocation13 [shape = 's32[1]{0}', space=sflag, size = 0x4, scoped, tag = 'scoped memory for tpu_custom_call.1']
    #allocation14 [shape = 'u8[327680]{0}', space=vmem, size = 0x50000, scoped, tag = 'output window, operand 0']
    %11 = vsyncpa [#allocation4], 0
    %s12 = scalar_lea.sflag [#allocation4], 1
    %13 = vsyncpa %s12, 0
    %14 = vsyncpa [#allocation7], 0
    %15 = vsyncpa [#allocation10], 0
    %16 = vsyncpa [#allocation13], 0
    %17 = vsyncpa [#allocation5], 0
    %s18 = scalar_lea.sflag [#allocation5], 1
    %19 = vsyncpa %s18, 0
    loop: start=0, step=1, limit=4
    $region2: #{tpu_custom_call.1} parent=1 // loop_pre_header
      _
    $region3: #{tpu_custom_call.1} parent=1 // loop_header
      %s21 = sphi 0, %s25
      %p22 = scmp.ge.s32.totalorder %s21, 4
      %s31 = sphi 0, %s33
      %s34 = sphi 0, %s31
      %s35 = sphi 0, %s34
      %s51 = sphi 0, %s35
      %s55 = sphi 0, %s55
      %s57 = sphi 0, %s55
      %s58 = sphi 0, %s57
      %s72 = sphi 0, %s58
      %s76 = sphi 0, %s76
      %s78 = sphi 0, %s76
      %s79 = sphi 0, %s78
      %s93 = sphi 0, %s79
      %s97 = sphi 0, %s97
      %s99 = sphi 0, %s97
      %s100 = sphi 0, %s99
      %s114 = sphi 0, %s100
      %s118 = sphi 0, %s118
      %s120 = sphi 0, %s118
      %s121 = sphi 0, %s120
      %s135 = sphi 0, %s121
      %s139 = sphi 0, %s139
      %s141 = sphi 0, %s139
      %s142 = sphi 0, %s141
      %s156 = sphi 0, %s142
      %s162 = sphi 0, %s164
      %s165 = sphi 0, %s162
      %s166 = sphi 0, %s165
      %s182 = sphi 0, %s166
    $region4: #{tpu_custom_call.1} parent=1 // loop_header_branch
      %24 = sbr.rel (%p22) target = $region8
    $region5: #{tpu_custom_call.1} parent=1 // loop_body
      %s26 = ssub.s32 %s21, 1
      %s27 = ssub.s32 %s21, 2
      %s28 = sadd.s32 %s21, 1
      %s29 = ssub.s32 %s21, %s28
      %p30 = scmp.eq.s32.totalorder %s29, 0
      %s32 = sadd.s32 %s31, 1
      %s33 = scalar_select %p30, %s31, %s32
      %p36 = pneg %p30
      %p37 = scmp.eq.s32.totalorder %s21, 1
      %p38 = por %p36, %p37
      %p39 = scmp.ne.s32.totalorder %s31, %s34
      %p40 = scmp.eq.s32.totalorder %s21, 0
      %p41 = por %p39, %p40
      %p42 = scmp.ne.s32.totalorder %s31, %s34
      %p43 = scmp.eq.s32.totalorder %s26, 1
      %p44 = por %p42, %p43
      %p45 = scmp.ne.s32.totalorder %s34, %s35
      %p46 = scmp.eq.s32.totalorder %s26, 0
      %p47 = por %p45, %p46
      %p48 = scmp.ne.s32.totalorder %s34, %s35
      %p49 = scmp.eq.s32.totalorder %s27, 1
      %p50 = por %p48, %p49
      %p52 = scmp.ne.s32.totalorder %s35, %s51
      %p53 = scmp.eq.s32.totalorder %s27, 0
      %p54 = por %p52, %p53
      %s56 = sadd.s32 %s55, 1
      %p59 = scmp.eq.s32.totalorder %s21, 1
      %p60 = scmp.ne.s32.totalorder %s55, %s57
      %p61 = scmp.eq.s32.totalorder %s21, 0
      %p62 = por %p60, %p61
      %p63 = scmp.ne.s32.totalorder %s55, %s57
      %p64 = scmp.eq.s32.totalorder %s26, 1
      %p65 = por %p63, %p64
      %p66 = scmp.ne.s32.totalorder %s57, %s58
      %p67 = scmp.eq.s32.totalorder %s26, 0
      %p68 = por %p66, %p67
      %p69 = scmp.ne.s32.totalorder %s57, %s58
      %p70 = scmp.eq.s32.totalorder %s27, 1
      %p71 = por %p69, %p70
      %p73 = scmp.ne.s32.totalorder %s58, %s72
      %p74 = scmp.eq.s32.totalorder %s27, 0
      %p75 = por %p73, %p74
      %s77 = sadd.s32 %s76, 1
      %p80 = scmp.eq.s32.totalorder %s21, 1
      %p81 = scmp.ne.s32.totalorder %s76, %s78
      %p82 = scmp.eq.s32.totalorder %s21, 0
      %p83 = por %p81, %p82
      %p84 = scmp.ne.s32.totalorder %s76, %s78
      %p85 = scmp.eq.s32.totalorder %s26, 1
      %p86 = por %p84, %p85
      %p87 = scmp.ne.s32.totalorder %s78, %s79
      %p88 = scmp.eq.s32.totalorder %s26, 0
      %p89 = por %p87, %p88
      %p90 = scmp.ne.s32.totalorder %s78, %s79
      %p91 = scmp.eq.s32.totalorder %s27, 1
      %p92 = por %p90, %p91
      %p94 = scmp.ne.s32.totalorder %s79, %s93
      %p95 = scmp.eq.s32.totalorder %s27, 0
      %p96 = por %p94, %p95
      %s98 = sadd.s32 %s97, 1
      %p101 = scmp.eq.s32.totalorder %s21, 1
      %p102 = scmp.ne.s32.totalorder %s97, %s99
      %p103 = scmp.eq.s32.totalorder %s21, 0
      %p104 = por %p102, %p103
      %p105 = scmp.ne.s32.totalorder %s97, %s99
      %p106 = scmp.eq.s32.totalorder %s26, 1
      %p107 = por %p105, %p106
      %p108 = scmp.ne.s32.totalorder %s99, %s100
      %p109 = scmp.eq.s32.totalorder %s26, 0
      %p110 = por %p108, %p109
      %p111 = scmp.ne.s32.totalorder %s99, %s100
      %p112 = scmp.eq.s32.totalorder %s27, 1
      %p113 = por %p111, %p112
      %p115 = scmp.ne.s32.totalorder %s100, %s114
      %p116 = scmp.eq.s32.totalorder %s27, 0
      %p117 = por %p115, %p116
      %s119 = sadd.s32 %s118, 1
      %p122 = scmp.eq.s32.totalorder %s21, 1
      %p123 = scmp.ne.s32.totalorder %s118, %s120
      %p124 = scmp.eq.s32.totalorder %s21, 0
      %p125 = por %p123, %p124
      %p126 = scmp.ne.s32.totalorder %s118, %s120
      %p127 = scmp.eq.s32.totalorder %s26, 1
      %p128 = por %p126, %p127
      %p129 = scmp.ne.s32.totalorder %s120, %s121
      %p130 = scmp.eq.s32.totalorder %s26, 0
      %p131 = por %p129, %p130
      %p132 = scmp.ne.s32.totalorder %s120, %s121
      %p133 = scmp.eq.s32.totalorder %s27, 1
      %p134 = por %p132, %p133
      %p136 = scmp.ne.s32.totalorder %s121, %s135
      %p137 = scmp.eq.s32.totalorder %s27, 0
      %p138 = por %p136, %p137
      %s140 = sadd.s32 %s139, 1
      %p143 = scmp.eq.s32.totalorder %s21, 1
      %p144 = scmp.ne.s32.totalorder %s139, %s141
      %p145 = scmp.eq.s32.totalorder %s21, 0
      %p146 = por %p144, %p145
      %p147 = scmp.ne.s32.totalorder %s139, %s141
      %p148 = scmp.eq.s32.totalorder %s26, 1
      %p149 = por %p147, %p148
      %p150 = scmp.ne.s32.totalorder %s141, %s142
      %p151 = scmp.eq.s32.totalorder %s26, 0
      %p152 = por %p150, %p151
      %p153 = scmp.ne.s32.totalorder %s141, %s142
      %p154 = scmp.eq.s32.totalorder %s27, 1
      %p155 = por %p153, %p154
      %p157 = scmp.ne.s32.totalorder %s142, %s156
      %p158 = scmp.eq.s32.totalorder %s27, 0
      %p159 = por %p157, %p158
      %s160 = ssub.s32 %s21, %s28
      %p161 = scmp.eq.s32.totalorder %s160, 0
      %s163 = sadd.s32 %s162, 1
      %s164 = scalar_select %p161, %s162, %s163
      %p167 = pneg %p161
      %p168 = scmp.eq.s32.totalorder %s21, 1
      %p169 = por %p167, %p168
      %p170 = scmp.ne.s32.totalorder %s162, %s165
      %p171 = scmp.eq.s32.totalorder %s21, 0
      %p172 = por %p170, %p171
      %p173 = scmp.ne.s32.totalorder %s162, %s165
      %p174 = scmp.eq.s32.totalorder %s26, 1
      %p175 = por %p173, %p174
      %p176 = scmp.ne.s32.totalorder %s165, %s166
      %p177 = scmp.eq.s32.totalorder %s26, 0
      %p178 = por %p176, %p177
      %p179 = scmp.ne.s32.totalorder %s165, %s166
      %p180 = scmp.eq.s32.totalorder %s27, 1
      %p181 = por %p179, %p180
      %p183 = scmp.ne.s32.totalorder %s166, %s182
      %p184 = scmp.eq.s32.totalorder %s27, 0
      %p185 = por %p183, %p184
      %p186 = scmp.le.s32.totalorder 1, %s21
      %p187 = scmp.lt.s32.totalorder %s21, 3
      %p188 = pnand %p186, %p187
      %p189 = pneg %p188
      // Predicated region
      $region9: #{tpu_custom_call.1} parent=5 // pred_check
        _
      $region10: #{tpu_custom_call.1} parent=5 // pred_check_branch
        %191 = sbr.rel (%p188) target = $region12
      $region11: #{tpu_custom_call.1} parent=5 // pred_region
        %s192 = ssub.s32 %s21, 1
        // Predicated region
        $region13: #{tpu_custom_call.1} parent=11 // pred_check
          %p193 = pneg %p68
        $region14: #{tpu_custom_call.1} parent=11 // pred_check_branch
          %195 = sbr.rel (%p193) target = $region16
        $region15: #{tpu_custom_call.1} parent=11 // pred_region
          %s197 = ssub.s32 256, 256
          %198 = vsyncadd [#allocation7], %s197
          %s199 = sshll.u32 [#allocation6], 4
          %s200 = int_to_ptr.vmem [resolvable:$true] %s199
          %205 = dma.hbm_to_vmem [thread:$0]  %s1, 256, %s200, [#allocation7], 128, 128, 8
        $region16: #{tpu_custom_call.1} parent=11 // pred_fallthru
          _
        // Predicated region
        $region17: #{tpu_custom_call.1} parent=11 // pred_check
          %p206 = pneg %p89
        $region18: #{tpu_custom_call.1} parent=11 // pred_check_branch
          %208 = sbr.rel (%p206) target = $region20
        $region19: #{tpu_custom_call.1} parent=11 // pred_region
          %s210 = ssub.s32 192, 192
          %211 = vsyncadd [#allocation7], %s210
          %s213 = sshll.u32 [#allocation8], 4
          %s214 = int_to_ptr.vmem [resolvable:$true] %s213
          %216 = dma.hbm_to_vmem [thread:$0]  %s2, 192, %s214, [#allocation7]
        $region20: #{tpu_custom_call.1} parent=11 // pred_fallthru
          _
        // Predicated region
        $region21: #{tpu_custom_call.1} parent=11 // pred_check
          %p217 = pneg %p110
        $region22: #{tpu_custom_call.1} parent=11 // pred_check_branch
          %219 = sbr.rel (%p217) target = $region24
        $region23: #{tpu_custom_call.1} parent=11 // pred_region
          %s221 = ssub.s32 192, 192
          %222 = vsyncadd [#allocation10], %s221
          %s224 = sshll.u32 [#allocation9], 4
          %s225 = int_to_ptr.vmem [resolvable:$true] %s224
          %227 = dma.hbm_to_vmem [thread:$0]  %s3, 192, %s225, [#allocation10]
        $region24: #{tpu_custom_call.1} parent=11 // pred_fallthru
          _
        // Predicated region
        $region25: #{tpu_custom_call.1} parent=11 // pred_check
          %p228 = pneg %p131
        $region26: #{tpu_custom_call.1} parent=11 // pred_check_branch
          %230 = sbr.rel (%p228) target = $region28
        $region27: #{tpu_custom_call.1} parent=11 // pred_region
          %s232 = ssub.s32 192, 192
          %233 = vsyncadd [#allocation10], %s232
          %s235 = sshll.u32 [#allocation11], 4
          %s236 = int_to_ptr.vmem [resolvable:$true] %s235
          %238 = dma.hbm_to_vmem [thread:$0]  %s4, 192, %s236, [#allocation10]
        $region28: #{tpu_custom_call.1} parent=11 // pred_fallthru
          _
        // Predicated region
        $region29: #{tpu_custom_call.1} parent=11 // pred_check
          %p239 = pneg %p152
        $region30: #{tpu_custom_call.1} parent=11 // pred_check_branch
          %241 = sbr.rel (%p239) target = $region32
        $region31: #{tpu_custom_call.1} parent=11 // pred_region
          %s243 = ssub.s32 192, 192
          %244 = vsyncadd [#allocation13], %s243
          %s246 = sshll.u32 [#allocation12], 4
          %s247 = int_to_ptr.vmem [resolvable:$true] %s246
          %249 = dma.hbm_to_vmem [thread:$0]  %s5, 192, %s247, [#allocation13]
        $region32: #{tpu_custom_call.1} parent=11 // pred_fallthru
          _
      $region12: #{tpu_custom_call.1} parent=5 // pred_fallthru
        _
      %p250 = scmp.lt.s32.totalorder %s21, 2
      // Predicated region
      $region33: #{tpu_custom_call.1} parent=5 // pred_check
        %p251 = pneg %p250
      $region34: #{tpu_custom_call.1} parent=5 // pred_check_branch
        %253 = sbr.rel (%p251) target = $region36
      $region35: #{tpu_custom_call.1} parent=5 // pred_region
        // Predicated region
        $region37: #{tpu_custom_call.1} parent=35 // pred_check
          %p254 = pneg %p41
        $region38: #{tpu_custom_call.1} parent=35 // pred_check_branch
          %256 = sbr.rel (%p254) target = $region40
        $region39: #{tpu_custom_call.1} parent=35 // pred_region
          %s257 = sand.u32 %s31, 1
          %s258 = scalar_lea.sflag [#allocation4], %s257
          %s259 = sand.u32 %s31, 1
          %s260 = smul.addr %s259, 64
          %s261 = scalar_lea.vmem [#allocation3], %s260
          %s262 = smul.u32 8, %s21
          %s264 = ssub.s32 1024, 1024
          %265 = vsyncadd %s258, %s264
          %s266 = smul.addr %s262, 128
          %s267 = scalar_lea.hbm %s0, %s266
          %s268 = sshll.u32 %s261, 4
          %s269 = int_to_ptr.vmem [resolvable:$true] %s268
          %274 = dma.hbm_to_vmem [thread:$0]  %s267, 1024, %s269, %s258, 128, 128, 8
        $region40: #{tpu_custom_call.1} parent=35 // pred_fallthru
          _
      $region36: #{tpu_custom_call.1} parent=5 // pred_fallthru
        _
      %p275 = scmp.le.s32.totalorder 1, %s21
      %p276 = scmp.lt.s32.totalorder %s21, 3
      %p277 = pnand %p275, %p276
      %p278 = pneg %p277
      // Predicated region
      $region41: #{tpu_custom_call.1} parent=5 // pred_check
        _
      $region42: #{tpu_custom_call.1} parent=5 // pred_check_branch
        %280 = sbr.rel (%p277) target = $region44
      $region43: #{tpu_custom_call.1} parent=5 // pred_region
        %s281 = ssub.s32 %s21, 1
        %s282 = sand.u32 %s34, 1
        %s283 = scalar_lea.sflag [#allocation4], %s282
        %s284 = sand.u32 %s34, 1
        %s285 = smul.addr %s284, 64
        %s286 = scalar_lea.vmem [#allocation3], %s285
        // Predicated region
        $region45: #{tpu_custom_call.1} parent=43 // pred_check
          %p287 = pneg %p47
        $region46: #{tpu_custom_call.1} parent=43 // pred_check_branch
          %289 = sbr.rel (%p287) target = $region48
        $region47: #{tpu_custom_call.1} parent=43 // pred_region
          %290 = dma.done %s283, 1024
        $region48: #{tpu_custom_call.1} parent=43 // pred_fallthru
          _
        // Predicated region
        $region49: #{tpu_custom_call.1} parent=43 // pred_check
          %p291 = pneg %p68
        $region50: #{tpu_custom_call.1} parent=43 // pred_check_branch
          %293 = sbr.rel (%p291) target = $region52
        $region51: #{tpu_custom_call.1} parent=43 // pred_region
          %294 = dma.done [#allocation7], 256
        $region52: #{tpu_custom_call.1} parent=43 // pred_fallthru
          _
        // Predicated region
        $region53: #{tpu_custom_call.1} parent=43 // pred_check
          %p295 = pneg %p89
        $region54: #{tpu_custom_call.1} parent=43 // pred_check_branch
          %297 = sbr.rel (%p295) target = $region56
        $region55: #{tpu_custom_call.1} parent=43 // pred_region
          %298 = dma.done [#allocation7], 192
        $region56: #{tpu_custom_call.1} parent=43 // pred_fallthru
          _
        // Predicated region
        $region57: #{tpu_custom_call.1} parent=43 // pred_check
          %p299 = pneg %p110
        $region58: #{tpu_custom_call.1} parent=43 // pred_check_branch
          %301 = sbr.rel (%p299) target = $region60
        $region59: #{tpu_custom_call.1} parent=43 // pred_region
          %302 = dma.done [#allocation10], 192
        $region60: #{tpu_custom_call.1} parent=43 // pred_fallthru
          _
        // Predicated region
        $region61: #{tpu_custom_call.1} parent=43 // pred_check
          %p303 = pneg %p131
        $region62: #{tpu_custom_call.1} parent=43 // pred_check_branch
          %305 = sbr.rel (%p303) target = $region64
        $region63: #{tpu_custom_call.1} parent=43 // pred_region
          %306 = dma.done [#allocation10], 192
        $region64: #{tpu_custom_call.1} parent=43 // pred_fallthru
          _
        // Predicated region
        $region65: #{tpu_custom_call.1} parent=43 // pred_check
          %p307 = pneg %p152
        $region66: #{tpu_custom_call.1} parent=43 // pred_check_branch
          %309 = sbr.rel (%p307) target = $region68
        $region67: #{tpu_custom_call.1} parent=43 // pred_region
          %310 = dma.done [#allocation13], 192
        $region68: #{tpu_custom_call.1} parent=43 // pred_fallthru
          _
        %s311 = sand.u32 %s34, 1
        %s312 = scalar_lea.sflag [#allocation4], %s311
        %s313 = sand.u32 %s34, 1
        %s314 = smul.addr %s313, 64
        %s315 = scalar_lea.vmem [#allocation3], %s314
        %p316 = pneg %p47
        %p317 = pneg %p44
        %p318 = pneg %p68
        %p319 = pneg %p65
        %p320 = pneg %p89
        %p321 = pneg %p86
        %p322 = pneg %p110
        %p323 = pneg %p107
        %p324 = pneg %p131
        %p325 = pneg %p128
        %p326 = pneg %p152
        %p327 = pneg %p149
        %p328 = pneg %p178
        %p329 = pneg %p175
        %s330 = sand.u32 %s165, 1
        %s331 = scalar_lea.sflag [#allocation5], %s330
        %s332 = sand.u32 %s165, 1
        %s333 = smul.addr %s332, 320
        %s334 = scalar_lea.vmem [#allocation14], %s333
        %s335 = smul.u32 8, %s26
        %s336 = smul.u32 8, %s26
        %v338 = vld [vmem:[#allocation6] sm:$0xff]
        %v339 = vld [vmem:[#allocation6 + $0x8] sm:$0x1]
        %v340 = vld [vmem:[%s286] sm:$0xff]
        %v341 = vld [vmem:[%s286 + $0x8] sm:$0xff]
        %v342 = vld [vmem:[%s286 + $0x10] sm:$0xff]
        %v343 = vld [vmem:[%s286 + $0x18] sm:$0xff]
        %v344 = vld [vmem:[%s286 + $0x20] sm:$0xff]
        %v345 = vld [vmem:[%s286 + $0x28] sm:$0xff]
        %v346 = vld [vmem:[%s286 + $0x30] sm:$0xff]
        %v347 = vld [vmem:[%s286 + $0x38] sm:$0xff]
        %348 = vst [vmem:[%s334] sm:$0xff] %v340
        %349 = vst [vmem:[%s334 + $0x28] sm:$0xff] %v341
        %350 = vst [vmem:[%s334 + $0x50] sm:$0xff] %v342
        %351 = vst [vmem:[%s334 + $0x78] sm:$0xff] %v343
        %352 = vst [vmem:[%s334 + $0xa0] sm:$0xff] %v344
        %353 = vst [vmem:[%s334 + $0xc8] sm:$0xff] %v345
        %354 = vst [vmem:[%s334 + $0xf0] sm:$0xff] %v346
        %355 = vst [vmem:[%s334 + $0x118] sm:$0xff] %v347
        %356 = vst [vmem:[#allocation2] sm:$0xf] 0
        %357 = vst [vmem:[#allocation2 + $0x4] sm:$0xf] 0
        %358 = vst [vmem:[#allocation2 + $0x8] sm:$0xf] 0
        %359 = vst [vmem:[#allocation2 + $0xc] sm:$0xf] 0
        %360 = vst [vmem:[#allocation2 + $0x10] sm:$0xf] 0
        %361 = vst [vmem:[#allocation2 + $0x14] sm:$0xf] 0
        %362 = vst [vmem:[#allocation2 + $0x18] sm:$0xf] 0
        %363 = vst [vmem:[#allocation2 + $0x1c] sm:$0xf] 0
        %364 = vst [vmem:[#allocation2 + $0x20] sm:$0xf] 0
        %365 = vst [vmem:[#allocation2 + $0x24] sm:$0xf] 0
        %366 = vst [vmem:[#allocation2 + $0x28] sm:$0xf] 0
        %367 = vst [vmem:[#allocation2 + $0x2c] sm:$0xf] 0
        %368 = vst [vmem:[#allocation2 + $0x30] sm:$0xf] 0
        %369 = vst [vmem:[#allocation2 + $0x34] sm:$0xf] 0
        %370 = vst [vmem:[#allocation2 + $0x38] sm:$0xf] 0
        %371 = vst [vmem:[#allocation2 + $0x3c] sm:$0xf] 0
        %372 = vst [vmem:[#allocation2 + $0x40] sm:$0xf] 0
        %373 = vst [vmem:[#allocation2 + $0x44] sm:$0xf] 0
        %374 = vst [vmem:[#allocation2 + $0x48] sm:$0xf] 0
        %375 = vst [vmem:[#allocation2 + $0x4c] sm:$0xf] 0
        %376 = vst [vmem:[#allocation2 + $0x50] sm:$0xf] 0
        %377 = vst [vmem:[#allocation2 + $0x54] sm:$0xf] 0
        %378 = vst [vmem:[#allocation2 + $0x58] sm:$0xf] 0
        %379 = vst [vmem:[#allocation2 + $0x5c] sm:$0xf] 0
        %380 = vst [vmem:[#allocation2 + $0x60] sm:$0xf] 0
        %381 = vst [vmem:[#allocation2 + $0x64] sm:$0xf] 0
        %382 = vst [vmem:[#allocation2 + $0x68] sm:$0xf] 0
        %383 = vst [vmem:[#allocation2 + $0x6c] sm:$0xf] 0
        %384 = vst [vmem:[#allocation2 + $0x70] sm:$0xf] 0
        %385 = vst [vmem:[#allocation2 + $0x74] sm:$0xf] 0
        %386 = vst [vmem:[#allocation2 + $0x78] sm:$0xf] 0
        %387 = vst [vmem:[#allocation2 + $0x7c] sm:$0xf] 0
        %388 = vst [vmem:[#allocation2 + $0x80] sm:$0xf] 0
        %389 = vst [vmem:[#allocation2 + $0x84] sm:$0xf] 0
        %390 = vst [vmem:[#allocation2 + $0x88] sm:$0xf] 0
        %391 = vst [vmem:[#allocation2 + $0x8c] sm:$0xf] 0
        %392 = vst [vmem:[#allocation2 + $0x90] sm:$0xf] 0
        %393 = vst [vmem:[#allocation2 + $0x94] sm:$0xf] 0
        %394 = vst [vmem:[#allocation2 + $0x98] sm:$0xf] 0
        %395 = vst [vmem:[#allocation2 + $0x9c] sm:$0xf] 0
        %396 = vst [vmem:[#allocation2 + $0xa0] sm:$0xf] 0
        %397 = vst [vmem:[#allocation2 + $0xa4] sm:$0xf] 0
        %398 = vst [vmem:[#allocation2 + $0xa8] sm:$0xf] 0
        %399 = vst [vmem:[#allocation2 + $0xac] sm:$0xf] 0
        %400 = vst [vmem:[#allocation2 + $0xb0] sm:$0xf] 0
        %401 = vst [vmem:[#allocation2 + $0xb4] sm:$0xf] 0
        %402 = vst [vmem:[#allocation2 + $0xb8] sm:$0xf] 0
        %403 = vst [vmem:[#allocation2 + $0xbc] sm:$0xf] 0
        %404 = vst [vmem:[#allocation2 + $0xc0] sm:$0xf] 0
        %405 = vst [vmem:[#allocation2 + $0xc4] sm:$0xf] 0
        %406 = vst [vmem:[#allocation2 + $0xc8] sm:$0xf] 0
        %407 = vst [vmem:[#allocation2 + $0xcc] sm:$0xf] 0
        %408 = vst [vmem:[#allocation2 + $0xd0] sm:$0xf] 0
        %409 = vst [vmem:[#allocation2 + $0xd4] sm:$0xf] 0
        %410 = vst [vmem:[#allocation2 + $0xd8] sm:$0xf] 0
        %411 = vst [vmem:[#allocation2 + $0xdc] sm:$0xf] 0
        %412 = vst [vmem:[#allocation2 + $0xe0] sm:$0xf] 0
        %413 = vst [vmem:[#allocation2 + $0xe4] sm:$0xf] 0
        %414 = vst [vmem:[#allocation2 + $0xe8] sm:$0xf] 0
        %415 = vst [vmem:[#allocation2 + $0xec] sm:$0xf] 0
        %416 = vst [vmem:[#allocation2 + $0xf0] sm:$0xf] 0
        %417 = vst [vmem:[#allocation2 + $0xf4] sm:$0xf] 0
        %418 = vst [vmem:[#allocation2 + $0xf8] sm:$0xf] 0
        %419 = vst [vmem:[#allocation2 + $0xfc] sm:$0xf] 0
        %420 = vst [vmem:[#allocation2 + $0x100] sm:$0xf] 0
        %421 = vst [vmem:[#allocation2 + $0x104] sm:$0xf] 0
        %422 = vst [vmem:[#allocation2 + $0x108] sm:$0xf] 0
        %423 = vst [vmem:[#allocation2 + $0x10c] sm:$0xf] 0
        %424 = vst [vmem:[#allocation2 + $0x110] sm:$0xf] 0
        %425 = vst [vmem:[#allocation2 + $0x114] sm:$0xf] 0
        %426 = vst [vmem:[#allocation2 + $0x118] sm:$0xf] 0
        %427 = vst [vmem:[#allocation2 + $0x11c] sm:$0xf] 0
        %428 = vst [vmem:[#allocation2 + $0x120] sm:$0xf] 0
        %429 = vst [vmem:[#allocation2 + $0x124] sm:$0xf] 0
        %430 = vst [vmem:[#allocation2 + $0x128] sm:$0xf] 0
        %431 = vst [vmem:[#allocation2 + $0x12c] sm:$0xf] 0
        %432 = vst [vmem:[#allocation2 + $0x130] sm:$0xf] 0
        %433 = vst [vmem:[#allocation2 + $0x134] sm:$0xf] 0
        %434 = vst [vmem:[#allocation2 + $0x138] sm:$0xf] 0
        %435 = vst [vmem:[#allocation2 + $0x13c] sm:$0xf] 0
        %436 = vst [vmem:[#allocation2 + $0x140] sm:$0xf] 0
        %437 = vst [vmem:[#allocation2 + $0x144] sm:$0xf] 0
        %438 = vst [vmem:[#allocation2 + $0x148] sm:$0xf] 0
        %439 = vst [vmem:[#allocation2 + $0x14c] sm:$0xf] 0
        %440 = vst [vmem:[#allocation2 + $0x150] sm:$0xf] 0
        %441 = vst [vmem:[#allocation2 + $0x154] sm:$0xf] 0
        %442 = vst [vmem:[#allocation2 + $0x158] sm:$0xf] 0
        %443 = vst [vmem:[#allocation2 + $0x15c] sm:$0xf] 0
        %444 = vst [vmem:[#allocation2 + $0x160] sm:$0xf] 0
        %445 = vst [vmem:[#allocation2 + $0x164] sm:$0xf] 0
        %446 = vst [vmem:[#allocation2 + $0x168] sm:$0xf] 0
        %447 = vst [vmem:[#allocation2 + $0x16c] sm:$0xf] 0
        %448 = vst [vmem:[#allocation2 + $0x170] sm:$0xf] 0
        %449 = vst [vmem:[#allocation2 + $0x174] sm:$0xf] 0
        %450 = vst [vmem:[#allocation2 + $0x178] sm:$0xf] 0
        %451 = vst [vmem:[#allocation2 + $0x17c] sm:$0xf] 0
        %452 = vst [vmem:[#allocation2 + $0x180] sm:$0xf] 0
        %453 = vst [vmem:[#allocation2 + $0x184] sm:$0xf] 0
        %454 = vst [vmem:[#allocation2 + $0x188] sm:$0xf] 0
        %455 = vst [vmem:[#allocation2 + $0x18c] sm:$0xf] 0
        %456 = vst [vmem:[#allocation2 + $0x190] sm:$0xf] 0
        %457 = vst [vmem:[#allocation2 + $0x194] sm:$0xf] 0
        %458 = vst [vmem:[#allocation2 + $0x198] sm:$0xf] 0
        %459 = vst [vmem:[#allocation2 + $0x19c] sm:$0xf] 0
        %460 = vst [vmem:[#allocation2 + $0x1a0] sm:$0xf] 0
        %461 = vst [vmem:[#allocation2 + $0x1a4] sm:$0xf] 0
        %462 = vst [vmem:[#allocation2 + $0x1a8] sm:$0xf] 0
        %463 = vst [vmem:[#allocation2 + $0x1ac] sm:$0xf] 0
        %464 = vst [vmem:[#allocation2 + $0x1b0] sm:$0xf] 0
        %465 = vst [vmem:[#allocation2 + $0x1b4] sm:$0xf] 0
        %466 = vst [vmem:[#allocation2 + $0x1b8] sm:$0xf] 0
        %467 = vst [vmem:[#allocation2 + $0x1bc] sm:$0xf] 0
        %468 = vst [vmem:[#allocation2 + $0x1c0] sm:$0xf] 0
        %469 = vst [vmem:[#allocation2 + $0x1c4] sm:$0xf] 0
        %470 = vst [vmem:[#allocation2 + $0x1c8] sm:$0xf] 0
        %471 = vst [vmem:[#allocation2 + $0x1cc] sm:$0xf] 0
        %472 = vst [vmem:[#allocation2 + $0x1d0] sm:$0xf] 0
        %473 = vst [vmem:[#allocation2 + $0x1d4] sm:$0xf] 0
        %474 = vst [vmem:[#allocation2 + $0x1d8] sm:$0xf] 0
        %475 = vst [vmem:[#allocation2 + $0x1dc] sm:$0xf] 0
        %476 = vst [vmem:[#allocation2 + $0x1e0] sm:$0xf] 0
        %477 = vst [vmem:[#allocation2 + $0x1e4] sm:$0xf] 0
        %478 = vst [vmem:[#allocation2 + $0x1e8] sm:$0xf] 0
        %479 = vst [vmem:[#allocation2 + $0x1ec] sm:$0xf] 0
        %480 = vst [vmem:[#allocation2 + $0x1f0] sm:$0xf] 0
        %481 = vst [vmem:[#allocation2 + $0x1f4] sm:$0xf] 0
        %482 = vst [vmem:[#allocation2 + $0x1f8] sm:$0xf] 0
        %483 = vst [vmem:[#allocation2 + $0x1fc] sm:$0xf] 0
        %484 = vst [vmem:[#allocation2 + $0x200] sm:$0xf] 0
        %485 = vst [vmem:[#allocation2 + $0x204] sm:$0xf] 0
        %486 = vst [vmem:[#allocation2 + $0x208] sm:$0xf] 0
        %487 = vst [vmem:[#allocation2 + $0x20c] sm:$0xf] 0
        %488 = vst [vmem:[#allocation2 + $0x210] sm:$0xf] 0
        %489 = vst [vmem:[#allocation2 + $0x214] sm:$0xf] 0
        %490 = vst [vmem:[#allocation2 + $0x218] sm:$0xf] 0
        %491 = vst [vmem:[#allocation2 + $0x21c] sm:$0xf] 0
        %492 = vst [vmem:[#allocation2 + $0x220] sm:$0xf] 0
        %493 = vst [vmem:[#allocation2 + $0x224] sm:$0xf] 0
        %494 = vst [vmem:[#allocation2 + $0x228] sm:$0xf] 0
        %495 = vst [vmem:[#allocation2 + $0x22c] sm:$0xf] 0
        %496 = vst [vmem:[#allocation2 + $0x230] sm:$0xf] 0
        %497 = vst [vmem:[#allocation2 + $0x234] sm:$0xf] 0
        %498 = vst [vmem:[#allocation2 + $0x238] sm:$0xf] 0
        %499 = vst [vmem:[#allocation2 + $0x23c] sm:$0xf] 0
        %500 = vst [vmem:[#allocation2 + $0x240] sm:$0xf] 0
        %501 = vst [vmem:[#allocation2 + $0x244] sm:$0xf] 0
        %502 = vst [vmem:[#allocation2 + $0x248] sm:$0xf] 0
        %503 = vst [vmem:[#allocation2 + $0x24c] sm:$0xf] 0
        %504 = vst [vmem:[#allocation2 + $0x250] sm:$0xf] 0
        %505 = vst [vmem:[#allocation2 + $0x254] sm:$0xf] 0
        %506 = vst [vmem:[#allocation2 + $0x258] sm:$0xf] 0
        %507 = vst [vmem:[#allocation2 + $0x25c] sm:$0xf] 0
        %508 = vst [vmem:[#allocation2 + $0x260] sm:$0xf] 0
        %509 = vst [vmem:[#allocation2 + $0x264] sm:$0xf] 0
        %510 = vst [vmem:[#allocation2 + $0x268] sm:$0xf] 0
        %511 = vst [vmem:[#allocation2 + $0x26c] sm:$0xf] 0
        %512 = vst [vmem:[#allocation2 + $0x270] sm:$0xf] 0
        %513 = vst [vmem:[#allocation2 + $0x274] sm:$0xf] 0
        %514 = vst [vmem:[#allocation2 + $0x278] sm:$0xf] 0
        %515 = vst [vmem:[#allocation2 + $0x27c] sm:$0xf] 0
        %516 = vst [vmem:[#allocation2 + $0x280] sm:$0xf] 0
        %517 = vst [vmem:[#allocation2 + $0x284] sm:$0xf] 0
        %518 = vst [vmem:[#allocation2 + $0x288] sm:$0xf] 0
        %519 = vst [vmem:[#allocation2 + $0x28c] sm:$0xf] 0
        %520 = vst [vmem:[#allocation2 + $0x290] sm:$0xf] 0
        %521 = vst [vmem:[#allocation2 + $0x294] sm:$0xf] 0
        %522 = vst [vmem:[#allocation2 + $0x298] sm:$0xf] 0
        %523 = vst [vmem:[#allocation2 + $0x29c] sm:$0xf] 0
        %524 = vst [vmem:[#allocation2 + $0x2a0] sm:$0xf] 0
        %525 = vst [vmem:[#allocation2 + $0x2a4] sm:$0xf] 0
        %526 = vst [vmem:[#allocation2 + $0x2a8] sm:$0xf] 0
        %527 = vst [vmem:[#allocation2 + $0x2ac] sm:$0xf] 0
        %528 = vst [vmem:[#allocation2 + $0x2b0] sm:$0xf] 0
        %529 = vst [vmem:[#allocation2 + $0x2b4] sm:$0xf] 0
        %530 = vst [vmem:[#allocation2 + $0x2b8] sm:$0xf] 0
        %531 = vst [vmem:[#allocation2 + $0x2bc] sm:$0xf] 0
        %532 = vst [vmem:[#allocation2 + $0x2c0] sm:$0xf] 0
        %533 = vst [vmem:[#allocation2 + $0x2c4] sm:$0xf] 0
        %534 = vst [vmem:[#allocation2 + $0x2c8] sm:$0xf] 0
        %535 = vst [vmem:[#allocation2 + $0x2cc] sm:$0xf] 0
        %536 = vst [vmem:[#allocation2 + $0x2d0] sm:$0xf] 0
        %537 = vst [vmem:[#allocation2 + $0x2d4] sm:$0xf] 0
        %538 = vst [vmem:[#allocation2 + $0x2d8] sm:$0xf] 0
        %539 = vst [vmem:[#allocation2 + $0x2dc] sm:$0xf] 0
        %540 = vst [vmem:[#allocation2 + $0x2e0] sm:$0xf] 0
        %541 = vst [vmem:[#allocation2 + $0x2e4] sm:$0xf] 0
        %542 = vst [vmem:[#allocation2 + $0x2e8] sm:$0xf] 0
        %543 = vst [vmem:[#allocation2 + $0x2ec] sm:$0xf] 0
        %544 = vst [vmem:[#allocation2 + $0x2f0] sm:$0xf] 0
        %545 = vst [vmem:[#allocation2 + $0x2f4] sm:$0xf] 0
        %546 = vst [vmem:[#allocation2 + $0x2f8] sm:$0xf] 0
        %547 = vst [vmem:[#allocation2 + $0x2fc] sm:$0xf] 0
        %548 = vst [vmem:[#allocation2 + $0x300] sm:$0xf] 0
        %549 = vst [vmem:[#allocation2 + $0x304] sm:$0xf] 0
        %550 = vst [vmem:[#allocation2 + $0x308] sm:$0xf] 0
        %551 = vst [vmem:[#allocation2 + $0x30c] sm:$0xf] 0
        %552 = vst [vmem:[#allocation2 + $0x310] sm:$0xf] 0
        %553 = vst [vmem:[#allocation2 + $0x314] sm:$0xf] 0
        %554 = vst [vmem:[#allocation2 + $0x318] sm:$0xf] 0
        %555 = vst [vmem:[#allocation2 + $0x31c] sm:$0xf] 0
        %556 = vst [vmem:[#allocation2 + $0x320] sm:$0xf] 0
        %557 = vst [vmem:[#allocation2 + $0x324] sm:$0xf] 0
        %558 = vst [vmem:[#allocation2 + $0x328] sm:$0xf] 0
        %559 = vst [vmem:[#allocation2 + $0x32c] sm:$0xf] 0
        %560 = vst [vmem:[#allocation2 + $0x330] sm:$0xf] 0
        %561 = vst [vmem:[#allocation2 + $0x334] sm:$0xf] 0
        %562 = vst [vmem:[#allocation2 + $0x338] sm:$0xf] 0
        %563 = vst [vmem:[#allocation2 + $0x33c] sm:$0xf] 0
        %564 = vst [vmem:[#allocation2 + $0x340] sm:$0xf] 0
        %565 = vst [vmem:[#allocation2 + $0x344] sm:$0xf] 0
        %566 = vst [vmem:[#allocation2 + $0x348] sm:$0xf] 0
        %567 = vst [vmem:[#allocation2 + $0x34c] sm:$0xf] 0
        %568 = vst [vmem:[#allocation2 + $0x350] sm:$0xf] 0
        %569 = vst [vmem:[#allocation2 + $0x354] sm:$0xf] 0
        %570 = vst [vmem:[#allocation2 + $0x358] sm:$0xf] 0
        %571 = vst [vmem:[#allocation2 + $0x35c] sm:$0xf] 0
        %572 = vst [vmem:[#allocation2 + $0x360] sm:$0xf] 0
        %573 = vst [vmem:[#allocation2 + $0x364] sm:$0xf] 0
        %574 = vst [vmem:[#allocation2 + $0x368] sm:$0xf] 0
        %575 = vst [vmem:[#allocation2 + $0x36c] sm:$0xf] 0
        %576 = vst [vmem:[#allocation2 + $0x370] sm:$0xf] 0
        %577 = vst [vmem:[#allocation2 + $0x374] sm:$0xf] 0
        %578 = vst [vmem:[#allocation2 + $0x378] sm:$0xf] 0
        %579 = vst [vmem:[#allocation2 + $0x37c] sm:$0xf] 0
        %580 = vst [vmem:[#allocation2 + $0x380] sm:$0xf] 0
        %581 = vst [vmem:[#allocation2 + $0x384] sm:$0xf] 0
        %582 = vst [vmem:[#allocation2 + $0x388] sm:$0xf] 0
        %583 = vst [vmem:[#allocation2 + $0x38c] sm:$0xf] 0
        %584 = vst [vmem:[#allocation2 + $0x390] sm:$0xf] 0
        %585 = vst [vmem:[#allocation2 + $0x394] sm:$0xf] 0
        %586 = vst [vmem:[#allocation2 + $0x398] sm:$0xf] 0
        %587 = vst [vmem:[#allocation2 + $0x39c] sm:$0xf] 0
        %588 = vst [vmem:[#allocation2 + $0x3a0] sm:$0xf] 0
        %589 = vst [vmem:[#allocation2 + $0x3a4] sm:$0xf] 0
        %590 = vst [vmem:[#allocation2 + $0x3a8] sm:$0xf] 0
        %591 = vst [vmem:[#allocation2 + $0x3ac] sm:$0xf] 0
        %592 = vst [vmem:[#allocation2 + $0x3b0] sm:$0xf] 0
        %593 = vst [vmem:[#allocation2 + $0x3b4] sm:$0xf] 0
        %594 = vst [vmem:[#allocation2 + $0x3b8] sm:$0xf] 0
        %595 = vst [vmem:[#allocation2 + $0x3bc] sm:$0xf] 0
        %596 = vst [vmem:[#allocation2 + $0x3c0] sm:$0xf] 0
        %597 = vst [vmem:[#allocation2 + $0x3c4] sm:$0xf] 0
        %598 = vst [vmem:[#allocation2 + $0x3c8] sm:$0xf] 0
        %599 = vst [vmem:[#allocation2 + $0x3cc] sm:$0xf] 0
        %600 = vst [vmem:[#allocation2 + $0x3d0] sm:$0xf] 0
        %601 = vst [vmem:[#allocation2 + $0x3d4] sm:$0xf] 0
        %602 = vst [vmem:[#allocation2 + $0x3d8] sm:$0xf] 0
        %603 = vst [vmem:[#allocation2 + $0x3dc] sm:$0xf] 0
        %604 = vst [vmem:[#allocation2 + $0x3e0] sm:$0xf] 0
        %605 = vst [vmem:[#allocation2 + $0x3e4] sm:$0xf] 0
        %606 = vst [vmem:[#allocation2 + $0x3e8] sm:$0xf] 0
        %607 = vst [vmem:[#allocation2 + $0x3ec] sm:$0xf] 0
        %608 = vst [vmem:[#allocation2 + $0x3f0] sm:$0xf] 0
        %609 = vst [vmem:[#allocation2 + $0x3f4] sm:$0xf] 0
        %610 = vst [vmem:[#allocation2 + $0x3f8] sm:$0xf] 0
        %611 = vst [vmem:[#allocation2 + $0x3fc] sm:$0xf] 0
        %612 = vst [vmem:[#allocation2 + $0x400] sm:$0xf] 0
        %613 = vst [vmem:[#allocation2 + $0x404] sm:$0xf] 0
        %614 = vst [vmem:[#allocation2 + $0x408] sm:$0xf] 0
        %615 = vst [vmem:[#allocation2 + $0x40c] sm:$0xf] 0
        %616 = vst [vmem:[#allocation2 + $0x410] sm:$0xf] 0
        %617 = vst [vmem:[#allocation2 + $0x414] sm:$0xf] 0
        %618 = vst [vmem:[#allocation2 + $0x418] sm:$0xf] 0
        %619 = vst [vmem:[#allocation2 + $0x41c] sm:$0xf] 0
        %620 = vst [vmem:[#allocation2 + $0x420] sm:$0xf] 0
        %621 = vst [vmem:[#allocation2 + $0x424] sm:$0xf] 0
        %622 = vst [vmem:[#allocation2 + $0x428] sm:$0xf] 0
        %623 = vst [vmem:[#allocation2 + $0x42c] sm:$0xf] 0
        %624 = vst [vmem:[#allocation2 + $0x430] sm:$0xf] 0
        %625 = vst [vmem:[#allocation2 + $0x434] sm:$0xf] 0
        %626 = vst [vmem:[#allocation2 + $0x438] sm:$0xf] 0
        %627 = vst [vmem:[#allocation2 + $0x43c] sm:$0xf] 0
        %628 = vst [vmem:[#allocation2 + $0x440] sm:$0xf] 0
        %629 = vst [vmem:[#allocation2 + $0x444] sm:$0xf] 0
        %630 = vst [vmem:[#allocation2 + $0x448] sm:$0xf] 0
        %631 = vst [vmem:[#allocation2 + $0x44c] sm:$0xf] 0
        %632 = vst [vmem:[#allocation2 + $0x450] sm:$0xf] 0
        %633 = vst [vmem:[#allocation2 + $0x454] sm:$0xf] 0
        %634 = vst [vmem:[#allocation2 + $0x458] sm:$0xf] 0
        %635 = vst [vmem:[#allocation2 + $0x45c] sm:$0xf] 0
        %636 = vst [vmem:[#allocation2 + $0x460] sm:$0xf] 0
        %637 = vst [vmem:[#allocation2 + $0x464] sm:$0xf] 0
        %638 = vst [vmem:[#allocation2 + $0x468] sm:$0xf] 0
        %639 = vst [vmem:[#allocation2 + $0x46c] sm:$0xf] 0
        %640 = vst [vmem:[#allocation2 + $0x470] sm:$0xf] 0
        %641 = vst [vmem:[#allocation2 + $0x474] sm:$0xf] 0
        %642 = vst [vmem:[#allocation2 + $0x478] sm:$0xf] 0
        %643 = vst [vmem:[#allocation2 + $0x47c] sm:$0xf] 0
        %644 = vst [vmem:[#allocation2 + $0x480] sm:$0xf] 0
        %645 = vst [vmem:[#allocation2 + $0x484] sm:$0xf] 0
        %646 = vst [vmem:[#allocation2 + $0x488] sm:$0xf] 0
        %647 = vst [vmem:[#allocation2 + $0x48c] sm:$0xf] 0
        %648 = vst [vmem:[#allocation2 + $0x490] sm:$0xf] 0
        %649 = vst [vmem:[#allocation2 + $0x494] sm:$0xf] 0
        %650 = vst [vmem:[#allocation2 + $0x498] sm:$0xf] 0
        %651 = vst [vmem:[#allocation2 + $0x49c] sm:$0xf] 0
        %v652 = vpack.c.bf16 %v338, %v338
        %v654 = vunpack.c.l.b16 %v652
        %v655 = vpack.c.b16 %v654, %v654
        %v656 = vrot.slane %v655, 6
        %v657 = vrot.slane %v656, 4
        %vm659 = vcmask 1040384
        %vm660 = vsmask.f32 256
        %vm661 = vmand %vm659, %vm660
        %v662 = vld [vmem:[#allocation2 + $0x90] sm:$0x1]
        %v663 = vsel %vm661, %v657, %v662
        %664 = vst [vmem:[#allocation2 + $0x90] sm:$0x1] %v663
        %v665 = vld [vmem:[#allocation2 + $0x124] sm:$0x1]
        %v666 = vsel %vm661, %v657, %v665
        %667 = vst [vmem:[#allocation2 + $0x124] sm:$0x1] %v666
        %v668 = vld [vmem:[#allocation2 + $0x1b8] sm:$0x1]
        %v669 = vsel %vm661, %v657, %v668
        %670 = vst [vmem:[#allocation2 + $0x1b8] sm:$0x1] %v669
        %v671 = vld [vmem:[#allocation2 + $0x24c] sm:$0x1]
        %v672 = vsel %vm661, %v657, %v671
        %673 = vst [vmem:[#allocation2 + $0x24c] sm:$0x1] %v672
        %v674 = vld [vmem:[#allocation2 + $0x2e0] sm:$0x1]
        %v675 = vsel %vm661, %v657, %v674
        %676 = vst [vmem:[#allocation2 + $0x2e0] sm:$0x1] %v675
        %v677 = vld [vmem:[#allocation2 + $0x374] sm:$0x1]
        %v678 = vsel %vm661, %v657, %v677
        %679 = vst [vmem:[#allocation2 + $0x374] sm:$0x1] %v678
        %v680 = vld [vmem:[#allocation2 + $0x408] sm:$0x1]
        %v681 = vsel %vm661, %v657, %v680
        %682 = vst [vmem:[#allocation2 + $0x408] sm:$0x1] %v681
        %v683 = vld [vmem:[#allocation2 + $0x49c] sm:$0x1]
        %v684 = vsel %vm661, %v657, %v683
        %685 = vst [vmem:[#allocation2 + $0x49c] sm:$0x1] %v684
        %v686 = vld [vmem:[%s334] sm:$0xff]
        %v687 = vld [vmem:[%s334 + $0x28] sm:$0xff]
        %v688 = vld [vmem:[%s334 + $0x50] sm:$0xff]
        %v689 = vld [vmem:[%s334 + $0x78] sm:$0xff]
        %v690 = vld [vmem:[%s334 + $0xa0] sm:$0xff]
        %v691 = vld [vmem:[%s334 + $0xc8] sm:$0xff]
        %v692 = vld [vmem:[%s334 + $0xf0] sm:$0xff]
        %v693 = vld [vmem:[%s334 + $0x118] sm:$0xff]
        %694 = vadd.xlane.f32.xlu0 %v686
        %v695 = vpop.xlane.xlu0 %694
        %696 = vadd.xlane.f32.xlu0 %v687
        %v697 = vpop.xlane.xlu0 %696
        %698 = vadd.xlane.f32.xlu0 %v688
        %v699 = vpop.xlane.xlu0 %698
        %700 = vadd.xlane.f32.xlu0 %v689
        %v701 = vpop.xlane.xlu0 %700
        %702 = vadd.xlane.f32.xlu0 %v690
        %v703 = vpop.xlane.xlu0 %702
        %704 = vadd.xlane.f32.xlu0 %v691
        %v705 = vpop.xlane.xlu0 %704
        %706 = vadd.xlane.f32.xlu0 %v692
        %v707 = vpop.xlane.xlu0 %706
        %708 = vadd.xlane.f32.xlu0 %v693
        %v709 = vpop.xlane.xlu0 %708
        %v710 = vmul.f32 %v695, 0.009090909
        %v711 = vmul.f32 %v697, 0.009090909
        %v712 = vmul.f32 %v699, 0.009090909
        %v713 = vmul.f32 %v701, 0.009090909
        %v714 = vmul.f32 %v703, 0.009090909
        %v715 = vmul.f32 %v705, 0.009090909
        %v716 = vmul.f32 %v707, 0.009090909
        %v717 = vmul.f32 %v709, 0.009090909
        %v718 = vsub.f32 %v686, %v710
        %v719 = vsub.f32 %v687, %v711
        %v720 = vsub.f32 %v688, %v712
        %v721 = vsub.f32 %v689, %v713
        %v722 = vsub.f32 %v690, %v714
        %v723 = vsub.f32 %v691, %v715
        %v724 = vsub.f32 %v692, %v716
        %v725 = vsub.f32 %v693, %v717
        %v726 = vlaneseq
        %v727 = vshrl.u32 %v726, 7
        %v728 = vsub.s32 4, %v727
        %v729 = vrot.slane %v338, %v728
        %v730 = vmul.f32 %v718, %v729
        %v731 = vmul.f32 %v719, %v729
        %v732 = vmul.f32 %v720, %v729
        %v733 = vmul.f32 %v721, %v729
        %v734 = vmul.f32 %v722, %v729
        %v735 = vmul.f32 %v723, %v729
        %v736 = vmul.f32 %v724, %v729
        %v737 = vmul.f32 %v725, %v729
        %v738 = vmul.f32 %v730, %v730
        %v739 = vmul.f32 %v731, %v731
        %v740 = vmul.f32 %v732, %v732
        %v741 = vmul.f32 %v733, %v733
        %v742 = vmul.f32 %v734, %v734
        %v743 = vmul.f32 %v735, %v735
        %v744 = vmul.f32 %v736, %v736
        %v745 = vmul.f32 %v737, %v737
        %746 = vadd.xlane.f32.xlu0 %v738
        %v747 = vpop.xlane.xlu0 %746
        %748 = vadd.xlane.f32.xlu0 %v739
        %v749 = vpop.xlane.xlu0 %748
        %750 = vadd.xlane.f32.xlu0 %v740
        %v751 = vpop.xlane.xlu0 %750
        %752 = vadd.xlane.f32.xlu0 %v741
        %v753 = vpop.xlane.xlu0 %752
        %754 = vadd.xlane.f32.xlu0 %v742
        %v755 = vpop.xlane.xlu0 %754
        %756 = vadd.xlane.f32.xlu0 %v743
        %v757 = vpop.xlane.xlu0 %756
        %758 = vadd.xlane.f32.xlu0 %v744
        %v759 = vpop.xlane.xlu0 %758
        %760 = vadd.xlane.f32.xlu0 %v745
        %v761 = vpop.xlane.xlu0 %760
        %v762 = vmul.f32 %v747, 0.009090909
        %v763 = vmul.f32 %v749, 0.009090909
        %v764 = vmul.f32 %v751, 0.009090909
        %v765 = vmul.f32 %v753, 0.009090909
        %v766 = vmul.f32 %v755, 0.009090909
        %v767 = vmul.f32 %v757, 0.009090909
        %v768 = vmul.f32 %v759, 0.009090909
        %v769 = vmul.f32 %v761, 0.009090909
        %v770 = vadd.f32 %v762, 1e-05
        %v771 = vadd.f32 %v763, 1e-05
        %v772 = vadd.f32 %v764, 1e-05
        %v773 = vadd.f32 %v765, 1e-05
        %v774 = vadd.f32 %v766, 1e-05
        %v775 = vadd.f32 %v767, 1e-05
        %v776 = vadd.f32 %v768, 1e-05
        %v777 = vadd.f32 %v769, 1e-05
        %v778 = vrsqrt.pop %v770
        %v779 = vrsqrt.pop %v771
        %v780 = vrsqrt.pop %v772
        %v781 = vrsqrt.pop %v773
        %v782 = vrsqrt.pop %v774
        %v783 = vrsqrt.pop %v775
        %v784 = vrsqrt.pop %v776
        %v785 = vrsqrt.pop %v777
        %v786 = vmul.f32 %v730, %v778
        %v787 = vmul.f32 %v731, %v779
        %v788 = vmul.f32 %v732, %v780
        %v789 = vmul.f32 %v733, %v781
        %v790 = vmul.f32 %v734, %v782
        %v791 = vmul.f32 %v735, %v783
        %v792 = vmul.f32 %v736, %v784
        %v793 = vmul.f32 %v737, %v785
        %794 = vrot.lane.b32.xlu0 %v786, 12
        %v795 = vpop.permute.xlu0 %794
        %796 = vrot.lane.b32.xlu0 %v787, 12
        %v797 = vpop.permute.xlu0 %796
        %798 = vrot.lane.b32.xlu0 %v788, 12
        %v799 = vpop.permute.xlu0 %798
        %800 = vrot.lane.b32.xlu0 %v789, 12
        %v801 = vpop.permute.xlu0 %800
        %802 = vrot.lane.b32.xlu0 %v790, 12
        %v803 = vpop.permute.xlu0 %802
        %804 = vrot.lane.b32.xlu0 %v791, 12
        %v805 = vpop.permute.xlu0 %804
        %806 = vrot.lane.b32.xlu0 %v792, 12
        %v807 = vpop.permute.xlu0 %806
        %808 = vrot.lane.b32.xlu0 %v793, 12
        %v809 = vpop.permute.xlu0 %808
        %v810 = vlaneseq
        %v811 = vshrl.u32 %v810, 7
        %v812 = vsub.s32 0, %v811
        %v813 = vrot.slane %v338, %v812
        %v814 = vmul.f32 %v795, %v813
        %v815 = vmul.f32 %v797, %v813
        %v816 = vmul.f32 %v799, %v813
        %v817 = vmul.f32 %v801, %v813
        %v818 = vmul.f32 %v803, %v813
        %v819 = vmul.f32 %v805, %v813
        %v820 = vmul.f32 %v807, %v813
        %v821 = vmul.f32 %v809, %v813
        %v822 = vpack.c.bf16 %v814, %v814
        %v823 = vpack.c.bf16 %v815, %v815
        %v824 = vpack.c.bf16 %v816, %v816
        %v825 = vpack.c.bf16 %v817, %v817
        %v826 = vpack.c.bf16 %v818, %v818
        %v827 = vpack.c.bf16 %v819, %v819
        %v828 = vpack.c.bf16 %v820, %v820
        %v829 = vpack.c.bf16 %v821, %v821
        %830 = vst [vmem:[#allocation2] sm:$0xf] %v822
        %831 = vst [vmem:[#allocation2 + $0x94] sm:$0xf] %v823
        %832 = vst [vmem:[#allocation2 + $0x128] sm:$0xf] %v824
        %833 = vst [vmem:[#allocation2 + $0x1bc] sm:$0xf] %v825
        %834 = vst [vmem:[#allocation2 + $0x250] sm:$0xf] %v826
        %835 = vst [vmem:[#allocation2 + $0x2e4] sm:$0xf] %v827
        %836 = vst [vmem:[#allocation2 + $0x378] sm:$0xf] %v828
        %837 = vst [vmem:[#allocation2 + $0x40c] sm:$0xf] %v829
        %838 = vrot.lane.b32.xlu0 %v786, 11
        %v839 = vpop.permute.xlu0 %838
        %840 = vrot.lane.b32.xlu0 %v787, 11
        %v841 = vpop.permute.xlu0 %840
        %842 = vrot.lane.b32.xlu0 %v788, 11
        %v843 = vpop.permute.xlu0 %842
        %844 = vrot.lane.b32.xlu0 %v789, 11
        %v845 = vpop.permute.xlu0 %844
        %846 = vrot.lane.b32.xlu0 %v790, 11
        %v847 = vpop.permute.xlu0 %846
        %848 = vrot.lane.b32.xlu0 %v791, 11
        %v849 = vpop.permute.xlu0 %848
        %850 = vrot.lane.b32.xlu0 %v792, 11
        %v851 = vpop.permute.xlu0 %850
        %852 = vrot.lane.b32.xlu0 %v793, 11
        %v853 = vpop.permute.xlu0 %852
        %v854 = vlaneseq
        %v855 = vshrl.u32 %v854, 7
        %v856 = vsub.s32 1, %v855
        %v857 = vrot.slane %v338, %v856
        %v858 = vmul.f32 %v839, %v857
        %v859 = vmul.f32 %v841, %v857
        %v860 = vmul.f32 %v843, %v857
        %v861 = vmul.f32 %v845, %v857
        %v862 = vmul.f32 %v847, %v857
        %v863 = vmul.f32 %v849, %v857
        %v864 = vmul.f32 %v851, %v857
        %v865 = vmul.f32 %v853, %v857
        %v866 = vpack.c.bf16 %v858, %v858
        %v867 = vpack.c.bf16 %v859, %v859
        %v868 = vpack.c.bf16 %v860, %v860
        %v869 = vpack.c.bf16 %v861, %v861
        %v870 = vpack.c.bf16 %v862, %v862
        %v871 = vpack.c.bf16 %v863, %v863
        %v872 = vpack.c.bf16 %v864, %v864
        %v873 = vpack.c.bf16 %v865, %v865
        %874 = vst [vmem:[#allocation2 + $0x10] sm:$0xf] %v866
        %875 = vst [vmem:[#allocation2 + $0xa4] sm:$0xf] %v867
        %876 = vst [vmem:[#allocation2 + $0x138] sm:$0xf] %v868
        %877 = vst [vmem:[#allocation2 + $0x1cc] sm:$0xf] %v869
        %878 = vst [vmem:[#allocation2 + $0x260] sm:$0xf] %v870
        %879 = vst [vmem:[#allocation2 + $0x2f4] sm:$0xf] %v871
        %880 = vst [vmem:[#allocation2 + $0x388] sm:$0xf] %v872
        %881 = vst [vmem:[#allocation2 + $0x41c] sm:$0xf] %v873
        %882 = vrot.lane.b32.xlu0 %v786, 10
        %v883 = vpop.permute.xlu0 %882
        %884 = vrot.lane.b32.xlu0 %v787, 10
        %v885 = vpop.permute.xlu0 %884
        %886 = vrot.lane.b32.xlu0 %v788, 10
        %v887 = vpop.permute.xlu0 %886
        %888 = vrot.lane.b32.xlu0 %v789, 10
        %v889 = vpop.permute.xlu0 %888
        %890 = vrot.lane.b32.xlu0 %v790, 10
        %v891 = vpop.permute.xlu0 %890
        %892 = vrot.lane.b32.xlu0 %v791, 10
        %v893 = vpop.permute.xlu0 %892
        %894 = vrot.lane.b32.xlu0 %v792, 10
        %v895 = vpop.permute.xlu0 %894
        %896 = vrot.lane.b32.xlu0 %v793, 10
        %v897 = vpop.permute.xlu0 %896
        %v898 = vlaneseq
        %v899 = vshrl.u32 %v898, 7
        %v900 = vsub.s32 2, %v899
        %v901 = vrot.slane %v338, %v900
        %v902 = vmul.f32 %v883, %v901
        %v903 = vmul.f32 %v885, %v901
        %v904 = vmul.f32 %v887, %v901
        %v905 = vmul.f32 %v889, %v901
        %v906 = vmul.f32 %v891, %v901
        %v907 = vmul.f32 %v893, %v901
        %v908 = vmul.f32 %v895, %v901
        %v909 = vmul.f32 %v897, %v901
        %v910 = vpack.c.bf16 %v902, %v902
        %v911 = vpack.c.bf16 %v903, %v903
        %v912 = vpack.c.bf16 %v904, %v904
        %v913 = vpack.c.bf16 %v905, %v905
        %v914 = vpack.c.bf16 %v906, %v906
        %v915 = vpack.c.bf16 %v907, %v907
        %v916 = vpack.c.bf16 %v908, %v908
        %v917 = vpack.c.bf16 %v909, %v909
        %918 = vst [vmem:[#allocation2 + $0x20] sm:$0xf] %v910
        %919 = vst [vmem:[#allocation2 + $0xb4] sm:$0xf] %v911
        %920 = vst [vmem:[#allocation2 + $0x148] sm:$0xf] %v912
        %921 = vst [vmem:[#allocation2 + $0x1dc] sm:$0xf] %v913
        %922 = vst [vmem:[#allocation2 + $0x270] sm:$0xf] %v914
        %923 = vst [vmem:[#allocation2 + $0x304] sm:$0xf] %v915
        %924 = vst [vmem:[#allocation2 + $0x398] sm:$0xf] %v916
        %925 = vst [vmem:[#allocation2 + $0x42c] sm:$0xf] %v917
        %926 = vrot.lane.b32.xlu0 %v786, 1
        %v927 = vpop.permute.xlu0 %926
        %928 = vrot.lane.b32.xlu0 %v787, 1
        %v929 = vpop.permute.xlu0 %928
        %930 = vrot.lane.b32.xlu0 %v788, 1
        %v931 = vpop.permute.xlu0 %930
        %932 = vrot.lane.b32.xlu0 %v789, 1
        %v933 = vpop.permute.xlu0 %932
        %934 = vrot.lane.b32.xlu0 %v790, 1
        %v935 = vpop.permute.xlu0 %934
        %936 = vrot.lane.b32.xlu0 %v791, 1
        %v937 = vpop.permute.xlu0 %936
        %938 = vrot.lane.b32.xlu0 %v792, 1
        %v939 = vpop.permute.xlu0 %938
        %940 = vrot.lane.b32.xlu0 %v793, 1
        %v941 = vpop.permute.xlu0 %940
        %v942 = vlaneseq
        %v943 = vshrl.u32 %v942, 7
        %v944 = vsub.s32 3, %v943
        %v945 = vrot.slane %v338, %v944
        %v946 = vmul.f32 %v927, %v945
        %v947 = vmul.f32 %v929, %v945
        %v948 = vmul.f32 %v931, %v945
        %v949 = vmul.f32 %v933, %v945
        %v950 = vmul.f32 %v935, %v945
        %v951 = vmul.f32 %v937, %v945
        %v952 = vmul.f32 %v939, %v945
        %v953 = vmul.f32 %v941, %v945
        %v954 = vpack.c.bf16 %v946, %v946
        %v955 = vpack.c.bf16 %v947, %v947
        %v956 = vpack.c.bf16 %v948, %v948
        %v957 = vpack.c.bf16 %v949, %v949
        %v958 = vpack.c.bf16 %v950, %v950
        %v959 = vpack.c.bf16 %v951, %v951
        %v960 = vpack.c.bf16 %v952, %v952
        %v961 = vpack.c.bf16 %v953, %v953
        %962 = vst [vmem:[#allocation2 + $0x30] sm:$0xf] %v954
        %963 = vst [vmem:[#allocation2 + $0xc4] sm:$0xf] %v955
        %964 = vst [vmem:[#allocation2 + $0x158] sm:$0xf] %v956
        %965 = vst [vmem:[#allocation2 + $0x1ec] sm:$0xf] %v957
        %966 = vst [vmem:[#allocation2 + $0x280] sm:$0xf] %v958
        %967 = vst [vmem:[#allocation2 + $0x314] sm:$0xf] %v959
        %968 = vst [vmem:[#allocation2 + $0x3a8] sm:$0xf] %v960
        %969 = vst [vmem:[#allocation2 + $0x43c] sm:$0xf] %v961
        %v970 = vpack.c.bf16 %v786, %v786
        %v971 = vpack.c.bf16 %v787, %v787
        %v972 = vpack.c.bf16 %v788, %v788
        %v973 = vpack.c.bf16 %v789, %v789
        %v974 = vpack.c.bf16 %v790, %v790
        %v975 = vpack.c.bf16 %v791, %v791
        %v976 = vpack.c.bf16 %v792, %v792
        %v977 = vpack.c.bf16 %v793, %v793
        %978 = vst [vmem:[#allocation2 + $0x40] sm:$0xf] %v970
        %979 = vst [vmem:[#allocation2 + $0xd4] sm:$0xf] %v971
        %980 = vst [vmem:[#allocation2 + $0x168] sm:$0xf] %v972
        %981 = vst [vmem:[#allocation2 + $0x1fc] sm:$0xf] %v973
        %982 = vst [vmem:[#allocation2 + $0x290] sm:$0xf] %v974
        %983 = vst [vmem:[#allocation2 + $0x324] sm:$0xf] %v975
        %984 = vst [vmem:[#allocation2 + $0x3b8] sm:$0xf] %v976
        %985 = vst [vmem:[#allocation2 + $0x44c] sm:$0xf] %v977
        %986 = vrot.lane.b32.xlu0 %v786, 127
        %v987 = vpop.permute.xlu0 %986
        %988 = vrot.lane.b32.xlu0 %v787, 127
        %v989 = vpop.permute.xlu0 %988
        %990 = vrot.lane.b32.xlu0 %v788, 127
        %v991 = vpop.permute.xlu0 %990
        %992 = vrot.lane.b32.xlu0 %v789, 127
        %v993 = vpop.permute.xlu0 %992
        %994 = vrot.lane.b32.xlu0 %v790, 127
        %v995 = vpop.permute.xlu0 %994
        %996 = vrot.lane.b32.xlu0 %v791, 127
        %v997 = vpop.permute.xlu0 %996
        %998 = vrot.lane.b32.xlu0 %v792, 127
        %v999 = vpop.permute.xlu0 %998
        %1000 = vrot.lane.b32.xlu0 %v793, 127
        %v1001 = vpop.permute.xlu0 %1000
        %v1002 = vlaneseq
        %v1003 = vshrl.u32 %v1002, 7
        %v1004 = vsub.s32 5, %v1003
        %v1005 = vrot.slane %v338, %v1004
        %v1006 = vmul.f32 %v987, %v1005
        %v1007 = vmul.f32 %v989, %v1005
        %v1008 = vmul.f32 %v991, %v1005
        %v1009 = vmul.f32 %v993, %v1005
        %v1010 = vmul.f32 %v995, %v1005
        %v1011 = vmul.f32 %v997, %v1005
        %v1012 = vmul.f32 %v999, %v1005
        %v1013 = vmul.f32 %v1001, %v1005
        %v1014 = vpack.c.bf16 %v1006, %v1006
        %v1015 = vpack.c.bf16 %v1007, %v1007
        %v1016 = vpack.c.bf16 %v1008, %v1008
        %v1017 = vpack.c.bf16 %v1009, %v1009
        %v1018 = vpack.c.bf16 %v1010, %v1010
        %v1019 = vpack.c.bf16 %v1011, %v1011
        %v1020 = vpack.c.bf16 %v1012, %v1012
        %v1021 = vpack.c.bf16 %v1013, %v1013
        %1022 = vst [vmem:[#allocation2 + $0x50] sm:$0xf] %v1014
        %1023 = vst [vmem:[#allocation2 + $0xe4] sm:$0xf] %v1015
        %1024 = vst [vmem:[#allocation2 + $0x178] sm:$0xf] %v1016
        %1025 = vst [vmem:[#allocation2 + $0x20c] sm:$0xf] %v1017
        %1026 = vst [vmem:[#allocation2 + $0x2a0] sm:$0xf] %v1018
        %1027 = vst [vmem:[#allocation2 + $0x334] sm:$0xf] %v1019
        %1028 = vst [vmem:[#allocation2 + $0x3c8] sm:$0xf] %v1020
        %1029 = vst [vmem:[#allocation2 + $0x45c] sm:$0xf] %v1021
        %1030 = vrot.lane.b32.xlu0 %v786, 118
        %v1031 = vpop.permute.xlu0 %1030
        %1032 = vrot.lane.b32.xlu0 %v787, 118
        %v1033 = vpop.permute.xlu0 %1032
        %1034 = vrot.lane.b32.xlu0 %v788, 118
        %v1035 = vpop.permute.xlu0 %1034
        %1036 = vrot.lane.b32.xlu0 %v789, 118
        %v1037 = vpop.permute.xlu0 %1036
        %1038 = vrot.lane.b32.xlu0 %v790, 118
        %v1039 = vpop.permute.xlu0 %1038
        %1040 = vrot.lane.b32.xlu0 %v791, 118
        %v1041 = vpop.permute.xlu0 %1040
        %1042 = vrot.lane.b32.xlu0 %v792, 118
        %v1043 = vpop.permute.xlu0 %1042
        %1044 = vrot.lane.b32.xlu0 %v793, 118
        %v1045 = vpop.permute.xlu0 %1044
        %v1046 = vlaneseq
        %v1047 = vshrl.u32 %v1046, 7
        %v1048 = vsub.s32 6, %v1047
        %v1049 = vrot.slane %v338, %v1048
        %v1050 = vmul.f32 %v1031, %v1049
        %v1051 = vmul.f32 %v1033, %v1049
        %v1052 = vmul.f32 %v1035, %v1049
        %v1053 = vmul.f32 %v1037, %v1049
        %v1054 = vmul.f32 %v1039, %v1049
        %v1055 = vmul.f32 %v1041, %v1049
        %v1056 = vmul.f32 %v1043, %v1049
        %v1057 = vmul.f32 %v1045, %v1049
        %v1058 = vpack.c.bf16 %v1050, %v1050
        %v1059 = vpack.c.bf16 %v1051, %v1051
        %v1060 = vpack.c.bf16 %v1052, %v1052
        %v1061 = vpack.c.bf16 %v1053, %v1053
        %v1062 = vpack.c.bf16 %v1054, %v1054
        %v1063 = vpack.c.bf16 %v1055, %v1055
        %v1064 = vpack.c.bf16 %v1056, %v1056
        %v1065 = vpack.c.bf16 %v1057, %v1057
        %1066 = vst [vmem:[#allocation2 + $0x60] sm:$0xf] %v1058
        %1067 = vst [vmem:[#allocation2 + $0xf4] sm:$0xf] %v1059
        %1068 = vst [vmem:[#allocation2 + $0x188] sm:$0xf] %v1060
        %1069 = vst [vmem:[#allocation2 + $0x21c] sm:$0xf] %v1061
        %1070 = vst [vmem:[#allocation2 + $0x2b0] sm:$0xf] %v1062
        %1071 = vst [vmem:[#allocation2 + $0x344] sm:$0xf] %v1063
        %1072 = vst [vmem:[#allocation2 + $0x3d8] sm:$0xf] %v1064
        %1073 = vst [vmem:[#allocation2 + $0x46c] sm:$0xf] %v1065
        %1074 = vrot.lane.b32.xlu0 %v786, 117
        %v1075 = vpop.permute.xlu0 %1074
        %1076 = vrot.lane.b32.xlu0 %v787, 117
        %v1077 = vpop.permute.xlu0 %1076
        %1078 = vrot.lane.b32.xlu0 %v788, 117
        %v1079 = vpop.permute.xlu0 %1078
        %1080 = vrot.lane.b32.xlu0 %v789, 117
        %v1081 = vpop.permute.xlu0 %1080
        %1082 = vrot.lane.b32.xlu0 %v790, 117
        %v1083 = vpop.permute.xlu0 %1082
        %1084 = vrot.lane.b32.xlu0 %v791, 117
        %v1085 = vpop.permute.xlu0 %1084
        %1086 = vrot.lane.b32.xlu0 %v792, 117
        %v1087 = vpop.permute.xlu0 %1086
        %1088 = vrot.lane.b32.xlu0 %v793, 117
        %v1089 = vpop.permute.xlu0 %1088
        %v1090 = vlaneseq
        %v1091 = vshrl.u32 %v1090, 7
        %v1092 = vsub.s32 7, %v1091
        %v1093 = vrot.slane %v338, %v1092
        %v1094 = vmul.f32 %v1075, %v1093
        %v1095 = vmul.f32 %v1077, %v1093
        %v1096 = vmul.f32 %v1079, %v1093
        %v1097 = vmul.f32 %v1081, %v1093
        %v1098 = vmul.f32 %v1083, %v1093
        %v1099 = vmul.f32 %v1085, %v1093
        %v1100 = vmul.f32 %v1087, %v1093
        %v1101 = vmul.f32 %v1089, %v1093
        %v1102 = vpack.c.bf16 %v1094, %v1094
        %v1103 = vpack.c.bf16 %v1095, %v1095
        %v1104 = vpack.c.bf16 %v1096, %v1096
        %v1105 = vpack.c.bf16 %v1097, %v1097
        %v1106 = vpack.c.bf16 %v1098, %v1098
        %v1107 = vpack.c.bf16 %v1099, %v1099
        %v1108 = vpack.c.bf16 %v1100, %v1100
        %v1109 = vpack.c.bf16 %v1101, %v1101
        %1110 = vst [vmem:[#allocation2 + $0x70] sm:$0xf] %v1102
        %1111 = vst [vmem:[#allocation2 + $0x104] sm:$0xf] %v1103
        %1112 = vst [vmem:[#allocation2 + $0x198] sm:$0xf] %v1104
        %1113 = vst [vmem:[#allocation2 + $0x22c] sm:$0xf] %v1105
        %1114 = vst [vmem:[#allocation2 + $0x2c0] sm:$0xf] %v1106
        %1115 = vst [vmem:[#allocation2 + $0x354] sm:$0xf] %v1107
        %1116 = vst [vmem:[#allocation2 + $0x3e8] sm:$0xf] %v1108
        %1117 = vst [vmem:[#allocation2 + $0x47c] sm:$0xf] %v1109
        %1118 = vrot.lane.b32.xlu0 %v786, 116
        %v1119 = vpop.permute.xlu0 %1118
        %1120 = vrot.lane.b32.xlu0 %v787, 116
        %v1121 = vpop.permute.xlu0 %1120
        %1122 = vrot.lane.b32.xlu0 %v788, 116
        %v1123 = vpop.permute.xlu0 %1122
        %1124 = vrot.lane.b32.xlu0 %v789, 116
        %v1125 = vpop.permute.xlu0 %1124
        %1126 = vrot.lane.b32.xlu0 %v790, 116
        %v1127 = vpop.permute.xlu0 %1126
        %1128 = vrot.lane.b32.xlu0 %v791, 116
        %v1129 = vpop.permute.xlu0 %1128
        %1130 = vrot.lane.b32.xlu0 %v792, 116
        %v1131 = vpop.permute.xlu0 %1130
        %1132 = vrot.lane.b32.xlu0 %v793, 116
        %v1133 = vpop.permute.xlu0 %1132
        %v1134 = vlaneseq
        %v1135 = vshrl.u32 %v1134, 7
        %v1136 = vsub.s32 0, %v1135
        %v1137 = vrot.slane %v339, %v1136
        %v1138 = vmul.f32 %v1119, %v1137
        %v1139 = vmul.f32 %v1121, %v1137
        %v1140 = vmul.f32 %v1123, %v1137
        %v1141 = vmul.f32 %v1125, %v1137
        %v1142 = vmul.f32 %v1127, %v1137
        %v1143 = vmul.f32 %v1129, %v1137
        %v1144 = vmul.f32 %v1131, %v1137
        %v1145 = vmul.f32 %v1133, %v1137
        %v1146 = vpack.c.bf16 %v1138, %v1138
        %v1147 = vpack.c.bf16 %v1139, %v1139
        %v1148 = vpack.c.bf16 %v1140, %v1140
        %v1149 = vpack.c.bf16 %v1141, %v1141
        %v1150 = vpack.c.bf16 %v1142, %v1142
        %v1151 = vpack.c.bf16 %v1143, %v1143
        %v1152 = vpack.c.bf16 %v1144, %v1144
        %v1153 = vpack.c.bf16 %v1145, %v1145
        %1154 = vst [vmem:[#allocation2 + $0x80] sm:$0xf] %v1146
        %1155 = vst [vmem:[#allocation2 + $0x114] sm:$0xf] %v1147
        %1156 = vst [vmem:[#allocation2 + $0x1a8] sm:$0xf] %v1148
        %1157 = vst [vmem:[#allocation2 + $0x23c] sm:$0xf] %v1149
        %1158 = vst [vmem:[#allocation2 + $0x2d0] sm:$0xf] %v1150
        %1159 = vst [vmem:[#allocation2 + $0x364] sm:$0xf] %v1151
        %1160 = vst [vmem:[#allocation2 + $0x3f8] sm:$0xf] %v1152
        %1161 = vst [vmem:[#allocation2 + $0x48c] sm:$0xf] %v1153
        %v1162 = vld [vmem:[#allocation8] sm:$0xff]
        %v1163 = vld [vmem:[#allocation8 + $0x8] sm:$0xf]
        %v1164 = vld [vmem:[#allocation2] sm:$0xf]
        %v1165 = vld [vmem:[#allocation2 + $0x4] sm:$0xf]
        %v1166 = vld [vmem:[#allocation2 + $0x8] sm:$0xf]
        %v1167 = vld [vmem:[#allocation2 + $0xc] sm:$0xf]
        %v1168 = vld [vmem:[#allocation2 + $0x10] sm:$0xf]
        %v1169 = vld [vmem:[#allocation2 + $0x14] sm:$0xf]
        %v1170 = vld [vmem:[#allocation2 + $0x18] sm:$0xf]
        %v1171 = vld [vmem:[#allocation2 + $0x1c] sm:$0xf]
        %v1172 = vld [vmem:[#allocation2 + $0x20] sm:$0xf]
        %v1173 = vld [vmem:[#allocation2 + $0x24] sm:$0xf]
        %v1174 = vld [vmem:[#allocation2 + $0x28] sm:$0xf]
        %v1175 = vld [vmem:[#allocation2 + $0x2c] sm:$0xf]
        %v1176 = vld [vmem:[#allocation2 + $0x30] sm:$0xf]
        %v1177 = vld [vmem:[#allocation2 + $0x34] sm:$0xf]
        %v1178 = vld [vmem:[#allocation2 + $0x38] sm:$0xf]
        %v1179 = vld [vmem:[#allocation2 + $0x3c] sm:$0xf]
        %v1180 = vld [vmem:[#allocation2 + $0x40] sm:$0xf]
        %v1181 = vld [vmem:[#allocation2 + $0x44] sm:$0xf]
        %v1182 = vld [vmem:[#allocation2 + $0x48] sm:$0xf]
        %v1183 = vld [vmem:[#allocation2 + $0x4c] sm:$0xf]
        %v1184 = vld [vmem:[#allocation2 + $0x50] sm:$0xf]
        %v1185 = vld [vmem:[#allocation2 + $0x54] sm:$0xf]
        %v1186 = vld [vmem:[#allocation2 + $0x58] sm:$0xf]
        %v1187 = vld [vmem:[#allocation2 + $0x5c] sm:$0xf]
        %v1188 = vld [vmem:[#allocation2 + $0x60] sm:$0xf]
        %v1189 = vld [vmem:[#allocation2 + $0x64] sm:$0xf]
        %v1190 = vld [vmem:[#allocation2 + $0x68] sm:$0xf]
        %v1191 = vld [vmem:[#allocation2 + $0x6c] sm:$0xf]
        %v1192 = vld [vmem:[#allocation2 + $0x70] sm:$0xf]
        %v1193 = vld [vmem:[#allocation2 + $0x74] sm:$0xf]
        %v1194 = vld [vmem:[#allocation2 + $0x78] sm:$0xf]
        %v1195 = vld [vmem:[#allocation2 + $0x7c] sm:$0xf]
        %v1196 = vld [vmem:[#allocation2 + $0x80] sm:$0xf]
        %v1197 = vld [vmem:[#allocation2 + $0x84] sm:$0xf]
        %v1198 = vld [vmem:[#allocation2 + $0x88] sm:$0xf]
        %v1199 = vld [vmem:[#allocation2 + $0x8c] sm:$0xf]
        %v1200 = vld [vmem:[#allocation2 + $0x90] sm:$0xf]
        %v1201 = vld [vmem:[#allocation2 + $0x94] sm:$0xf]
        %v1202 = vld [vmem:[#allocation2 + $0x98] sm:$0xf]
        %v1203 = vld [vmem:[#allocation2 + $0x9c] sm:$0xf]
        %v1204 = vld [vmem:[#allocation2 + $0xa0] sm:$0xf]
        %v1205 = vld [vmem:[#allocation2 + $0xa4] sm:$0xf]
        %v1206 = vld [vmem:[#allocation2 + $0xa8] sm:$0xf]
        %v1207 = vld [vmem:[#allocation2 + $0xac] sm:$0xf]
        %v1208 = vld [vmem:[#allocation2 + $0xb0] sm:$0xf]
        %v1209 = vld [vmem:[#allocation2 + $0xb4] sm:$0xf]
        %v1210 = vld [vmem:[#allocation2 + $0xb8] sm:$0xf]
        %v1211 = vld [vmem:[#allocation2 + $0xbc] sm:$0xf]
        %v1212 = vld [vmem:[#allocation2 + $0xc0] sm:$0xf]
        %v1213 = vld [vmem:[#allocation2 + $0xc4] sm:$0xf]
        %v1214 = vld [vmem:[#allocation2 + $0xc8] sm:$0xf]
        %v1215 = vld [vmem:[#allocation2 + $0xcc] sm:$0xf]
        %v1216 = vld [vmem:[#allocation2 + $0xd0] sm:$0xf]
        %v1217 = vld [vmem:[#allocation2 + $0xd4] sm:$0xf]
        %v1218 = vld [vmem:[#allocation2 + $0xd8] sm:$0xf]
        %v1219 = vld [vmem:[#allocation2 + $0xdc] sm:$0xf]
        %v1220 = vld [vmem:[#allocation2 + $0xe0] sm:$0xf]
        %v1221 = vld [vmem:[#allocation2 + $0xe4] sm:$0xf]
        %v1222 = vld [vmem:[#allocation2 + $0xe8] sm:$0xf]
        %v1223 = vld [vmem:[#allocation2 + $0xec] sm:$0xf]
        %v1224 = vld [vmem:[#allocation2 + $0xf0] sm:$0xf]
        %v1225 = vld [vmem:[#allocation2 + $0xf4] sm:$0xf]
        %v1226 = vld [vmem:[#allocation2 + $0xf8] sm:$0xf]
        %v1227 = vld [vmem:[#allocation2 + $0xfc] sm:$0xf]
        %v1228 = vld [vmem:[#allocation2 + $0x100] sm:$0xf]
        %v1229 = vld [vmem:[#allocation2 + $0x104] sm:$0xf]
        %v1230 = vld [vmem:[#allocation2 + $0x108] sm:$0xf]
        %v1231 = vld [vmem:[#allocation2 + $0x10c] sm:$0xf]
        %v1232 = vld [vmem:[#allocation2 + $0x110] sm:$0xf]
        %v1233 = vld [vmem:[#allocation2 + $0x114] sm:$0xf]
        %v1234 = vld [vmem:[#allocation2 + $0x118] sm:$0xf]
        %v1235 = vld [vmem:[#allocation2 + $0x11c] sm:$0xf]
        %v1236 = vld [vmem:[#allocation2 + $0x120] sm:$0xf]
        %v1237 = vld [vmem:[#allocation2 + $0x124] sm:$0xf]
        %v1238 = vld [vmem:[#allocation2 + $0x128] sm:$0xf]
        %v1239 = vld [vmem:[#allocation2 + $0x12c] sm:$0xf]
        %v1240 = vld [vmem:[#allocation2 + $0x130] sm:$0xf]
        %v1241 = vld [vmem:[#allocation2 + $0x134] sm:$0xf]
        %v1242 = vld [vmem:[#allocation2 + $0x138] sm:$0xf]
        %v1243 = vld [vmem:[#allocation2 + $0x13c] sm:$0xf]
        %v1244 = vld [vmem:[#allocation2 + $0x140] sm:$0xf]
        %v1245 = vld [vmem:[#allocation2 + $0x144] sm:$0xf]
        %v1246 = vld [vmem:[#allocation2 + $0x148] sm:$0xf]
        %v1247 = vld [vmem:[#allocation2 + $0x14c] sm:$0xf]
        %v1248 = vld [vmem:[#allocation2 + $0x150] sm:$0xf]
        %v1249 = vld [vmem:[#allocation2 + $0x154] sm:$0xf]
        %v1250 = vld [vmem:[#allocation2 + $0x158] sm:$0xf]
        %v1251 = vld [vmem:[#allocation2 + $0x15c] sm:$0xf]
        %v1252 = vld [vmem:[#allocation2 + $0x160] sm:$0xf]
        %v1253 = vld [vmem:[#allocation2 + $0x164] sm:$0xf]
        %v1254 = vld [vmem:[#allocation2 + $0x168] sm:$0xf]
        %v1255 = vld [vmem:[#allocation2 + $0x16c] sm:$0xf]
        %v1256 = vld [vmem:[#allocation2 + $0x170] sm:$0xf]
        %v1257 = vld [vmem:[#allocation2 + $0x174] sm:$0xf]
        %v1258 = vld [vmem:[#allocation2 + $0x178] sm:$0xf]
        %v1259 = vld [vmem:[#allocation2 + $0x17c] sm:$0xf]
        %v1260 = vld [vmem:[#allocation2 + $0x180] sm:$0xf]
        %v1261 = vld [vmem:[#allocation2 + $0x184] sm:$0xf]
        %v1262 = vld [vmem:[#allocation2 + $0x188] sm:$0xf]
        %v1263 = vld [vmem:[#allocation2 + $0x18c] sm:$0xf]
        %v1264 = vld [vmem:[#allocation2 + $0x190] sm:$0xf]
        %v1265 = vld [vmem:[#allocation2 + $0x194] sm:$0xf]
        %v1266 = vld [vmem:[#allocation2 + $0x198] sm:$0xf]
        %v1267 = vld [vmem:[#allocation2 + $0x19c] sm:$0xf]
        %v1268 = vld [vmem:[#allocation2 + $0x1a0] sm:$0xf]
        %v1269 = vld [vmem:[#allocation2 + $0x1a4] sm:$0xf]
        %v1270 = vld [vmem:[#allocation2 + $0x1a8] sm:$0xf]
        %v1271 = vld [vmem:[#allocation2 + $0x1ac] sm:$0xf]
        %v1272 = vld [vmem:[#allocation2 + $0x1b0] sm:$0xf]
        %v1273 = vld [vmem:[#allocation2 + $0x1b4] sm:$0xf]
        %v1274 = vld [vmem:[#allocation2 + $0x1b8] sm:$0xf]
        %v1275 = vld [vmem:[#allocation2 + $0x1bc] sm:$0xf]
        %v1276 = vld [vmem:[#allocation2 + $0x1c0] sm:$0xf]
        %v1277 = vld [vmem:[#allocation2 + $0x1c4] sm:$0xf]
        %v1278 = vld [vmem:[#allocation2 + $0x1c8] sm:$0xf]
        %v1279 = vld [vmem:[#allocation2 + $0x1cc] sm:$0xf]
        %v1280 = vld [vmem:[#allocation2 + $0x1d0] sm:$0xf]
        %v1281 = vld [vmem:[#allocation2 + $0x1d4] sm:$0xf]
        %v1282 = vld [vmem:[#allocation2 + $0x1d8] sm:$0xf]
        %v1283 = vld [vmem:[#allocation2 + $0x1dc] sm:$0xf]
        %v1284 = vld [vmem:[#allocation2 + $0x1e0] sm:$0xf]
        %v1285 = vld [vmem:[#allocation2 + $0x1e4] sm:$0xf]
        %v1286 = vld [vmem:[#allocation2 + $0x1e8] sm:$0xf]
        %v1287 = vld [vmem:[#allocation2 + $0x1ec] sm:$0xf]
        %v1288 = vld [vmem:[#allocation2 + $0x1f0] sm:$0xf]
        %v1289 = vld [vmem:[#allocation2 + $0x1f4] sm:$0xf]
        %v1290 = vld [vmem:[#allocation2 + $0x1f8] sm:$0xf]
        %v1291 = vld [vmem:[#allocation2 + $0x1fc] sm:$0xf]
        %v1292 = vld [vmem:[#allocation2 + $0x200] sm:$0xf]
        %v1293 = vld [vmem:[#allocation2 + $0x204] sm:$0xf]
        %v1294 = vld [vmem:[#allocation2 + $0x208] sm:$0xf]
        %v1295 = vld [vmem:[#allocation2 + $0x20c] sm:$0xf]
        %v1296 = vld [vmem:[#allocation2 + $0x210] sm:$0xf]
        %v1297 = vld [vmem:[#allocation2 + $0x214] sm:$0xf]
        %v1298 = vld [vmem:[#allocation2 + $0x218] sm:$0xf]
        %v1299 = vld [vmem:[#allocation2 + $0x21c] sm:$0xf]
        %v1300 = vld [vmem:[#allocation2 + $0x220] sm:$0xf]
        %v1301 = vld [vmem:[#allocation2 + $0x224] sm:$0xf]
        %v1302 = vld [vmem:[#allocation2 + $0x228] sm:$0xf]
        %v1303 = vld [vmem:[#allocation2 + $0x22c] sm:$0xf]
        %v1304 = vld [vmem:[#allocation2 + $0x230] sm:$0xf]
        %v1305 = vld [vmem:[#allocation2 + $0x234] sm:$0xf]
        %v1306 = vld [vmem:[#allocation2 + $0x238] sm:$0xf]
        %v1307 = vld [vmem:[#allocation2 + $0x23c] sm:$0xf]
        %v1308 = vld [vmem:[#allocation2 + $0x240] sm:$0xf]
        %v1309 = vld [vmem:[#allocation2 + $0x244] sm:$0xf]
        %v1310 = vld [vmem:[#allocation2 + $0x248] sm:$0xf]
        %v1311 = vld [vmem:[#allocation2 + $0x24c] sm:$0xf]
        %v1312 = vld [vmem:[#allocation2 + $0x250] sm:$0xf]
        %v1313 = vld [vmem:[#allocation2 + $0x254] sm:$0xf]
        %v1314 = vld [vmem:[#allocation2 + $0x258] sm:$0xf]
        %v1315 = vld [vmem:[#allocation2 + $0x25c] sm:$0xf]
        %v1316 = vld [vmem:[#allocation2 + $0x260] sm:$0xf]
        %v1317 = vld [vmem:[#allocation2 + $0x264] sm:$0xf]
        %v1318 = vld [vmem:[#allocation2 + $0x268] sm:$0xf]
        %v1319 = vld [vmem:[#allocation2 + $0x26c] sm:$0xf]
        %v1320 = vld [vmem:[#allocation2 + $0x270] sm:$0xf]
        %v1321 = vld [vmem:[#allocation2 + $0x274] sm:$0xf]
        %v1322 = vld [vmem:[#allocation2 + $0x278] sm:$0xf]
        %v1323 = vld [vmem:[#allocation2 + $0x27c] sm:$0xf]
        %v1324 = vld [vmem:[#allocation2 + $0x280] sm:$0xf]
        %v1325 = vld [vmem:[#allocation2 + $0x284] sm:$0xf]
        %v1326 = vld [vmem:[#allocation2 + $0x288] sm:$0xf]
        %v1327 = vld [vmem:[#allocation2 + $0x28c] sm:$0xf]
        %v1328 = vld [vmem:[#allocation2 + $0x290] sm:$0xf]
        %v1329 = vld [vmem:[#allocation2 + $0x294] sm:$0xf]
        %v1330 = vld [vmem:[#allocation2 + $0x298] sm:$0xf]
        %v1331 = vld [vmem:[#allocation2 + $0x29c] sm:$0xf]
        %v1332 = vld [vmem:[#allocation2 + $0x2a0] sm:$0xf]
        %v1333 = vld [vmem:[#allocation2 + $0x2a4] sm:$0xf]
        %v1334 = vld [vmem:[#allocation2 + $0x2a8] sm:$0xf]
        %v1335 = vld [vmem:[#allocation2 + $0x2ac] sm:$0xf]
        %v1336 = vld [vmem:[#allocation2 + $0x2b0] sm:$0xf]
        %v1337 = vld [vmem:[#allocation2 + $0x2b4] sm:$0xf]
        %v1338 = vld [vmem:[#allocation2 + $0x2b8] sm:$0xf]
        %v1339 = vld [vmem:[#allocation2 + $0x2bc] sm:$0xf]
        %v1340 = vld [vmem:[#allocation2 + $0x2c0] sm:$0xf]
        %v1341 = vld [vmem:[#allocation2 + $0x2c4] sm:$0xf]
        %v1342 = vld [vmem:[#allocation2 + $0x2c8] sm:$0xf]
        %v1343 = vld [vmem:[#allocation2 + $0x2cc] sm:$0xf]
        %v1344 = vld [vmem:[#allocation2 + $0x2d0] sm:$0xf]
        %v1345 = vld [vmem:[#allocation2 + $0x2d4] sm:$0xf]
        %v1346 = vld [vmem:[#allocation2 + $0x2d8] sm:$0xf]
        %v1347 = vld [vmem:[#allocation2 + $0x2dc] sm:$0xf]
        %v1348 = vld [vmem:[#allocation2 + $0x2e0] sm:$0xf]
        %v1349 = vld [vmem:[#allocation2 + $0x2e4] sm:$0xf]
        %v1350 = vld [vmem:[#allocation2 + $0x2e8] sm:$0xf]
        %v1351 = vld [vmem:[#allocation2 + $0x2ec] sm:$0xf]
        %v1352 = vld [vmem:[#allocation2 + $0x2f0] sm:$0xf]
        %v1353 = vld [vmem:[#allocation2 + $0x2f4] sm:$0xf]
        %v1354 = vld [vmem:[#allocation2 + $0x2f8] sm:$0xf]
        %v1355 = vld [vmem:[#allocation2 + $0x2fc] sm:$0xf]
        %v1356 = vld [vmem:[#allocation2 + $0x300] sm:$0xf]
        %v1357 = vld [vmem:[#allocation2 + $0x304] sm:$0xf]
        %v1358 = vld [vmem:[#allocation2 + $0x308] sm:$0xf]
        %v1359 = vld [vmem:[#allocation2 + $0x30c] sm:$0xf]
        %v1360 = vld [vmem:[#allocation2 + $0x310] sm:$0xf]
        %v1361 = vld [vmem:[#allocation2 + $0x314] sm:$0xf]
        %v1362 = vld [vmem:[#allocation2 + $0x318] sm:$0xf]
        %v1363 = vld [vmem:[#allocation2 + $0x31c] sm:$0xf]
        %v1364 = vld [vmem:[#allocation2 + $0x320] sm:$0xf]
        %v1365 = vld [vmem:[#allocation2 + $0x324] sm:$0xf]
        %v1366 = vld [vmem:[#allocation2 + $0x328] sm:$0xf]
        %v1367 = vld [vmem:[#allocation2 + $0x32c] sm:$0xf]
        %v1368 = vld [vmem:[#allocation2 + $0x330] sm:$0xf]
        %v1369 = vld [vmem:[#allocation2 + $0x334] sm:$0xf]
        %v1370 = vld [vmem:[#allocation2 + $0x338] sm:$0xf]
        %v1371 = vld [vmem:[#allocation2 + $0x33c] sm:$0xf]
        %v1372 = vld [vmem:[#allocation2 + $0x340] sm:$0xf]
        %v1373 = vld [vmem:[#allocation2 + $0x344] sm:$0xf]
        %v1374 = vld [vmem:[#allocation2 + $0x348] sm:$0xf]
        %v1375 = vld [vmem:[#allocation2 + $0x34c] sm:$0xf]
        %v1376 = vld [vmem:[#allocation2 + $0x350] sm:$0xf]
        %v1377 = vld [vmem:[#allocation2 + $0x354] sm:$0xf]
        %v1378 = vld [vmem:[#allocation2 + $0x358] sm:$0xf]
        %v1379 = vld [vmem:[#allocation2 + $0x35c] sm:$0xf]
        %v1380 = vld [vmem:[#allocation2 + $0x360] sm:$0xf]
        %v1381 = vld [vmem:[#allocation2 + $0x364] sm:$0xf]
        %v1382 = vld [vmem:[#allocation2 + $0x368] sm:$0xf]
        %v1383 = vld [vmem:[#allocation2 + $0x36c] sm:$0xf]
        %v1384 = vld [vmem:[#allocation2 + $0x370] sm:$0xf]
        %v1385 = vld [vmem:[#allocation2 + $0x374] sm:$0xf]
        %v1386 = vld [vmem:[#allocation2 + $0x378] sm:$0xf]
        %v1387 = vld [vmem:[#allocation2 + $0x37c] sm:$0xf]
        %v1388 = vld [vmem:[#allocation2 + $0x380] sm:$0xf]
        %v1389 = vld [vmem:[#allocation2 + $0x384] sm:$0xf]
        %v1390 = vld [vmem:[#allocation2 + $0x388] sm:$0xf]
        %v1391 = vld [vmem:[#allocation2 + $0x38c] sm:$0xf]
        %v1392 = vld [vmem:[#allocation2 + $0x390] sm:$0xf]
        %v1393 = vld [vmem:[#allocation2 + $0x394] sm:$0xf]
        %v1394 = vld [vmem:[#allocation2 + $0x398] sm:$0xf]
        %v1395 = vld [vmem:[#allocation2 + $0x39c] sm:$0xf]
        %v1396 = vld [vmem:[#allocation2 + $0x3a0] sm:$0xf]
        %v1397 = vld [vmem:[#allocation2 + $0x3a4] sm:$0xf]
        %v1398 = vld [vmem:[#allocation2 + $0x3a8] sm:$0xf]
        %v1399 = vld [vmem:[#allocation2 + $0x3ac] sm:$0xf]
        %v1400 = vld [vmem:[#allocation2 + $0x3b0] sm:$0xf]
        %v1401 = vld [vmem:[#allocation2 + $0x3b4] sm:$0xf]
        %v1402 = vld [vmem:[#allocation2 + $0x3b8] sm:$0xf]
        %v1403 = vld [vmem:[#allocation2 + $0x3bc] sm:$0xf]
        %v1404 = vld [vmem:[#allocation2 + $0x3c0] sm:$0xf]
        %v1405 = vld [vmem:[#allocation2 + $0x3c4] sm:$0xf]
        %v1406 = vld [vmem:[#allocation2 + $0x3c8] sm:$0xf]
        %v1407 = vld [vmem:[#allocation2 + $0x3cc] sm:$0xf]
        %v1408 = vld [vmem:[#allocation2 + $0x3d0] sm:$0xf]
        %v1409 = vld [vmem:[#allocation2 + $0x3d4] sm:$0xf]
        %v1410 = vld [vmem:[#allocation2 + $0x3d8] sm:$0xf]
        %v1411 = vld [vmem:[#allocation2 + $0x3dc] sm:$0xf]
        %v1412 = vld [vmem:[#allocation2 + $0x3e0] sm:$0xf]
        %v1413 = vld [vmem:[#allocation2 + $0x3e4] sm:$0xf]
        %v1414 = vld [vmem:[#allocation2 + $0x3e8] sm:$0xf]
        %v1415 = vld [vmem:[#allocation2 + $0x3ec] sm:$0xf]
        %v1416 = vld [vmem:[#allocation2 + $0x3f0] sm:$0xf]
        %v1417 = vld [vmem:[#allocation2 + $0x3f4] sm:$0xf]
        %v1418 = vld [vmem:[#allocation2 + $0x3f8] sm:$0xf]
        %v1419 = vld [vmem:[#allocation2 + $0x3fc] sm:$0xf]
        %v1420 = vld [vmem:[#allocation2 + $0x400] sm:$0xf]
        %v1421 = vld [vmem:[#allocation2 + $0x404] sm:$0xf]
        %v1422 = vld [vmem:[#allocation2 + $0x408] sm:$0xf]
        %v1423 = vld [vmem:[#allocation2 + $0x40c] sm:$0xf]
        %v1424 = vld [vmem:[#allocation2 + $0x410] sm:$0xf]
        %v1425 = vld [vmem:[#allocation2 + $0x414] sm:$0xf]
        %v1426 = vld [vmem:[#allocation2 + $0x418] sm:$0xf]
        %v1427 = vld [vmem:[#allocation2 + $0x41c] sm:$0xf]
        %v1428 = vld [vmem:[#allocation2 + $0x420] sm:$0xf]
        %v1429 = vld [vmem:[#allocation2 + $0x424] sm:$0xf]
        %v1430 = vld [vmem:[#allocation2 + $0x428] sm:$0xf]
        %v1431 = vld [vmem:[#allocation2 + $0x42c] sm:$0xf]
        %v1432 = vld [vmem:[#allocation2 + $0x430] sm:$0xf]
        %v1433 = vld [vmem:[#allocation2 + $0x434] sm:$0xf]
        %v1434 = vld [vmem:[#allocation2 + $0x438] sm:$0xf]
        %v1435 = vld [vmem:[#allocation2 + $0x43c] sm:$0xf]
        %v1436 = vld [vmem:[#allocation2 + $0x440] sm:$0xf]
        %v1437 = vld [vmem:[#allocation2 + $0x444] sm:$0xf]
        %v1438 = vld [vmem:[#allocation2 + $0x448] sm:$0xf]
        %v1439 = vld [vmem:[#allocation2 + $0x44c] sm:$0xf]
        %v1440 = vld [vmem:[#allocation2 + $0x450] sm:$0xf]
        %v1441 = vld [vmem:[#allocation2 + $0x454] sm:$0xf]
        %v1442 = vld [vmem:[#allocation2 + $0x458] sm:$0xf]
        %v1443 = vld [vmem:[#allocation2 + $0x45c] sm:$0xf]
        %v1444 = vld [vmem:[#allocation2 + $0x460] sm:$0xf]
        %v1445 = vld [vmem:[#allocation2 + $0x464] sm:$0xf]
        %v1446 = vld [vmem:[#allocation2 + $0x468] sm:$0xf]
        %v1447 = vld [vmem:[#allocation2 + $0x46c] sm:$0xf]
        %v1448 = vld [vmem:[#allocation2 + $0x470] sm:$0xf]
        %v1449 = vld [vmem:[#allocation2 + $0x474] sm:$0xf]
        %v1450 = vld [vmem:[#allocation2 + $0x478] sm:$0xf]
        %v1451 = vld [vmem:[#allocation2 + $0x47c] sm:$0xf]
        %v1452 = vld [vmem:[#allocation2 + $0x480] sm:$0xf]
        %v1453 = vld [vmem:[#allocation2 + $0x484] sm:$0xf]
        %v1454 = vld [vmem:[#allocation2 + $0x488] sm:$0xf]
        %v1455 = vld [vmem:[#allocation2 + $0x48c] sm:$0xf]
        %v1456 = vld [vmem:[#allocation2 + $0x490] sm:$0xf]
        %v1457 = vld [vmem:[#allocation2 + $0x494] sm:$0xf]
        %v1458 = vld [vmem:[#allocation2 + $0x498] sm:$0xf]
        %v1459 = vld [vmem:[#allocation2 + $0x49c] sm:$0xf]
        %v1462 = vunpack.c.l.b16 %v1162
        %v1463 = vunpack.c.h.b16 %v1162
        %v1464 = vunpack.c.l.b16 %v1163
        %v1465 = vpack.c.b16 %v1462, %v1462
        %v1466 = vpack.c.b16 %v1463, %v1463
        %v1467 = vpack.c.b16 %v1464, %v1464
        %v1507 = vunpack.c.l.b16 %v1164
        %v1508 = vunpack.c.l.b16 %v1165
        %v1509 = vunpack.c.l.b16 %v1166
        %v1510 = vunpack.c.l.b16 %v1167
        %v1511 = vunpack.c.l.b16 %v1168
        %v1512 = vunpack.c.l.b16 %v1169
        %v1513 = vunpack.c.l.b16 %v1170
        %v1514 = vunpack.c.l.b16 %v1171
        %v1515 = vunpack.c.l.b16 %v1172
        %v1516 = vunpack.c.l.b16 %v1173
        %v1517 = vunpack.c.l.b16 %v1174
        %v1518 = vunpack.c.l.b16 %v1175
        %v1519 = vunpack.c.l.b16 %v1176
        %v1520 = vunpack.c.l.b16 %v1177
        %v1521 = vunpack.c.l.b16 %v1178
        %v1522 = vunpack.c.l.b16 %v1179
        %v1523 = vunpack.c.l.b16 %v1180
        %v1524 = vunpack.c.l.b16 %v1181
        %v1525 = vunpack.c.l.b16 %v1182
        %v1526 = vunpack.c.l.b16 %v1183
        %v1527 = vunpack.c.l.b16 %v1184
        %v1528 = vunpack.c.l.b16 %v1185
        %v1529 = vunpack.c.l.b16 %v1186
        %v1530 = vunpack.c.l.b16 %v1187
        %v1531 = vunpack.c.l.b16 %v1188
        %v1532 = vunpack.c.l.b16 %v1189
        %v1533 = vunpack.c.l.b16 %v1190
        %v1534 = vunpack.c.l.b16 %v1191
        %v1535 = vunpack.c.l.b16 %v1192
        %v1536 = vunpack.c.l.b16 %v1193
        %v1537 = vunpack.c.l.b16 %v1194
        %v1538 = vunpack.c.l.b16 %v1195
        %v1539 = vunpack.c.l.b16 %v1196
        %v1540 = vunpack.c.l.b16 %v1197
        %v1541 = vunpack.c.l.b16 %v1198
        %v1542 = vunpack.c.l.b16 %v1199
        %v1543 = vunpack.c.l.b16 %v1200
        %v1544 = vpack.c.b16 %v1508, %v1507
        %v1545 = vpack.c.b16 %v1510, %v1509
        %v1546 = vpack.c.b16 %v1512, %v1511
        %v1547 = vpack.c.b16 %v1514, %v1513
        %v1548 = vpack.c.b16 %v1516, %v1515
        %v1549 = vpack.c.b16 %v1518, %v1517
        %v1550 = vpack.c.b16 %v1520, %v1519
        %v1551 = vpack.c.b16 %v1522, %v1521
        %v1552 = vpack.c.b16 %v1524, %v1523
        %v1553 = vpack.c.b16 %v1526, %v1525
        %v1554 = vpack.c.b16 %v1528, %v1527
        %v1555 = vpack.c.b16 %v1530, %v1529
        %v1556 = vpack.c.b16 %v1532, %v1531
        %v1557 = vpack.c.b16 %v1534, %v1533
        %v1558 = vpack.c.b16 %v1536, %v1535
        %v1559 = vpack.c.b16 %v1538, %v1537
        %v1560 = vpack.c.b16 %v1540, %v1539
        %v1561 = vpack.c.b16 %v1542, %v1541
        %v1562 = vpack.c.b16 %v1543, %v1543
        %vm1581 = vcmask 326656
        %v1583 = vsel %vm1581, %v1467, 0
        %vm1585 = vcmask 1043456
        %v1587 = vsel %vm1585, %v1562, 0
        %1589 = vmatprep.subr.bf16.mxu0 0
        %1590 = vmatpush1.bf16.msra.mxu0 %v1551
        %1591 = vmatprep.subr.bf16.mxu0 0
        %1592 = vmatpush1.bf16.msra.mxu0 %v1550
        %1593 = vmatprep.subr.bf16.mxu0 0
        %1594 = vmatpush1.bf16.msra.mxu0 %v1549
        %1595 = vmatprep.subr.bf16.mxu0 0
        %1596 = vmatpush1.bf16.msra.mxu0 %v1548
        %1597 = vmatprep.subr.bf16.mxu0 0
        %1598 = vmatpush1.bf16.msra.mxu0 %v1547
        %1599 = vmatprep.subr.bf16.mxu0 0
        %1600 = vmatpush1.bf16.msra.mxu0 %v1546
        %1601 = vmatprep.subr.bf16.mxu0 0
        %1602 = vmatpush1.bf16.msra.mxu0 %v1545
        %1603 = vmatprep.subr.bf16.mxu0 0
        %1604 = vmatpush1.bf16.msra.mxu0 %v1544
        %1605 = vmatprep.subr.bf16.mxu0 0
        %1606 = vmatpush2.bf16.msra.mxu0 %v1559
        %1607 = vmatprep.subr.bf16.mxu0 0
        %1608 = vmatpush2.bf16.msra.mxu0 %v1558
        %1609 = vmatprep.subr.bf16.mxu0 0
        %1610 = vmatpush2.bf16.msra.mxu0 %v1557
        %1611 = vmatprep.subr.bf16.mxu0 0
        %1612 = vmatpush2.bf16.msra.mxu0 %v1556
        %1613 = vmatprep.subr.bf16.mxu0 0
        %1614 = vmatpush2.bf16.msra.mxu0 %v1555
        %1615 = vmatprep.subr.bf16.mxu0 0
        %1616 = vmatpush2.bf16.msra.mxu0 %v1554
        %1617 = vmatprep.subr.bf16.mxu0 0
        %1618 = vmatpush2.bf16.msra.mxu0 %v1553
        %1619 = vmatprep.subr.bf16.mxu0 0
        %1620 = vmatpush2.bf16.msra.mxu0 %v1552
        %1621 = vmatprep.mubr.bf16.mxu0 %v1466
        %1622 = vmatmul.mubr.bf16.gmra.mxu0 %v1465
        %v1623 = vpop.f32.mrf.mxu0
        %v1624 = vadd.f32 0.0, %v1623
        %v1625 = vpop.f32.mrf.mxu0
        %v1626 = vpop.f32.mrf.mxu0
        %v1627 = vpop.f32.mrf.mxu0
        %1628 = vdwg.mxu0
        %1629 = vmatprep.subr.bf16.mxu0 0
        %1630 = vmatpush1.bf16.msra.mxu0 0
        %1631 = vmatprep.subr.bf16.mxu0 0
        %1632 = vmatpush1.bf16.msra.mxu0 0
        %1633 = vmatprep.subr.bf16.mxu0 0
        %1634 = vmatpush1.bf16.msra.mxu0 0
        %1635 = vmatprep.subr.bf16.mxu0 0
        %1636 = vmatpush1.bf16.msra.mxu0 0
        %1637 = vmatprep.subr.bf16.mxu0 0
        %1638 = vmatpush1.bf16.msra.mxu0 0
        %1639 = vmatprep.subr.bf16.mxu0 0
        %1640 = vmatpush1.bf16.msra.mxu0 %v1587
        %1641 = vmatprep.subr.bf16.mxu0 0
        %1642 = vmatpush1.bf16.msra.mxu0 %v1561
        %1643 = vmatprep.subr.bf16.mxu0 0
        %1644 = vmatpush1.bf16.msra.mxu0 %v1560
        %1645 = vmatprep.subr.bf16.mxu0 0
        %1646 = vmatpush2.bf16.msra.mxu0 0
        %1647 = vmatprep.subr.bf16.mxu0 0
        %1648 = vmatpush2.bf16.msra.mxu0 0
        %1649 = vmatprep.subr.bf16.mxu0 0
        %1650 = vmatpush2.bf16.msra.mxu0 0
        %1651 = vmatprep.subr.bf16.mxu0 0
        %1652 = vmatpush2.bf16.msra.mxu0 0
        %1653 = vmatprep.subr.bf16.mxu0 0
        %1654 = vmatpush2.bf16.msra.mxu0 0
        %1655 = vmatprep.subr.bf16.mxu0 0
        %1656 = vmatpush2.bf16.msra.mxu0 0
        %1657 = vmatprep.subr.bf16.mxu0 0
        %1658 = vmatpush2.bf16.msra.mxu0 0
        %1659 = vmatprep.subr.bf16.mxu0 0
        %1660 = vmatpush2.bf16.msra.mxu0 0
        %1661 = vmatprep.mubr.bf16.mxu0 0
        %1662 = vmatmul.mubr.bf16.gmra.mxu0 %v1583
        %v1663 = vpop.f32.mrf.mxu0
        %v1664 = vadd.f32 %v1624, %v1663
        %v1665 = vpop.f32.mrf.mxu0
        %v1666 = vpop.f32.mrf.mxu0
        %v1667 = vpop.f32.mrf.mxu0
        %1668 = vdwg.mxu0
        %v1706 = vunpack.c.l.b16 %v1201
        %v1707 = vunpack.c.l.b16 %v1202
        %v1708 = vunpack.c.l.b16 %v1203
        %v1709 = vunpack.c.l.b16 %v1204
        %v1710 = vunpack.c.l.b16 %v1205
        %v1711 = vunpack.c.l.b16 %v1206
        %v1712 = vunpack.c.l.b16 %v1207
        %v1713 = vunpack.c.l.b16 %v1208
        %v1714 = vunpack.c.l.b16 %v1209
        %v1715 = vunpack.c.l.b16 %v1210
        %v1716 = vunpack.c.l.b16 %v1211
        %v1717 = vunpack.c.l.b16 %v1212
        %v1718 = vunpack.c.l.b16 %v1213
        %v1719 = vunpack.c.l.b16 %v1214
        %v1720 = vunpack.c.l.b16 %v1215
        %v1721 = vunpack.c.l.b16 %v1216
        %v1722 = vunpack.c.l.b16 %v1217
        %v1723 = vunpack.c.l.b16 %v1218
        %v1724 = vunpack.c.l.b16 %v1219
        %v1725 = vunpack.c.l.b16 %v1220
        %v1726 = vunpack.c.l.b16 %v1221
        %v1727 = vunpack.c.l.b16 %v1222
        %v1728 = vunpack.c.l.b16 %v1223
        %v1729 = vunpack.c.l.b16 %v1224
        %v1730 = vunpack.c.l.b16 %v1225
        %v1731 = vunpack.c.l.b16 %v1226
        %v1732 = vunpack.c.l.b16 %v1227
        %v1733 = vunpack.c.l.b16 %v1228
        %v1734 = vunpack.c.l.b16 %v1229
        %v1735 = vunpack.c.l.b16 %v1230
        %v1736 = vunpack.c.l.b16 %v1231
        %v1737 = vunpack.c.l.b16 %v1232
        %v1738 = vunpack.c.l.b16 %v1233
        %v1739 = vunpack.c.l.b16 %v1234
        %v1740 = vunpack.c.l.b16 %v1235
        %v1741 = vunpack.c.l.b16 %v1236
        %v1742 = vunpack.c.l.b16 %v1237
        %v1743 = vpack.c.b16 %v1707, %v1706
        %v1744 = vpack.c.b16 %v1709, %v1708
        %v1745 = vpack.c.b16 %v1711, %v1710
        %v1746 = vpack.c.b16 %v1713, %v1712
        %v1747 = vpack.c.b16 %v1715, %v1714
        %v1748 = vpack.c.b16 %v1717, %v1716
        %v1749 = vpack.c.b16 %v1719, %v1718
        %v1750 = vpack.c.b16 %v1721, %v1720
        %v1751 = vpack.c.b16 %v1723, %v1722
        %v1752 = vpack.c.b16 %v1725, %v1724
        %v1753 = vpack.c.b16 %v1727, %v1726
        %v1754 = vpack.c.b16 %v1729, %v1728
        %v1755 = vpack.c.b16 %v1731, %v1730
        %v1756 = vpack.c.b16 %v1733, %v1732
        %v1757 = vpack.c.b16 %v1735, %v1734
        %v1758 = vpack.c.b16 %v1737, %v1736
        %v1759 = vpack.c.b16 %v1739, %v1738
        %v1760 = vpack.c.b16 %v1741, %v1740
        %v1761 = vpack.c.b16 %v1742, %v1742
        %v1781 = vsel %vm1585, %v1761, 0
        %1783 = vmatprep.subr.bf16.mxu0 0
        %1784 = vmatpush1.bf16.msra.mxu0 %v1750
        %1785 = vmatprep.subr.bf16.mxu0 0
        %1786 = vmatpush1.bf16.msra.mxu0 %v1749
        %1787 = vmatprep.subr.bf16.mxu0 0
        %1788 = vmatpush1.bf16.msra.mxu0 %v1748
        %1789 = vmatprep.subr.bf16.mxu0 0
        %1790 = vmatpush1.bf16.msra.mxu0 %v1747
        %1791 = vmatprep.subr.bf16.mxu0 0
        %1792 = vmatpush1.bf16.msra.mxu0 %v1746
        %1793 = vmatprep.subr.bf16.mxu0 0
        %1794 = vmatpush1.bf16.msra.mxu0 %v1745
        %1795 = vmatprep.subr.bf16.mxu0 0
        %1796 = vmatpush1.bf16.msra.mxu0 %v1744
        %1797 = vmatprep.subr.bf16.mxu0 0
        %1798 = vmatpush1.bf16.msra.mxu0 %v1743
        %1799 = vmatprep.subr.bf16.mxu0 0
        %1800 = vmatpush2.bf16.msra.mxu0 %v1758
        %1801 = vmatprep.subr.bf16.mxu0 0
        %1802 = vmatpush2.bf16.msra.mxu0 %v1757
        %1803 = vmatprep.subr.bf16.mxu0 0
        %1804 = vmatpush2.bf16.msra.mxu0 %v1756
        %1805 = vmatprep.subr.bf16.mxu0 0
        %1806 = vmatpush2.bf16.msra.mxu0 %v1755
        %1807 = vmatprep.subr.bf16.mxu0 0
        %1808 = vmatpush2.bf16.msra.mxu0 %v1754
        %1809 = vmatprep.subr.bf16.mxu0 0
        %1810 = vmatpush2.bf16.msra.mxu0 %v1753
        %1811 = vmatprep.subr.bf16.mxu0 0
        %1812 = vmatpush2.bf16.msra.mxu0 %v1752
        %1813 = vmatprep.subr.bf16.mxu0 0
        %1814 = vmatpush2.bf16.msra.mxu0 %v1751
        %1815 = vmatprep.mubr.bf16.mxu0 %v1466
        %1816 = vmatmul.mubr.bf16.gmra.mxu0 %v1465
        %v1817 = vpop.f32.mrf.mxu0
        %v1818 = vadd.f32 0.0, %v1817
        %v1819 = vpop.f32.mrf.mxu0
        %v1820 = vpop.f32.mrf.mxu0
        %v1821 = vpop.f32.mrf.mxu0
        %1822 = vdwg.mxu0
        %1823 = vmatprep.subr.bf16.mxu0 0
        %1824 = vmatpush1.bf16.msra.mxu0 0
        %1825 = vmatprep.subr.bf16.mxu0 0
        %1826 = vmatpush1.bf16.msra.mxu0 0
        %1827 = vmatprep.subr.bf16.mxu0 0
        %1828 = vmatpush1.bf16.msra.mxu0 0
        %1829 = vmatprep.subr.bf16.mxu0 0
        %1830 = vmatpush1.bf16.msra.mxu0 0
        %1831 = vmatprep.subr.bf16.mxu0 0
        %1832 = vmatpush1.bf16.msra.mxu0 0
        %1833 = vmatprep.subr.bf16.mxu0 0
        %1834 = vmatpush1.bf16.msra.mxu0 %v1781
        %1835 = vmatprep.subr.bf16.mxu0 0
        %1836 = vmatpush1.bf16.msra.mxu0 %v1760
        %1837 = vmatprep.subr.bf16.mxu0 0
        %1838 = vmatpush1.bf16.msra.mxu0 %v1759
        %1839 = vmatprep.subr.bf16.mxu0 0
        %1840 = vmatpush2.bf16.msra.mxu0 0
        %1841 = vmatprep.subr.bf16.mxu0 0
        %1842 = vmatpush2.bf16.msra.mxu0 0
        %1843 = vmatprep.subr.bf16.mxu0 0
        %1844 = vmatpush2.bf16.msra.mxu0 0
        %1845 = vmatprep.subr.bf16.mxu0 0
        %1846 = vmatpush2.bf16.msra.mxu0 0
        %1847 = vmatprep.subr.bf16.mxu0 0
        %1848 = vmatpush2.bf16.msra.mxu0 0
        %1849 = vmatprep.subr.bf16.mxu0 0
        %1850 = vmatpush2.bf16.msra.mxu0 0
        %1851 = vmatprep.subr.bf16.mxu0 0
        %1852 = vmatpush2.bf16.msra.mxu0 0
        %1853 = vmatprep.subr.bf16.mxu0 0
        %1854 = vmatpush2.bf16.msra.mxu0 0
        %1855 = vmatprep.mubr.bf16.mxu0 0
        %1856 = vmatmul.mubr.bf16.gmra.mxu0 %v1583
        %v1857 = vpop.f32.mrf.mxu0
        %v1858 = vadd.f32 %v1818, %v1857
        %v1859 = vpop.f32.mrf.mxu0
        %v1860 = vpop.f32.mrf.mxu0
        %v1861 = vpop.f32.mrf.mxu0
        %1862 = vdwg.mxu0
        %v1900 = vunpack.c.l.b16 %v1238
        %v1901 = vunpack.c.l.b16 %v1239
        %v1902 = vunpack.c.l.b16 %v1240
        %v1903 = vunpack.c.l.b16 %v1241
        %v1904 = vunpack.c.l.b16 %v1242
        %v1905 = vunpack.c.l.b16 %v1243
        %v1906 = vunpack.c.l.b16 %v1244
        %v1907 = vunpack.c.l.b16 %v1245
        %v1908 = vunpack.c.l.b16 %v1246
        %v1909 = vunpack.c.l.b16 %v1247
        %v1910 = vunpack.c.l.b16 %v1248
        %v1911 = vunpack.c.l.b16 %v1249
        %v1912 = vunpack.c.l.b16 %v1250
        %v1913 = vunpack.c.l.b16 %v1251
        %v1914 = vunpack.c.l.b16 %v1252
        %v1915 = vunpack.c.l.b16 %v1253
        %v1916 = vunpack.c.l.b16 %v1254
        %v1917 = vunpack.c.l.b16 %v1255
        %v1918 = vunpack.c.l.b16 %v1256
        %v1919 = vunpack.c.l.b16 %v1257
        %v1920 = vunpack.c.l.b16 %v1258
        %v1921 = vunpack.c.l.b16 %v1259
        %v1922 = vunpack.c.l.b16 %v1260
        %v1923 = vunpack.c.l.b16 %v1261
        %v1924 = vunpack.c.l.b16 %v1262
        %v1925 = vunpack.c.l.b16 %v1263
        %v1926 = vunpack.c.l.b16 %v1264
        %v1927 = vunpack.c.l.b16 %v1265
        %v1928 = vunpack.c.l.b16 %v1266
        %v1929 = vunpack.c.l.b16 %v1267
        %v1930 = vunpack.c.l.b16 %v1268
        %v1931 = vunpack.c.l.b16 %v1269
        %v1932 = vunpack.c.l.b16 %v1270
        %v1933 = vunpack.c.l.b16 %v1271
        %v1934 = vunpack.c.l.b16 %v1272
        %v1935 = vunpack.c.l.b16 %v1273
        %v1936 = vunpack.c.l.b16 %v1274
        %v1937 = vpack.c.b16 %v1901, %v1900
        %v1938 = vpack.c.b16 %v1903, %v1902
        %v1939 = vpack.c.b16 %v1905, %v1904
        %v1940 = vpack.c.b16 %v1907, %v1906
        %v1941 = vpack.c.b16 %v1909, %v1908
        %v1942 = vpack.c.b16 %v1911, %v1910
        %v1943 = vpack.c.b16 %v1913, %v1912
        %v1944 = vpack.c.b16 %v1915, %v1914
        %v1945 = vpack.c.b16 %v1917, %v1916
        %v1946 = vpack.c.b16 %v1919, %v1918
        %v1947 = vpack.c.b16 %v1921, %v1920
        %v1948 = vpack.c.b16 %v1923, %v1922
        %v1949 = vpack.c.b16 %v1925, %v1924
        %v1950 = vpack.c.b16 %v1927, %v1926
        %v1951 = vpack.c.b16 %v1929, %v1928
        %v1952 = vpack.c.b16 %v1931, %v1930
        %v1953 = vpack.c.b16 %v1933, %v1932
        %v1954 = vpack.c.b16 %v1935, %v1934
        %v1955 = vpack.c.b16 %v1936, %v1936
        %v1975 = vsel %vm1585, %v1955, 0
        %1977 = vmatprep.subr.bf16.mxu0 0
        %1978 = vmatpush1.bf16.msra.mxu0 %v1944
        %1979 = vmatprep.subr.bf16.mxu0 0
        %1980 = vmatpush1.bf16.msra.mxu0 %v1943
        %1981 = vmatprep.subr.bf16.mxu0 0
        %1982 = vmatpush1.bf16.msra.mxu0 %v1942
        %1983 = vmatprep.subr.bf16.mxu0 0
        %1984 = vmatpush1.bf16.msra.mxu0 %v1941
        %1985 = vmatprep.subr.bf16.mxu0 0
        %1986 = vmatpush1.bf16.msra.mxu0 %v1940
        %1987 = vmatprep.subr.bf16.mxu0 0
        %1988 = vmatpush1.bf16.msra.mxu0 %v1939
        %1989 = vmatprep.subr.bf16.mxu0 0
        %1990 = vmatpush1.bf16.msra.mxu0 %v1938
        %1991 = vmatprep.subr.bf16.mxu0 0
        %1992 = vmatpush1.bf16.msra.mxu0 %v1937
        %1993 = vmatprep.subr.bf16.mxu0 0
        %1994 = vmatpush2.bf16.msra.mxu0 %v1952
        %1995 = vmatprep.subr.bf16.mxu0 0
        %1996 = vmatpush2.bf16.msra.mxu0 %v1951
        %1997 = vmatprep.subr.bf16.mxu0 0
        %1998 = vmatpush2.bf16.msra.mxu0 %v1950
        %1999 = vmatprep.subr.bf16.mxu0 0
        %2000 = vmatpush2.bf16.msra.mxu0 %v1949
        %2001 = vmatprep.subr.bf16.mxu0 0
        %2002 = vmatpush2.bf16.msra.mxu0 %v1948
        %2003 = vmatprep.subr.bf16.mxu0 0
        %2004 = vmatpush2.bf16.msra.mxu0 %v1947
        %2005 = vmatprep.subr.bf16.mxu0 0
        %2006 = vmatpush2.bf16.msra.mxu0 %v1946
        %2007 = vmatprep.subr.bf16.mxu0 0
        %2008 = vmatpush2.bf16.msra.mxu0 %v1945
        %2009 = vmatprep.mubr.bf16.mxu0 %v1466
        %2010 = vmatmul.mubr.bf16.gmra.mxu0 %v1465
        %v2011 = vpop.f32.mrf.mxu0
        %v2012 = vadd.f32 0.0, %v2011
        %v2013 = vpop.f32.mrf.mxu0
        %v2014 = vpop.f32.mrf.mxu0
        %v2015 = vpop.f32.mrf.mxu0
        %2016 = vdwg.mxu0
        %2017 = vmatprep.subr.bf16.mxu0 0
        %2018 = vmatpush1.bf16.msra.mxu0 0
        %2019 = vmatprep.subr.bf16.mxu0 0
        %2020 = vmatpush1.bf16.msra.mxu0 0
        %2021 = vmatprep.subr.bf16.mxu0 0
        %2022 = vmatpush1.bf16.msra.mxu0 0
        %2023 = vmatprep.subr.bf16.mxu0 0
        %2024 = vmatpush1.bf16.msra.mxu0 0
        %2025 = vmatprep.subr.bf16.mxu0 0
        %2026 = vmatpush1.bf16.msra.mxu0 0
        %2027 = vmatprep.subr.bf16.mxu0 0
        %2028 = vmatpush1.bf16.msra.mxu0 %v1975
        %2029 = vmatprep.subr.bf16.mxu0 0
        %2030 = vmatpush1.bf16.msra.mxu0 %v1954
        %2031 = vmatprep.subr.bf16.mxu0 0
        %2032 = vmatpush1.bf16.msra.mxu0 %v1953
        %2033 = vmatprep.subr.bf16.mxu0 0
        %2034 = vmatpush2.bf16.msra.mxu0 0
        %2035 = vmatprep.subr.bf16.mxu0 0
        %2036 = vmatpush2.bf16.msra.mxu0 0
        %2037 = vmatprep.subr.bf16.mxu0 0
        %2038 = vmatpush2.bf16.msra.mxu0 0
        %2039 = vmatprep.subr.bf16.mxu0 0
        %2040 = vmatpush2.bf16.msra.mxu0 0
        %2041 = vmatprep.subr.bf16.mxu0 0
        %2042 = vmatpush2.bf16.msra.mxu0 0
        %2043 = vmatprep.subr.bf16.mxu0 0
        %2044 = vmatpush2.bf16.msra.mxu0 0
        %2045 = vmatprep.subr.bf16.mxu0 0
        %2046 = vmatpush2.bf16.msra.mxu0 0
        %2047 = vmatprep.subr.bf16.mxu0 0
        %2048 = vmatpush2.bf16.msra.mxu0 0
        %2049 = vmatprep.mubr.bf16.mxu0 0
        %2050 = vmatmul.mubr.bf16.gmra.mxu0 %v1583
        %v2051 = vpop.f32.mrf.mxu0
        %v2052 = vadd.f32 %v2012, %v2051
        %v2053 = vpop.f32.mrf.mxu0
        %v2054 = vpop.f32.mrf.mxu0
        %v2055 = vpop.f32.mrf.mxu0
        %2056 = vdwg.mxu0
        %v2094 = vunpack.c.l.b16 %v1275
        %v2095 = vunpack.c.l.b16 %v1276
        %v2096 = vunpack.c.l.b16 %v1277
        %v2097 = vunpack.c.l.b16 %v1278
        %v2098 = vunpack.c.l.b16 %v1279
        %v2099 = vunpack.c.l.b16 %v1280
        %v2100 = vunpack.c.l.b16 %v1281
        %v2101 = vunpack.c.l.b16 %v1282
        %v2102 = vunpack.c.l.b16 %v1283
        %v2103 = vunpack.c.l.b16 %v1284
        %v2104 = vunpack.c.l.b16 %v1285
        %v2105 = vunpack.c.l.b16 %v1286
        %v2106 = vunpack.c.l.b16 %v1287
        %v2107 = vunpack.c.l.b16 %v1288
        %v2108 = vunpack.c.l.b16 %v1289
        %v2109 = vunpack.c.l.b16 %v1290
        %v2110 = vunpack.c.l.b16 %v1291
        %v2111 = vunpack.c.l.b16 %v1292
        %v2112 = vunpack.c.l.b16 %v1293
        %v2113 = vunpack.c.l.b16 %v1294
        %v2114 = vunpack.c.l.b16 %v1295
        %v2115 = vunpack.c.l.b16 %v1296
        %v2116 = vunpack.c.l.b16 %v1297
        %v2117 = vunpack.c.l.b16 %v1298
        %v2118 = vunpack.c.l.b16 %v1299
        %v2119 = vunpack.c.l.b16 %v1300
        %v2120 = vunpack.c.l.b16 %v1301
        %v2121 = vunpack.c.l.b16 %v1302
        %v2122 = vunpack.c.l.b16 %v1303
        %v2123 = vunpack.c.l.b16 %v1304
        %v2124 = vunpack.c.l.b16 %v1305
        %v2125 = vunpack.c.l.b16 %v1306
        %v2126 = vunpack.c.l.b16 %v1307
        %v2127 = vunpack.c.l.b16 %v1308
        %v2128 = vunpack.c.l.b16 %v1309
        %v2129 = vunpack.c.l.b16 %v1310
        %v2130 = vunpack.c.l.b16 %v1311
        %v2131 = vpack.c.b16 %v2095, %v2094
        %v2132 = vpack.c.b16 %v2097, %v2096
        %v2133 = vpack.c.b16 %v2099, %v2098
        %v2134 = vpack.c.b16 %v2101, %v2100
        %v2135 = vpack.c.b16 %v2103, %v2102
        %v2136 = vpack.c.b16 %v2105, %v2104
        %v2137 = vpack.c.b16 %v2107, %v2106
        %v2138 = vpack.c.b16 %v2109, %v2108
        %v2139 = vpack.c.b16 %v2111, %v2110
        %v2140 = vpack.c.b16 %v2113, %v2112
        %v2141 = vpack.c.b16 %v2115, %v2114
        %v2142 = vpack.c.b16 %v2117, %v2116
        %v2143 = vpack.c.b16 %v2119, %v2118
        %v2144 = vpack.c.b16 %v2121, %v2120
        %v2145 = vpack.c.b16 %v2123, %v2122
        %v2146 = vpack.c.b16 %v2125, %v2124
        %v2147 = vpack.c.b16 %v2127, %v2126
        %v2148 = vpack.c.b16 %v2129, %v2128
        %v2149 = vpack.c.b16 %v2130, %v2130
        %v2169 = vsel %vm1585, %v2149, 0
        %2171 = vmatprep.subr.bf16.mxu0 0
        %2172 = vmatpush1.bf16.msra.mxu0 %v2138
        %2173 = vmatprep.subr.bf16.mxu0 0
        %2174 = vmatpush1.bf16.msra.mxu0 %v2137
        %2175 = vmatprep.subr.bf16.mxu0 0
        %2176 = vmatpush1.bf16.msra.mxu0 %v2136
        %2177 = vmatprep.subr.bf16.mxu0 0
        %2178 = vmatpush1.bf16.msra.mxu0 %v2135
        %2179 = vmatprep.subr.bf16.mxu0 0
        %2180 = vmatpush1.bf16.msra.mxu0 %v2134
        %2181 = vmatprep.subr.bf16.mxu0 0
        %2182 = vmatpush1.bf16.msra.mxu0 %v2133
        %2183 = vmatprep.subr.bf16.mxu0 0
        %2184 = vmatpush1.bf16.msra.mxu0 %v2132
        %2185 = vmatprep.subr.bf16.mxu0 0
        %2186 = vmatpush1.bf16.msra.mxu0 %v2131
        %2187 = vmatprep.subr.bf16.mxu0 0
        %2188 = vmatpush2.bf16.msra.mxu0 %v2146
        %2189 = vmatprep.subr.bf16.mxu0 0
        %2190 = vmatpush2.bf16.msra.mxu0 %v2145
        %2191 = vmatprep.subr.bf16.mxu0 0
        %2192 = vmatpush2.bf16.msra.mxu0 %v2144
        %2193 = vmatprep.subr.bf16.mxu0 0
        %2194 = vmatpush2.bf16.msra.mxu0 %v2143
        %2195 = vmatprep.subr.bf16.mxu0 0
        %2196 = vmatpush2.bf16.msra.mxu0 %v2142
        %2197 = vmatprep.subr.bf16.mxu0 0
        %2198 = vmatpush2.bf16.msra.mxu0 %v2141
        %2199 = vmatprep.subr.bf16.mxu0 0
        %2200 = vmatpush2.bf16.msra.mxu0 %v2140
        %2201 = vmatprep.subr.bf16.mxu0 0
        %2202 = vmatpush2.bf16.msra.mxu0 %v2139
        %2203 = vmatprep.mubr.bf16.mxu0 %v1466
        %2204 = vmatmul.mubr.bf16.gmra.mxu0 %v1465
        %v2205 = vpop.f32.mrf.mxu0
        %v2206 = vadd.f32 0.0, %v2205
        %v2207 = vpop.f32.mrf.mxu0
        %v2208 = vpop.f32.mrf.mxu0
        %v2209 = vpop.f32.mrf.mxu0
        %2210 = vdwg.mxu0
        %2211 = vmatprep.subr.bf16.mxu0 0
        %2212 = vmatpush1.bf16.msra.mxu0 0
        %2213 = vmatprep.subr.bf16.mxu0 0
        %2214 = vmatpush1.bf16.msra.mxu0 0
        %2215 = vmatprep.subr.bf16.mxu0 0
        %2216 = vmatpush1.bf16.msra.mxu0 0
        %2217 = vmatprep.subr.bf16.mxu0 0
        %2218 = vmatpush1.bf16.msra.mxu0 0
        %2219 = vmatprep.subr.bf16.mxu0 0
        %2220 = vmatpush1.bf16.msra.mxu0 0
        %2221 = vmatprep.subr.bf16.mxu0 0
        %2222 = vmatpush1.bf16.msra.mxu0 %v2169
        %2223 = vmatprep.subr.bf16.mxu0 0
        %2224 = vmatpush1.bf16.msra.mxu0 %v2148
        %2225 = vmatprep.subr.bf16.mxu0 0
        %2226 = vmatpush1.bf16.msra.mxu0 %v2147
        %2227 = vmatprep.subr.bf16.mxu0 0
        %2228 = vmatpush2.bf16.msra.mxu0 0
        %2229 = vmatprep.subr.bf16.mxu0 0
        %2230 = vmatpush2.bf16.msra.mxu0 0
        %2231 = vmatprep.subr.bf16.mxu0 0
        %2232 = vmatpush2.bf16.msra.mxu0 0
        %2233 = vmatprep.subr.bf16.mxu0 0
        %2234 = vmatpush2.bf16.msra.mxu0 0
        %2235 = vmatprep.subr.bf16.mxu0 0
        %2236 = vmatpush2.bf16.msra.mxu0 0
        %2237 = vmatprep.subr.bf16.mxu0 0
        %2238 = vmatpush2.bf16.msra.mxu0 0
        %2239 = vmatprep.subr.bf16.mxu0 0
        %2240 = vmatpush2.bf16.msra.mxu0 0
        %2241 = vmatprep.subr.bf16.mxu0 0
        %2242 = vmatpush2.bf16.msra.mxu0 0
        %2243 = vmatprep.mubr.bf16.mxu0 0
        %2244 = vmatmul.mubr.bf16.gmra.mxu0 %v1583
        %v2245 = vpop.f32.mrf.mxu0
        %v2246 = vadd.f32 %v2206, %v2245
        %v2247 = vpop.f32.mrf.mxu0
        %v2248 = vpop.f32.mrf.mxu0
        %v2249 = vpop.f32.mrf.mxu0
        %2250 = vdwg.mxu0
        %v2288 = vunpack.c.l.b16 %v1312
        %v2289 = vunpack.c.l.b16 %v1313
        %v2290 = vunpack.c.l.b16 %v1314
        %v2291 = vunpack.c.l.b16 %v1315
        %v2292 = vunpack.c.l.b16 %v1316
        %v2293 = vunpack.c.l.b16 %v1317
        %v2294 = vunpack.c.l.b16 %v1318
        %v2295 = vunpack.c.l.b16 %v1319
        %v2296 = vunpack.c.l.b16 %v1320
        %v2297 = vunpack.c.l.b16 %v1321
        %v2298 = vunpack.c.l.b16 %v1322
        %v2299 = vunpack.c.l.b16 %v1323
        %v2300 = vunpack.c.l.b16 %v1324
        %v2301 = vunpack.c.l.b16 %v1325
        %v2302 = vunpack.c.l.b16 %v1326
        %v2303 = vunpack.c.l.b16 %v1327
        %v2304 = vunpack.c.l.b16 %v1328
        %v2305 = vunpack.c.l.b16 %v1329
        %v2306 = vunpack.c.l.b16 %v1330
        %v2307 = vunpack.c.l.b16 %v1331
        %v2308 = vunpack.c.l.b16 %v1332
        %v2309 = vunpack.c.l.b16 %v1333
        %v2310 = vunpack.c.l.b16 %v1334
        %v2311 = vunpack.c.l.b16 %v1335
        %v2312 = vunpack.c.l.b16 %v1336
        %v2313 = vunpack.c.l.b16 %v1337
        %v2314 = vunpack.c.l.b16 %v1338
        %v2315 = vunpack.c.l.b16 %v1339
        %v2316 = vunpack.c.l.b16 %v1340
        %v2317 = vunpack.c.l.b16 %v1341
        %v2318 = vunpack.c.l.b16 %v1342
        %v2319 = vunpack.c.l.b16 %v1343
        %v2320 = vunpack.c.l.b16 %v1344
        %v2321 = vunpack.c.l.b16 %v1345
        %v2322 = vunpack.c.l.b16 %v1346
        %v2323 = vunpack.c.l.b16 %v1347
        %v2324 = vunpack.c.l.b16 %v1348
        %v2325 = vpack.c.b16 %v2289, %v2288
        %v2326 = vpack.c.b16 %v2291, %v2290
        %v2327 = vpack.c.b16 %v2293, %v2292
        %v2328 = vpack.c.b16 %v2295, %v2294
        %v2329 = vpack.c.b16 %v2297, %v2296
        %v2330 = vpack.c.b16 %v2299, %v2298
        %v2331 = vpack.c.b16 %v2301, %v2300
        %v2332 = vpack.c.b16 %v2303, %v2302
        %v2333 = vpack.c.b16 %v2305, %v2304
        %v2334 = vpack.c.b16 %v2307, %v2306
        %v2335 = vpack.c.b16 %v2309, %v2308
        %v2336 = vpack.c.b16 %v2311, %v2310
        %v2337 = vpack.c.b16 %v2313, %v2312
        %v2338 = vpack.c.b16 %v2315, %v2314
        %v2339 = vpack.c.b16 %v2317, %v2316
        %v2340 = vpack.c.b16 %v2319, %v2318
        %v2341 = vpack.c.b16 %v2321, %v2320
        %v2342 = vpack.c.b16 %v2323, %v2322
        %v2343 = vpack.c.b16 %v2324, %v2324
        %v2363 = vsel %vm1585, %v2343, 0
        %2365 = vmatprep.subr.bf16.mxu0 0
        %2366 = vmatpush1.bf16.msra.mxu0 %v2332
        %2367 = vmatprep.subr.bf16.mxu0 0
        %2368 = vmatpush1.bf16.msra.mxu0 %v2331
        %2369 = vmatprep.subr.bf16.mxu0 0
        %2370 = vmatpush1.bf16.msra.mxu0 %v2330
        %2371 = vmatprep.subr.bf16.mxu0 0
        %2372 = vmatpush1.bf16.msra.mxu0 %v2329
        %2373 = vmatprep.subr.bf16.mxu0 0
        %2374 = vmatpush1.bf16.msra.mxu0 %v2328
        %2375 = vmatprep.subr.bf16.mxu0 0
        %2376 = vmatpush1.bf16.msra.mxu0 %v2327
        %2377 = vmatprep.subr.bf16.mxu0 0
        %2378 = vmatpush1.bf16.msra.mxu0 %v2326
        %2379 = vmatprep.subr.bf16.mxu0 0
        %2380 = vmatpush1.bf16.msra.mxu0 %v2325
        %2381 = vmatprep.subr.bf16.mxu0 0
        %2382 = vmatpush2.bf16.msra.mxu0 %v2340
        %2383 = vmatprep.subr.bf16.mxu0 0
        %2384 = vmatpush2.bf16.msra.mxu0 %v2339
        %2385 = vmatprep.subr.bf16.mxu0 0
        %2386 = vmatpush2.bf16.msra.mxu0 %v2338
        %2387 = vmatprep.subr.bf16.mxu0 0
        %2388 = vmatpush2.bf16.msra.mxu0 %v2337
        %2389 = vmatprep.subr.bf16.mxu0 0
        %2390 = vmatpush2.bf16.msra.mxu0 %v2336
        %2391 = vmatprep.subr.bf16.mxu0 0
        %2392 = vmatpush2.bf16.msra.mxu0 %v2335
        %2393 = vmatprep.subr.bf16.mxu0 0
        %2394 = vmatpush2.bf16.msra.mxu0 %v2334
        %2395 = vmatprep.subr.bf16.mxu0 0
        %2396 = vmatpush2.bf16.msra.mxu0 %v2333
        %2397 = vmatprep.mubr.bf16.mxu0 %v1466
        %2398 = vmatmul.mubr.bf16.gmra.mxu0 %v1465
        %v2399 = vpop.f32.mrf.mxu0
        %v2400 = vadd.f32 0.0, %v2399
        %v2401 = vpop.f32.mrf.mxu0
        %v2402 = vpop.f32.mrf.mxu0
        %v2403 = vpop.f32.mrf.mxu0
        %2404 = vdwg.mxu0
        %2405 = vmatprep.subr.bf16.mxu0 0
        %2406 = vmatpush1.bf16.msra.mxu0 0
        %2407 = vmatprep.subr.bf16.mxu0 0
        %2408 = vmatpush1.bf16.msra.mxu0 0
        %2409 = vmatprep.subr.bf16.mxu0 0
        %2410 = vmatpush1.bf16.msra.mxu0 0
        %2411 = vmatprep.subr.bf16.mxu0 0
        %2412 = vmatpush1.bf16.msra.mxu0 0
        %2413 = vmatprep.subr.bf16.mxu0 0
        %2414 = vmatpush1.bf16.msra.mxu0 0
        %2415 = vmatprep.subr.bf16.mxu0 0
        %2416 = vmatpush1.bf16.msra.mxu0 %v2363
        %2417 = vmatprep.subr.bf16.mxu0 0
        %2418 = vmatpush1.bf16.msra.mxu0 %v2342
        %2419 = vmatprep.subr.bf16.mxu0 0
        %2420 = vmatpush1.bf16.msra.mxu0 %v2341
        %2421 = vmatprep.subr.bf16.mxu0 0
        %2422 = vmatpush2.bf16.msra.mxu0 0
        %2423 = vmatprep.subr.bf16.mxu0 0
        %2424 = vmatpush2.bf16.msra.mxu0 0
        %2425 = vmatprep.subr.bf16.mxu0 0
        %2426 = vmatpush2.bf16.msra.mxu0 0
        %2427 = vmatprep.subr.bf16.mxu0 0
        %2428 = vmatpush2.bf16.msra.mxu0 0
        %2429 = vmatprep.subr.bf16.mxu0 0
        %2430 = vmatpush2.bf16.msra.mxu0 0
        %2431 = vmatprep.subr.bf16.mxu0 0
        %2432 = vmatpush2.bf16.msra.mxu0 0
        %2433 = vmatprep.subr.bf16.mxu0 0
        %2434 = vmatpush2.bf16.msra.mxu0 0
        %2435 = vmatprep.subr.bf16.mxu0 0
        %2436 = vmatpush2.bf16.msra.mxu0 0
        %2437 = vmatprep.mubr.bf16.mxu0 0
        %2438 = vmatmul.mubr.bf16.gmra.mxu0 %v1583
        %v2439 = vpop.f32.mrf.mxu0
        %v2440 = vadd.f32 %v2400, %v2439
        %v2441 = vpop.f32.mrf.mxu0
        %v2442 = vpop.f32.mrf.mxu0
        %v2443 = vpop.f32.mrf.mxu0
        %2444 = vdwg.mxu0
        %v2482 = vunpack.c.l.b16 %v1349
        %v2483 = vunpack.c.l.b16 %v1350
        %v2484 = vunpack.c.l.b16 %v1351
        %v2485 = vunpack.c.l.b16 %v1352
        %v2486 = vunpack.c.l.b16 %v1353
        %v2487 = vunpack.c.l.b16 %v1354
        %v2488 = vunpack.c.l.b16 %v1355
        %v2489 = vunpack.c.l.b16 %v1356
        %v2490 = vunpack.c.l.b16 %v1357
        %v2491 = vunpack.c.l.b16 %v1358
        %v2492 = vunpack.c.l.b16 %v1359
        %v2493 = vunpack.c.l.b16 %v1360
        %v2494 = vunpack.c.l.b16 %v1361
        %v2495 = vunpack.c.l.b16 %v1362
        %v2496 = vunpack.c.l.b16 %v1363
        %v2497 = vunpack.c.l.b16 %v1364
        %v2498 = vunpack.c.l.b16 %v1365
        %v2499 = vunpack.c.l.b16 %v1366
        %v2500 = vunpack.c.l.b16 %v1367
        %v2501 = vunpack.c.l.b16 %v1368
        %v2502 = vunpack.c.l.b16 %v1369
        %v2503 = vunpack.c.l.b16 %v1370
        %v2504 = vunpack.c.l.b16 %v1371
        %v2505 = vunpack.c.l.b16 %v1372
        %v2506 = vunpack.c.l.b16 %v1373
        %v2507 = vunpack.c.l.b16 %v1374
        %v2508 = vunpack.c.l.b16 %v1375
        %v2509 = vunpack.c.l.b16 %v1376
        %v2510 = vunpack.c.l.b16 %v1377
        %v2511 = vunpack.c.l.b16 %v1378
        %v2512 = vunpack.c.l.b16 %v1379
        %v2513 = vunpack.c.l.b16 %v1380
        %v2514 = vunpack.c.l.b16 %v1381
        %v2515 = vunpack.c.l.b16 %v1382
        %v2516 = vunpack.c.l.b16 %v1383
        %v2517 = vunpack.c.l.b16 %v1384
        %v2518 = vunpack.c.l.b16 %v1385
        %v2519 = vpack.c.b16 %v2483, %v2482
        %v2520 = vpack.c.b16 %v2485, %v2484
        %v2521 = vpack.c.b16 %v2487, %v2486
        %v2522 = vpack.c.b16 %v2489, %v2488
        %v2523 = vpack.c.b16 %v2491, %v2490
        %v2524 = vpack.c.b16 %v2493, %v2492
        %v2525 = vpack.c.b16 %v2495, %v2494
        %v2526 = vpack.c.b16 %v2497, %v2496
        %v2527 = vpack.c.b16 %v2499, %v2498
        %v2528 = vpack.c.b16 %v2501, %v2500
        %v2529 = vpack.c.b16 %v2503, %v2502
        %v2530 = vpack.c.b16 %v2505, %v2504
        %v2531 = vpack.c.b16 %v2507, %v2506
        %v2532 = vpack.c.b16 %v2509, %v2508
        %v2533 = vpack.c.b16 %v2511, %v2510
        %v2534 = vpack.c.b16 %v2513, %v2512
        %v2535 = vpack.c.b16 %v2515, %v2514
        %v2536 = vpack.c.b16 %v2517, %v2516
        %v2537 = vpack.c.b16 %v2518, %v2518
        %v2557 = vsel %vm1585, %v2537, 0
        %2559 = vmatprep.subr.bf16.mxu0 0
        %2560 = vmatpush1.bf16.msra.mxu0 %v2526
        %2561 = vmatprep.subr.bf16.mxu0 0
        %2562 = vmatpush1.bf16.msra.mxu0 %v2525
        %2563 = vmatprep.subr.bf16.mxu0 0
        %2564 = vmatpush1.bf16.msra.mxu0 %v2524
        %2565 = vmatprep.subr.bf16.mxu0 0
        %2566 = vmatpush1.bf16.msra.mxu0 %v2523
        %2567 = vmatprep.subr.bf16.mxu0 0
        %2568 = vmatpush1.bf16.msra.mxu0 %v2522
        %2569 = vmatprep.subr.bf16.mxu0 0
        %2570 = vmatpush1.bf16.msra.mxu0 %v2521
        %2571 = vmatprep.subr.bf16.mxu0 0
        %2572 = vmatpush1.bf16.msra.mxu0 %v2520
        %2573 = vmatprep.subr.bf16.mxu0 0
        %2574 = vmatpush1.bf16.msra.mxu0 %v2519
        %2575 = vmatprep.subr.bf16.mxu0 0
        %2576 = vmatpush2.bf16.msra.mxu0 %v2534
        %2577 = vmatprep.subr.bf16.mxu0 0
        %2578 = vmatpush2.bf16.msra.mxu0 %v2533
        %2579 = vmatprep.subr.bf16.mxu0 0
        %2580 = vmatpush2.bf16.msra.mxu0 %v2532
        %2581 = vmatprep.subr.bf16.mxu0 0
        %2582 = vmatpush2.bf16.msra.mxu0 %v2531
        %2583 = vmatprep.subr.bf16.mxu0 0
        %2584 = vmatpush2.bf16.msra.mxu0 %v2530
        %2585 = vmatprep.subr.bf16.mxu0 0
        %2586 = vmatpush2.bf16.msra.mxu0 %v2529
        %2587 = vmatprep.subr.bf16.mxu0 0
        %2588 = vmatpush2.bf16.msra.mxu0 %v2528
        %2589 = vmatprep.subr.bf16.mxu0 0
        %2590 = vmatpush2.bf16.msra.mxu0 %v2527
        %2591 = vmatprep.mubr.bf16.mxu0 %v1466
        %2592 = vmatmul.mubr.bf16.gmra.mxu0 %v1465
        %v2593 = vpop.f32.mrf.mxu0
        %v2594 = vadd.f32 0.0, %v2593
        %v2595 = vpop.f32.mrf.mxu0
        %v2596 = vpop.f32.mrf.mxu0
        %v2597 = vpop.f32.mrf.mxu0
        %2598 = vdwg.mxu0
        %2599 = vmatprep.subr.bf16.mxu0 0
        %2600 = vmatpush1.bf16.msra.mxu0 0
        %2601 = vmatprep.subr.bf16.mxu0 0
        %2602 = vmatpush1.bf16.msra.mxu0 0
        %2603 = vmatprep.subr.bf16.mxu0 0
        %2604 = vmatpush1.bf16.msra.mxu0 0
        %2605 = vmatprep.subr.bf16.mxu0 0
        %2606 = vmatpush1.bf16.msra.mxu0 0
        %2607 = vmatprep.subr.bf16.mxu0 0
        %2608 = vmatpush1.bf16.msra.mxu0 0
        %2609 = vmatprep.subr.bf16.mxu0 0
        %2610 = vmatpush1.bf16.msra.mxu0 %v2557
        %2611 = vmatprep.subr.bf16.mxu0 0
        %2612 = vmatpush1.bf16.msra.mxu0 %v2536
        %2613 = vmatprep.subr.bf16.mxu0 0
        %2614 = vmatpush1.bf16.msra.mxu0 %v2535
        %2615 = vmatprep.subr.bf16.mxu0 0
        %2616 = vmatpush2.bf16.msra.mxu0 0
        %2617 = vmatprep.subr.bf16.mxu0 0
        %2618 = vmatpush2.bf16.msra.mxu0 0
        %2619 = vmatprep.subr.bf16.mxu0 0
        %2620 = vmatpush2.bf16.msra.mxu0 0
        %2621 = vmatprep.subr.bf16.mxu0 0
        %2622 = vmatpush2.bf16.msra.mxu0 0
        %2623 = vmatprep.subr.bf16.mxu0 0
        %2624 = vmatpush2.bf16.msra.mxu0 0
        %2625 = vmatprep.subr.bf16.mxu0 0
        %2626 = vmatpush2.bf16.msra.mxu0 0
        %2627 = vmatprep.subr.bf16.mxu0 0
        %2628 = vmatpush2.bf16.msra.mxu0 0
        %2629 = vmatprep.subr.bf16.mxu0 0
        %2630 = vmatpush2.bf16.msra.mxu0 0
        %2631 = vmatprep.mubr.bf16.mxu0 0
        %2632 = vmatmul.mubr.bf16.gmra.mxu0 %v1583
        %v2633 = vpop.f32.mrf.mxu0
        %v2634 = vadd.f32 %v2594, %v2633
        %v2635 = vpop.f32.mrf.mxu0
        %v2636 = vpop.f32.mrf.mxu0
        %v2637 = vpop.f32.mrf.mxu0
        %2638 = vdwg.mxu0
        %v2676 = vunpack.c.l.b16 %v1386
        %v2677 = vunpack.c.l.b16 %v1387
        %v2678 = vunpack.c.l.b16 %v1388
        %v2679 = vunpack.c.l.b16 %v1389
        %v2680 = vunpack.c.l.b16 %v1390
        %v2681 = vunpack.c.l.b16 %v1391
        %v2682 = vunpack.c.l.b16 %v1392
        %v2683 = vunpack.c.l.b16 %v1393
        %v2684 = vunpack.c.l.b16 %v1394
        %v2685 = vunpack.c.l.b16 %v1395
        %v2686 = vunpack.c.l.b16 %v1396
        %v2687 = vunpack.c.l.b16 %v1397
        %v2688 = vunpack.c.l.b16 %v1398
        %v2689 = vunpack.c.l.b16 %v1399
        %v2690 = vunpack.c.l.b16 %v1400
        %v2691 = vunpack.c.l.b16 %v1401
        %v2692 = vunpack.c.l.b16 %v1402
        %v2693 = vunpack.c.l.b16 %v1403
        %v2694 = vunpack.c.l.b16 %v1404
        %v2695 = vunpack.c.l.b16 %v1405
        %v2696 = vunpack.c.l.b16 %v1406
        %v2697 = vunpack.c.l.b16 %v1407
        %v2698 = vunpack.c.l.b16 %v1408
        %v2699 = vunpack.c.l.b16 %v1409
        %v2700 = vunpack.c.l.b16 %v1410
        %v2701 = vunpack.c.l.b16 %v1411
        %v2702 = vunpack.c.l.b16 %v1412
        %v2703 = vunpack.c.l.b16 %v1413
        %v2704 = vunpack.c.l.b16 %v1414
        %v2705 = vunpack.c.l.b16 %v1415
        %v2706 = vunpack.c.l.b16 %v1416
        %v2707 = vunpack.c.l.b16 %v1417
        %v2708 = vunpack.c.l.b16 %v1418
        %v2709 = vunpack.c.l.b16 %v1419
        %v2710 = vunpack.c.l.b16 %v1420
        %v2711 = vunpack.c.l.b16 %v1421
        %v2712 = vunpack.c.l.b16 %v1422
        %v2713 = vpack.c.b16 %v2677, %v2676
        %v2714 = vpack.c.b16 %v2679, %v2678
        %v2715 = vpack.c.b16 %v2681, %v2680
        %v2716 = vpack.c.b16 %v2683, %v2682
        %v2717 = vpack.c.b16 %v2685, %v2684
        %v2718 = vpack.c.b16 %v2687, %v2686
        %v2719 = vpack.c.b16 %v2689, %v2688
        %v2720 = vpack.c.b16 %v2691, %v2690
        %v2721 = vpack.c.b16 %v2693, %v2692
        %v2722 = vpack.c.b16 %v2695, %v2694
        %v2723 = vpack.c.b16 %v2697, %v2696
        %v2724 = vpack.c.b16 %v2699, %v2698
        %v2725 = vpack.c.b16 %v2701, %v2700
        %v2726 = vpack.c.b16 %v2703, %v2702
        %v2727 = vpack.c.b16 %v2705, %v2704
        %v2728 = vpack.c.b16 %v2707, %v2706
        %v2729 = vpack.c.b16 %v2709, %v2708
        %v2730 = vpack.c.b16 %v2711, %v2710
        %v2731 = vpack.c.b16 %v2712, %v2712
        %v2751 = vsel %vm1585, %v2731, 0
        %2753 = vmatprep.subr.bf16.mxu0 0
        %2754 = vmatpush1.bf16.msra.mxu0 %v2720
        %2755 = vmatprep.subr.bf16.mxu0 0
        %2756 = vmatpush1.bf16.msra.mxu0 %v2719
        %2757 = vmatprep.subr.bf16.mxu0 0
        %2758 = vmatpush1.bf16.msra.mxu0 %v2718
        %2759 = vmatprep.subr.bf16.mxu0 0
        %2760 = vmatpush1.bf16.msra.mxu0 %v2717
        %2761 = vmatprep.subr.bf16.mxu0 0
        %2762 = vmatpush1.bf16.msra.mxu0 %v2716
        %2763 = vmatprep.subr.bf16.mxu0 0
        %2764 = vmatpush1.bf16.msra.mxu0 %v2715
        %2765 = vmatprep.subr.bf16.mxu0 0
        %2766 = vmatpush1.bf16.msra.mxu0 %v2714
        %2767 = vmatprep.subr.bf16.mxu0 0
        %2768 = vmatpush1.bf16.msra.mxu0 %v2713
        %2769 = vmatprep.subr.bf16.mxu0 0
        %2770 = vmatpush2.bf16.msra.mxu0 %v2728
        %2771 = vmatprep.subr.bf16.mxu0 0
        %2772 = vmatpush2.bf16.msra.mxu0 %v2727
        %2773 = vmatprep.subr.bf16.mxu0 0
        %2774 = vmatpush2.bf16.msra.mxu0 %v2726
        %2775 = vmatprep.subr.bf16.mxu0 0
        %2776 = vmatpush2.bf16.msra.mxu0 %v2725
        %2777 = vmatprep.subr.bf16.mxu0 0
        %2778 = vmatpush2.bf16.msra.mxu0 %v2724
        %2779 = vmatprep.subr.bf16.mxu0 0
        %2780 = vmatpush2.bf16.msra.mxu0 %v2723
        %2781 = vmatprep.subr.bf16.mxu0 0
        %2782 = vmatpush2.bf16.msra.mxu0 %v2722
        %2783 = vmatprep.subr.bf16.mxu0 0
        %2784 = vmatpush2.bf16.msra.mxu0 %v2721
        %2785 = vmatprep.mubr.bf16.mxu0 %v1466
        %2786 = vmatmul.mubr.bf16.gmra.mxu0 %v1465
        %v2787 = vpop.f32.mrf.mxu0
        %v2788 = vadd.f32 0.0, %v2787
        %v2789 = vpop.f32.mrf.mxu0
        %v2790 = vpop.f32.mrf.mxu0
        %v2791 = vpop.f32.mrf.mxu0
        %2792 = vdwg.mxu0
        %2793 = vmatprep.subr.bf16.mxu0 0
        %2794 = vmatpush1.bf16.msra.mxu0 0
        %2795 = vmatprep.subr.bf16.mxu0 0
        %2796 = vmatpush1.bf16.msra.mxu0 0
        %2797 = vmatprep.subr.bf16.mxu0 0
        %2798 = vmatpush1.bf16.msra.mxu0 0
        %2799 = vmatprep.subr.bf16.mxu0 0
        %2800 = vmatpush1.bf16.msra.mxu0 0
        %2801 = vmatprep.subr.bf16.mxu0 0
        %2802 = vmatpush1.bf16.msra.mxu0 0
        %2803 = vmatprep.subr.bf16.mxu0 0
        %2804 = vmatpush1.bf16.msra.mxu0 %v2751
        %2805 = vmatprep.subr.bf16.mxu0 0
        %2806 = vmatpush1.bf16.msra.mxu0 %v2730
        %2807 = vmatprep.subr.bf16.mxu0 0
        %2808 = vmatpush1.bf16.msra.mxu0 %v2729
        %2809 = vmatprep.subr.bf16.mxu0 0
        %2810 = vmatpush2.bf16.msra.mxu0 0
        %2811 = vmatprep.subr.bf16.mxu0 0
        %2812 = vmatpush2.bf16.msra.mxu0 0
        %2813 = vmatprep.subr.bf16.mxu0 0
        %2814 = vmatpush2.bf16.msra.mxu0 0
        %2815 = vmatprep.subr.bf16.mxu0 0
        %2816 = vmatpush2.bf16.msra.mxu0 0
        %2817 = vmatprep.subr.bf16.mxu0 0
        %2818 = vmatpush2.bf16.msra.mxu0 0
        %2819 = vmatprep.subr.bf16.mxu0 0
        %2820 = vmatpush2.bf16.msra.mxu0 0
        %2821 = vmatprep.subr.bf16.mxu0 0
        %2822 = vmatpush2.bf16.msra.mxu0 0
        %2823 = vmatprep.subr.bf16.mxu0 0
        %2824 = vmatpush2.bf16.msra.mxu0 0
        %2825 = vmatprep.mubr.bf16.mxu0 0
        %2826 = vmatmul.mubr.bf16.gmra.mxu0 %v1583
        %v2827 = vpop.f32.mrf.mxu0
        %v2828 = vadd.f32 %v2788, %v2827
        %v2829 = vpop.f32.mrf.mxu0
        %v2830 = vpop.f32.mrf.mxu0
        %v2831 = vpop.f32.mrf.mxu0
        %2832 = vdwg.mxu0
        %v2870 = vunpack.c.l.b16 %v1423
        %v2871 = vunpack.c.l.b16 %v1424
        %v2872 = vunpack.c.l.b16 %v1425
        %v2873 = vunpack.c.l.b16 %v1426
        %v2874 = vunpack.c.l.b16 %v1427
        %v2875 = vunpack.c.l.b16 %v1428
        %v2876 = vunpack.c.l.b16 %v1429
        %v2877 = vunpack.c.l.b16 %v1430
        %v2878 = vunpack.c.l.b16 %v1431
        %v2879 = vunpack.c.l.b16 %v1432
        %v2880 = vunpack.c.l.b16 %v1433
        %v2881 = vunpack.c.l.b16 %v1434
        %v2882 = vunpack.c.l.b16 %v1435
        %v2883 = vunpack.c.l.b16 %v1436
        %v2884 = vunpack.c.l.b16 %v1437
        %v2885 = vunpack.c.l.b16 %v1438
        %v2886 = vunpack.c.l.b16 %v1439
        %v2887 = vunpack.c.l.b16 %v1440
        %v2888 = vunpack.c.l.b16 %v1441
        %v2889 = vunpack.c.l.b16 %v1442
        %v2890 = vunpack.c.l.b16 %v1443
        %v2891 = vunpack.c.l.b16 %v1444
        %v2892 = vunpack.c.l.b16 %v1445
        %v2893 = vunpack.c.l.b16 %v1446
        %v2894 = vunpack.c.l.b16 %v1447
        %v2895 = vunpack.c.l.b16 %v1448
        %v2896 = vunpack.c.l.b16 %v1449
        %v2897 = vunpack.c.l.b16 %v1450
        %v2898 = vunpack.c.l.b16 %v1451
        %v2899 = vunpack.c.l.b16 %v1452
        %v2900 = vunpack.c.l.b16 %v1453
        %v2901 = vunpack.c.l.b16 %v1454
        %v2902 = vunpack.c.l.b16 %v1455
        %v2903 = vunpack.c.l.b16 %v1456
        %v2904 = vunpack.c.l.b16 %v1457
        %v2905 = vunpack.c.l.b16 %v1458
        %v2906 = vunpack.c.l.b16 %v1459
        %v2907 = vpack.c.b16 %v2871, %v2870
        %v2908 = vpack.c.b16 %v2873, %v2872
        %v2909 = vpack.c.b16 %v2875, %v2874
        %v2910 = vpack.c.b16 %v2877, %v2876
        %v2911 = vpack.c.b16 %v2879, %v2878
        %v2912 = vpack.c.b16 %v2881, %v2880
        %v2913 = vpack.c.b16 %v2883, %v2882
        %v2914 = vpack.c.b16 %v2885, %v2884
        %v2915 = vpack.c.b16 %v2887, %v2886
        %v2916 = vpack.c.b16 %v2889, %v2888
        %v2917 = vpack.c.b16 %v2891, %v2890
        %v2918 = vpack.c.b16 %v2893, %v2892
        %v2919 = vpack.c.b16 %v2895, %v2894
        %v2920 = vpack.c.b16 %v2897, %v2896
        %v2921 = vpack.c.b16 %v2899, %v2898
        %v2922 = vpack.c.b16 %v2901, %v2900
        %v2923 = vpack.c.b16 %v2903, %v2902
        %v2924 = vpack.c.b16 %v2905, %v2904
        %v2925 = vpack.c.b16 %v2906, %v2906
        %v2945 = vsel %vm1585, %v2925, 0
        %2947 = vmatprep.subr.bf16.mxu0 0
        %2948 = vmatpush1.bf16.msra.mxu0 %v2914
        %2949 = vmatprep.subr.bf16.mxu0 0
        %2950 = vmatpush1.bf16.msra.mxu0 %v2913
        %2951 = vmatprep.subr.bf16.mxu0 0
        %2952 = vmatpush1.bf16.msra.mxu0 %v2912
        %2953 = vmatprep.subr.bf16.mxu0 0
        %2954 = vmatpush1.bf16.msra.mxu0 %v2911
        %2955 = vmatprep.subr.bf16.mxu0 0
        %2956 = vmatpush1.bf16.msra.mxu0 %v2910
        %2957 = vmatprep.subr.bf16.mxu0 0
        %2958 = vmatpush1.bf16.msra.mxu0 %v2909
        %2959 = vmatprep.subr.bf16.mxu0 0
        %2960 = vmatpush1.bf16.msra.mxu0 %v2908
        %2961 = vmatprep.subr.bf16.mxu0 0
        %2962 = vmatpush1.bf16.msra.mxu0 %v2907
        %2963 = vmatprep.subr.bf16.mxu0 0
        %2964 = vmatpush2.bf16.msra.mxu0 %v2922
        %2965 = vmatprep.subr.bf16.mxu0 0
        %2966 = vmatpush2.bf16.msra.mxu0 %v2921
        %2967 = vmatprep.subr.bf16.mxu0 0
        %2968 = vmatpush2.bf16.msra.mxu0 %v2920
        %2969 = vmatprep.subr.bf16.mxu0 0
        %2970 = vmatpush2.bf16.msra.mxu0 %v2919
        %2971 = vmatprep.subr.bf16.mxu0 0
        %2972 = vmatpush2.bf16.msra.mxu0 %v2918
        %2973 = vmatprep.subr.bf16.mxu0 0
        %2974 = vmatpush2.bf16.msra.mxu0 %v2917
        %2975 = vmatprep.subr.bf16.mxu0 0
        %2976 = vmatpush2.bf16.msra.mxu0 %v2916
        %2977 = vmatprep.subr.bf16.mxu0 0
        %2978 = vmatpush2.bf16.msra.mxu0 %v2915
        %2979 = vmatprep.mubr.bf16.mxu0 %v1466
        %2980 = vmatmul.mubr.bf16.gmra.mxu0 %v1465
        %v2981 = vpop.f32.mrf.mxu0
        %v2982 = vadd.f32 0.0, %v2981
        %v2983 = vpop.f32.mrf.mxu0
        %v2984 = vpop.f32.mrf.mxu0
        %v2985 = vpop.f32.mrf.mxu0
        %2986 = vdwg.mxu0
        %2987 = vmatprep.subr.bf16.mxu0 0
        %2988 = vmatpush1.bf16.msra.mxu0 0
        %2989 = vmatprep.subr.bf16.mxu0 0
        %2990 = vmatpush1.bf16.msra.mxu0 0
        %2991 = vmatprep.subr.bf16.mxu0 0
        %2992 = vmatpush1.bf16.msra.mxu0 0
        %2993 = vmatprep.subr.bf16.mxu0 0
        %2994 = vmatpush1.bf16.msra.mxu0 0
        %2995 = vmatprep.subr.bf16.mxu0 0
        %2996 = vmatpush1.bf16.msra.mxu0 0
        %2997 = vmatprep.subr.bf16.mxu0 0
        %2998 = vmatpush1.bf16.msra.mxu0 %v2945
        %2999 = vmatprep.subr.bf16.mxu0 0
        %3000 = vmatpush1.bf16.msra.mxu0 %v2924
        %3001 = vmatprep.subr.bf16.mxu0 0
        %3002 = vmatpush1.bf16.msra.mxu0 %v2923
        %3003 = vmatprep.subr.bf16.mxu0 0
        %3004 = vmatpush2.bf16.msra.mxu0 0
        %3005 = vmatprep.subr.bf16.mxu0 0
        %3006 = vmatpush2.bf16.msra.mxu0 0
        %3007 = vmatprep.subr.bf16.mxu0 0
        %3008 = vmatpush2.bf16.msra.mxu0 0
        %3009 = vmatprep.subr.bf16.mxu0 0
        %3010 = vmatpush2.bf16.msra.mxu0 0
        %3011 = vmatprep.subr.bf16.mxu0 0
        %3012 = vmatpush2.bf16.msra.mxu0 0
        %3013 = vmatprep.subr.bf16.mxu0 0
        %3014 = vmatpush2.bf16.msra.mxu0 0
        %3015 = vmatprep.subr.bf16.mxu0 0
        %3016 = vmatpush2.bf16.msra.mxu0 0
        %3017 = vmatprep.subr.bf16.mxu0 0
        %3018 = vmatpush2.bf16.msra.mxu0 0
        %3019 = vmatprep.mubr.bf16.mxu0 0
        %3020 = vmatmul.mubr.bf16.gmra.mxu0 %v1583
        %v3021 = vpop.f32.mrf.mxu0
        %v3022 = vadd.f32 %v2982, %v3021
        %v3023 = vpop.f32.mrf.mxu0
        %v3024 = vpop.f32.mrf.mxu0
        %v3025 = vpop.f32.mrf.mxu0
        %3026 = vdwg.mxu0
        %v3027 = vmax.f32 %v1664, 0.0
        %v3028 = vmax.f32 %v1858, 0.0
        %v3029 = vmax.f32 %v2052, 0.0
        %v3030 = vmax.f32 %v2246, 0.0
        %v3031 = vmax.f32 %v2440, 0.0
        %v3032 = vmax.f32 %v2634, 0.0
        %v3033 = vmax.f32 %v2828, 0.0
        %v3034 = vmax.f32 %v3022, 0.0
        %3035 = vst [vmem:[%s334 + $0x8] sm:$0xff] %v3027
        %3036 = vst [vmem:[%s334 + $0x30] sm:$0xff] %v3028
        %3037 = vst [vmem:[%s334 + $0x58] sm:$0xff] %v3029
        %3038 = vst [vmem:[%s334 + $0x80] sm:$0xff] %v3030
        %3039 = vst [vmem:[%s334 + $0xa8] sm:$0xff] %v3031
        %3040 = vst [vmem:[%s334 + $0xd0] sm:$0xff] %v3032
        %3041 = vst [vmem:[%s334 + $0xf8] sm:$0xff] %v3033
        %3042 = vst [vmem:[%s334 + $0x120] sm:$0xff] %v3034
        %v3043 = vld [vmem:[%s334 + $0x8] sm:$0xff]
        %v3044 = vld [vmem:[%s334 + $0x30] sm:$0xff]
        %v3045 = vld [vmem:[%s334 + $0x58] sm:$0xff]
        %v3046 = vld [vmem:[%s334 + $0x80] sm:$0xff]
        %v3047 = vld [vmem:[%s334 + $0xa8] sm:$0xff]
        %v3048 = vld [vmem:[%s334 + $0xd0] sm:$0xff]
        %v3049 = vld [vmem:[%s334 + $0xf8] sm:$0xff]
        %v3050 = vld [vmem:[%s334 + $0x120] sm:$0xff]
        %3051 = vadd.xlane.f32.xlu0 %v3043
        %v3052 = vpop.xlane.xlu0 %3051
        %3053 = vadd.xlane.f32.xlu0 %v3044
        %v3054 = vpop.xlane.xlu0 %3053
        %3055 = vadd.xlane.f32.xlu0 %v3045
        %v3056 = vpop.xlane.xlu0 %3055
        %3057 = vadd.xlane.f32.xlu0 %v3046
        %v3058 = vpop.xlane.xlu0 %3057
        %3059 = vadd.xlane.f32.xlu0 %v3047
        %v3060 = vpop.xlane.xlu0 %3059
        %3061 = vadd.xlane.f32.xlu0 %v3048
        %v3062 = vpop.xlane.xlu0 %3061
        %3063 = vadd.xlane.f32.xlu0 %v3049
        %v3064 = vpop.xlane.xlu0 %3063
        %3065 = vadd.xlane.f32.xlu0 %v3050
        %v3066 = vpop.xlane.xlu0 %3065
        %v3067 = vmul.f32 %v3052, 0.009090909
        %v3068 = vmul.f32 %v3054, 0.009090909
        %v3069 = vmul.f32 %v3056, 0.009090909
        %v3070 = vmul.f32 %v3058, 0.009090909
        %v3071 = vmul.f32 %v3060, 0.009090909
        %v3072 = vmul.f32 %v3062, 0.009090909
        %v3073 = vmul.f32 %v3064, 0.009090909
        %v3074 = vmul.f32 %v3066, 0.009090909
        %v3075 = vsub.f32 %v3043, %v3067
        %v3076 = vsub.f32 %v3044, %v3068
        %v3077 = vsub.f32 %v3045, %v3069
        %v3078 = vsub.f32 %v3046, %v3070
        %v3079 = vsub.f32 %v3047, %v3071
        %v3080 = vsub.f32 %v3048, %v3072
        %v3081 = vsub.f32 %v3049, %v3073
        %v3082 = vsub.f32 %v3050, %v3074
        %v3083 = vmul.f32 %v3075, %v729
        %v3084 = vmul.f32 %v3076, %v729
        %v3085 = vmul.f32 %v3077, %v729
        %v3086 = vmul.f32 %v3078, %v729
        %v3087 = vmul.f32 %v3079, %v729
        %v3088 = vmul.f32 %v3080, %v729
        %v3089 = vmul.f32 %v3081, %v729
        %v3090 = vmul.f32 %v3082, %v729
        %v3091 = vmul.f32 %v3083, %v3083
        %v3092 = vmul.f32 %v3084, %v3084
        %v3093 = vmul.f32 %v3085, %v3085
        %v3094 = vmul.f32 %v3086, %v3086
        %v3095 = vmul.f32 %v3087, %v3087
        %v3096 = vmul.f32 %v3088, %v3088
        %v3097 = vmul.f32 %v3089, %v3089
        %v3098 = vmul.f32 %v3090, %v3090
        %3099 = vadd.xlane.f32.xlu0 %v3091
        %v3100 = vpop.xlane.xlu0 %3099
        %3101 = vadd.xlane.f32.xlu0 %v3092
        %v3102 = vpop.xlane.xlu0 %3101
        %3103 = vadd.xlane.f32.xlu0 %v3093
        %v3104 = vpop.xlane.xlu0 %3103
        %3105 = vadd.xlane.f32.xlu0 %v3094
        %v3106 = vpop.xlane.xlu0 %3105
        %3107 = vadd.xlane.f32.xlu0 %v3095
        %v3108 = vpop.xlane.xlu0 %3107
        %3109 = vadd.xlane.f32.xlu0 %v3096
        %v3110 = vpop.xlane.xlu0 %3109
        %3111 = vadd.xlane.f32.xlu0 %v3097
        %v3112 = vpop.xlane.xlu0 %3111
        %3113 = vadd.xlane.f32.xlu0 %v3098
        %v3114 = vpop.xlane.xlu0 %3113
        %v3115 = vmul.f32 %v3100, 0.009090909
        %v3116 = vmul.f32 %v3102, 0.009090909
        %v3117 = vmul.f32 %v3104, 0.009090909
        %v3118 = vmul.f32 %v3106, 0.009090909
        %v3119 = vmul.f32 %v3108, 0.009090909
        %v3120 = vmul.f32 %v3110, 0.009090909
        %v3121 = vmul.f32 %v3112, 0.009090909
        %v3122 = vmul.f32 %v3114, 0.009090909
        %v3123 = vadd.f32 %v3115, 1e-05
        %v3124 = vadd.f32 %v3116, 1e-05
        %v3125 = vadd.f32 %v3117, 1e-05
        %v3126 = vadd.f32 %v3118, 1e-05
        %v3127 = vadd.f32 %v3119, 1e-05
        %v3128 = vadd.f32 %v3120, 1e-05
        %v3129 = vadd.f32 %v3121, 1e-05
        %v3130 = vadd.f32 %v3122, 1e-05
        %v3131 = vrsqrt.pop %v3123
        %v3132 = vrsqrt.pop %v3124
        %v3133 = vrsqrt.pop %v3125
        %v3134 = vrsqrt.pop %v3126
        %v3135 = vrsqrt.pop %v3127
        %v3136 = vrsqrt.pop %v3128
        %v3137 = vrsqrt.pop %v3129
        %v3138 = vrsqrt.pop %v3130
        %v3139 = vmul.f32 %v3083, %v3131
        %v3140 = vmul.f32 %v3084, %v3132
        %v3141 = vmul.f32 %v3085, %v3133
        %v3142 = vmul.f32 %v3086, %v3134
        %v3143 = vmul.f32 %v3087, %v3135
        %v3144 = vmul.f32 %v3088, %v3136
        %v3145 = vmul.f32 %v3089, %v3137
        %v3146 = vmul.f32 %v3090, %v3138
        %3147 = vrot.lane.b32.xlu0 %v3139, 12
        %v3148 = vpop.permute.xlu0 %3147
        %3149 = vrot.lane.b32.xlu0 %v3140, 12
        %v3150 = vpop.permute.xlu0 %3149
        %3151 = vrot.lane.b32.xlu0 %v3141, 12
        %v3152 = vpop.permute.xlu0 %3151
        %3153 = vrot.lane.b32.xlu0 %v3142, 12
        %v3154 = vpop.permute.xlu0 %3153
        %3155 = vrot.lane.b32.xlu0 %v3143, 12
        %v3156 = vpop.permute.xlu0 %3155
        %3157 = vrot.lane.b32.xlu0 %v3144, 12
        %v3158 = vpop.permute.xlu0 %3157
        %3159 = vrot.lane.b32.xlu0 %v3145, 12
        %v3160 = vpop.permute.xlu0 %3159
        %3161 = vrot.lane.b32.xlu0 %v3146, 12
        %v3162 = vpop.permute.xlu0 %3161
        %v3163 = vmul.f32 %v3148, %v813
        %v3164 = vmul.f32 %v3150, %v813
        %v3165 = vmul.f32 %v3152, %v813
        %v3166 = vmul.f32 %v3154, %v813
        %v3167 = vmul.f32 %v3156, %v813
        %v3168 = vmul.f32 %v3158, %v813
        %v3169 = vmul.f32 %v3160, %v813
        %v3170 = vmul.f32 %v3162, %v813
        %v3171 = vpack.c.bf16 %v3163, %v3163
        %v3172 = vpack.c.bf16 %v3164, %v3164
        %v3173 = vpack.c.bf16 %v3165, %v3165
        %v3174 = vpack.c.bf16 %v3166, %v3166
        %v3175 = vpack.c.bf16 %v3167, %v3167
        %v3176 = vpack.c.bf16 %v3168, %v3168
        %v3177 = vpack.c.bf16 %v3169, %v3169
        %v3178 = vpack.c.bf16 %v3170, %v3170
        %3179 = vst [vmem:[#allocation2 + $0x4] sm:$0xf] %v3171
        %3180 = vst [vmem:[#allocation2 + $0x98] sm:$0xf] %v3172
        %3181 = vst [vmem:[#allocation2 + $0x12c] sm:$0xf] %v3173
        %3182 = vst [vmem:[#allocation2 + $0x1c0] sm:$0xf] %v3174
        %3183 = vst [vmem:[#allocation2 + $0x254] sm:$0xf] %v3175
        %3184 = vst [vmem:[#allocation2 + $0x2e8] sm:$0xf] %v3176
        %3185 = vst [vmem:[#allocation2 + $0x37c] sm:$0xf] %v3177
        %3186 = vst [vmem:[#allocation2 + $0x410] sm:$0xf] %v3178
        %3187 = vrot.lane.b32.xlu0 %v3139, 11
        %v3188 = vpop.permute.xlu0 %3187
        %3189 = vrot.lane.b32.xlu0 %v3140, 11
        %v3190 = vpop.permute.xlu0 %3189
        %3191 = vrot.lane.b32.xlu0 %v3141, 11
        %v3192 = vpop.permute.xlu0 %3191
        %3193 = vrot.lane.b32.xlu0 %v3142, 11
        %v3194 = vpop.permute.xlu0 %3193
        %3195 = vrot.lane.b32.xlu0 %v3143, 11
        %v3196 = vpop.permute.xlu0 %3195
        %3197 = vrot.lane.b32.xlu0 %v3144, 11
        %v3198 = vpop.permute.xlu0 %3197
        %3199 = vrot.lane.b32.xlu0 %v3145, 11
        %v3200 = vpop.permute.xlu0 %3199
        %3201 = vrot.lane.b32.xlu0 %v3146, 11
        %v3202 = vpop.permute.xlu0 %3201
        %v3203 = vmul.f32 %v3188, %v857
        %v3204 = vmul.f32 %v3190, %v857
        %v3205 = vmul.f32 %v3192, %v857
        %v3206 = vmul.f32 %v3194, %v857
        %v3207 = vmul.f32 %v3196, %v857
        %v3208 = vmul.f32 %v3198, %v857
        %v3209 = vmul.f32 %v3200, %v857
        %v3210 = vmul.f32 %v3202, %v857
        %v3211 = vpack.c.bf16 %v3203, %v3203
        %v3212 = vpack.c.bf16 %v3204, %v3204
        %v3213 = vpack.c.bf16 %v3205, %v3205
        %v3214 = vpack.c.bf16 %v3206, %v3206
        %v3215 = vpack.c.bf16 %v3207, %v3207
        %v3216 = vpack.c.bf16 %v3208, %v3208
        %v3217 = vpack.c.bf16 %v3209, %v3209
        %v3218 = vpack.c.bf16 %v3210, %v3210
        %3219 = vst [vmem:[#allocation2 + $0x14] sm:$0xf] %v3211
        %3220 = vst [vmem:[#allocation2 + $0xa8] sm:$0xf] %v3212
        %3221 = vst [vmem:[#allocation2 + $0x13c] sm:$0xf] %v3213
        %3222 = vst [vmem:[#allocation2 + $0x1d0] sm:$0xf] %v3214
        %3223 = vst [vmem:[#allocation2 + $0x264] sm:$0xf] %v3215
        %3224 = vst [vmem:[#allocation2 + $0x2f8] sm:$0xf] %v3216
        %3225 = vst [vmem:[#allocation2 + $0x38c] sm:$0xf] %v3217
        %3226 = vst [vmem:[#allocation2 + $0x420] sm:$0xf] %v3218
        %3227 = vrot.lane.b32.xlu0 %v3139, 10
        %v3228 = vpop.permute.xlu0 %3227
        %3229 = vrot.lane.b32.xlu0 %v3140, 10
        %v3230 = vpop.permute.xlu0 %3229
        %3231 = vrot.lane.b32.xlu0 %v3141, 10
        %v3232 = vpop.permute.xlu0 %3231
        %3233 = vrot.lane.b32.xlu0 %v3142, 10
        %v3234 = vpop.permute.xlu0 %3233
        %3235 = vrot.lane.b32.xlu0 %v3143, 10
        %v3236 = vpop.permute.xlu0 %3235
        %3237 = vrot.lane.b32.xlu0 %v3144, 10
        %v3238 = vpop.permute.xlu0 %3237
        %3239 = vrot.lane.b32.xlu0 %v3145, 10
        %v3240 = vpop.permute.xlu0 %3239
        %3241 = vrot.lane.b32.xlu0 %v3146, 10
        %v3242 = vpop.permute.xlu0 %3241
        %v3243 = vmul.f32 %v3228, %v901
        %v3244 = vmul.f32 %v3230, %v901
        %v3245 = vmul.f32 %v3232, %v901
        %v3246 = vmul.f32 %v3234, %v901
        %v3247 = vmul.f32 %v3236, %v901
        %v3248 = vmul.f32 %v3238, %v901
        %v3249 = vmul.f32 %v3240, %v901
        %v3250 = vmul.f32 %v3242, %v901
        %v3251 = vpack.c.bf16 %v3243, %v3243
        %v3252 = vpack.c.bf16 %v3244, %v3244
        %v3253 = vpack.c.bf16 %v3245, %v3245
        %v3254 = vpack.c.bf16 %v3246, %v3246
        %v3255 = vpack.c.bf16 %v3247, %v3247
        %v3256 = vpack.c.bf16 %v3248, %v3248
        %v3257 = vpack.c.bf16 %v3249, %v3249
        %v3258 = vpack.c.bf16 %v3250, %v3250
        %3259 = vst [vmem:[#allocation2 + $0x24] sm:$0xf] %v3251
        %3260 = vst [vmem:[#allocation2 + $0xb8] sm:$0xf] %v3252
        %3261 = vst [vmem:[#allocation2 + $0x14c] sm:$0xf] %v3253
        %3262 = vst [vmem:[#allocation2 + $0x1e0] sm:$0xf] %v3254
        %3263 = vst [vmem:[#allocation2 + $0x274] sm:$0xf] %v3255
        %3264 = vst [vmem:[#allocation2 + $0x308] sm:$0xf] %v3256
        %3265 = vst [vmem:[#allocation2 + $0x39c] sm:$0xf] %v3257
        %3266 = vst [vmem:[#allocation2 + $0x430] sm:$0xf] %v3258
        %3267 = vrot.lane.b32.xlu0 %v3139, 1
        %v3268 = vpop.permute.xlu0 %3267
        %3269 = vrot.lane.b32.xlu0 %v3140, 1
        %v3270 = vpop.permute.xlu0 %3269
        %3271 = vrot.lane.b32.xlu0 %v3141, 1
        %v3272 = vpop.permute.xlu0 %3271
        %3273 = vrot.lane.b32.xlu0 %v3142, 1
        %v3274 = vpop.permute.xlu0 %3273
        %3275 = vrot.lane.b32.xlu0 %v3143, 1
        %v3276 = vpop.permute.xlu0 %3275
        %3277 = vrot.lane.b32.xlu0 %v3144, 1
        %v3278 = vpop.permute.xlu0 %3277
        %3279 = vrot.lane.b32.xlu0 %v3145, 1
        %v3280 = vpop.permute.xlu0 %3279
        %3281 = vrot.lane.b32.xlu0 %v3146, 1
        %v3282 = vpop.permute.xlu0 %3281
        %v3283 = vmul.f32 %v3268, %v945
        %v3284 = vmul.f32 %v3270, %v945
        %v3285 = vmul.f32 %v3272, %v945
        %v3286 = vmul.f32 %v3274, %v945
        %v3287 = vmul.f32 %v3276, %v945
        %v3288 = vmul.f32 %v3278, %v945
        %v3289 = vmul.f32 %v3280, %v945
        %v3290 = vmul.f32 %v3282, %v945
        %v3291 = vpack.c.bf16 %v3283, %v3283
        %v3292 = vpack.c.bf16 %v3284, %v3284
        %v3293 = vpack.c.bf16 %v3285, %v3285
        %v3294 = vpack.c.bf16 %v3286, %v3286
        %v3295 = vpack.c.bf16 %v3287, %v3287
        %v3296 = vpack.c.bf16 %v3288, %v3288
        %v3297 = vpack.c.bf16 %v3289, %v3289
        %v3298 = vpack.c.bf16 %v3290, %v3290
        %3299 = vst [vmem:[#allocation2 + $0x34] sm:$0xf] %v3291
        %3300 = vst [vmem:[#allocation2 + $0xc8] sm:$0xf] %v3292
        %3301 = vst [vmem:[#allocation2 + $0x15c] sm:$0xf] %v3293
        %3302 = vst [vmem:[#allocation2 + $0x1f0] sm:$0xf] %v3294
        %3303 = vst [vmem:[#allocation2 + $0x284] sm:$0xf] %v3295
        %3304 = vst [vmem:[#allocation2 + $0x318] sm:$0xf] %v3296
        %3305 = vst [vmem:[#allocation2 + $0x3ac] sm:$0xf] %v3297
        %3306 = vst [vmem:[#allocation2 + $0x440] sm:$0xf] %v3298
        %v3307 = vpack.c.bf16 %v3139, %v3139
        %v3308 = vpack.c.bf16 %v3140, %v3140
        %v3309 = vpack.c.bf16 %v3141, %v3141
        %v3310 = vpack.c.bf16 %v3142, %v3142
        %v3311 = vpack.c.bf16 %v3143, %v3143
        %v3312 = vpack.c.bf16 %v3144, %v3144
        %v3313 = vpack.c.bf16 %v3145, %v3145
        %v3314 = vpack.c.bf16 %v3146, %v3146
        %3315 = vst [vmem:[#allocation2 + $0x44] sm:$0xf] %v3307
        %3316 = vst [vmem:[#allocation2 + $0xd8] sm:$0xf] %v3308
        %3317 = vst [vmem:[#allocation2 + $0x16c] sm:$0xf] %v3309
        %3318 = vst [vmem:[#allocation2 + $0x200] sm:$0xf] %v3310
        %3319 = vst [vmem:[#allocation2 + $0x294] sm:$0xf] %v3311
        %3320 = vst [vmem:[#allocation2 + $0x328] sm:$0xf] %v3312
        %3321 = vst [vmem:[#allocation2 + $0x3bc] sm:$0xf] %v3313
        %3322 = vst [vmem:[#allocation2 + $0x450] sm:$0xf] %v3314
        %3323 = vrot.lane.b32.xlu0 %v3139, 127
        %v3324 = vpop.permute.xlu0 %3323
        %3325 = vrot.lane.b32.xlu0 %v3140, 127
        %v3326 = vpop.permute.xlu0 %3325
        %3327 = vrot.lane.b32.xlu0 %v3141, 127
        %v3328 = vpop.permute.xlu0 %3327
        %3329 = vrot.lane.b32.xlu0 %v3142, 127
        %v3330 = vpop.permute.xlu0 %3329
        %3331 = vrot.lane.b32.xlu0 %v3143, 127
        %v3332 = vpop.permute.xlu0 %3331
        %3333 = vrot.lane.b32.xlu0 %v3144, 127
        %v3334 = vpop.permute.xlu0 %3333
        %3335 = vrot.lane.b32.xlu0 %v3145, 127
        %v3336 = vpop.permute.xlu0 %3335
        %3337 = vrot.lane.b32.xlu0 %v3146, 127
        %v3338 = vpop.permute.xlu0 %3337
        %v3339 = vmul.f32 %v3324, %v1005
        %v3340 = vmul.f32 %v3326, %v1005
        %v3341 = vmul.f32 %v3328, %v1005
        %v3342 = vmul.f32 %v3330, %v1005
        %v3343 = vmul.f32 %v3332, %v1005
        %v3344 = vmul.f32 %v3334, %v1005
        %v3345 = vmul.f32 %v3336, %v1005
        %v3346 = vmul.f32 %v3338, %v1005
        %v3347 = vpack.c.bf16 %v3339, %v3339
        %v3348 = vpack.c.bf16 %v3340, %v3340
        %v3349 = vpack.c.bf16 %v3341, %v3341
        %v3350 = vpack.c.bf16 %v3342, %v3342
        %v3351 = vpack.c.bf16 %v3343, %v3343
        %v3352 = vpack.c.bf16 %v3344, %v3344
        %v3353 = vpack.c.bf16 %v3345, %v3345
        %v3354 = vpack.c.bf16 %v3346, %v3346
        %3355 = vst [vmem:[#allocation2 + $0x54] sm:$0xf] %v3347
        %3356 = vst [vmem:[#allocation2 + $0xe8] sm:$0xf] %v3348
        %3357 = vst [vmem:[#allocation2 + $0x17c] sm:$0xf] %v3349
        %3358 = vst [vmem:[#allocation2 + $0x210] sm:$0xf] %v3350
        %3359 = vst [vmem:[#allocation2 + $0x2a4] sm:$0xf] %v3351
        %3360 = vst [vmem:[#allocation2 + $0x338] sm:$0xf] %v3352
        %3361 = vst [vmem:[#allocation2 + $0x3cc] sm:$0xf] %v3353
        %3362 = vst [vmem:[#allocation2 + $0x460] sm:$0xf] %v3354
        %3363 = vrot.lane.b32.xlu0 %v3139, 118
        %v3364 = vpop.permute.xlu0 %3363
        %3365 = vrot.lane.b32.xlu0 %v3140, 118
        %v3366 = vpop.permute.xlu0 %3365
        %3367 = vrot.lane.b32.xlu0 %v3141, 118
        %v3368 = vpop.permute.xlu0 %3367
        %3369 = vrot.lane.b32.xlu0 %v3142, 118
        %v3370 = vpop.permute.xlu0 %3369
        %3371 = vrot.lane.b32.xlu0 %v3143, 118
        %v3372 = vpop.permute.xlu0 %3371
        %3373 = vrot.lane.b32.xlu0 %v3144, 118
        %v3374 = vpop.permute.xlu0 %3373
        %3375 = vrot.lane.b32.xlu0 %v3145, 118
        %v3376 = vpop.permute.xlu0 %3375
        %3377 = vrot.lane.b32.xlu0 %v3146, 118
        %v3378 = vpop.permute.xlu0 %3377
        %v3379 = vmul.f32 %v3364, %v1049
        %v3380 = vmul.f32 %v3366, %v1049
        %v3381 = vmul.f32 %v3368, %v1049
        %v3382 = vmul.f32 %v3370, %v1049
        %v3383 = vmul.f32 %v3372, %v1049
        %v3384 = vmul.f32 %v3374, %v1049
        %v3385 = vmul.f32 %v3376, %v1049
        %v3386 = vmul.f32 %v3378, %v1049
        %v3387 = vpack.c.bf16 %v3379, %v3379
        %v3388 = vpack.c.bf16 %v3380, %v3380
        %v3389 = vpack.c.bf16 %v3381, %v3381
        %v3390 = vpack.c.bf16 %v3382, %v3382
        %v3391 = vpack.c.bf16 %v3383, %v3383
        %v3392 = vpack.c.bf16 %v3384, %v3384
        %v3393 = vpack.c.bf16 %v3385, %v3385
        %v3394 = vpack.c.bf16 %v3386, %v3386
        %3395 = vst [vmem:[#allocation2 + $0x64] sm:$0xf] %v3387
        %3396 = vst [vmem:[#allocation2 + $0xf8] sm:$0xf] %v3388
        %3397 = vst [vmem:[#allocation2 + $0x18c] sm:$0xf] %v3389
        %3398 = vst [vmem:[#allocation2 + $0x220] sm:$0xf] %v3390
        %3399 = vst [vmem:[#allocation2 + $0x2b4] sm:$0xf] %v3391
        %3400 = vst [vmem:[#allocation2 + $0x348] sm:$0xf] %v3392
        %3401 = vst [vmem:[#allocation2 + $0x3dc] sm:$0xf] %v3393
        %3402 = vst [vmem:[#allocation2 + $0x470] sm:$0xf] %v3394
        %3403 = vrot.lane.b32.xlu0 %v3139, 117
        %v3404 = vpop.permute.xlu0 %3403
        %3405 = vrot.lane.b32.xlu0 %v3140, 117
        %v3406 = vpop.permute.xlu0 %3405
        %3407 = vrot.lane.b32.xlu0 %v3141, 117
        %v3408 = vpop.permute.xlu0 %3407
        %3409 = vrot.lane.b32.xlu0 %v3142, 117
        %v3410 = vpop.permute.xlu0 %3409
        %3411 = vrot.lane.b32.xlu0 %v3143, 117
        %v3412 = vpop.permute.xlu0 %3411
        %3413 = vrot.lane.b32.xlu0 %v3144, 117
        %v3414 = vpop.permute.xlu0 %3413
        %3415 = vrot.lane.b32.xlu0 %v3145, 117
        %v3416 = vpop.permute.xlu0 %3415
        %3417 = vrot.lane.b32.xlu0 %v3146, 117
        %v3418 = vpop.permute.xlu0 %3417
        %v3419 = vmul.f32 %v3404, %v1093
        %v3420 = vmul.f32 %v3406, %v1093
        %v3421 = vmul.f32 %v3408, %v1093
        %v3422 = vmul.f32 %v3410, %v1093
        %v3423 = vmul.f32 %v3412, %v1093
        %v3424 = vmul.f32 %v3414, %v1093
        %v3425 = vmul.f32 %v3416, %v1093
        %v3426 = vmul.f32 %v3418, %v1093
        %v3427 = vpack.c.bf16 %v3419, %v3419
        %v3428 = vpack.c.bf16 %v3420, %v3420
        %v3429 = vpack.c.bf16 %v3421, %v3421
        %v3430 = vpack.c.bf16 %v3422, %v3422
        %v3431 = vpack.c.bf16 %v3423, %v3423
        %v3432 = vpack.c.bf16 %v3424, %v3424
        %v3433 = vpack.c.bf16 %v3425, %v3425
        %v3434 = vpack.c.bf16 %v3426, %v3426
        %3435 = vst [vmem:[#allocation2 + $0x74] sm:$0xf] %v3427
        %3436 = vst [vmem:[#allocation2 + $0x108] sm:$0xf] %v3428
        %3437 = vst [vmem:[#allocation2 + $0x19c] sm:$0xf] %v3429
        %3438 = vst [vmem:[#allocation2 + $0x230] sm:$0xf] %v3430
        %3439 = vst [vmem:[#allocation2 + $0x2c4] sm:$0xf] %v3431
        %3440 = vst [vmem:[#allocation2 + $0x358] sm:$0xf] %v3432
        %3441 = vst [vmem:[#allocation2 + $0x3ec] sm:$0xf] %v3433
        %3442 = vst [vmem:[#allocation2 + $0x480] sm:$0xf] %v3434
        %3443 = vrot.lane.b32.xlu0 %v3139, 116
        %v3444 = vpop.permute.xlu0 %3443
        %3445 = vrot.lane.b32.xlu0 %v3140, 116
        %v3446 = vpop.permute.xlu0 %3445
        %3447 = vrot.lane.b32.xlu0 %v3141, 116
        %v3448 = vpop.permute.xlu0 %3447
        %3449 = vrot.lane.b32.xlu0 %v3142, 116
        %v3450 = vpop.permute.xlu0 %3449
        %3451 = vrot.lane.b32.xlu0 %v3143, 116
        %v3452 = vpop.permute.xlu0 %3451
        %3453 = vrot.lane.b32.xlu0 %v3144, 116
        %v3454 = vpop.permute.xlu0 %3453
        %3455 = vrot.lane.b32.xlu0 %v3145, 116
        %v3456 = vpop.permute.xlu0 %3455
        %3457 = vrot.lane.b32.xlu0 %v3146, 116
        %v3458 = vpop.permute.xlu0 %3457
        %v3459 = vmul.f32 %v3444, %v1137
        %v3460 = vmul.f32 %v3446, %v1137
        %v3461 = vmul.f32 %v3448, %v1137
        %v3462 = vmul.f32 %v3450, %v1137
        %v3463 = vmul.f32 %v3452, %v1137
        %v3464 = vmul.f32 %v3454, %v1137
        %v3465 = vmul.f32 %v3456, %v1137
        %v3466 = vmul.f32 %v3458, %v1137
        %v3467 = vpack.c.bf16 %v3459, %v3459
        %v3468 = vpack.c.bf16 %v3460, %v3460
        %v3469 = vpack.c.bf16 %v3461, %v3461
        %v3470 = vpack.c.bf16 %v3462, %v3462
        %v3471 = vpack.c.bf16 %v3463, %v3463
        %v3472 = vpack.c.bf16 %v3464, %v3464
        %v3473 = vpack.c.bf16 %v3465, %v3465
        %v3474 = vpack.c.bf16 %v3466, %v3466
        %3475 = vst [vmem:[#allocation2 + $0x84] sm:$0xf] %v3467
        %3476 = vst [vmem:[#allocation2 + $0x118] sm:$0xf] %v3468
        %3477 = vst [vmem:[#allocation2 + $0x1ac] sm:$0xf] %v3469
        %3478 = vst [vmem:[#allocation2 + $0x240] sm:$0xf] %v3470
        %3479 = vst [vmem:[#allocation2 + $0x2d4] sm:$0xf] %v3471
        %3480 = vst [vmem:[#allocation2 + $0x368] sm:$0xf] %v3472
        %3481 = vst [vmem:[#allocation2 + $0x3fc] sm:$0xf] %v3473
        %3482 = vst [vmem:[#allocation2 + $0x490] sm:$0xf] %v3474
        %v3483 = vld [vmem:[#allocation9] sm:$0xff]
        %v3484 = vld [vmem:[#allocation9 + $0x8] sm:$0xf]
        %v3485 = vld [vmem:[#allocation2] sm:$0xf]
        %v3486 = vld [vmem:[#allocation2 + $0x4] sm:$0xf]
        %v3487 = vld [vmem:[#allocation2 + $0x8] sm:$0xf]
        %v3488 = vld [vmem:[#allocation2 + $0xc] sm:$0xf]
        %v3489 = vld [vmem:[#allocation2 + $0x10] sm:$0xf]
        %v3490 = vld [vmem:[#allocation2 + $0x14] sm:$0xf]
        %v3491 = vld [vmem:[#allocation2 + $0x18] sm:$0xf]
        %v3492 = vld [vmem:[#allocation2 + $0x1c] sm:$0xf]
        %v3493 = vld [vmem:[#allocation2 + $0x20] sm:$0xf]
        %v3494 = vld [vmem:[#allocation2 + $0x24] sm:$0xf]
        %v3495 = vld [vmem:[#allocation2 + $0x28] sm:$0xf]
        %v3496 = vld [vmem:[#allocation2 + $0x2c] sm:$0xf]
        %v3497 = vld [vmem:[#allocation2 + $0x30] sm:$0xf]
        %v3498 = vld [vmem:[#allocation2 + $0x34] sm:$0xf]
        %v3499 = vld [vmem:[#allocation2 + $0x38] sm:$0xf]
        %v3500 = vld [vmem:[#allocation2 + $0x3c] sm:$0xf]
        %v3501 = vld [vmem:[#allocation2 + $0x40] sm:$0xf]
        %v3502 = vld [vmem:[#allocation2 + $0x44] sm:$0xf]
        %v3503 = vld [vmem:[#allocation2 + $0x48] sm:$0xf]
        %v3504 = vld [vmem:[#allocation2 + $0x4c] sm:$0xf]
        %v3505 = vld [vmem:[#allocation2 + $0x50] sm:$0xf]
        %v3506 = vld [vmem:[#allocation2 + $0x54] sm:$0xf]
        %v3507 = vld [vmem:[#allocation2 + $0x58] sm:$0xf]
        %v3508 = vld [vmem:[#allocation2 + $0x5c] sm:$0xf]
        %v3509 = vld [vmem:[#allocation2 + $0x60] sm:$0xf]
        %v3510 = vld [vmem:[#allocation2 + $0x64] sm:$0xf]
        %v3511 = vld [vmem:[#allocation2 + $0x68] sm:$0xf]
        %v3512 = vld [vmem:[#allocation2 + $0x6c] sm:$0xf]
        %v3513 = vld [vmem:[#allocation2 + $0x70] sm:$0xf]
        %v3514 = vld [vmem:[#allocation2 + $0x74] sm:$0xf]
        %v3515 = vld [vmem:[#allocation2 + $0x78] sm:$0xf]
        %v3516 = vld [vmem:[#allocation2 + $0x7c] sm:$0xf]
        %v3517 = vld [vmem:[#allocation2 + $0x80] sm:$0xf]
        %v3518 = vld [vmem:[#allocation2 + $0x84] sm:$0xf]
        %v3519 = vld [vmem:[#allocation2 + $0x88] sm:$0xf]
        %v3520 = vld [vmem:[#allocation2 + $0x8c] sm:$0xf]
        %v3521 = vld [vmem:[#allocation2 + $0x90] sm:$0xf]
        %v3522 = vld [vmem:[#allocation2 + $0x94] sm:$0xf]
        %v3523 = vld [vmem:[#allocation2 + $0x98] sm:$0xf]
        %v3524 = vld [vmem:[#allocation2 + $0x9c] sm:$0xf]
        %v3525 = vld [vmem:[#allocation2 + $0xa0] sm:$0xf]
        %v3526 = vld [vmem:[#allocation2 + $0xa4] sm:$0xf]
        %v3527 = vld [vmem:[#allocation2 + $0xa8] sm:$0xf]
        %v3528 = vld [vmem:[#allocation2 + $0xac] sm:$0xf]
        %v3529 = vld [vmem:[#allocation2 + $0xb0] sm:$0xf]
        %v3530 = vld [vmem:[#allocation2 + $0xb4] sm:$0xf]
        %v3531 = vld [vmem:[#allocation2 + $0xb8] sm:$0xf]
        %v3532 = vld [vmem:[#allocation2 + $0xbc] sm:$0xf]
        %v3533 = vld [vmem:[#allocation2 + $0xc0] sm:$0xf]
        %v3534 = vld [vmem:[#allocation2 + $0xc4] sm:$0xf]
        %v3535 = vld [vmem:[#allocation2 + $0xc8] sm:$0xf]
        %v3536 = vld [vmem:[#allocation2 + $0xcc] sm:$0xf]
        %v3537 = vld [vmem:[#allocation2 + $0xd0] sm:$0xf]
        %v3538 = vld [vmem:[#allocation2 + $0xd4] sm:$0xf]
        %v3539 = vld [vmem:[#allocation2 + $0xd8] sm:$0xf]
        %v3540 = vld [vmem:[#allocation2 + $0xdc] sm:$0xf]
        %v3541 = vld [vmem:[#allocation2 + $0xe0] sm:$0xf]
        %v3542 = vld [vmem:[#allocation2 + $0xe4] sm:$0xf]
        %v3543 = vld [vmem:[#allocation2 + $0xe8] sm:$0xf]
        %v3544 = vld [vmem:[#allocation2 + $0xec] sm:$0xf]
        %v3545 = vld [vmem:[#allocation2 + $0xf0] sm:$0xf]
        %v3546 = vld [vmem:[#allocation2 + $0xf4] sm:$0xf]
        %v3547 = vld [vmem:[#allocation2 + $0xf8] sm:$0xf]
        %v3548 = vld [vmem:[#allocation2 + $0xfc] sm:$0xf]
        %v3549 = vld [vmem:[#allocation2 + $0x100] sm:$0xf]
        %v3550 = vld [vmem:[#allocation2 + $0x104] sm:$0xf]
        %v3551 = vld [vmem:[#allocation2 + $0x108] sm:$0xf]
        %v3552 = vld [vmem:[#allocation2 + $0x10c] sm:$0xf]
        %v3553 = vld [vmem:[#allocation2 + $0x110] sm:$0xf]
        %v3554 = vld [vmem:[#allocation2 + $0x114] sm:$0xf]
        %v3555 = vld [vmem:[#allocation2 + $0x118] sm:$0xf]
        %v3556 = vld [vmem:[#allocation2 + $0x11c] sm:$0xf]
        %v3557 = vld [vmem:[#allocation2 + $0x120] sm:$0xf]
        %v3558 = vld [vmem:[#allocation2 + $0x124] sm:$0xf]
        %v3559 = vld [vmem:[#allocation2 + $0x128] sm:$0xf]
        %v3560 = vld [vmem:[#allocation2 + $0x12c] sm:$0xf]
        %v3561 = vld [vmem:[#allocation2 + $0x130] sm:$0xf]
        %v3562 = vld [vmem:[#allocation2 + $0x134] sm:$0xf]
        %v3563 = vld [vmem:[#allocation2 + $0x138] sm:$0xf]
        %v3564 = vld [vmem:[#allocation2 + $0x13c] sm:$0xf]
        %v3565 = vld [vmem:[#allocation2 + $0x140] sm:$0xf]
        %v3566 = vld [vmem:[#allocation2 + $0x144] sm:$0xf]
        %v3567 = vld [vmem:[#allocation2 + $0x148] sm:$0xf]
        %v3568 = vld [vmem:[#allocation2 + $0x14c] sm:$0xf]
        %v3569 = vld [vmem:[#allocation2 + $0x150] sm:$0xf]
        %v3570 = vld [vmem:[#allocation2 + $0x154] sm:$0xf]
        %v3571 = vld [vmem:[#allocation2 + $0x158] sm:$0xf]
        %v3572 = vld [vmem:[#allocation2 + $0x15c] sm:$0xf]
        %v3573 = vld [vmem:[#allocation2 + $0x160] sm:$0xf]
        %v3574 = vld [vmem:[#allocation2 + $0x164] sm:$0xf]
        %v3575 = vld [vmem:[#allocation2 + $0x168] sm:$0xf]
        %v3576 = vld [vmem:[#allocation2 + $0x16c] sm:$0xf]
        %v3577 = vld [vmem:[#allocation2 + $0x170] sm:$0xf]
        %v3578 = vld [vmem:[#allocation2 + $0x174] sm:$0xf]
        %v3579 = vld [vmem:[#allocation2 + $0x178] sm:$0xf]
        %v3580 = vld [vmem:[#allocation2 + $0x17c] sm:$0xf]
        %v3581 = vld [vmem:[#allocation2 + $0x180] sm:$0xf]
        %v3582 = vld [vmem:[#allocation2 + $0x184] sm:$0xf]
        %v3583 = vld [vmem:[#allocation2 + $0x188] sm:$0xf]
        %v3584 = vld [vmem:[#allocation2 + $0x18c] sm:$0xf]
        %v3585 = vld [vmem:[#allocation2 + $0x190] sm:$0xf]
        %v3586 = vld [vmem:[#allocation2 + $0x194] sm:$0xf]
        %v3587 = vld [vmem:[#allocation2 + $0x198] sm:$0xf]
        %v3588 = vld [vmem:[#allocation2 + $0x19c] sm:$0xf]
        %v3589 = vld [vmem:[#allocation2 + $0x1a0] sm:$0xf]
        %v3590 = vld [vmem:[#allocation2 + $0x1a4] sm:$0xf]
        %v3591 = vld [vmem:[#allocation2 + $0x1a8] sm:$0xf]
        %v3592 = vld [vmem:[#allocation2 + $0x1ac] sm:$0xf]
        %v3593 = vld [vmem:[#allocation2 + $0x1b0] sm:$0xf]
        %v3594 = vld [vmem:[#allocation2 + $0x1b4] sm:$0xf]
        %v3595 = vld [vmem:[#allocation2 + $0x1b8] sm:$0xf]
        %v3596 = vld [vmem:[#allocation2 + $0x1bc] sm:$0xf]
        %v3597 = vld [vmem:[#allocation2 + $0x1c0] sm:$0xf]
        %v3598 = vld [vmem:[#allocation2 + $0x1c4] sm:$0xf]
        %v3599 = vld [vmem:[#allocation2 + $0x1c8] sm:$0xf]
        %v3600 = vld [vmem:[#allocation2 + $0x1cc] sm:$0xf]
        %v3601 = vld [vmem:[#allocation2 + $0x1d0] sm:$0xf]
        %v3602 = vld [vmem:[#allocation2 + $0x1d4] sm:$0xf]
        %v3603 = vld [vmem:[#allocation2 + $0x1d8] sm:$0xf]
        %v3604 = vld [vmem:[#allocation2 + $0x1dc] sm:$0xf]
        %v3605 = vld [vmem:[#allocation2 + $0x1e0] sm:$0xf]
        %v3606 = vld [vmem:[#allocation2 + $0x1e4] sm:$0xf]
        %v3607 = vld [vmem:[#allocation2 + $0x1e8] sm:$0xf]
        %v3608 = vld [vmem:[#allocation2 + $0x1ec] sm:$0xf]
        %v3609 = vld [vmem:[#allocation2 + $0x1f0] sm:$0xf]
        %v3610 = vld [vmem:[#allocation2 + $0x1f4] sm:$0xf]
        %v3611 = vld [vmem:[#allocation2 + $0x1f8] sm:$0xf]
        %v3612 = vld [vmem:[#allocation2 + $0x1fc] sm:$0xf]
        %v3613 = vld [vmem:[#allocation2 + $0x200] sm:$0xf]
        %v3614 = vld [vmem:[#allocation2 + $0x204] sm:$0xf]
        %v3615 = vld [vmem:[#allocation2 + $0x208] sm:$0xf]
        %v3616 = vld [vmem:[#allocation2 + $0x20c] sm:$0xf]
        %v3617 = vld [vmem:[#allocation2 + $0x210] sm:$0xf]
        %v3618 = vld [vmem:[#allocation2 + $0x214] sm:$0xf]
        %v3619 = vld [vmem:[#allocation2 + $0x218] sm:$0xf]
        %v3620 = vld [vmem:[#allocation2 + $0x21c] sm:$0xf]
        %v3621 = vld [vmem:[#allocation2 + $0x220] sm:$0xf]
        %v3622 = vld [vmem:[#allocation2 + $0x224] sm:$0xf]
        %v3623 = vld [vmem:[#allocation2 + $0x228] sm:$0xf]
        %v3624 = vld [vmem:[#allocation2 + $0x22c] sm:$0xf]
        %v3625 = vld [vmem:[#allocation2 + $0x230] sm:$0xf]
        %v3626 = vld [vmem:[#allocation2 + $0x234] sm:$0xf]
        %v3627 = vld [vmem:[#allocation2 + $0x238] sm:$0xf]
        %v3628 = vld [vmem:[#allocation2 + $0x23c] sm:$0xf]
        %v3629 = vld [vmem:[#allocation2 + $0x240] sm:$0xf]
        %v3630 = vld [vmem:[#allocation2 + $0x244] sm:$0xf]
        %v3631 = vld [vmem:[#allocation2 + $0x248] sm:$0xf]
        %v3632 = vld [vmem:[#allocation2 + $0x24c] sm:$0xf]
        %v3633 = vld [vmem:[#allocation2 + $0x250] sm:$0xf]
        %v3634 = vld [vmem:[#allocation2 + $0x254] sm:$0xf]
        %v3635 = vld [vmem:[#allocation2 + $0x258] sm:$0xf]
        %v3636 = vld [vmem:[#allocation2 + $0x25c] sm:$0xf]
        %v3637 = vld [vmem:[#allocation2 + $0x260] sm:$0xf]
        %v3638 = vld [vmem:[#allocation2 + $0x264] sm:$0xf]
        %v3639 = vld [vmem:[#allocation2 + $0x268] sm:$0xf]
        %v3640 = vld [vmem:[#allocation2 + $0x26c] sm:$0xf]
        %v3641 = vld [vmem:[#allocation2 + $0x270] sm:$0xf]
        %v3642 = vld [vmem:[#allocation2 + $0x274] sm:$0xf]
        %v3643 = vld [vmem:[#allocation2 + $0x278] sm:$0xf]
        %v3644 = vld [vmem:[#allocation2 + $0x27c] sm:$0xf]
        %v3645 = vld [vmem:[#allocation2 + $0x280] sm:$0xf]
        %v3646 = vld [vmem:[#allocation2 + $0x284] sm:$0xf]
        %v3647 = vld [vmem:[#allocation2 + $0x288] sm:$0xf]
        %v3648 = vld [vmem:[#allocation2 + $0x28c] sm:$0xf]
        %v3649 = vld [vmem:[#allocation2 + $0x290] sm:$0xf]
        %v3650 = vld [vmem:[#allocation2 + $0x294] sm:$0xf]
        %v3651 = vld [vmem:[#allocation2 + $0x298] sm:$0xf]
        %v3652 = vld [vmem:[#allocation2 + $0x29c] sm:$0xf]
        %v3653 = vld [vmem:[#allocation2 + $0x2a0] sm:$0xf]
        %v3654 = vld [vmem:[#allocation2 + $0x2a4] sm:$0xf]
        %v3655 = vld [vmem:[#allocation2 + $0x2a8] sm:$0xf]
        %v3656 = vld [vmem:[#allocation2 + $0x2ac] sm:$0xf]
        %v3657 = vld [vmem:[#allocation2 + $0x2b0] sm:$0xf]
        %v3658 = vld [vmem:[#allocation2 + $0x2b4] sm:$0xf]
        %v3659 = vld [vmem:[#allocation2 + $0x2b8] sm:$0xf]
        %v3660 = vld [vmem:[#allocation2 + $0x2bc] sm:$0xf]
        %v3661 = vld [vmem:[#allocation2 + $0x2c0] sm:$0xf]
        %v3662 = vld [vmem:[#allocation2 + $0x2c4] sm:$0xf]
        %v3663 = vld [vmem:[#allocation2 + $0x2c8] sm:$0xf]
        %v3664 = vld [vmem:[#allocation2 + $0x2cc] sm:$0xf]
        %v3665 = vld [vmem:[#allocation2 + $0x2d0] sm:$0xf]
        %v3666 = vld [vmem:[#allocation2 + $0x2d4] sm:$0xf]
        %v3667 = vld [vmem:[#allocation2 + $0x2d8] sm:$0xf]
        %v3668 = vld [vmem:[#allocation2 + $0x2dc] sm:$0xf]
        %v3669 = vld [vmem:[#allocation2 + $0x2e0] sm:$0xf]
        %v3670 = vld [vmem:[#allocation2 + $0x2e4] sm:$0xf]
        %v3671 = vld [vmem:[#allocation2 + $0x2e8] sm:$0xf]
        %v3672 = vld [vmem:[#allocation2 + $0x2ec] sm:$0xf]
        %v3673 = vld [vmem:[#allocation2 + $0x2f0] sm:$0xf]
        %v3674 = vld [vmem:[#allocation2 + $0x2f4] sm:$0xf]
        %v3675 = vld [vmem:[#allocation2 + $0x2f8] sm:$0xf]
        %v3676 = vld [vmem:[#allocation2 + $0x2fc] sm:$0xf]
        %v3677 = vld [vmem:[#allocation2 + $0x300] sm:$0xf]
        %v3678 = vld [vmem:[#allocation2 + $0x304] sm:$0xf]
        %v3679 = vld [vmem:[#allocation2 + $0x308] sm:$0xf]
        %v3680 = vld [vmem:[#allocation2 + $0x30c] sm:$0xf]
        %v3681 = vld [vmem:[#allocation2 + $0x310] sm:$0xf]
        %v3682 = vld [vmem:[#allocation2 + $0x314] sm:$0xf]
        %v3683 = vld [vmem:[#allocation2 + $0x318] sm:$0xf]
        %v3684 = vld [vmem:[#allocation2 + $0x31c] sm:$0xf]
        %v3685 = vld [vmem:[#allocation2 + $0x320] sm:$0xf]
        %v3686 = vld [vmem:[#allocation2 + $0x324] sm:$0xf]
        %v3687 = vld [vmem:[#allocation2 + $0x328] sm:$0xf]
        %v3688 = vld [vmem:[#allocation2 + $0x32c] sm:$0xf]
        %v3689 = vld [vmem:[#allocation2 + $0x330] sm:$0xf]
        %v3690 = vld [vmem:[#allocation2 + $0x334] sm:$0xf]
        %v3691 = vld [vmem:[#allocation2 + $0x338] sm:$0xf]
        %v3692 = vld [vmem:[#allocation2 + $0x33c] sm:$0xf]
        %v3693 = vld [vmem:[#allocation2 + $0x340] sm:$0xf]
        %v3694 = vld [vmem:[#allocation2 + $0x344] sm:$0xf]
        %v3695 = vld [vmem:[#allocation2 + $0x348] sm:$0xf]
        %v3696 = vld [vmem:[#allocation2 + $0x34c] sm:$0xf]
        %v3697 = vld [vmem:[#allocation2 + $0x350] sm:$0xf]
        %v3698 = vld [vmem:[#allocation2 + $0x354] sm:$0xf]
        %v3699 = vld [vmem:[#allocation2 + $0x358] sm:$0xf]
        %v3700 = vld [vmem:[#allocation2 + $0x35c] sm:$0xf]
        %v3701 = vld [vmem:[#allocation2 + $0x360] sm:$0xf]
        %v3702 = vld [vmem:[#allocation2 + $0x364] sm:$0xf]
        %v3703 = vld [vmem:[#allocation2 + $0x368] sm:$0xf]
        %v3704 = vld [vmem:[#allocation2 + $0x36c] sm:$0xf]
        %v3705 = vld [vmem:[#allocation2 + $0x370] sm:$0xf]
        %v3706 = vld [vmem:[#allocation2 + $0x374] sm:$0xf]
        %v3707 = vld [vmem:[#allocation2 + $0x378] sm:$0xf]
        %v3708 = vld [vmem:[#allocation2 + $0x37c] sm:$0xf]
        %v3709 = vld [vmem:[#allocation2 + $0x380] sm:$0xf]
        %v3710 = vld [vmem:[#allocation2 + $0x384] sm:$0xf]
        %v3711 = vld [vmem:[#allocation2 + $0x388] sm:$0xf]
        %v3712 = vld [vmem:[#allocation2 + $0x38c] sm:$0xf]
        %v3713 = vld [vmem:[#allocation2 + $0x390] sm:$0xf]
        %v3714 = vld [vmem:[#allocation2 + $0x394] sm:$0xf]
        %v3715 = vld [vmem:[#allocation2 + $0x398] sm:$0xf]
        %v3716 = vld [vmem:[#allocation2 + $0x39c] sm:$0xf]
        %v3717 = vld [vmem:[#allocation2 + $0x3a0] sm:$0xf]
        %v3718 = vld [vmem:[#allocation2 + $0x3a4] sm:$0xf]
        %v3719 = vld [vmem:[#allocation2 + $0x3a8] sm:$0xf]
        %v3720 = vld [vmem:[#allocation2 + $0x3ac] sm:$0xf]
        %v3721 = vld [vmem:[#allocation2 + $0x3b0] sm:$0xf]
        %v3722 = vld [vmem:[#allocation2 + $0x3b4] sm:$0xf]
        %v3723 = vld [vmem:[#allocation2 + $0x3b8] sm:$0xf]
        %v3724 = vld [vmem:[#allocation2 + $0x3bc] sm:$0xf]
        %v3725 = vld [vmem:[#allocation2 + $0x3c0] sm:$0xf]
        %v3726 = vld [vmem:[#allocation2 + $0x3c4] sm:$0xf]
        %v3727 = vld [vmem:[#allocation2 + $0x3c8] sm:$0xf]
        %v3728 = vld [vmem:[#allocation2 + $0x3cc] sm:$0xf]
        %v3729 = vld [vmem:[#allocation2 + $0x3d0] sm:$0xf]
        %v3730 = vld [vmem:[#allocation2 + $0x3d4] sm:$0xf]
        %v3731 = vld [vmem:[#allocation2 + $0x3d8] sm:$0xf]
        %v3732 = vld [vmem:[#allocation2 + $0x3dc] sm:$0xf]
        %v3733 = vld [vmem:[#allocation2 + $0x3e0] sm:$0xf]
        %v3734 = vld [vmem:[#allocation2 + $0x3e4] sm:$0xf]
        %v3735 = vld [vmem:[#allocation2 + $0x3e8] sm:$0xf]
        %v3736 = vld [vmem:[#allocation2 + $0x3ec] sm:$0xf]
        %v3737 = vld [vmem:[#allocation2 + $0x3f0] sm:$0xf]
        %v3738 = vld [vmem:[#allocation2 + $0x3f4] sm:$0xf]
        %v3739 = vld [vmem:[#allocation2 + $0x3f8] sm:$0xf]
        %v3740 = vld [vmem:[#allocation2 + $0x3fc] sm:$0xf]
        %v3741 = vld [vmem:[#allocation2 + $0x400] sm:$0xf]
        %v3742 = vld [vmem:[#allocation2 + $0x404] sm:$0xf]
        %v3743 = vld [vmem:[#allocation2 + $0x408] sm:$0xf]
        %v3744 = vld [vmem:[#allocation2 + $0x40c] sm:$0xf]
        %v3745 = vld [vmem:[#allocation2 + $0x410] sm:$0xf]
        %v3746 = vld [vmem:[#allocation2 + $0x414] sm:$0xf]
        %v3747 = vld [vmem:[#allocation2 + $0x418] sm:$0xf]
        %v3748 = vld [vmem:[#allocation2 + $0x41c] sm:$0xf]
        %v3749 = vld [vmem:[#allocation2 + $0x420] sm:$0xf]
        %v3750 = vld [vmem:[#allocation2 + $0x424] sm:$0xf]
        %v3751 = vld [vmem:[#allocation2 + $0x428] sm:$0xf]
        %v3752 = vld [vmem:[#allocation2 + $0x42c] sm:$0xf]
        %v3753 = vld [vmem:[#allocation2 + $0x430] sm:$0xf]
        %v3754 = vld [vmem:[#allocation2 + $0x434] sm:$0xf]
        %v3755 = vld [vmem:[#allocation2 + $0x438] sm:$0xf]
        %v3756 = vld [vmem:[#allocation2 + $0x43c] sm:$0xf]
        %v3757 = vld [vmem:[#allocation2 + $0x440] sm:$0xf]
        %v3758 = vld [vmem:[#allocation2 + $0x444] sm:$0xf]
        %v3759 = vld [vmem:[#allocation2 + $0x448] sm:$0xf]
        %v3760 = vld [vmem:[#allocation2 + $0x44c] sm:$0xf]
        %v3761 = vld [vmem:[#allocation2 + $0x450] sm:$0xf]
        %v3762 = vld [vmem:[#allocation2 + $0x454] sm:$0xf]
        %v3763 = vld [vmem:[#allocation2 + $0x458] sm:$0xf]
        %v3764 = vld [vmem:[#allocation2 + $0x45c] sm:$0xf]
        %v3765 = vld [vmem:[#allocation2 + $0x460] sm:$0xf]
        %v3766 = vld [vmem:[#allocation2 + $0x464] sm:$0xf]
        %v3767 = vld [vmem:[#allocation2 + $0x468] sm:$0xf]
        %v3768 = vld [vmem:[#allocation2 + $0x46c] sm:$0xf]
        %v3769 = vld [vmem:[#allocation2 + $0x470] sm:$0xf]
        %v3770 = vld [vmem:[#allocation2 + $0x474] sm:$0xf]
        %v3771 = vld [vmem:[#allocation2 + $0x478] sm:$0xf]
        %v3772 = vld [vmem:[#allocation2 + $0x47c] sm:$0xf]
        %v3773 = vld [vmem:[#allocation2 + $0x480] sm:$0xf]
        %v3774 = vld [vmem:[#allocation2 + $0x484] sm:$0xf]
        %v3775 = vld [vmem:[#allocation2 + $0x488] sm:$0xf]
        %v3776 = vld [vmem:[#allocation2 + $0x48c] sm:$0xf]
        %v3777 = vld [vmem:[#allocation2 + $0x490] sm:$0xf]
        %v3778 = vld [vmem:[#allocation2 + $0x494] sm:$0xf]
        %v3779 = vld [vmem:[#allocation2 + $0x498] sm:$0xf]
        %v3780 = vld [vmem:[#allocation2 + $0x49c] sm:$0xf]
        %v3783 = vunpack.c.l.b16 %v3483
        %v3784 = vunpack.c.h.b16 %v3483
        %v3785 = vunpack.c.l.b16 %v3484
        %v3786 = vpack.c.b16 %v3783, %v3783
        %v3787 = vpack.c.b16 %v3784, %v3784
        %v3788 = vpack.c.b16 %v3785, %v3785
        %v3828 = vunpack.c.l.b16 %v3485
        %v3829 = vunpack.c.l.b16 %v3486
        %v3830 = vunpack.c.l.b16 %v3487
        %v3831 = vunpack.c.l.b16 %v3488
        %v3832 = vunpack.c.l.b16 %v3489
        %v3833 = vunpack.c.l.b16 %v3490
        %v3834 = vunpack.c.l.b16 %v3491
        %v3835 = vunpack.c.l.b16 %v3492
        %v3836 = vunpack.c.l.b16 %v3493
        %v3837 = vunpack.c.l.b16 %v3494
        %v3838 = vunpack.c.l.b16 %v3495
        %v3839 = vunpack.c.l.b16 %v3496
        %v3840 = vunpack.c.l.b16 %v3497
        %v3841 = vunpack.c.l.b16 %v3498
        %v3842 = vunpack.c.l.b16 %v3499
        %v3843 = vunpack.c.l.b16 %v3500
        %v3844 = vunpack.c.l.b16 %v3501
        %v3845 = vunpack.c.l.b16 %v3502
        %v3846 = vunpack.c.l.b16 %v3503
        %v3847 = vunpack.c.l.b16 %v3504
        %v3848 = vunpack.c.l.b16 %v3505
        %v3849 = vunpack.c.l.b16 %v3506
        %v3850 = vunpack.c.l.b16 %v3507
        %v3851 = vunpack.c.l.b16 %v3508
        %v3852 = vunpack.c.l.b16 %v3509
        %v3853 = vunpack.c.l.b16 %v3510
        %v3854 = vunpack.c.l.b16 %v3511
        %v3855 = vunpack.c.l.b16 %v3512
        %v3856 = vunpack.c.l.b16 %v3513
        %v3857 = vunpack.c.l.b16 %v3514
        %v3858 = vunpack.c.l.b16 %v3515
        %v3859 = vunpack.c.l.b16 %v3516
        %v3860 = vunpack.c.l.b16 %v3517
        %v3861 = vunpack.c.l.b16 %v3518
        %v3862 = vunpack.c.l.b16 %v3519
        %v3863 = vunpack.c.l.b16 %v3520
        %v3864 = vunpack.c.l.b16 %v3521
        %v3865 = vpack.c.b16 %v3829, %v3828
        %v3866 = vpack.c.b16 %v3831, %v3830
        %v3867 = vpack.c.b16 %v3833, %v3832
        %v3868 = vpack.c.b16 %v3835, %v3834
        %v3869 = vpack.c.b16 %v3837, %v3836
        %v3870 = vpack.c.b16 %v3839, %v3838
        %v3871 = vpack.c.b16 %v3841, %v3840
        %v3872 = vpack.c.b16 %v3843, %v3842
        %v3873 = vpack.c.b16 %v3845, %v3844
        %v3874 = vpack.c.b16 %v3847, %v3846
        %v3875 = vpack.c.b16 %v3849, %v3848
        %v3876 = vpack.c.b16 %v3851, %v3850
        %v3877 = vpack.c.b16 %v3853, %v3852
        %v3878 = vpack.c.b16 %v3855, %v3854
        %v3879 = vpack.c.b16 %v3857, %v3856
        %v3880 = vpack.c.b16 %v3859, %v3858
        %v3881 = vpack.c.b16 %v3861, %v3860
        %v3882 = vpack.c.b16 %v3863, %v3862
        %v3883 = vpack.c.b16 %v3864, %v3864
        %v3903 = vsel %vm1581, %v3788, 0
        %v3906 = vsel %vm1585, %v3883, 0
        %3908 = vmatprep.subr.bf16.mxu0 0
        %3909 = vmatpush1.bf16.msra.mxu0 %v3872
        %3910 = vmatprep.subr.bf16.mxu0 0
        %3911 = vmatpush1.bf16.msra.mxu0 %v3871
        %3912 = vmatprep.subr.bf16.mxu0 0
        %3913 = vmatpush1.bf16.msra.mxu0 %v3870
        %3914 = vmatprep.subr.bf16.mxu0 0
        %3915 = vmatpush1.bf16.msra.mxu0 %v3869
        %3916 = vmatprep.subr.bf16.mxu0 0
        %3917 = vmatpush1.bf16.msra.mxu0 %v3868
        %3918 = vmatprep.subr.bf16.mxu0 0
        %3919 = vmatpush1.bf16.msra.mxu0 %v3867
        %3920 = vmatprep.subr.bf16.mxu0 0
        %3921 = vmatpush1.bf16.msra.mxu0 %v3866
        %3922 = vmatprep.subr.bf16.mxu0 0
        %3923 = vmatpush1.bf16.msra.mxu0 %v3865
        %3924 = vmatprep.subr.bf16.mxu0 0
        %3925 = vmatpush2.bf16.msra.mxu0 %v3880
        %3926 = vmatprep.subr.bf16.mxu0 0
        %3927 = vmatpush2.bf16.msra.mxu0 %v3879
        %3928 = vmatprep.subr.bf16.mxu0 0
        %3929 = vmatpush2.bf16.msra.mxu0 %v3878
        %3930 = vmatprep.subr.bf16.mxu0 0
        %3931 = vmatpush2.bf16.msra.mxu0 %v3877
        %3932 = vmatprep.subr.bf16.mxu0 0
        %3933 = vmatpush2.bf16.msra.mxu0 %v3876
        %3934 = vmatprep.subr.bf16.mxu0 0
        %3935 = vmatpush2.bf16.msra.mxu0 %v3875
        %3936 = vmatprep.subr.bf16.mxu0 0
        %3937 = vmatpush2.bf16.msra.mxu0 %v3874
        %3938 = vmatprep.subr.bf16.mxu0 0
        %3939 = vmatpush2.bf16.msra.mxu0 %v3873
        %3940 = vmatprep.mubr.bf16.mxu0 %v3787
        %3941 = vmatmul.mubr.bf16.gmra.mxu0 %v3786
        %v3942 = vpop.f32.mrf.mxu0
        %v3943 = vadd.f32 0.0, %v3942
        %v3944 = vpop.f32.mrf.mxu0
        %v3945 = vpop.f32.mrf.mxu0
        %v3946 = vpop.f32.mrf.mxu0
        %3947 = vdwg.mxu0
        %3948 = vmatprep.subr.bf16.mxu0 0
        %3949 = vmatpush1.bf16.msra.mxu0 0
        %3950 = vmatprep.subr.bf16.mxu0 0
        %3951 = vmatpush1.bf16.msra.mxu0 0
        %3952 = vmatprep.subr.bf16.mxu0 0
        %3953 = vmatpush1.bf16.msra.mxu0 0
        %3954 = vmatprep.subr.bf16.mxu0 0
        %3955 = vmatpush1.bf16.msra.mxu0 0
        %3956 = vmatprep.subr.bf16.mxu0 0
        %3957 = vmatpush1.bf16.msra.mxu0 0
        %3958 = vmatprep.subr.bf16.mxu0 0
        %3959 = vmatpush1.bf16.msra.mxu0 %v3906
        %3960 = vmatprep.subr.bf16.mxu0 0
        %3961 = vmatpush1.bf16.msra.mxu0 %v3882
        %3962 = vmatprep.subr.bf16.mxu0 0
        %3963 = vmatpush1.bf16.msra.mxu0 %v3881
        %3964 = vmatprep.subr.bf16.mxu0 0
        %3965 = vmatpush2.bf16.msra.mxu0 0
        %3966 = vmatprep.subr.bf16.mxu0 0
        %3967 = vmatpush2.bf16.msra.mxu0 0
        %3968 = vmatprep.subr.bf16.mxu0 0
        %3969 = vmatpush2.bf16.msra.mxu0 0
        %3970 = vmatprep.subr.bf16.mxu0 0
        %3971 = vmatpush2.bf16.msra.mxu0 0
        %3972 = vmatprep.subr.bf16.mxu0 0
        %3973 = vmatpush2.bf16.msra.mxu0 0
        %3974 = vmatprep.subr.bf16.mxu0 0
        %3975 = vmatpush2.bf16.msra.mxu0 0
        %3976 = vmatprep.subr.bf16.mxu0 0
        %3977 = vmatpush2.bf16.msra.mxu0 0
        %3978 = vmatprep.subr.bf16.mxu0 0
        %3979 = vmatpush2.bf16.msra.mxu0 0
        %3980 = vmatprep.mubr.bf16.mxu0 0
        %3981 = vmatmul.mubr.bf16.gmra.mxu0 %v3903
        %v3982 = vpop.f32.mrf.mxu0
        %v3983 = vadd.f32 %v3943, %v3982
        %v3984 = vpop.f32.mrf.mxu0
        %v3985 = vpop.f32.mrf.mxu0
        %v3986 = vpop.f32.mrf.mxu0
        %3987 = vdwg.mxu0
        %v4025 = vunpack.c.l.b16 %v3522
        %v4026 = vunpack.c.l.b16 %v3523
        %v4027 = vunpack.c.l.b16 %v3524
        %v4028 = vunpack.c.l.b16 %v3525
        %v4029 = vunpack.c.l.b16 %v3526
        %v4030 = vunpack.c.l.b16 %v3527
        %v4031 = vunpack.c.l.b16 %v3528
        %v4032 = vunpack.c.l.b16 %v3529
        %v4033 = vunpack.c.l.b16 %v3530
        %v4034 = vunpack.c.l.b16 %v3531
        %v4035 = vunpack.c.l.b16 %v3532
        %v4036 = vunpack.c.l.b16 %v3533
        %v4037 = vunpack.c.l.b16 %v3534
        %v4038 = vunpack.c.l.b16 %v3535
        %v4039 = vunpack.c.l.b16 %v3536
        %v4040 = vunpack.c.l.b16 %v3537
        %v4041 = vunpack.c.l.b16 %v3538
        %v4042 = vunpack.c.l.b16 %v3539
        %v4043 = vunpack.c.l.b16 %v3540
        %v4044 = vunpack.c.l.b16 %v3541
        %v4045 = vunpack.c.l.b16 %v3542
        %v4046 = vunpack.c.l.b16 %v3543
        %v4047 = vunpack.c.l.b16 %v3544
        %v4048 = vunpack.c.l.b16 %v3545
        %v4049 = vunpack.c.l.b16 %v3546
        %v4050 = vunpack.c.l.b16 %v3547
        %v4051 = vunpack.c.l.b16 %v3548
        %v4052 = vunpack.c.l.b16 %v3549
        %v4053 = vunpack.c.l.b16 %v3550
        %v4054 = vunpack.c.l.b16 %v3551
        %v4055 = vunpack.c.l.b16 %v3552
        %v4056 = vunpack.c.l.b16 %v3553
        %v4057 = vunpack.c.l.b16 %v3554
        %v4058 = vunpack.c.l.b16 %v3555
        %v4059 = vunpack.c.l.b16 %v3556
        %v4060 = vunpack.c.l.b16 %v3557
        %v4061 = vunpack.c.l.b16 %v3558
        %v4062 = vpack.c.b16 %v4026, %v4025
        %v4063 = vpack.c.b16 %v4028, %v4027
        %v4064 = vpack.c.b16 %v4030, %v4029
        %v4065 = vpack.c.b16 %v4032, %v4031
        %v4066 = vpack.c.b16 %v4034, %v4033
        %v4067 = vpack.c.b16 %v4036, %v4035
        %v4068 = vpack.c.b16 %v4038, %v4037
        %v4069 = vpack.c.b16 %v4040, %v4039
        %v4070 = vpack.c.b16 %v4042, %v4041
        %v4071 = vpack.c.b16 %v4044, %v4043
        %v4072 = vpack.c.b16 %v4046, %v4045
        %v4073 = vpack.c.b16 %v4048, %v4047
        %v4074 = vpack.c.b16 %v4050, %v4049
        %v4075 = vpack.c.b16 %v4052, %v4051
        %v4076 = vpack.c.b16 %v4054, %v4053
        %v4077 = vpack.c.b16 %v4056, %v4055
        %v4078 = vpack.c.b16 %v4058, %v4057
        %v4079 = vpack.c.b16 %v4060, %v4059
        %v4080 = vpack.c.b16 %v4061, %v4061
        %v4100 = vsel %vm1585, %v4080, 0
        %4102 = vmatprep.subr.bf16.mxu0 0
        %4103 = vmatpush1.bf16.msra.mxu0 %v4069
        %4104 = vmatprep.subr.bf16.mxu0 0
        %4105 = vmatpush1.bf16.msra.mxu0 %v4068
        %4106 = vmatprep.subr.bf16.mxu0 0
        %4107 = vmatpush1.bf16.msra.mxu0 %v4067
        %4108 = vmatprep.subr.bf16.mxu0 0
        %4109 = vmatpush1.bf16.msra.mxu0 %v4066
        %4110 = vmatprep.subr.bf16.mxu0 0
        %4111 = vmatpush1.bf16.msra.mxu0 %v4065
        %4112 = vmatprep.subr.bf16.mxu0 0
        %4113 = vmatpush1.bf16.msra.mxu0 %v4064
        %4114 = vmatprep.subr.bf16.mxu0 0
        %4115 = vmatpush1.bf16.msra.mxu0 %v4063
        %4116 = vmatprep.subr.bf16.mxu0 0
        %4117 = vmatpush1.bf16.msra.mxu0 %v4062
        %4118 = vmatprep.subr.bf16.mxu0 0
        %4119 = vmatpush2.bf16.msra.mxu0 %v4077
        %4120 = vmatprep.subr.bf16.mxu0 0
        %4121 = vmatpush2.bf16.msra.mxu0 %v4076
        %4122 = vmatprep.subr.bf16.mxu0 0
        %4123 = vmatpush2.bf16.msra.mxu0 %v4075
        %4124 = vmatprep.subr.bf16.mxu0 0
        %4125 = vmatpush2.bf16.msra.mxu0 %v4074
        %4126 = vmatprep.subr.bf16.mxu0 0
        %4127 = vmatpush2.bf16.msra.mxu0 %v4073
        %4128 = vmatprep.subr.bf16.mxu0 0
        %4129 = vmatpush2.bf16.msra.mxu0 %v4072
        %4130 = vmatprep.subr.bf16.mxu0 0
        %4131 = vmatpush2.bf16.msra.mxu0 %v4071
        %4132 = vmatprep.subr.bf16.mxu0 0
        %4133 = vmatpush2.bf16.msra.mxu0 %v4070
        %4134 = vmatprep.mubr.bf16.mxu0 %v3787
        %4135 = vmatmul.mubr.bf16.gmra.mxu0 %v3786
        %v4136 = vpop.f32.mrf.mxu0
        %v4137 = vadd.f32 0.0, %v4136
        %v4138 = vpop.f32.mrf.mxu0
        %v4139 = vpop.f32.mrf.mxu0
        %v4140 = vpop.f32.mrf.mxu0
        %4141 = vdwg.mxu0
        %4142 = vmatprep.subr.bf16.mxu0 0
        %4143 = vmatpush1.bf16.msra.mxu0 0
        %4144 = vmatprep.subr.bf16.mxu0 0
        %4145 = vmatpush1.bf16.msra.mxu0 0
        %4146 = vmatprep.subr.bf16.mxu0 0
        %4147 = vmatpush1.bf16.msra.mxu0 0
        %4148 = vmatprep.subr.bf16.mxu0 0
        %4149 = vmatpush1.bf16.msra.mxu0 0
        %4150 = vmatprep.subr.bf16.mxu0 0
        %4151 = vmatpush1.bf16.msra.mxu0 0
        %4152 = vmatprep.subr.bf16.mxu0 0
        %4153 = vmatpush1.bf16.msra.mxu0 %v4100
        %4154 = vmatprep.subr.bf16.mxu0 0
        %4155 = vmatpush1.bf16.msra.mxu0 %v4079
        %4156 = vmatprep.subr.bf16.mxu0 0
        %4157 = vmatpush1.bf16.msra.mxu0 %v4078
        %4158 = vmatprep.subr.bf16.mxu0 0
        %4159 = vmatpush2.bf16.msra.mxu0 0
        %4160 = vmatprep.subr.bf16.mxu0 0
        %4161 = vmatpush2.bf16.msra.mxu0 0
        %4162 = vmatprep.subr.bf16.mxu0 0
        %4163 = vmatpush2.bf16.msra.mxu0 0
        %4164 = vmatprep.subr.bf16.mxu0 0
        %4165 = vmatpush2.bf16.msra.mxu0 0
        %4166 = vmatprep.subr.bf16.mxu0 0
        %4167 = vmatpush2.bf16.msra.mxu0 0
        %4168 = vmatprep.subr.bf16.mxu0 0
        %4169 = vmatpush2.bf16.msra.mxu0 0
        %4170 = vmatprep.subr.bf16.mxu0 0
        %4171 = vmatpush2.bf16.msra.mxu0 0
        %4172 = vmatprep.subr.bf16.mxu0 0
        %4173 = vmatpush2.bf16.msra.mxu0 0
        %4174 = vmatprep.mubr.bf16.mxu0 0
        %4175 = vmatmul.mubr.bf16.gmra.mxu0 %v3903
        %v4176 = vpop.f32.mrf.mxu0
        %v4177 = vadd.f32 %v4137, %v4176
        %v4178 = vpop.f32.mrf.mxu0
        %v4179 = vpop.f32.mrf.mxu0
        %v4180 = vpop.f32.mrf.mxu0
        %4181 = vdwg.mxu0
        %v4219 = vunpack.c.l.b16 %v3559
        %v4220 = vunpack.c.l.b16 %v3560
        %v4221 = vunpack.c.l.b16 %v3561
        %v4222 = vunpack.c.l.b16 %v3562
        %v4223 = vunpack.c.l.b16 %v3563
        %v4224 = vunpack.c.l.b16 %v3564
        %v4225 = vunpack.c.l.b16 %v3565
        %v4226 = vunpack.c.l.b16 %v3566
        %v4227 = vunpack.c.l.b16 %v3567
        %v4228 = vunpack.c.l.b16 %v3568
        %v4229 = vunpack.c.l.b16 %v3569
        %v4230 = vunpack.c.l.b16 %v3570
        %v4231 = vunpack.c.l.b16 %v3571
        %v4232 = vunpack.c.l.b16 %v3572
        %v4233 = vunpack.c.l.b16 %v3573
        %v4234 = vunpack.c.l.b16 %v3574
        %v4235 = vunpack.c.l.b16 %v3575
        %v4236 = vunpack.c.l.b16 %v3576
        %v4237 = vunpack.c.l.b16 %v3577
        %v4238 = vunpack.c.l.b16 %v3578
        %v4239 = vunpack.c.l.b16 %v3579
        %v4240 = vunpack.c.l.b16 %v3580
        %v4241 = vunpack.c.l.b16 %v3581
        %v4242 = vunpack.c.l.b16 %v3582
        %v4243 = vunpack.c.l.b16 %v3583
        %v4244 = vunpack.c.l.b16 %v3584
        %v4245 = vunpack.c.l.b16 %v3585
        %v4246 = vunpack.c.l.b16 %v3586
        %v4247 = vunpack.c.l.b16 %v3587
        %v4248 = vunpack.c.l.b16 %v3588
        %v4249 = vunpack.c.l.b16 %v3589
        %v4250 = vunpack.c.l.b16 %v3590
        %v4251 = vunpack.c.l.b16 %v3591
        %v4252 = vunpack.c.l.b16 %v3592
        %v4253 = vunpack.c.l.b16 %v3593
        %v4254 = vunpack.c.l.b16 %v3594
        %v4255 = vunpack.c.l.b16 %v3595
        %v4256 = vpack.c.b16 %v4220, %v4219
        %v4257 = vpack.c.b16 %v4222, %v4221
        %v4258 = vpack.c.b16 %v4224, %v4223
        %v4259 = vpack.c.b16 %v4226, %v4225
        %v4260 = vpack.c.b16 %v4228, %v4227
        %v4261 = vpack.c.b16 %v4230, %v4229
        %v4262 = vpack.c.b16 %v4232, %v4231
        %v4263 = vpack.c.b16 %v4234, %v4233
        %v4264 = vpack.c.b16 %v4236, %v4235
        %v4265 = vpack.c.b16 %v4238, %v4237
        %v4266 = vpack.c.b16 %v4240, %v4239
        %v4267 = vpack.c.b16 %v4242, %v4241
        %v4268 = vpack.c.b16 %v4244, %v4243
        %v4269 = vpack.c.b16 %v4246, %v4245
        %v4270 = vpack.c.b16 %v4248, %v4247
        %v4271 = vpack.c.b16 %v4250, %v4249
        %v4272 = vpack.c.b16 %v4252, %v4251
        %v4273 = vpack.c.b16 %v4254, %v4253
        %v4274 = vpack.c.b16 %v4255, %v4255
        %v4294 = vsel %vm1585, %v4274, 0
        %4296 = vmatprep.subr.bf16.mxu0 0
        %4297 = vmatpush1.bf16.msra.mxu0 %v4263
        %4298 = vmatprep.subr.bf16.mxu0 0
        %4299 = vmatpush1.bf16.msra.mxu0 %v4262
        %4300 = vmatprep.subr.bf16.mxu0 0
        %4301 = vmatpush1.bf16.msra.mxu0 %v4261
        %4302 = vmatprep.subr.bf16.mxu0 0
        %4303 = vmatpush1.bf16.msra.mxu0 %v4260
        %4304 = vmatprep.subr.bf16.mxu0 0
        %4305 = vmatpush1.bf16.msra.mxu0 %v4259
        %4306 = vmatprep.subr.bf16.mxu0 0
        %4307 = vmatpush1.bf16.msra.mxu0 %v4258
        %4308 = vmatprep.subr.bf16.mxu0 0
        %4309 = vmatpush1.bf16.msra.mxu0 %v4257
        %4310 = vmatprep.subr.bf16.mxu0 0
        %4311 = vmatpush1.bf16.msra.mxu0 %v4256
        %4312 = vmatprep.subr.bf16.mxu0 0
        %4313 = vmatpush2.bf16.msra.mxu0 %v4271
        %4314 = vmatprep.subr.bf16.mxu0 0
        %4315 = vmatpush2.bf16.msra.mxu0 %v4270
        %4316 = vmatprep.subr.bf16.mxu0 0
        %4317 = vmatpush2.bf16.msra.mxu0 %v4269
        %4318 = vmatprep.subr.bf16.mxu0 0
        %4319 = vmatpush2.bf16.msra.mxu0 %v4268
        %4320 = vmatprep.subr.bf16.mxu0 0
        %4321 = vmatpush2.bf16.msra.mxu0 %v4267
        %4322 = vmatprep.subr.bf16.mxu0 0
        %4323 = vmatpush2.bf16.msra.mxu0 %v4266
        %4324 = vmatprep.subr.bf16.mxu0 0
        %4325 = vmatpush2.bf16.msra.mxu0 %v4265
        %4326 = vmatprep.subr.bf16.mxu0 0
        %4327 = vmatpush2.bf16.msra.mxu0 %v4264
        %4328 = vmatprep.mubr.bf16.mxu0 %v3787
        %4329 = vmatmul.mubr.bf16.gmra.mxu0 %v3786
        %v4330 = vpop.f32.mrf.mxu0
        %v4331 = vadd.f32 0.0, %v4330
        %v4332 = vpop.f32.mrf.mxu0
        %v4333 = vpop.f32.mrf.mxu0
        %v4334 = vpop.f32.mrf.mxu0
        %4335 = vdwg.mxu0
        %4336 = vmatprep.subr.bf16.mxu0 0
        %4337 = vmatpush1.bf16.msra.mxu0 0
        %4338 = vmatprep.subr.bf16.mxu0 0
        %4339 = vmatpush1.bf16.msra.mxu0 0
        %4340 = vmatprep.subr.bf16.mxu0 0
        %4341 = vmatpush1.bf16.msra.mxu0 0
        %4342 = vmatprep.subr.bf16.mxu0 0
        %4343 = vmatpush1.bf16.msra.mxu0 0
        %4344 = vmatprep.subr.bf16.mxu0 0
        %4345 = vmatpush1.bf16.msra.mxu0 0
        %4346 = vmatprep.subr.bf16.mxu0 0
        %4347 = vmatpush1.bf16.msra.mxu0 %v4294
        %4348 = vmatprep.subr.bf16.mxu0 0
        %4349 = vmatpush1.bf16.msra.mxu0 %v4273
        %4350 = vmatprep.subr.bf16.mxu0 0
        %4351 = vmatpush1.bf16.msra.mxu0 %v4272
        %4352 = vmatprep.subr.bf16.mxu0 0
        %4353 = vmatpush2.bf16.msra.mxu0 0
        %4354 = vmatprep.subr.bf16.mxu0 0
        %4355 = vmatpush2.bf16.msra.mxu0 0
        %4356 = vmatprep.subr.bf16.mxu0 0
        %4357 = vmatpush2.bf16.msra.mxu0 0
        %4358 = vmatprep.subr.bf16.mxu0 0
        %4359 = vmatpush2.bf16.msra.mxu0 0
        %4360 = vmatprep.subr.bf16.mxu0 0
        %4361 = vmatpush2.bf16.msra.mxu0 0
        %4362 = vmatprep.subr.bf16.mxu0 0
        %4363 = vmatpush2.bf16.msra.mxu0 0
        %4364 = vmatprep.subr.bf16.mxu0 0
        %4365 = vmatpush2.bf16.msra.mxu0 0
        %4366 = vmatprep.subr.bf16.mxu0 0
        %4367 = vmatpush2.bf16.msra.mxu0 0
        %4368 = vmatprep.mubr.bf16.mxu0 0
        %4369 = vmatmul.mubr.bf16.gmra.mxu0 %v3903
        %v4370 = vpop.f32.mrf.mxu0
        %v4371 = vadd.f32 %v4331, %v4370
        %v4372 = vpop.f32.mrf.mxu0
        %v4373 = vpop.f32.mrf.mxu0
        %v4374 = vpop.f32.mrf.mxu0
        %4375 = vdwg.mxu0
        %v4413 = vunpack.c.l.b16 %v3596
        %v4414 = vunpack.c.l.b16 %v3597
        %v4415 = vunpack.c.l.b16 %v3598
        %v4416 = vunpack.c.l.b16 %v3599
        %v4417 = vunpack.c.l.b16 %v3600
        %v4418 = vunpack.c.l.b16 %v3601
        %v4419 = vunpack.c.l.b16 %v3602
        %v4420 = vunpack.c.l.b16 %v3603
        %v4421 = vunpack.c.l.b16 %v3604
        %v4422 = vunpack.c.l.b16 %v3605
        %v4423 = vunpack.c.l.b16 %v3606
        %v4424 = vunpack.c.l.b16 %v3607
        %v4425 = vunpack.c.l.b16 %v3608
        %v4426 = vunpack.c.l.b16 %v3609
        %v4427 = vunpack.c.l.b16 %v3610
        %v4428 = vunpack.c.l.b16 %v3611
        %v4429 = vunpack.c.l.b16 %v3612
        %v4430 = vunpack.c.l.b16 %v3613
        %v4431 = vunpack.c.l.b16 %v3614
        %v4432 = vunpack.c.l.b16 %v3615
        %v4433 = vunpack.c.l.b16 %v3616
        %v4434 = vunpack.c.l.b16 %v3617
        %v4435 = vunpack.c.l.b16 %v3618
        %v4436 = vunpack.c.l.b16 %v3619
        %v4437 = vunpack.c.l.b16 %v3620
        %v4438 = vunpack.c.l.b16 %v3621
        %v4439 = vunpack.c.l.b16 %v3622
        %v4440 = vunpack.c.l.b16 %v3623
        %v4441 = vunpack.c.l.b16 %v3624
        %v4442 = vunpack.c.l.b16 %v3625
        %v4443 = vunpack.c.l.b16 %v3626
        %v4444 = vunpack.c.l.b16 %v3627
        %v4445 = vunpack.c.l.b16 %v3628
        %v4446 = vunpack.c.l.b16 %v3629
        %v4447 = vunpack.c.l.b16 %v3630
        %v4448 = vunpack.c.l.b16 %v3631
        %v4449 = vunpack.c.l.b16 %v3632
        %v4450 = vpack.c.b16 %v4414, %v4413
        %v4451 = vpack.c.b16 %v4416, %v4415
        %v4452 = vpack.c.b16 %v4418, %v4417
        %v4453 = vpack.c.b16 %v4420, %v4419
        %v4454 = vpack.c.b16 %v4422, %v4421
        %v4455 = vpack.c.b16 %v4424, %v4423
        %v4456 = vpack.c.b16 %v4426, %v4425
        %v4457 = vpack.c.b16 %v4428, %v4427
        %v4458 = vpack.c.b16 %v4430, %v4429
        %v4459 = vpack.c.b16 %v4432, %v4431
        %v4460 = vpack.c.b16 %v4434, %v4433
        %v4461 = vpack.c.b16 %v4436, %v4435
        %v4462 = vpack.c.b16 %v4438, %v4437
        %v4463 = vpack.c.b16 %v4440, %v4439
        %v4464 = vpack.c.b16 %v4442, %v4441
        %v4465 = vpack.c.b16 %v4444, %v4443
        %v4466 = vpack.c.b16 %v4446, %v4445
        %v4467 = vpack.c.b16 %v4448, %v4447
        %v4468 = vpack.c.b16 %v4449, %v4449
        %v4488 = vsel %vm1585, %v4468, 0
        %4490 = vmatprep.subr.bf16.mxu0 0
        %4491 = vmatpush1.bf16.msra.mxu0 %v4457
        %4492 = vmatprep.subr.bf16.mxu0 0
        %4493 = vmatpush1.bf16.msra.mxu0 %v4456
        %4494 = vmatprep.subr.bf16.mxu0 0
        %4495 = vmatpush1.bf16.msra.mxu0 %v4455
        %4496 = vmatprep.subr.bf16.mxu0 0
        %4497 = vmatpush1.bf16.msra.mxu0 %v4454
        %4498 = vmatprep.subr.bf16.mxu0 0
        %4499 = vmatpush1.bf16.msra.mxu0 %v4453
        %4500 = vmatprep.subr.bf16.mxu0 0
        %4501 = vmatpush1.bf16.msra.mxu0 %v4452
        %4502 = vmatprep.subr.bf16.mxu0 0
        %4503 = vmatpush1.bf16.msra.mxu0 %v4451
        %4504 = vmatprep.subr.bf16.mxu0 0
        %4505 = vmatpush1.bf16.msra.mxu0 %v4450
        %4506 = vmatprep.subr.bf16.mxu0 0
        %4507 = vmatpush2.bf16.msra.mxu0 %v4465
        %4508 = vmatprep.subr.bf16.mxu0 0
        %4509 = vmatpush2.bf16.msra.mxu0 %v4464
        %4510 = vmatprep.subr.bf16.mxu0 0
        %4511 = vmatpush2.bf16.msra.mxu0 %v4463
        %4512 = vmatprep.subr.bf16.mxu0 0
        %4513 = vmatpush2.bf16.msra.mxu0 %v4462
        %4514 = vmatprep.subr.bf16.mxu0 0
        %4515 = vmatpush2.bf16.msra.mxu0 %v4461
        %4516 = vmatprep.subr.bf16.mxu0 0
        %4517 = vmatpush2.bf16.msra.mxu0 %v4460
        %4518 = vmatprep.subr.bf16.mxu0 0
        %4519 = vmatpush2.bf16.msra.mxu0 %v4459
        %4520 = vmatprep.subr.bf16.mxu0 0
        %4521 = vmatpush2.bf16.msra.mxu0 %v4458
        %4522 = vmatprep.mubr.bf16.mxu0 %v3787
        %4523 = vmatmul.mubr.bf16.gmra.mxu0 %v3786
        %v4524 = vpop.f32.mrf.mxu0
        %v4525 = vadd.f32 0.0, %v4524
        %v4526 = vpop.f32.mrf.mxu0
        %v4527 = vpop.f32.mrf.mxu0
        %v4528 = vpop.f32.mrf.mxu0
        %4529 = vdwg.mxu0
        %4530 = vmatprep.subr.bf16.mxu0 0
        %4531 = vmatpush1.bf16.msra.mxu0 0
        %4532 = vmatprep.subr.bf16.mxu0 0
        %4533 = vmatpush1.bf16.msra.mxu0 0
        %4534 = vmatprep.subr.bf16.mxu0 0
        %4535 = vmatpush1.bf16.msra.mxu0 0
        %4536 = vmatprep.subr.bf16.mxu0 0
        %4537 = vmatpush1.bf16.msra.mxu0 0
        %4538 = vmatprep.subr.bf16.mxu0 0
        %4539 = vmatpush1.bf16.msra.mxu0 0
        %4540 = vmatprep.subr.bf16.mxu0 0
        %4541 = vmatpush1.bf16.msra.mxu0 %v4488
        %4542 = vmatprep.subr.bf16.mxu0 0
        %4543 = vmatpush1.bf16.msra.mxu0 %v4467
        %4544 = vmatprep.subr.bf16.mxu0 0
        %4545 = vmatpush1.bf16.msra.mxu0 %v4466
        %4546 = vmatprep.subr.bf16.mxu0 0
        %4547 = vmatpush2.bf16.msra.mxu0 0
        %4548 = vmatprep.subr.bf16.mxu0 0
        %4549 = vmatpush2.bf16.msra.mxu0 0
        %4550 = vmatprep.subr.bf16.mxu0 0
        %4551 = vmatpush2.bf16.msra.mxu0 0
        %4552 = vmatprep.subr.bf16.mxu0 0
        %4553 = vmatpush2.bf16.msra.mxu0 0
        %4554 = vmatprep.subr.bf16.mxu0 0
        %4555 = vmatpush2.bf16.msra.mxu0 0
        %4556 = vmatprep.subr.bf16.mxu0 0
        %4557 = vmatpush2.bf16.msra.mxu0 0
        %4558 = vmatprep.subr.bf16.mxu0 0
        %4559 = vmatpush2.bf16.msra.mxu0 0
        %4560 = vmatprep.subr.bf16.mxu0 0
        %4561 = vmatpush2.bf16.msra.mxu0 0
        %4562 = vmatprep.mubr.bf16.mxu0 0
        %4563 = vmatmul.mubr.bf16.gmra.mxu0 %v3903
        %v4564 = vpop.f32.mrf.mxu0
        %v4565 = vadd.f32 %v4525, %v4564
        %v4566 = vpop.f32.mrf.mxu0
        %v4567 = vpop.f32.mrf.mxu0
        %v4568 = vpop.f32.mrf.mxu0
        %4569 = vdwg.mxu0
        %v4607 = vunpack.c.l.b16 %v3633
        %v4608 = vunpack.c.l.b16 %v3634
        %v4609 = vunpack.c.l.b16 %v3635
        %v4610 = vunpack.c.l.b16 %v3636
        %v4611 = vunpack.c.l.b16 %v3637
        %v4612 = vunpack.c.l.b16 %v3638
        %v4613 = vunpack.c.l.b16 %v3639
        %v4614 = vunpack.c.l.b16 %v3640
        %v4615 = vunpack.c.l.b16 %v3641
        %v4616 = vunpack.c.l.b16 %v3642
        %v4617 = vunpack.c.l.b16 %v3643
        %v4618 = vunpack.c.l.b16 %v3644
        %v4619 = vunpack.c.l.b16 %v3645
        %v4620 = vunpack.c.l.b16 %v3646
        %v4621 = vunpack.c.l.b16 %v3647
        %v4622 = vunpack.c.l.b16 %v3648
        %v4623 = vunpack.c.l.b16 %v3649
        %v4624 = vunpack.c.l.b16 %v3650
        %v4625 = vunpack.c.l.b16 %v3651
        %v4626 = vunpack.c.l.b16 %v3652
        %v4627 = vunpack.c.l.b16 %v3653
        %v4628 = vunpack.c.l.b16 %v3654
        %v4629 = vunpack.c.l.b16 %v3655
        %v4630 = vunpack.c.l.b16 %v3656
        %v4631 = vunpack.c.l.b16 %v3657
        %v4632 = vunpack.c.l.b16 %v3658
        %v4633 = vunpack.c.l.b16 %v3659
        %v4634 = vunpack.c.l.b16 %v3660
        %v4635 = vunpack.c.l.b16 %v3661
        %v4636 = vunpack.c.l.b16 %v3662
        %v4637 = vunpack.c.l.b16 %v3663
        %v4638 = vunpack.c.l.b16 %v3664
        %v4639 = vunpack.c.l.b16 %v3665
        %v4640 = vunpack.c.l.b16 %v3666
        %v4641 = vunpack.c.l.b16 %v3667
        %v4642 = vunpack.c.l.b16 %v3668
        %v4643 = vunpack.c.l.b16 %v3669
        %v4644 = vpack.c.b16 %v4608, %v4607
        %v4645 = vpack.c.b16 %v4610, %v4609
        %v4646 = vpack.c.b16 %v4612, %v4611
        %v4647 = vpack.c.b16 %v4614, %v4613
        %v4648 = vpack.c.b16 %v4616, %v4615
        %v4649 = vpack.c.b16 %v4618, %v4617
        %v4650 = vpack.c.b16 %v4620, %v4619
        %v4651 = vpack.c.b16 %v4622, %v4621
        %v4652 = vpack.c.b16 %v4624, %v4623
        %v4653 = vpack.c.b16 %v4626, %v4625
        %v4654 = vpack.c.b16 %v4628, %v4627
        %v4655 = vpack.c.b16 %v4630, %v4629
        %v4656 = vpack.c.b16 %v4632, %v4631
        %v4657 = vpack.c.b16 %v4634, %v4633
        %v4658 = vpack.c.b16 %v4636, %v4635
        %v4659 = vpack.c.b16 %v4638, %v4637
        %v4660 = vpack.c.b16 %v4640, %v4639
        %v4661 = vpack.c.b16 %v4642, %v4641
        %v4662 = vpack.c.b16 %v4643, %v4643
        %v4682 = vsel %vm1585, %v4662, 0
        %4684 = vmatprep.subr.bf16.mxu0 0
        %4685 = vmatpush1.bf16.msra.mxu0 %v4651
        %4686 = vmatprep.subr.bf16.mxu0 0
        %4687 = vmatpush1.bf16.msra.mxu0 %v4650
        %4688 = vmatprep.subr.bf16.mxu0 0
        %4689 = vmatpush1.bf16.msra.mxu0 %v4649
        %4690 = vmatprep.subr.bf16.mxu0 0
        %4691 = vmatpush1.bf16.msra.mxu0 %v4648
        %4692 = vmatprep.subr.bf16.mxu0 0
        %4693 = vmatpush1.bf16.msra.mxu0 %v4647
        %4694 = vmatprep.subr.bf16.mxu0 0
        %4695 = vmatpush1.bf16.msra.mxu0 %v4646
        %4696 = vmatprep.subr.bf16.mxu0 0
        %4697 = vmatpush1.bf16.msra.mxu0 %v4645
        %4698 = vmatprep.subr.bf16.mxu0 0
        %4699 = vmatpush1.bf16.msra.mxu0 %v4644
        %4700 = vmatprep.subr.bf16.mxu0 0
        %4701 = vmatpush2.bf16.msra.mxu0 %v4659
        %4702 = vmatprep.subr.bf16.mxu0 0
        %4703 = vmatpush2.bf16.msra.mxu0 %v4658
        %4704 = vmatprep.subr.bf16.mxu0 0
        %4705 = vmatpush2.bf16.msra.mxu0 %v4657
        %4706 = vmatprep.subr.bf16.mxu0 0
        %4707 = vmatpush2.bf16.msra.mxu0 %v4656
        %4708 = vmatprep.subr.bf16.mxu0 0
        %4709 = vmatpush2.bf16.msra.mxu0 %v4655
        %4710 = vmatprep.subr.bf16.mxu0 0
        %4711 = vmatpush2.bf16.msra.mxu0 %v4654
        %4712 = vmatprep.subr.bf16.mxu0 0
        %4713 = vmatpush2.bf16.msra.mxu0 %v4653
        %4714 = vmatprep.subr.bf16.mxu0 0
        %4715 = vmatpush2.bf16.msra.mxu0 %v4652
        %4716 = vmatprep.mubr.bf16.mxu0 %v3787
        %4717 = vmatmul.mubr.bf16.gmra.mxu0 %v3786
        %v4718 = vpop.f32.mrf.mxu0
        %v4719 = vadd.f32 0.0, %v4718
        %v4720 = vpop.f32.mrf.mxu0
        %v4721 = vpop.f32.mrf.mxu0
        %v4722 = vpop.f32.mrf.mxu0
        %4723 = vdwg.mxu0
        %4724 = vmatprep.subr.bf16.mxu0 0
        %4725 = vmatpush1.bf16.msra.mxu0 0
        %4726 = vmatprep.subr.bf16.mxu0 0
        %4727 = vmatpush1.bf16.msra.mxu0 0
        %4728 = vmatprep.subr.bf16.mxu0 0
        %4729 = vmatpush1.bf16.msra.mxu0 0
        %4730 = vmatprep.subr.bf16.mxu0 0
        %4731 = vmatpush1.bf16.msra.mxu0 0
        %4732 = vmatprep.subr.bf16.mxu0 0
        %4733 = vmatpush1.bf16.msra.mxu0 0
        %4734 = vmatprep.subr.bf16.mxu0 0
        %4735 = vmatpush1.bf16.msra.mxu0 %v4682
        %4736 = vmatprep.subr.bf16.mxu0 0
        %4737 = vmatpush1.bf16.msra.mxu0 %v4661
        %4738 = vmatprep.subr.bf16.mxu0 0
        %4739 = vmatpush1.bf16.msra.mxu0 %v4660
        %4740 = vmatprep.subr.bf16.mxu0 0
        %4741 = vmatpush2.bf16.msra.mxu0 0
        %4742 = vmatprep.subr.bf16.mxu0 0
        %4743 = vmatpush2.bf16.msra.mxu0 0
        %4744 = vmatprep.subr.bf16.mxu0 0
        %4745 = vmatpush2.bf16.msra.mxu0 0
        %4746 = vmatprep.subr.bf16.mxu0 0
        %4747 = vmatpush2.bf16.msra.mxu0 0
        %4748 = vmatprep.subr.bf16.mxu0 0
        %4749 = vmatpush2.bf16.msra.mxu0 0
        %4750 = vmatprep.subr.bf16.mxu0 0
        %4751 = vmatpush2.bf16.msra.mxu0 0
        %4752 = vmatprep.subr.bf16.mxu0 0
        %4753 = vmatpush2.bf16.msra.mxu0 0
        %4754 = vmatprep.subr.bf16.mxu0 0
        %4755 = vmatpush2.bf16.msra.mxu0 0
        %4756 = vmatprep.mubr.bf16.mxu0 0
        %4757 = vmatmul.mubr.bf16.gmra.mxu0 %v3903
        %v4758 = vpop.f32.mrf.mxu0
        %v4759 = vadd.f32 %v4719, %v4758
        %v4760 = vpop.f32.mrf.mxu0
        %v4761 = vpop.f32.mrf.mxu0
        %v4762 = vpop.f32.mrf.mxu0
        %4763 = vdwg.mxu0
        %v4801 = vunpack.c.l.b16 %v3670
        %v4802 = vunpack.c.l.b16 %v3671
        %v4803 = vunpack.c.l.b16 %v3672
        %v4804 = vunpack.c.l.b16 %v3673
        %v4805 = vunpack.c.l.b16 %v3674
        %v4806 = vunpack.c.l.b16 %v3675
        %v4807 = vunpack.c.l.b16 %v3676
        %v4808 = vunpack.c.l.b16 %v3677
        %v4809 = vunpack.c.l.b16 %v3678
        %v4810 = vunpack.c.l.b16 %v3679
        %v4811 = vunpack.c.l.b16 %v3680
        %v4812 = vunpack.c.l.b16 %v3681
        %v4813 = vunpack.c.l.b16 %v3682
        %v4814 = vunpack.c.l.b16 %v3683
        %v4815 = vunpack.c.l.b16 %v3684
        %v4816 = vunpack.c.l.b16 %v3685
        %v4817 = vunpack.c.l.b16 %v3686
        %v4818 = vunpack.c.l.b16 %v3687
        %v4819 = vunpack.c.l.b16 %v3688
        %v4820 = vunpack.c.l.b16 %v3689
        %v4821 = vunpack.c.l.b16 %v3690
        %v4822 = vunpack.c.l.b16 %v3691
        %v4823 = vunpack.c.l.b16 %v3692
        %v4824 = vunpack.c.l.b16 %v3693
        %v4825 = vunpack.c.l.b16 %v3694
        %v4826 = vunpack.c.l.b16 %v3695
        %v4827 = vunpack.c.l.b16 %v3696
        %v4828 = vunpack.c.l.b16 %v3697
        %v4829 = vunpack.c.l.b16 %v3698
        %v4830 = vunpack.c.l.b16 %v3699
        %v4831 = vunpack.c.l.b16 %v3700
        %v4832 = vunpack.c.l.b16 %v3701
        %v4833 = vunpack.c.l.b16 %v3702
        %v4834 = vunpack.c.l.b16 %v3703
        %v4835 = vunpack.c.l.b16 %v3704
        %v4836 = vunpack.c.l.b16 %v3705
        %v4837 = vunpack.c.l.b16 %v3706
        %v4838 = vpack.c.b16 %v4802, %v4801
        %v4839 = vpack.c.b16 %v4804, %v4803
        %v4840 = vpack.c.b16 %v4806, %v4805
        %v4841 = vpack.c.b16 %v4808, %v4807
        %v4842 = vpack.c.b16 %v4810, %v4809
        %v4843 = vpack.c.b16 %v4812, %v4811
        %v4844 = vpack.c.b16 %v4814, %v4813
        %v4845 = vpack.c.b16 %v4816, %v4815
        %v4846 = vpack.c.b16 %v4818, %v4817
        %v4847 = vpack.c.b16 %v4820, %v4819
        %v4848 = vpack.c.b16 %v4822, %v4821
        %v4849 = vpack.c.b16 %v4824, %v4823
        %v4850 = vpack.c.b16 %v4826, %v4825
        %v4851 = vpack.c.b16 %v4828, %v4827
        %v4852 = vpack.c.b16 %v4830, %v4829
        %v4853 = vpack.c.b16 %v4832, %v4831
        %v4854 = vpack.c.b16 %v4834, %v4833
        %v4855 = vpack.c.b16 %v4836, %v4835
        %v4856 = vpack.c.b16 %v4837, %v4837
        %v4876 = vsel %vm1585, %v4856, 0
        %4878 = vmatprep.subr.bf16.mxu0 0
        %4879 = vmatpush1.bf16.msra.mxu0 %v4845
        %4880 = vmatprep.subr.bf16.mxu0 0
        %4881 = vmatpush1.bf16.msra.mxu0 %v4844
        %4882 = vmatprep.subr.bf16.mxu0 0
        %4883 = vmatpush1.bf16.msra.mxu0 %v4843
        %4884 = vmatprep.subr.bf16.mxu0 0
        %4885 = vmatpush1.bf16.msra.mxu0 %v4842
        %4886 = vmatprep.subr.bf16.mxu0 0
        %4887 = vmatpush1.bf16.msra.mxu0 %v4841
        %4888 = vmatprep.subr.bf16.mxu0 0
        %4889 = vmatpush1.bf16.msra.mxu0 %v4840
        %4890 = vmatprep.subr.bf16.mxu0 0
        %4891 = vmatpush1.bf16.msra.mxu0 %v4839
        %4892 = vmatprep.subr.bf16.mxu0 0
        %4893 = vmatpush1.bf16.msra.mxu0 %v4838
        %4894 = vmatprep.subr.bf16.mxu0 0
        %4895 = vmatpush2.bf16.msra.mxu0 %v4853
        %4896 = vmatprep.subr.bf16.mxu0 0
        %4897 = vmatpush2.bf16.msra.mxu0 %v4852
        %4898 = vmatprep.subr.bf16.mxu0 0
        %4899 = vmatpush2.bf16.msra.mxu0 %v4851
        %4900 = vmatprep.subr.bf16.mxu0 0
        %4901 = vmatpush2.bf16.msra.mxu0 %v4850
        %4902 = vmatprep.subr.bf16.mxu0 0
        %4903 = vmatpush2.bf16.msra.mxu0 %v4849
        %4904 = vmatprep.subr.bf16.mxu0 0
        %4905 = vmatpush2.bf16.msra.mxu0 %v4848
        %4906 = vmatprep.subr.bf16.mxu0 0
        %4907 = vmatpush2.bf16.msra.mxu0 %v4847
        %4908 = vmatprep.subr.bf16.mxu0 0
        %4909 = vmatpush2.bf16.msra.mxu0 %v4846
        %4910 = vmatprep.mubr.bf16.mxu0 %v3787
        %4911 = vmatmul.mubr.bf16.gmra.mxu0 %v3786
        %v4912 = vpop.f32.mrf.mxu0
        %v4913 = vadd.f32 0.0, %v4912
        %v4914 = vpop.f32.mrf.mxu0
        %v4915 = vpop.f32.mrf.mxu0
        %v4916 = vpop.f32.mrf.mxu0
        %4917 = vdwg.mxu0
        %4918 = vmatprep.subr.bf16.mxu0 0
        %4919 = vmatpush1.bf16.msra.mxu0 0
        %4920 = vmatprep.subr.bf16.mxu0 0
        %4921 = vmatpush1.bf16.msra.mxu0 0
        %4922 = vmatprep.subr.bf16.mxu0 0
        %4923 = vmatpush1.bf16.msra.mxu0 0
        %4924 = vmatprep.subr.bf16.mxu0 0
        %4925 = vmatpush1.bf16.msra.mxu0 0
        %4926 = vmatprep.subr.bf16.mxu0 0
        %4927 = vmatpush1.bf16.msra.mxu0 0
        %4928 = vmatprep.subr.bf16.mxu0 0
        %4929 = vmatpush1.bf16.msra.mxu0 %v4876
        %4930 = vmatprep.subr.bf16.mxu0 0
        %4931 = vmatpush1.bf16.msra.mxu0 %v4855
        %4932 = vmatprep.subr.bf16.mxu0 0
        %4933 = vmatpush1.bf16.msra.mxu0 %v4854
        %4934 = vmatprep.subr.bf16.mxu0 0
        %4935 = vmatpush2.bf16.msra.mxu0 0
        %4936 = vmatprep.subr.bf16.mxu0 0
        %4937 = vmatpush2.bf16.msra.mxu0 0
        %4938 = vmatprep.subr.bf16.mxu0 0
        %4939 = vmatpush2.bf16.msra.mxu0 0
        %4940 = vmatprep.subr.bf16.mxu0 0
        %4941 = vmatpush2.bf16.msra.mxu0 0
        %4942 = vmatprep.subr.bf16.mxu0 0
        %4943 = vmatpush2.bf16.msra.mxu0 0
        %4944 = vmatprep.subr.bf16.mxu0 0
        %4945 = vmatpush2.bf16.msra.mxu0 0
        %4946 = vmatprep.subr.bf16.mxu0 0
        %4947 = vmatpush2.bf16.msra.mxu0 0
        %4948 = vmatprep.subr.bf16.mxu0 0
        %4949 = vmatpush2.bf16.msra.mxu0 0
        %4950 = vmatprep.mubr.bf16.mxu0 0
        %4951 = vmatmul.mubr.bf16.gmra.mxu0 %v3903
        %v4952 = vpop.f32.mrf.mxu0
        %v4953 = vadd.f32 %v4913, %v4952
        %v4954 = vpop.f32.mrf.mxu0
        %v4955 = vpop.f32.mrf.mxu0
        %v4956 = vpop.f32.mrf.mxu0
        %4957 = vdwg.mxu0
        %v4995 = vunpack.c.l.b16 %v3707
        %v4996 = vunpack.c.l.b16 %v3708
        %v4997 = vunpack.c.l.b16 %v3709
        %v4998 = vunpack.c.l.b16 %v3710
        %v4999 = vunpack.c.l.b16 %v3711
        %v5000 = vunpack.c.l.b16 %v3712
        %v5001 = vunpack.c.l.b16 %v3713
        %v5002 = vunpack.c.l.b16 %v3714
        %v5003 = vunpack.c.l.b16 %v3715
        %v5004 = vunpack.c.l.b16 %v3716
        %v5005 = vunpack.c.l.b16 %v3717
        %v5006 = vunpack.c.l.b16 %v3718
        %v5007 = vunpack.c.l.b16 %v3719
        %v5008 = vunpack.c.l.b16 %v3720
        %v5009 = vunpack.c.l.b16 %v3721
        %v5010 = vunpack.c.l.b16 %v3722
        %v5011 = vunpack.c.l.b16 %v3723
        %v5012 = vunpack.c.l.b16 %v3724
        %v5013 = vunpack.c.l.b16 %v3725
        %v5014 = vunpack.c.l.b16 %v3726
        %v5015 = vunpack.c.l.b16 %v3727
        %v5016 = vunpack.c.l.b16 %v3728
        %v5017 = vunpack.c.l.b16 %v3729
        %v5018 = vunpack.c.l.b16 %v3730
        %v5019 = vunpack.c.l.b16 %v3731
        %v5020 = vunpack.c.l.b16 %v3732
        %v5021 = vunpack.c.l.b16 %v3733
        %v5022 = vunpack.c.l.b16 %v3734
        %v5023 = vunpack.c.l.b16 %v3735
        %v5024 = vunpack.c.l.b16 %v3736
        %v5025 = vunpack.c.l.b16 %v3737
        %v5026 = vunpack.c.l.b16 %v3738
        %v5027 = vunpack.c.l.b16 %v3739
        %v5028 = vunpack.c.l.b16 %v3740
        %v5029 = vunpack.c.l.b16 %v3741
        %v5030 = vunpack.c.l.b16 %v3742
        %v5031 = vunpack.c.l.b16 %v3743
        %v5032 = vpack.c.b16 %v4996, %v4995
        %v5033 = vpack.c.b16 %v4998, %v4997
        %v5034 = vpack.c.b16 %v5000, %v4999
        %v5035 = vpack.c.b16 %v5002, %v5001
        %v5036 = vpack.c.b16 %v5004, %v5003
        %v5037 = vpack.c.b16 %v5006, %v5005
        %v5038 = vpack.c.b16 %v5008, %v5007
        %v5039 = vpack.c.b16 %v5010, %v5009
        %v5040 = vpack.c.b16 %v5012, %v5011
        %v5041 = vpack.c.b16 %v5014, %v5013
        %v5042 = vpack.c.b16 %v5016, %v5015
        %v5043 = vpack.c.b16 %v5018, %v5017
        %v5044 = vpack.c.b16 %v5020, %v5019
        %v5045 = vpack.c.b16 %v5022, %v5021
        %v5046 = vpack.c.b16 %v5024, %v5023
        %v5047 = vpack.c.b16 %v5026, %v5025
        %v5048 = vpack.c.b16 %v5028, %v5027
        %v5049 = vpack.c.b16 %v5030, %v5029
        %v5050 = vpack.c.b16 %v5031, %v5031
        %v5070 = vsel %vm1585, %v5050, 0
        %5072 = vmatprep.subr.bf16.mxu0 0
        %5073 = vmatpush1.bf16.msra.mxu0 %v5039
        %5074 = vmatprep.subr.bf16.mxu0 0
        %5075 = vmatpush1.bf16.msra.mxu0 %v5038
        %5076 = vmatprep.subr.bf16.mxu0 0
        %5077 = vmatpush1.bf16.msra.mxu0 %v5037
        %5078 = vmatprep.subr.bf16.mxu0 0
        %5079 = vmatpush1.bf16.msra.mxu0 %v5036
        %5080 = vmatprep.subr.bf16.mxu0 0
        %5081 = vmatpush1.bf16.msra.mxu0 %v5035
        %5082 = vmatprep.subr.bf16.mxu0 0
        %5083 = vmatpush1.bf16.msra.mxu0 %v5034
        %5084 = vmatprep.subr.bf16.mxu0 0
        %5085 = vmatpush1.bf16.msra.mxu0 %v5033
        %5086 = vmatprep.subr.bf16.mxu0 0
        %5087 = vmatpush1.bf16.msra.mxu0 %v5032
        %5088 = vmatprep.subr.bf16.mxu0 0
        %5089 = vmatpush2.bf16.msra.mxu0 %v5047
        %5090 = vmatprep.subr.bf16.mxu0 0
        %5091 = vmatpush2.bf16.msra.mxu0 %v5046
        %5092 = vmatprep.subr.bf16.mxu0 0
        %5093 = vmatpush2.bf16.msra.mxu0 %v5045
        %5094 = vmatprep.subr.bf16.mxu0 0
        %5095 = vmatpush2.bf16.msra.mxu0 %v5044
        %5096 = vmatprep.subr.bf16.mxu0 0
        %5097 = vmatpush2.bf16.msra.mxu0 %v5043
        %5098 = vmatprep.subr.bf16.mxu0 0
        %5099 = vmatpush2.bf16.msra.mxu0 %v5042
        %5100 = vmatprep.subr.bf16.mxu0 0
        %5101 = vmatpush2.bf16.msra.mxu0 %v5041
        %5102 = vmatprep.subr.bf16.mxu0 0
        %5103 = vmatpush2.bf16.msra.mxu0 %v5040
        %5104 = vmatprep.mubr.bf16.mxu0 %v3787
        %5105 = vmatmul.mubr.bf16.gmra.mxu0 %v3786
        %v5106 = vpop.f32.mrf.mxu0
        %v5107 = vadd.f32 0.0, %v5106
        %v5108 = vpop.f32.mrf.mxu0
        %v5109 = vpop.f32.mrf.mxu0
        %v5110 = vpop.f32.mrf.mxu0
        %5111 = vdwg.mxu0
        %5112 = vmatprep.subr.bf16.mxu0 0
        %5113 = vmatpush1.bf16.msra.mxu0 0
        %5114 = vmatprep.subr.bf16.mxu0 0
        %5115 = vmatpush1.bf16.msra.mxu0 0
        %5116 = vmatprep.subr.bf16.mxu0 0
        %5117 = vmatpush1.bf16.msra.mxu0 0
        %5118 = vmatprep.subr.bf16.mxu0 0
        %5119 = vmatpush1.bf16.msra.mxu0 0
        %5120 = vmatprep.subr.bf16.mxu0 0
        %5121 = vmatpush1.bf16.msra.mxu0 0
        %5122 = vmatprep.subr.bf16.mxu0 0
        %5123 = vmatpush1.bf16.msra.mxu0 %v5070
        %5124 = vmatprep.subr.bf16.mxu0 0
        %5125 = vmatpush1.bf16.msra.mxu0 %v5049
        %5126 = vmatprep.subr.bf16.mxu0 0
        %5127 = vmatpush1.bf16.msra.mxu0 %v5048
        %5128 = vmatprep.subr.bf16.mxu0 0
        %5129 = vmatpush2.bf16.msra.mxu0 0
        %5130 = vmatprep.subr.bf16.mxu0 0
        %5131 = vmatpush2.bf16.msra.mxu0 0
        %5132 = vmatprep.subr.bf16.mxu0 0
        %5133 = vmatpush2.bf16.msra.mxu0 0
        %5134 = vmatprep.subr.bf16.mxu0 0
        %5135 = vmatpush2.bf16.msra.mxu0 0
        %5136 = vmatprep.subr.bf16.mxu0 0
        %5137 = vmatpush2.bf16.msra.mxu0 0
        %5138 = vmatprep.subr.bf16.mxu0 0
        %5139 = vmatpush2.bf16.msra.mxu0 0
        %5140 = vmatprep.subr.bf16.mxu0 0
        %5141 = vmatpush2.bf16.msra.mxu0 0
        %5142 = vmatprep.subr.bf16.mxu0 0
        %5143 = vmatpush2.bf16.msra.mxu0 0
        %5144 = vmatprep.mubr.bf16.mxu0 0
        %5145 = vmatmul.mubr.bf16.gmra.mxu0 %v3903
        %v5146 = vpop.f32.mrf.mxu0
        %v5147 = vadd.f32 %v5107, %v5146
        %v5148 = vpop.f32.mrf.mxu0
        %v5149 = vpop.f32.mrf.mxu0
        %v5150 = vpop.f32.mrf.mxu0
        %5151 = vdwg.mxu0
        %v5189 = vunpack.c.l.b16 %v3744
        %v5190 = vunpack.c.l.b16 %v3745
        %v5191 = vunpack.c.l.b16 %v3746
        %v5192 = vunpack.c.l.b16 %v3747
        %v5193 = vunpack.c.l.b16 %v3748
        %v5194 = vunpack.c.l.b16 %v3749
        %v5195 = vunpack.c.l.b16 %v3750
        %v5196 = vunpack.c.l.b16 %v3751
        %v5197 = vunpack.c.l.b16 %v3752
        %v5198 = vunpack.c.l.b16 %v3753
        %v5199 = vunpack.c.l.b16 %v3754
        %v5200 = vunpack.c.l.b16 %v3755
        %v5201 = vunpack.c.l.b16 %v3756
        %v5202 = vunpack.c.l.b16 %v3757
        %v5203 = vunpack.c.l.b16 %v3758
        %v5204 = vunpack.c.l.b16 %v3759
        %v5205 = vunpack.c.l.b16 %v3760
        %v5206 = vunpack.c.l.b16 %v3761
        %v5207 = vunpack.c.l.b16 %v3762
        %v5208 = vunpack.c.l.b16 %v3763
        %v5209 = vunpack.c.l.b16 %v3764
        %v5210 = vunpack.c.l.b16 %v3765
        %v5211 = vunpack.c.l.b16 %v3766
        %v5212 = vunpack.c.l.b16 %v3767
        %v5213 = vunpack.c.l.b16 %v3768
        %v5214 = vunpack.c.l.b16 %v3769
        %v5215 = vunpack.c.l.b16 %v3770
        %v5216 = vunpack.c.l.b16 %v3771
        %v5217 = vunpack.c.l.b16 %v3772
        %v5218 = vunpack.c.l.b16 %v3773
        %v5219 = vunpack.c.l.b16 %v3774
        %v5220 = vunpack.c.l.b16 %v3775
        %v5221 = vunpack.c.l.b16 %v3776
        %v5222 = vunpack.c.l.b16 %v3777
        %v5223 = vunpack.c.l.b16 %v3778
        %v5224 = vunpack.c.l.b16 %v3779
        %v5225 = vunpack.c.l.b16 %v3780
        %v5226 = vpack.c.b16 %v5190, %v5189
        %v5227 = vpack.c.b16 %v5192, %v5191
        %v5228 = vpack.c.b16 %v5194, %v5193
        %v5229 = vpack.c.b16 %v5196, %v5195
        %v5230 = vpack.c.b16 %v5198, %v5197
        %v5231 = vpack.c.b16 %v5200, %v5199
        %v5232 = vpack.c.b16 %v5202, %v5201
        %v5233 = vpack.c.b16 %v5204, %v5203
        %v5234 = vpack.c.b16 %v5206, %v5205
        %v5235 = vpack.c.b16 %v5208, %v5207
        %v5236 = vpack.c.b16 %v5210, %v5209
        %v5237 = vpack.c.b16 %v5212, %v5211
        %v5238 = vpack.c.b16 %v5214, %v5213
        %v5239 = vpack.c.b16 %v5216, %v5215
        %v5240 = vpack.c.b16 %v5218, %v5217
        %v5241 = vpack.c.b16 %v5220, %v5219
        %v5242 = vpack.c.b16 %v5222, %v5221
        %v5243 = vpack.c.b16 %v5224, %v5223
        %v5244 = vpack.c.b16 %v5225, %v5225
        %v5264 = vsel %vm1585, %v5244, 0
        %5266 = vmatprep.subr.bf16.mxu0 0
        %5267 = vmatpush1.bf16.msra.mxu0 %v5233
        %5268 = vmatprep.subr.bf16.mxu0 0
        %5269 = vmatpush1.bf16.msra.mxu0 %v5232
        %5270 = vmatprep.subr.bf16.mxu0 0
        %5271 = vmatpush1.bf16.msra.mxu0 %v5231
        %5272 = vmatprep.subr.bf16.mxu0 0
        %5273 = vmatpush1.bf16.msra.mxu0 %v5230
        %5274 = vmatprep.subr.bf16.mxu0 0
        %5275 = vmatpush1.bf16.msra.mxu0 %v5229
        %5276 = vmatprep.subr.bf16.mxu0 0
        %5277 = vmatpush1.bf16.msra.mxu0 %v5228
        %5278 = vmatprep.subr.bf16.mxu0 0
        %5279 = vmatpush1.bf16.msra.mxu0 %v5227
        %5280 = vmatprep.subr.bf16.mxu0 0
        %5281 = vmatpush1.bf16.msra.mxu0 %v5226
        %5282 = vmatprep.subr.bf16.mxu0 0
        %5283 = vmatpush2.bf16.msra.mxu0 %v5241
        %5284 = vmatprep.subr.bf16.mxu0 0
        %5285 = vmatpush2.bf16.msra.mxu0 %v5240
        %5286 = vmatprep.subr.bf16.mxu0 0
        %5287 = vmatpush2.bf16.msra.mxu0 %v5239
        %5288 = vmatprep.subr.bf16.mxu0 0
        %5289 = vmatpush2.bf16.msra.mxu0 %v5238
        %5290 = vmatprep.subr.bf16.mxu0 0
        %5291 = vmatpush2.bf16.msra.mxu0 %v5237
        %5292 = vmatprep.subr.bf16.mxu0 0
        %5293 = vmatpush2.bf16.msra.mxu0 %v5236
        %5294 = vmatprep.subr.bf16.mxu0 0
        %5295 = vmatpush2.bf16.msra.mxu0 %v5235
        %5296 = vmatprep.subr.bf16.mxu0 0
        %5297 = vmatpush2.bf16.msra.mxu0 %v5234
        %5298 = vmatprep.mubr.bf16.mxu0 %v3787
        %5299 = vmatmul.mubr.bf16.gmra.mxu0 %v3786
        %v5300 = vpop.f32.mrf.mxu0
        %v5301 = vadd.f32 0.0, %v5300
        %v5302 = vpop.f32.mrf.mxu0
        %v5303 = vpop.f32.mrf.mxu0
        %v5304 = vpop.f32.mrf.mxu0
        %5305 = vdwg.mxu0
        %5306 = vmatprep.subr.bf16.mxu0 0
        %5307 = vmatpush1.bf16.msra.mxu0 0
        %5308 = vmatprep.subr.bf16.mxu0 0
        %5309 = vmatpush1.bf16.msra.mxu0 0
        %5310 = vmatprep.subr.bf16.mxu0 0
        %5311 = vmatpush1.bf16.msra.mxu0 0
        %5312 = vmatprep.subr.bf16.mxu0 0
        %5313 = vmatpush1.bf16.msra.mxu0 0
        %5314 = vmatprep.subr.bf16.mxu0 0
        %5315 = vmatpush1.bf16.msra.mxu0 0
        %5316 = vmatprep.subr.bf16.mxu0 0
        %5317 = vmatpush1.bf16.msra.mxu0 %v5264
        %5318 = vmatprep.subr.bf16.mxu0 0
        %5319 = vmatpush1.bf16.msra.mxu0 %v5243
        %5320 = vmatprep.subr.bf16.mxu0 0
        %5321 = vmatpush1.bf16.msra.mxu0 %v5242
        %5322 = vmatprep.subr.bf16.mxu0 0
        %5323 = vmatpush2.bf16.msra.mxu0 0
        %5324 = vmatprep.subr.bf16.mxu0 0
        %5325 = vmatpush2.bf16.msra.mxu0 0
        %5326 = vmatprep.subr.bf16.mxu0 0
        %5327 = vmatpush2.bf16.msra.mxu0 0
        %5328 = vmatprep.subr.bf16.mxu0 0
        %5329 = vmatpush2.bf16.msra.mxu0 0
        %5330 = vmatprep.subr.bf16.mxu0 0
        %5331 = vmatpush2.bf16.msra.mxu0 0
        %5332 = vmatprep.subr.bf16.mxu0 0
        %5333 = vmatpush2.bf16.msra.mxu0 0
        %5334 = vmatprep.subr.bf16.mxu0 0
        %5335 = vmatpush2.bf16.msra.mxu0 0
        %5336 = vmatprep.subr.bf16.mxu0 0
        %5337 = vmatpush2.bf16.msra.mxu0 0
        %5338 = vmatprep.mubr.bf16.mxu0 0
        %5339 = vmatmul.mubr.bf16.gmra.mxu0 %v3903
        %v5340 = vpop.f32.mrf.mxu0
        %v5341 = vadd.f32 %v5301, %v5340
        %v5342 = vpop.f32.mrf.mxu0
        %v5343 = vpop.f32.mrf.mxu0
        %v5344 = vpop.f32.mrf.mxu0
        %5345 = vdwg.mxu0
        %v5346 = vmax.f32 %v3983, 0.0
        %v5347 = vmax.f32 %v4177, 0.0
        %v5348 = vmax.f32 %v4371, 0.0
        %v5349 = vmax.f32 %v4565, 0.0
        %v5350 = vmax.f32 %v4759, 0.0
        %v5351 = vmax.f32 %v4953, 0.0
        %v5352 = vmax.f32 %v5147, 0.0
        %v5353 = vmax.f32 %v5341, 0.0
        %5354 = vst [vmem:[%s334 + $0x10] sm:$0xff] %v5346
        %5355 = vst [vmem:[%s334 + $0x38] sm:$0xff] %v5347
        %5356 = vst [vmem:[%s334 + $0x60] sm:$0xff] %v5348
        %5357 = vst [vmem:[%s334 + $0x88] sm:$0xff] %v5349
        %5358 = vst [vmem:[%s334 + $0xb0] sm:$0xff] %v5350
        %5359 = vst [vmem:[%s334 + $0xd8] sm:$0xff] %v5351
        %5360 = vst [vmem:[%s334 + $0x100] sm:$0xff] %v5352
        %5361 = vst [vmem:[%s334 + $0x128] sm:$0xff] %v5353
        %v5362 = vld [vmem:[%s334 + $0x10] sm:$0xff]
        %v5363 = vld [vmem:[%s334 + $0x38] sm:$0xff]
        %v5364 = vld [vmem:[%s334 + $0x60] sm:$0xff]
        %v5365 = vld [vmem:[%s334 + $0x88] sm:$0xff]
        %v5366 = vld [vmem:[%s334 + $0xb0] sm:$0xff]
        %v5367 = vld [vmem:[%s334 + $0xd8] sm:$0xff]
        %v5368 = vld [vmem:[%s334 + $0x100] sm:$0xff]
        %v5369 = vld [vmem:[%s334 + $0x128] sm:$0xff]
        %5370 = vadd.xlane.f32.xlu0 %v5362
        %v5371 = vpop.xlane.xlu0 %5370
        %5372 = vadd.xlane.f32.xlu0 %v5363
        %v5373 = vpop.xlane.xlu0 %5372
        %5374 = vadd.xlane.f32.xlu0 %v5364
        %v5375 = vpop.xlane.xlu0 %5374
        %5376 = vadd.xlane.f32.xlu0 %v5365
        %v5377 = vpop.xlane.xlu0 %5376
        %5378 = vadd.xlane.f32.xlu0 %v5366
        %v5379 = vpop.xlane.xlu0 %5378
        %5380 = vadd.xlane.f32.xlu0 %v5367
        %v5381 = vpop.xlane.xlu0 %5380
        %5382 = vadd.xlane.f32.xlu0 %v5368
        %v5383 = vpop.xlane.xlu0 %5382
        %5384 = vadd.xlane.f32.xlu0 %v5369
        %v5385 = vpop.xlane.xlu0 %5384
        %v5386 = vmul.f32 %v5371, 0.009090909
        %v5387 = vmul.f32 %v5373, 0.009090909
        %v5388 = vmul.f32 %v5375, 0.009090909
        %v5389 = vmul.f32 %v5377, 0.009090909
        %v5390 = vmul.f32 %v5379, 0.009090909
        %v5391 = vmul.f32 %v5381, 0.009090909
        %v5392 = vmul.f32 %v5383, 0.009090909
        %v5393 = vmul.f32 %v5385, 0.009090909
        %v5394 = vsub.f32 %v5362, %v5386
        %v5395 = vsub.f32 %v5363, %v5387
        %v5396 = vsub.f32 %v5364, %v5388
        %v5397 = vsub.f32 %v5365, %v5389
        %v5398 = vsub.f32 %v5366, %v5390
        %v5399 = vsub.f32 %v5367, %v5391
        %v5400 = vsub.f32 %v5368, %v5392
        %v5401 = vsub.f32 %v5369, %v5393
        %v5402 = vmul.f32 %v5394, %v729
        %v5403 = vmul.f32 %v5395, %v729
        %v5404 = vmul.f32 %v5396, %v729
        %v5405 = vmul.f32 %v5397, %v729
        %v5406 = vmul.f32 %v5398, %v729
        %v5407 = vmul.f32 %v5399, %v729
        %v5408 = vmul.f32 %v5400, %v729
        %v5409 = vmul.f32 %v5401, %v729
        %v5410 = vmul.f32 %v5402, %v5402
        %v5411 = vmul.f32 %v5403, %v5403
        %v5412 = vmul.f32 %v5404, %v5404
        %v5413 = vmul.f32 %v5405, %v5405
        %v5414 = vmul.f32 %v5406, %v5406
        %v5415 = vmul.f32 %v5407, %v5407
        %v5416 = vmul.f32 %v5408, %v5408
        %v5417 = vmul.f32 %v5409, %v5409
        %5418 = vadd.xlane.f32.xlu0 %v5410
        %v5419 = vpop.xlane.xlu0 %5418
        %5420 = vadd.xlane.f32.xlu0 %v5411
        %v5421 = vpop.xlane.xlu0 %5420
        %5422 = vadd.xlane.f32.xlu0 %v5412
        %v5423 = vpop.xlane.xlu0 %5422
        %5424 = vadd.xlane.f32.xlu0 %v5413
        %v5425 = vpop.xlane.xlu0 %5424
        %5426 = vadd.xlane.f32.xlu0 %v5414
        %v5427 = vpop.xlane.xlu0 %5426
        %5428 = vadd.xlane.f32.xlu0 %v5415
        %v5429 = vpop.xlane.xlu0 %5428
        %5430 = vadd.xlane.f32.xlu0 %v5416
        %v5431 = vpop.xlane.xlu0 %5430
        %5432 = vadd.xlane.f32.xlu0 %v5417
        %v5433 = vpop.xlane.xlu0 %5432
        %v5434 = vmul.f32 %v5419, 0.009090909
        %v5435 = vmul.f32 %v5421, 0.009090909
        %v5436 = vmul.f32 %v5423, 0.009090909
        %v5437 = vmul.f32 %v5425, 0.009090909
        %v5438 = vmul.f32 %v5427, 0.009090909
        %v5439 = vmul.f32 %v5429, 0.009090909
        %v5440 = vmul.f32 %v5431, 0.009090909
        %v5441 = vmul.f32 %v5433, 0.009090909
        %v5442 = vadd.f32 %v5434, 1e-05
        %v5443 = vadd.f32 %v5435, 1e-05
        %v5444 = vadd.f32 %v5436, 1e-05
        %v5445 = vadd.f32 %v5437, 1e-05
        %v5446 = vadd.f32 %v5438, 1e-05
        %v5447 = vadd.f32 %v5439, 1e-05
        %v5448 = vadd.f32 %v5440, 1e-05
        %v5449 = vadd.f32 %v5441, 1e-05
        %v5450 = vrsqrt.pop %v5442
        %v5451 = vrsqrt.pop %v5443
        %v5452 = vrsqrt.pop %v5444
        %v5453 = vrsqrt.pop %v5445
        %v5454 = vrsqrt.pop %v5446
        %v5455 = vrsqrt.pop %v5447
        %v5456 = vrsqrt.pop %v5448
        %v5457 = vrsqrt.pop %v5449
        %v5458 = vmul.f32 %v5402, %v5450
        %v5459 = vmul.f32 %v5403, %v5451
        %v5460 = vmul.f32 %v5404, %v5452
        %v5461 = vmul.f32 %v5405, %v5453
        %v5462 = vmul.f32 %v5406, %v5454
        %v5463 = vmul.f32 %v5407, %v5455
        %v5464 = vmul.f32 %v5408, %v5456
        %v5465 = vmul.f32 %v5409, %v5457
        %5466 = vrot.lane.b32.xlu0 %v5458, 12
        %v5467 = vpop.permute.xlu0 %5466
        %5468 = vrot.lane.b32.xlu0 %v5459, 12
        %v5469 = vpop.permute.xlu0 %5468
        %5470 = vrot.lane.b32.xlu0 %v5460, 12
        %v5471 = vpop.permute.xlu0 %5470
        %5472 = vrot.lane.b32.xlu0 %v5461, 12
        %v5473 = vpop.permute.xlu0 %5472
        %5474 = vrot.lane.b32.xlu0 %v5462, 12
        %v5475 = vpop.permute.xlu0 %5474
        %5476 = vrot.lane.b32.xlu0 %v5463, 12
        %v5477 = vpop.permute.xlu0 %5476
        %5478 = vrot.lane.b32.xlu0 %v5464, 12
        %v5479 = vpop.permute.xlu0 %5478
        %5480 = vrot.lane.b32.xlu0 %v5465, 12
        %v5481 = vpop.permute.xlu0 %5480
        %v5482 = vmul.f32 %v5467, %v813
        %v5483 = vmul.f32 %v5469, %v813
        %v5484 = vmul.f32 %v5471, %v813
        %v5485 = vmul.f32 %v5473, %v813
        %v5486 = vmul.f32 %v5475, %v813
        %v5487 = vmul.f32 %v5477, %v813
        %v5488 = vmul.f32 %v5479, %v813
        %v5489 = vmul.f32 %v5481, %v813
        %v5490 = vpack.c.bf16 %v5482, %v5482
        %v5491 = vpack.c.bf16 %v5483, %v5483
        %v5492 = vpack.c.bf16 %v5484, %v5484
        %v5493 = vpack.c.bf16 %v5485, %v5485
        %v5494 = vpack.c.bf16 %v5486, %v5486
        %v5495 = vpack.c.bf16 %v5487, %v5487
        %v5496 = vpack.c.bf16 %v5488, %v5488
        %v5497 = vpack.c.bf16 %v5489, %v5489
        %5498 = vst [vmem:[#allocation2 + $0x8] sm:$0xf] %v5490
        %5499 = vst [vmem:[#allocation2 + $0x9c] sm:$0xf] %v5491
        %5500 = vst [vmem:[#allocation2 + $0x130] sm:$0xf] %v5492
        %5501 = vst [vmem:[#allocation2 + $0x1c4] sm:$0xf] %v5493
        %5502 = vst [vmem:[#allocation2 + $0x258] sm:$0xf] %v5494
        %5503 = vst [vmem:[#allocation2 + $0x2ec] sm:$0xf] %v5495
        %5504 = vst [vmem:[#allocation2 + $0x380] sm:$0xf] %v5496
        %5505 = vst [vmem:[#allocation2 + $0x414] sm:$0xf] %v5497
        %5506 = vrot.lane.b32.xlu0 %v5458, 11
        %v5507 = vpop.permute.xlu0 %5506
        %5508 = vrot.lane.b32.xlu0 %v5459, 11
        %v5509 = vpop.permute.xlu0 %5508
        %5510 = vrot.lane.b32.xlu0 %v5460, 11
        %v5511 = vpop.permute.xlu0 %5510
        %5512 = vrot.lane.b32.xlu0 %v5461, 11
        %v5513 = vpop.permute.xlu0 %5512
        %5514 = vrot.lane.b32.xlu0 %v5462, 11
        %v5515 = vpop.permute.xlu0 %5514
        %5516 = vrot.lane.b32.xlu0 %v5463, 11
        %v5517 = vpop.permute.xlu0 %5516
        %5518 = vrot.lane.b32.xlu0 %v5464, 11
        %v5519 = vpop.permute.xlu0 %5518
        %5520 = vrot.lane.b32.xlu0 %v5465, 11
        %v5521 = vpop.permute.xlu0 %5520
        %v5522 = vmul.f32 %v5507, %v857
        %v5523 = vmul.f32 %v5509, %v857
        %v5524 = vmul.f32 %v5511, %v857
        %v5525 = vmul.f32 %v5513, %v857
        %v5526 = vmul.f32 %v5515, %v857
        %v5527 = vmul.f32 %v5517, %v857
        %v5528 = vmul.f32 %v5519, %v857
        %v5529 = vmul.f32 %v5521, %v857
        %v5530 = vpack.c.bf16 %v5522, %v5522
        %v5531 = vpack.c.bf16 %v5523, %v5523
        %v5532 = vpack.c.bf16 %v5524, %v5524
        %v5533 = vpack.c.bf16 %v5525, %v5525
        %v5534 = vpack.c.bf16 %v5526, %v5526
        %v5535 = vpack.c.bf16 %v5527, %v5527
        %v5536 = vpack.c.bf16 %v5528, %v5528
        %v5537 = vpack.c.bf16 %v5529, %v5529
        %5538 = vst [vmem:[#allocation2 + $0x18] sm:$0xf] %v5530
        %5539 = vst [vmem:[#allocation2 + $0xac] sm:$0xf] %v5531
        %5540 = vst [vmem:[#allocation2 + $0x140] sm:$0xf] %v5532
        %5541 = vst [vmem:[#allocation2 + $0x1d4] sm:$0xf] %v5533
        %5542 = vst [vmem:[#allocation2 + $0x268] sm:$0xf] %v5534
        %5543 = vst [vmem:[#allocation2 + $0x2fc] sm:$0xf] %v5535
        %5544 = vst [vmem:[#allocation2 + $0x390] sm:$0xf] %v5536
        %5545 = vst [vmem:[#allocation2 + $0x424] sm:$0xf] %v5537
        %5546 = vrot.lane.b32.xlu0 %v5458, 10
        %v5547 = vpop.permute.xlu0 %5546
        %5548 = vrot.lane.b32.xlu0 %v5459, 10
        %v5549 = vpop.permute.xlu0 %5548
        %5550 = vrot.lane.b32.xlu0 %v5460, 10
        %v5551 = vpop.permute.xlu0 %5550
        %5552 = vrot.lane.b32.xlu0 %v5461, 10
        %v5553 = vpop.permute.xlu0 %5552
        %5554 = vrot.lane.b32.xlu0 %v5462, 10
        %v5555 = vpop.permute.xlu0 %5554
        %5556 = vrot.lane.b32.xlu0 %v5463, 10
        %v5557 = vpop.permute.xlu0 %5556
        %5558 = vrot.lane.b32.xlu0 %v5464, 10
        %v5559 = vpop.permute.xlu0 %5558
        %5560 = vrot.lane.b32.xlu0 %v5465, 10
        %v5561 = vpop.permute.xlu0 %5560
        %v5562 = vmul.f32 %v5547, %v901
        %v5563 = vmul.f32 %v5549, %v901
        %v5564 = vmul.f32 %v5551, %v901
        %v5565 = vmul.f32 %v5553, %v901
        %v5566 = vmul.f32 %v5555, %v901
        %v5567 = vmul.f32 %v5557, %v901
        %v5568 = vmul.f32 %v5559, %v901
        %v5569 = vmul.f32 %v5561, %v901
        %v5570 = vpack.c.bf16 %v5562, %v5562
        %v5571 = vpack.c.bf16 %v5563, %v5563
        %v5572 = vpack.c.bf16 %v5564, %v5564
        %v5573 = vpack.c.bf16 %v5565, %v5565
        %v5574 = vpack.c.bf16 %v5566, %v5566
        %v5575 = vpack.c.bf16 %v5567, %v5567
        %v5576 = vpack.c.bf16 %v5568, %v5568
        %v5577 = vpack.c.bf16 %v5569, %v5569
        %5578 = vst [vmem:[#allocation2 + $0x28] sm:$0xf] %v5570
        %5579 = vst [vmem:[#allocation2 + $0xbc] sm:$0xf] %v5571
        %5580 = vst [vmem:[#allocation2 + $0x150] sm:$0xf] %v5572
        %5581 = vst [vmem:[#allocation2 + $0x1e4] sm:$0xf] %v5573
        %5582 = vst [vmem:[#allocation2 + $0x278] sm:$0xf] %v5574
        %5583 = vst [vmem:[#allocation2 + $0x30c] sm:$0xf] %v5575
        %5584 = vst [vmem:[#allocation2 + $0x3a0] sm:$0xf] %v5576
        %5585 = vst [vmem:[#allocation2 + $0x434] sm:$0xf] %v5577
        %5586 = vrot.lane.b32.xlu0 %v5458, 1
        %v5587 = vpop.permute.xlu0 %5586
        %5588 = vrot.lane.b32.xlu0 %v5459, 1
        %v5589 = vpop.permute.xlu0 %5588
        %5590 = vrot.lane.b32.xlu0 %v5460, 1
        %v5591 = vpop.permute.xlu0 %5590
        %5592 = vrot.lane.b32.xlu0 %v5461, 1
        %v5593 = vpop.permute.xlu0 %5592
        %5594 = vrot.lane.b32.xlu0 %v5462, 1
        %v5595 = vpop.permute.xlu0 %5594
        %5596 = vrot.lane.b32.xlu0 %v5463, 1
        %v5597 = vpop.permute.xlu0 %5596
        %5598 = vrot.lane.b32.xlu0 %v5464, 1
        %v5599 = vpop.permute.xlu0 %5598
        %5600 = vrot.lane.b32.xlu0 %v5465, 1
        %v5601 = vpop.permute.xlu0 %5600
        %v5602 = vmul.f32 %v5587, %v945
        %v5603 = vmul.f32 %v5589, %v945
        %v5604 = vmul.f32 %v5591, %v945
        %v5605 = vmul.f32 %v5593, %v945
        %v5606 = vmul.f32 %v5595, %v945
        %v5607 = vmul.f32 %v5597, %v945
        %v5608 = vmul.f32 %v5599, %v945
        %v5609 = vmul.f32 %v5601, %v945
        %v5610 = vpack.c.bf16 %v5602, %v5602
        %v5611 = vpack.c.bf16 %v5603, %v5603
        %v5612 = vpack.c.bf16 %v5604, %v5604
        %v5613 = vpack.c.bf16 %v5605, %v5605
        %v5614 = vpack.c.bf16 %v5606, %v5606
        %v5615 = vpack.c.bf16 %v5607, %v5607
        %v5616 = vpack.c.bf16 %v5608, %v5608
        %v5617 = vpack.c.bf16 %v5609, %v5609
        %5618 = vst [vmem:[#allocation2 + $0x38] sm:$0xf] %v5610
        %5619 = vst [vmem:[#allocation2 + $0xcc] sm:$0xf] %v5611
        %5620 = vst [vmem:[#allocation2 + $0x160] sm:$0xf] %v5612
        %5621 = vst [vmem:[#allocation2 + $0x1f4] sm:$0xf] %v5613
        %5622 = vst [vmem:[#allocation2 + $0x288] sm:$0xf] %v5614
        %5623 = vst [vmem:[#allocation2 + $0x31c] sm:$0xf] %v5615
        %5624 = vst [vmem:[#allocation2 + $0x3b0] sm:$0xf] %v5616
        %5625 = vst [vmem:[#allocation2 + $0x444] sm:$0xf] %v5617
        %v5626 = vpack.c.bf16 %v5458, %v5458
        %v5627 = vpack.c.bf16 %v5459, %v5459
        %v5628 = vpack.c.bf16 %v5460, %v5460
        %v5629 = vpack.c.bf16 %v5461, %v5461
        %v5630 = vpack.c.bf16 %v5462, %v5462
        %v5631 = vpack.c.bf16 %v5463, %v5463
        %v5632 = vpack.c.bf16 %v5464, %v5464
        %v5633 = vpack.c.bf16 %v5465, %v5465
        %5634 = vst [vmem:[#allocation2 + $0x48] sm:$0xf] %v5626
        %5635 = vst [vmem:[#allocation2 + $0xdc] sm:$0xf] %v5627
        %5636 = vst [vmem:[#allocation2 + $0x170] sm:$0xf] %v5628
        %5637 = vst [vmem:[#allocation2 + $0x204] sm:$0xf] %v5629
        %5638 = vst [vmem:[#allocation2 + $0x298] sm:$0xf] %v5630
        %5639 = vst [vmem:[#allocation2 + $0x32c] sm:$0xf] %v5631
        %5640 = vst [vmem:[#allocation2 + $0x3c0] sm:$0xf] %v5632
        %5641 = vst [vmem:[#allocation2 + $0x454] sm:$0xf] %v5633
        %5642 = vrot.lane.b32.xlu0 %v5458, 127
        %v5643 = vpop.permute.xlu0 %5642
        %5644 = vrot.lane.b32.xlu0 %v5459, 127
        %v5645 = vpop.permute.xlu0 %5644
        %5646 = vrot.lane.b32.xlu0 %v5460, 127
        %v5647 = vpop.permute.xlu0 %5646
        %5648 = vrot.lane.b32.xlu0 %v5461, 127
        %v5649 = vpop.permute.xlu0 %5648
        %5650 = vrot.lane.b32.xlu0 %v5462, 127
        %v5651 = vpop.permute.xlu0 %5650
        %5652 = vrot.lane.b32.xlu0 %v5463, 127
        %v5653 = vpop.permute.xlu0 %5652
        %5654 = vrot.lane.b32.xlu0 %v5464, 127
        %v5655 = vpop.permute.xlu0 %5654
        %5656 = vrot.lane.b32.xlu0 %v5465, 127
        %v5657 = vpop.permute.xlu0 %5656
        %v5658 = vmul.f32 %v5643, %v1005
        %v5659 = vmul.f32 %v5645, %v1005
        %v5660 = vmul.f32 %v5647, %v1005
        %v5661 = vmul.f32 %v5649, %v1005
        %v5662 = vmul.f32 %v5651, %v1005
        %v5663 = vmul.f32 %v5653, %v1005
        %v5664 = vmul.f32 %v5655, %v1005
        %v5665 = vmul.f32 %v5657, %v1005
        %v5666 = vpack.c.bf16 %v5658, %v5658
        %v5667 = vpack.c.bf16 %v5659, %v5659
        %v5668 = vpack.c.bf16 %v5660, %v5660
        %v5669 = vpack.c.bf16 %v5661, %v5661
        %v5670 = vpack.c.bf16 %v5662, %v5662
        %v5671 = vpack.c.bf16 %v5663, %v5663
        %v5672 = vpack.c.bf16 %v5664, %v5664
        %v5673 = vpack.c.bf16 %v5665, %v5665
        %5674 = vst [vmem:[#allocation2 + $0x58] sm:$0xf] %v5666
        %5675 = vst [vmem:[#allocation2 + $0xec] sm:$0xf] %v5667
        %5676 = vst [vmem:[#allocation2 + $0x180] sm:$0xf] %v5668
        %5677 = vst [vmem:[#allocation2 + $0x214] sm:$0xf] %v5669
        %5678 = vst [vmem:[#allocation2 + $0x2a8] sm:$0xf] %v5670
        %5679 = vst [vmem:[#allocation2 + $0x33c] sm:$0xf] %v5671
        %5680 = vst [vmem:[#allocation2 + $0x3d0] sm:$0xf] %v5672
        %5681 = vst [vmem:[#allocation2 + $0x464] sm:$0xf] %v5673
        %5682 = vrot.lane.b32.xlu0 %v5458, 118
        %v5683 = vpop.permute.xlu0 %5682
        %5684 = vrot.lane.b32.xlu0 %v5459, 118
        %v5685 = vpop.permute.xlu0 %5684
        %5686 = vrot.lane.b32.xlu0 %v5460, 118
        %v5687 = vpop.permute.xlu0 %5686
        %5688 = vrot.lane.b32.xlu0 %v5461, 118
        %v5689 = vpop.permute.xlu0 %5688
        %5690 = vrot.lane.b32.xlu0 %v5462, 118
        %v5691 = vpop.permute.xlu0 %5690
        %5692 = vrot.lane.b32.xlu0 %v5463, 118
        %v5693 = vpop.permute.xlu0 %5692
        %5694 = vrot.lane.b32.xlu0 %v5464, 118
        %v5695 = vpop.permute.xlu0 %5694
        %5696 = vrot.lane.b32.xlu0 %v5465, 118
        %v5697 = vpop.permute.xlu0 %5696
        %v5698 = vmul.f32 %v5683, %v1049
        %v5699 = vmul.f32 %v5685, %v1049
        %v5700 = vmul.f32 %v5687, %v1049
        %v5701 = vmul.f32 %v5689, %v1049
        %v5702 = vmul.f32 %v5691, %v1049
        %v5703 = vmul.f32 %v5693, %v1049
        %v5704 = vmul.f32 %v5695, %v1049
        %v5705 = vmul.f32 %v5697, %v1049
        %v5706 = vpack.c.bf16 %v5698, %v5698
        %v5707 = vpack.c.bf16 %v5699, %v5699
        %v5708 = vpack.c.bf16 %v5700, %v5700
        %v5709 = vpack.c.bf16 %v5701, %v5701
        %v5710 = vpack.c.bf16 %v5702, %v5702
        %v5711 = vpack.c.bf16 %v5703, %v5703
        %v5712 = vpack.c.bf16 %v5704, %v5704
        %v5713 = vpack.c.bf16 %v5705, %v5705
        %5714 = vst [vmem:[#allocation2 + $0x68] sm:$0xf] %v5706
        %5715 = vst [vmem:[#allocation2 + $0xfc] sm:$0xf] %v5707
        %5716 = vst [vmem:[#allocation2 + $0x190] sm:$0xf] %v5708
        %5717 = vst [vmem:[#allocation2 + $0x224] sm:$0xf] %v5709
        %5718 = vst [vmem:[#allocation2 + $0x2b8] sm:$0xf] %v5710
        %5719 = vst [vmem:[#allocation2 + $0x34c] sm:$0xf] %v5711
        %5720 = vst [vmem:[#allocation2 + $0x3e0] sm:$0xf] %v5712
        %5721 = vst [vmem:[#allocation2 + $0x474] sm:$0xf] %v5713
        %5722 = vrot.lane.b32.xlu0 %v5458, 117
        %v5723 = vpop.permute.xlu0 %5722
        %5724 = vrot.lane.b32.xlu0 %v5459, 117
        %v5725 = vpop.permute.xlu0 %5724
        %5726 = vrot.lane.b32.xlu0 %v5460, 117
        %v5727 = vpop.permute.xlu0 %5726
        %5728 = vrot.lane.b32.xlu0 %v5461, 117
        %v5729 = vpop.permute.xlu0 %5728
        %5730 = vrot.lane.b32.xlu0 %v5462, 117
        %v5731 = vpop.permute.xlu0 %5730
        %5732 = vrot.lane.b32.xlu0 %v5463, 117
        %v5733 = vpop.permute.xlu0 %5732
        %5734 = vrot.lane.b32.xlu0 %v5464, 117
        %v5735 = vpop.permute.xlu0 %5734
        %5736 = vrot.lane.b32.xlu0 %v5465, 117
        %v5737 = vpop.permute.xlu0 %5736
        %v5738 = vmul.f32 %v5723, %v1093
        %v5739 = vmul.f32 %v5725, %v1093
        %v5740 = vmul.f32 %v5727, %v1093
        %v5741 = vmul.f32 %v5729, %v1093
        %v5742 = vmul.f32 %v5731, %v1093
        %v5743 = vmul.f32 %v5733, %v1093
        %v5744 = vmul.f32 %v5735, %v1093
        %v5745 = vmul.f32 %v5737, %v1093
        %v5746 = vpack.c.bf16 %v5738, %v5738
        %v5747 = vpack.c.bf16 %v5739, %v5739
        %v5748 = vpack.c.bf16 %v5740, %v5740
        %v5749 = vpack.c.bf16 %v5741, %v5741
        %v5750 = vpack.c.bf16 %v5742, %v5742
        %v5751 = vpack.c.bf16 %v5743, %v5743
        %v5752 = vpack.c.bf16 %v5744, %v5744
        %v5753 = vpack.c.bf16 %v5745, %v5745
        %5754 = vst [vmem:[#allocation2 + $0x78] sm:$0xf] %v5746
        %5755 = vst [vmem:[#allocation2 + $0x10c] sm:$0xf] %v5747
        %5756 = vst [vmem:[#allocation2 + $0x1a0] sm:$0xf] %v5748
        %5757 = vst [vmem:[#allocation2 + $0x234] sm:$0xf] %v5749
        %5758 = vst [vmem:[#allocation2 + $0x2c8] sm:$0xf] %v5750
        %5759 = vst [vmem:[#allocation2 + $0x35c] sm:$0xf] %v5751
        %5760 = vst [vmem:[#allocation2 + $0x3f0] sm:$0xf] %v5752
        %5761 = vst [vmem:[#allocation2 + $0x484] sm:$0xf] %v5753
        %5762 = vrot.lane.b32.xlu0 %v5458, 116
        %v5763 = vpop.permute.xlu0 %5762
        %5764 = vrot.lane.b32.xlu0 %v5459, 116
        %v5765 = vpop.permute.xlu0 %5764
        %5766 = vrot.lane.b32.xlu0 %v5460, 116
        %v5767 = vpop.permute.xlu0 %5766
        %5768 = vrot.lane.b32.xlu0 %v5461, 116
        %v5769 = vpop.permute.xlu0 %5768
        %5770 = vrot.lane.b32.xlu0 %v5462, 116
        %v5771 = vpop.permute.xlu0 %5770
        %5772 = vrot.lane.b32.xlu0 %v5463, 116
        %v5773 = vpop.permute.xlu0 %5772
        %5774 = vrot.lane.b32.xlu0 %v5464, 116
        %v5775 = vpop.permute.xlu0 %5774
        %5776 = vrot.lane.b32.xlu0 %v5465, 116
        %v5777 = vpop.permute.xlu0 %5776
        %v5778 = vmul.f32 %v5763, %v1137
        %v5779 = vmul.f32 %v5765, %v1137
        %v5780 = vmul.f32 %v5767, %v1137
        %v5781 = vmul.f32 %v5769, %v1137
        %v5782 = vmul.f32 %v5771, %v1137
        %v5783 = vmul.f32 %v5773, %v1137
        %v5784 = vmul.f32 %v5775, %v1137
        %v5785 = vmul.f32 %v5777, %v1137
        %v5786 = vpack.c.bf16 %v5778, %v5778
        %v5787 = vpack.c.bf16 %v5779, %v5779
        %v5788 = vpack.c.bf16 %v5780, %v5780
        %v5789 = vpack.c.bf16 %v5781, %v5781
        %v5790 = vpack.c.bf16 %v5782, %v5782
        %v5791 = vpack.c.bf16 %v5783, %v5783
        %v5792 = vpack.c.bf16 %v5784, %v5784
        %v5793 = vpack.c.bf16 %v5785, %v5785
        %5794 = vst [vmem:[#allocation2 + $0x88] sm:$0xf] %v5786
        %5795 = vst [vmem:[#allocation2 + $0x11c] sm:$0xf] %v5787
        %5796 = vst [vmem:[#allocation2 + $0x1b0] sm:$0xf] %v5788
        %5797 = vst [vmem:[#allocation2 + $0x244] sm:$0xf] %v5789
        %5798 = vst [vmem:[#allocation2 + $0x2d8] sm:$0xf] %v5790
        %5799 = vst [vmem:[#allocation2 + $0x36c] sm:$0xf] %v5791
        %5800 = vst [vmem:[#allocation2 + $0x400] sm:$0xf] %v5792
        %5801 = vst [vmem:[#allocation2 + $0x494] sm:$0xf] %v5793
        %v5802 = vld [vmem:[#allocation11] sm:$0xff]
        %v5803 = vld [vmem:[#allocation11 + $0x8] sm:$0xf]
        %v5804 = vld [vmem:[#allocation2] sm:$0xf]
        %v5805 = vld [vmem:[#allocation2 + $0x4] sm:$0xf]
        %v5806 = vld [vmem:[#allocation2 + $0x8] sm:$0xf]
        %v5807 = vld [vmem:[#allocation2 + $0xc] sm:$0xf]
        %v5808 = vld [vmem:[#allocation2 + $0x10] sm:$0xf]
        %v5809 = vld [vmem:[#allocation2 + $0x14] sm:$0xf]
        %v5810 = vld [vmem:[#allocation2 + $0x18] sm:$0xf]
        %v5811 = vld [vmem:[#allocation2 + $0x1c] sm:$0xf]
        %v5812 = vld [vmem:[#allocation2 + $0x20] sm:$0xf]
        %v5813 = vld [vmem:[#allocation2 + $0x24] sm:$0xf]
        %v5814 = vld [vmem:[#allocation2 + $0x28] sm:$0xf]
        %v5815 = vld [vmem:[#allocation2 + $0x2c] sm:$0xf]
        %v5816 = vld [vmem:[#allocation2 + $0x30] sm:$0xf]
        %v5817 = vld [vmem:[#allocation2 + $0x34] sm:$0xf]
        %v5818 = vld [vmem:[#allocation2 + $0x38] sm:$0xf]
        %v5819 = vld [vmem:[#allocation2 + $0x3c] sm:$0xf]
        %v5820 = vld [vmem:[#allocation2 + $0x40] sm:$0xf]
        %v5821 = vld [vmem:[#allocation2 + $0x44] sm:$0xf]
        %v5822 = vld [vmem:[#allocation2 + $0x48] sm:$0xf]
        %v5823 = vld [vmem:[#allocation2 + $0x4c] sm:$0xf]
        %v5824 = vld [vmem:[#allocation2 + $0x50] sm:$0xf]
        %v5825 = vld [vmem:[#allocation2 + $0x54] sm:$0xf]
        %v5826 = vld [vmem:[#allocation2 + $0x58] sm:$0xf]
        %v5827 = vld [vmem:[#allocation2 + $0x5c] sm:$0xf]
        %v5828 = vld [vmem:[#allocation2 + $0x60] sm:$0xf]
        %v5829 = vld [vmem:[#allocation2 + $0x64] sm:$0xf]
        %v5830 = vld [vmem:[#allocation2 + $0x68] sm:$0xf]
        %v5831 = vld [vmem:[#allocation2 + $0x6c] sm:$0xf]
        %v5832 = vld [vmem:[#allocation2 + $0x70] sm:$0xf]
        %v5833 = vld [vmem:[#allocation2 + $0x74] sm:$0xf]
        %v5834 = vld [vmem:[#allocation2 + $0x78] sm:$0xf]
        %v5835 = vld [vmem:[#allocation2 + $0x7c] sm:$0xf]
        %v5836 = vld [vmem:[#allocation2 + $0x80] sm:$0xf]
        %v5837 = vld [vmem:[#allocation2 + $0x84] sm:$0xf]
        %v5838 = vld [vmem:[#allocation2 + $0x88] sm:$0xf]
        %v5839 = vld [vmem:[#allocation2 + $0x8c] sm:$0xf]
        %v5840 = vld [vmem:[#allocation2 + $0x90] sm:$0xf]
        %v5841 = vld [vmem:[#allocation2 + $0x94] sm:$0xf]
        %v5842 = vld [vmem:[#allocation2 + $0x98] sm:$0xf]
        %v5843 = vld [vmem:[#allocation2 + $0x9c] sm:$0xf]
        %v5844 = vld [vmem:[#allocation2 + $0xa0] sm:$0xf]
        %v5845 = vld [vmem:[#allocation2 + $0xa4] sm:$0xf]
        %v5846 = vld [vmem:[#allocation2 + $0xa8] sm:$0xf]
        %v5847 = vld [vmem:[#allocation2 + $0xac] sm:$0xf]
        %v5848 = vld [vmem:[#allocation2 + $0xb0] sm:$0xf]
        %v5849 = vld [vmem:[#allocation2 + $0xb4] sm:$0xf]
        %v5850 = vld [vmem:[#allocation2 + $0xb8] sm:$0xf]
        %v5851 = vld [vmem:[#allocation2 + $0xbc] sm:$0xf]
        %v5852 = vld [vmem:[#allocation2 + $0xc0] sm:$0xf]
        %v5853 = vld [vmem:[#allocation2 + $0xc4] sm:$0xf]
        %v5854 = vld [vmem:[#allocation2 + $0xc8] sm:$0xf]
        %v5855 = vld [vmem:[#allocation2 + $0xcc] sm:$0xf]
        %v5856 = vld [vmem:[#allocation2 + $0xd0] sm:$0xf]
        %v5857 = vld [vmem:[#allocation2 + $0xd4] sm:$0xf]
        %v5858 = vld [vmem:[#allocation2 + $0xd8] sm:$0xf]
        %v5859 = vld [vmem:[#allocation2 + $0xdc] sm:$0xf]
        %v5860 = vld [vmem:[#allocation2 + $0xe0] sm:$0xf]
        %v5861 = vld [vmem:[#allocation2 + $0xe4] sm:$0xf]
        %v5862 = vld [vmem:[#allocation2 + $0xe8] sm:$0xf]
        %v5863 = vld [vmem:[#allocation2 + $0xec] sm:$0xf]
        %v5864 = vld [vmem:[#allocation2 + $0xf0] sm:$0xf]
        %v5865 = vld [vmem:[#allocation2 + $0xf4] sm:$0xf]
        %v5866 = vld [vmem:[#allocation2 + $0xf8] sm:$0xf]
        %v5867 = vld [vmem:[#allocation2 + $0xfc] sm:$0xf]
        %v5868 = vld [vmem:[#allocation2 + $0x100] sm:$0xf]
        %v5869 = vld [vmem:[#allocation2 + $0x104] sm:$0xf]
        %v5870 = vld [vmem:[#allocation2 + $0x108] sm:$0xf]
        %v5871 = vld [vmem:[#allocation2 + $0x10c] sm:$0xf]
        %v5872 = vld [vmem:[#allocation2 + $0x110] sm:$0xf]
        %v5873 = vld [vmem:[#allocation2 + $0x114] sm:$0xf]
        %v5874 = vld [vmem:[#allocation2 + $0x118] sm:$0xf]
        %v5875 = vld [vmem:[#allocation2 + $0x11c] sm:$0xf]
        %v5876 = vld [vmem:[#allocation2 + $0x120] sm:$0xf]
        %v5877 = vld [vmem:[#allocation2 + $0x124] sm:$0xf]
        %v5878 = vld [vmem:[#allocation2 + $0x128] sm:$0xf]
        %v5879 = vld [vmem:[#allocation2 + $0x12c] sm:$0xf]
        %v5880 = vld [vmem:[#allocation2 + $0x130] sm:$0xf]
        %v5881 = vld [vmem:[#allocation2 + $0x134] sm:$0xf]
        %v5882 = vld [vmem:[#allocation2 + $0x138] sm:$0xf]
        %v5883 = vld [vmem:[#allocation2 + $0x13c] sm:$0xf]
        %v5884 = vld [vmem:[#allocation2 + $0x140] sm:$0xf]
        %v5885 = vld [vmem:[#allocation2 + $0x144] sm:$0xf]
        %v5886 = vld [vmem:[#allocation2 + $0x148] sm:$0xf]
        %v5887 = vld [vmem:[#allocation2 + $0x14c] sm:$0xf]
        %v5888 = vld [vmem:[#allocation2 + $0x150] sm:$0xf]
        %v5889 = vld [vmem:[#allocation2 + $0x154] sm:$0xf]
        %v5890 = vld [vmem:[#allocation2 + $0x158] sm:$0xf]
        %v5891 = vld [vmem:[#allocation2 + $0x15c] sm:$0xf]
        %v5892 = vld [vmem:[#allocation2 + $0x160] sm:$0xf]
        %v5893 = vld [vmem:[#allocation2 + $0x164] sm:$0xf]
        %v5894 = vld [vmem:[#allocation2 + $0x168] sm:$0xf]
        %v5895 = vld [vmem:[#allocation2 + $0x16c] sm:$0xf]
        %v5896 = vld [vmem:[#allocation2 + $0x170] sm:$0xf]
        %v5897 = vld [vmem:[#allocation2 + $0x174] sm:$0xf]
        %v5898 = vld [vmem:[#allocation2 + $0x178] sm:$0xf]
        %v5899 = vld [vmem:[#allocation2 + $0x17c] sm:$0xf]
        %v5900 = vld [vmem:[#allocation2 + $0x180] sm:$0xf]
        %v5901 = vld [vmem:[#allocation2 + $0x184] sm:$0xf]
        %v5902 = vld [vmem:[#allocation2 + $0x188] sm:$0xf]
        %v5903 = vld [vmem:[#allocation2 + $0x18c] sm:$0xf]
        %v5904 = vld [vmem:[#allocation2 + $0x190] sm:$0xf]
        %v5905 = vld [vmem:[#allocation2 + $0x194] sm:$0xf]
        %v5906 = vld [vmem:[#allocation2 + $0x198] sm:$0xf]
        %v5907 = vld [vmem:[#allocation2 + $0x19c] sm:$0xf]
        %v5908 = vld [vmem:[#allocation2 + $0x1a0] sm:$0xf]
        %v5909 = vld [vmem:[#allocation2 + $0x1a4] sm:$0xf]
        %v5910 = vld [vmem:[#allocation2 + $0x1a8] sm:$0xf]
        %v5911 = vld [vmem:[#allocation2 + $0x1ac] sm:$0xf]
        %v5912 = vld [vmem:[#allocation2 + $0x1b0] sm:$0xf]
        %v5913 = vld [vmem:[#allocation2 + $0x1b4] sm:$0xf]
        %v5914 = vld [vmem:[#allocation2 + $0x1b8] sm:$0xf]
        %v5915 = vld [vmem:[#allocation2 + $0x1bc] sm:$0xf]
        %v5916 = vld [vmem:[#allocation2 + $0x1c0] sm:$0xf]
        %v5917 = vld [vmem:[#allocation2 + $0x1c4] sm:$0xf]
        %v5918 = vld [vmem:[#allocation2 + $0x1c8] sm:$0xf]
        %v5919 = vld [vmem:[#allocation2 + $0x1cc] sm:$0xf]
        %v5920 = vld [vmem:[#allocation2 + $0x1d0] sm:$0xf]
        %v5921 = vld [vmem:[#allocation2 + $0x1d4] sm:$0xf]
        %v5922 = vld [vmem:[#allocation2 + $0x1d8] sm:$0xf]
        %v5923 = vld [vmem:[#allocation2 + $0x1dc] sm:$0xf]
        %v5924 = vld [vmem:[#allocation2 + $0x1e0] sm:$0xf]
        %v5925 = vld [vmem:[#allocation2 + $0x1e4] sm:$0xf]
        %v5926 = vld [vmem:[#allocation2 + $0x1e8] sm:$0xf]
        %v5927 = vld [vmem:[#allocation2 + $0x1ec] sm:$0xf]
        %v5928 = vld [vmem:[#allocation2 + $0x1f0] sm:$0xf]
        %v5929 = vld [vmem:[#allocation2 + $0x1f4] sm:$0xf]
        %v5930 = vld [vmem:[#allocation2 + $0x1f8] sm:$0xf]
        %v5931 = vld [vmem:[#allocation2 + $0x1fc] sm:$0xf]
        %v5932 = vld [vmem:[#allocation2 + $0x200] sm:$0xf]
        %v5933 = vld [vmem:[#allocation2 + $0x204] sm:$0xf]
        %v5934 = vld [vmem:[#allocation2 + $0x208] sm:$0xf]
        %v5935 = vld [vmem:[#allocation2 + $0x20c] sm:$0xf]
        %v5936 = vld [vmem:[#allocation2 + $0x210] sm:$0xf]
        %v5937 = vld [vmem:[#allocation2 + $0x214] sm:$0xf]
        %v5938 = vld [vmem:[#allocation2 + $0x218] sm:$0xf]
        %v5939 = vld [vmem:[#allocation2 + $0x21c] sm:$0xf]
        %v5940 = vld [vmem:[#allocation2 + $0x220] sm:$0xf]
        %v5941 = vld [vmem:[#allocation2 + $0x224] sm:$0xf]
        %v5942 = vld [vmem:[#allocation2 + $0x228] sm:$0xf]
        %v5943 = vld [vmem:[#allocation2 + $0x22c] sm:$0xf]
        %v5944 = vld [vmem:[#allocation2 + $0x230] sm:$0xf]
        %v5945 = vld [vmem:[#allocation2 + $0x234] sm:$0xf]
        %v5946 = vld [vmem:[#allocation2 + $0x238] sm:$0xf]
        %v5947 = vld [vmem:[#allocation2 + $0x23c] sm:$0xf]
        %v5948 = vld [vmem:[#allocation2 + $0x240] sm:$0xf]
        %v5949 = vld [vmem:[#allocation2 + $0x244] sm:$0xf]
        %v5950 = vld [vmem:[#allocation2 + $0x248] sm:$0xf]
        %v5951 = vld [vmem:[#allocation2 + $0x24c] sm:$0xf]
        %v5952 = vld [vmem:[#allocation2 + $0x250] sm:$0xf]
        %v5953 = vld [vmem:[#allocation2 + $0x254] sm:$0xf]
        %v5954 = vld [vmem:[#allocation2 + $0x258] sm:$0xf]
        %v5955 = vld [vmem:[#allocation2 + $0x25c] sm:$0xf]
        %v5956 = vld [vmem:[#allocation2 + $0x260] sm:$0xf]
        %v5957 = vld [vmem:[#allocation2 + $0x264] sm:$0xf]
        %v5958 = vld [vmem:[#allocation2 + $0x268] sm:$0xf]
        %v5959 = vld [vmem:[#allocation2 + $0x26c] sm:$0xf]
        %v5960 = vld [vmem:[#allocation2 + $0x270] sm:$0xf]
        %v5961 = vld [vmem:[#allocation2 + $0x274] sm:$0xf]
        %v5962 = vld [vmem:[#allocation2 + $0x278] sm:$0xf]
        %v5963 = vld [vmem:[#allocation2 + $0x27c] sm:$0xf]
        %v5964 = vld [vmem:[#allocation2 + $0x280] sm:$0xf]
        %v5965 = vld [vmem:[#allocation2 + $0x284] sm:$0xf]
        %v5966 = vld [vmem:[#allocation2 + $0x288] sm:$0xf]
        %v5967 = vld [vmem:[#allocation2 + $0x28c] sm:$0xf]
        %v5968 = vld [vmem:[#allocation2 + $0x290] sm:$0xf]
        %v5969 = vld [vmem:[#allocation2 + $0x294] sm:$0xf]
        %v5970 = vld [vmem:[#allocation2 + $0x298] sm:$0xf]
        %v5971 = vld [vmem:[#allocation2 + $0x29c] sm:$0xf]
        %v5972 = vld [vmem:[#allocation2 + $0x2a0] sm:$0xf]
        %v5973 = vld [vmem:[#allocation2 + $0x2a4] sm:$0xf]
        %v5974 = vld [vmem:[#allocation2 + $0x2a8] sm:$0xf]
        %v5975 = vld [vmem:[#allocation2 + $0x2ac] sm:$0xf]
        %v5976 = vld [vmem:[#allocation2 + $0x2b0] sm:$0xf]
        %v5977 = vld [vmem:[#allocation2 + $0x2b4] sm:$0xf]
        %v5978 = vld [vmem:[#allocation2 + $0x2b8] sm:$0xf]
        %v5979 = vld [vmem:[#allocation2 + $0x2bc] sm:$0xf]
        %v5980 = vld [vmem:[#allocation2 + $0x2c0] sm:$0xf]
        %v5981 = vld [vmem:[#allocation2 + $0x2c4] sm:$0xf]
        %v5982 = vld [vmem:[#allocation2 + $0x2c8] sm:$0xf]
        %v5983 = vld [vmem:[#allocation2 + $0x2cc] sm:$0xf]
        %v5984 = vld [vmem:[#allocation2 + $0x2d0] sm:$0xf]
        %v5985 = vld [vmem:[#allocation2 + $0x2d4] sm:$0xf]
        %v5986 = vld [vmem:[#allocation2 + $0x2d8] sm:$0xf]
        %v5987 = vld [vmem:[#allocation2 + $0x2dc] sm:$0xf]
        %v5988 = vld [vmem:[#allocation2 + $0x2e0] sm:$0xf]
        %v5989 = vld [vmem:[#allocation2 + $0x2e4] sm:$0xf]
        %v5990 = vld [vmem:[#allocation2 + $0x2e8] sm:$0xf]
        %v5991 = vld [vmem:[#allocation2 + $0x2ec] sm:$0xf]
        %v5992 = vld [vmem:[#allocation2 + $0x2f0] sm:$0xf]
        %v5993 = vld [vmem:[#allocation2 + $0x2f4] sm:$0xf]
        %v5994 = vld [vmem:[#allocation2 + $0x2f8] sm:$0xf]
        %v5995 = vld [vmem:[#allocation2 + $0x2fc] sm:$0xf]
        %v5996 = vld [vmem:[#allocation2 + $0x300] sm:$0xf]
        %v5997 = vld [vmem:[#allocation2 + $0x304] sm:$0xf]
        %v5998 = vld [vmem:[#allocation2 + $0x308] sm:$0xf]
        %v5999 = vld [vmem:[#allocation2 + $0x30c] sm:$0xf]
        %v6000 = vld [vmem:[#allocation2 + $0x310] sm:$0xf]
        %v6001 = vld [vmem:[#allocation2 + $0x314] sm:$0xf]
        %v6002 = vld [vmem:[#allocation2 + $0x318] sm:$0xf]
        %v6003 = vld [vmem:[#allocation2 + $0x31c] sm:$0xf]
        %v6004 = vld [vmem:[#allocation2 + $0x320] sm:$0xf]
        %v6005 = vld [vmem:[#allocation2 + $0x324] sm:$0xf]
        %v6006 = vld [vmem:[#allocation2 + $0x328] sm:$0xf]
        %v6007 = vld [vmem:[#allocation2 + $0x32c] sm:$0xf]
        %v6008 = vld [vmem:[#allocation2 + $0x330] sm:$0xf]
        %v6009 = vld [vmem:[#allocation2 + $0x334] sm:$0xf]
        %v6010 = vld [vmem:[#allocation2 + $0x338] sm:$0xf]
        %v6011 = vld [vmem:[#allocation2 + $0x33c] sm:$0xf]
        %v6012 = vld [vmem:[#allocation2 + $0x340] sm:$0xf]
        %v6013 = vld [vmem:[#allocation2 + $0x344] sm:$0xf]
        %v6014 = vld [vmem:[#allocation2 + $0x348] sm:$0xf]
        %v6015 = vld [vmem:[#allocation2 + $0x34c] sm:$0xf]
        %v6016 = vld [vmem:[#allocation2 + $0x350] sm:$0xf]
        %v6017 = vld [vmem:[#allocation2 + $0x354] sm:$0xf]
        %v6018 = vld [vmem:[#allocation2 + $0x358] sm:$0xf]
        %v6019 = vld [vmem:[#allocation2 + $0x35c] sm:$0xf]
        %v6020 = vld [vmem:[#allocation2 + $0x360] sm:$0xf]
        %v6021 = vld [vmem:[#allocation2 + $0x364] sm:$0xf]
        %v6022 = vld [vmem:[#allocation2 + $0x368] sm:$0xf]
        %v6023 = vld [vmem:[#allocation2 + $0x36c] sm:$0xf]
        %v6024 = vld [vmem:[#allocation2 + $0x370] sm:$0xf]
        %v6025 = vld [vmem:[#allocation2 + $0x374] sm:$0xf]
        %v6026 = vld [vmem:[#allocation2 + $0x378] sm:$0xf]
        %v6027 = vld [vmem:[#allocation2 + $0x37c] sm:$0xf]
        %v6028 = vld [vmem:[#allocation2 + $0x380] sm:$0xf]
        %v6029 = vld [vmem:[#allocation2 + $0x384] sm:$0xf]
        %v6030 = vld [vmem:[#allocation2 + $0x388] sm:$0xf]
        %v6031 = vld [vmem:[#allocation2 + $0x38c] sm:$0xf]
        %v6032 = vld [vmem:[#allocation2 + $0x390] sm:$0xf]
        %v6033 = vld [vmem:[#allocation2 + $0x394] sm:$0xf]
        %v6034 = vld [vmem:[#allocation2 + $0x398] sm:$0xf]
        %v6035 = vld [vmem:[#allocation2 + $0x39c] sm:$0xf]
        %v6036 = vld [vmem:[#allocation2 + $0x3a0] sm:$0xf]
        %v6037 = vld [vmem:[#allocation2 + $0x3a4] sm:$0xf]
        %v6038 = vld [vmem:[#allocation2 + $0x3a8] sm:$0xf]
        %v6039 = vld [vmem:[#allocation2 + $0x3ac] sm:$0xf]
        %v6040 = vld [vmem:[#allocation2 + $0x3b0] sm:$0xf]
        %v6041 = vld [vmem:[#allocation2 + $0x3b4] sm:$0xf]
        %v6042 = vld [vmem:[#allocation2 + $0x3b8] sm:$0xf]
        %v6043 = vld [vmem:[#allocation2 + $0x3bc] sm:$0xf]
        %v6044 = vld [vmem:[#allocation2 + $0x3c0] sm:$0xf]
        %v6045 = vld [vmem:[#allocation2 + $0x3c4] sm:$0xf]
        %v6046 = vld [vmem:[#allocation2 + $0x3c8] sm:$0xf]
        %v6047 = vld [vmem:[#allocation2 + $0x3cc] sm:$0xf]
        %v6048 = vld [vmem:[#allocation2 + $0x3d0] sm:$0xf]
        %v6049 = vld [vmem:[#allocation2 + $0x3d4] sm:$0xf]
        %v6050 = vld [vmem:[#allocation2 + $0x3d8] sm:$0xf]
        %v6051 = vld [vmem:[#allocation2 + $0x3dc] sm:$0xf]
        %v6052 = vld [vmem:[#allocation2 + $0x3e0] sm:$0xf]
        %v6053 = vld [vmem:[#allocation2 + $0x3e4] sm:$0xf]
        %v6054 = vld [vmem:[#allocation2 + $0x3e8] sm:$0xf]
        %v6055 = vld [vmem:[#allocation2 + $0x3ec] sm:$0xf]
        %v6056 = vld [vmem:[#allocation2 + $0x3f0] sm:$0xf]
        %v6057 = vld [vmem:[#allocation2 + $0x3f4] sm:$0xf]
        %v6058 = vld [vmem:[#allocation2 + $0x3f8] sm:$0xf]
        %v6059 = vld [vmem:[#allocation2 + $0x3fc] sm:$0xf]
        %v6060 = vld [vmem:[#allocation2 + $0x400] sm:$0xf]
        %v6061 = vld [vmem:[#allocation2 + $0x404] sm:$0xf]
        %v6062 = vld [vmem:[#allocation2 + $0x408] sm:$0xf]
        %v6063 = vld [vmem:[#allocation2 + $0x40c] sm:$0xf]
        %v6064 = vld [vmem:[#allocation2 + $0x410] sm:$0xf]
        %v6065 = vld [vmem:[#allocation2 + $0x414] sm:$0xf]
        %v6066 = vld [vmem:[#allocation2 + $0x418] sm:$0xf]
        %v6067 = vld [vmem:[#allocation2 + $0x41c] sm:$0xf]
        %v6068 = vld [vmem:[#allocation2 + $0x420] sm:$0xf]
        %v6069 = vld [vmem:[#allocation2 + $0x424] sm:$0xf]
        %v6070 = vld [vmem:[#allocation2 + $0x428] sm:$0xf]
        %v6071 = vld [vmem:[#allocation2 + $0x42c] sm:$0xf]
        %v6072 = vld [vmem:[#allocation2 + $0x430] sm:$0xf]
        %v6073 = vld [vmem:[#allocation2 + $0x434] sm:$0xf]
        %v6074 = vld [vmem:[#allocation2 + $0x438] sm:$0xf]
        %v6075 = vld [vmem:[#allocation2 + $0x43c] sm:$0xf]
        %v6076 = vld [vmem:[#allocation2 + $0x440] sm:$0xf]
        %v6077 = vld [vmem:[#allocation2 + $0x444] sm:$0xf]
        %v6078 = vld [vmem:[#allocation2 + $0x448] sm:$0xf]
        %v6079 = vld [vmem:[#allocation2 + $0x44c] sm:$0xf]
        %v6080 = vld [vmem:[#allocation2 + $0x450] sm:$0xf]
        %v6081 = vld [vmem:[#allocation2 + $0x454] sm:$0xf]
        %v6082 = vld [vmem:[#allocation2 + $0x458] sm:$0xf]
        %v6083 = vld [vmem:[#allocation2 + $0x45c] sm:$0xf]
        %v6084 = vld [vmem:[#allocation2 + $0x460] sm:$0xf]
        %v6085 = vld [vmem:[#allocation2 + $0x464] sm:$0xf]
        %v6086 = vld [vmem:[#allocation2 + $0x468] sm:$0xf]
        %v6087 = vld [vmem:[#allocation2 + $0x46c] sm:$0xf]
        %v6088 = vld [vmem:[#allocation2 + $0x470] sm:$0xf]
        %v6089 = vld [vmem:[#allocation2 + $0x474] sm:$0xf]
        %v6090 = vld [vmem:[#allocation2 + $0x478] sm:$0xf]
        %v6091 = vld [vmem:[#allocation2 + $0x47c] sm:$0xf]
        %v6092 = vld [vmem:[#allocation2 + $0x480] sm:$0xf]
        %v6093 = vld [vmem:[#allocation2 + $0x484] sm:$0xf]
        %v6094 = vld [vmem:[#allocation2 + $0x488] sm:$0xf]
        %v6095 = vld [vmem:[#allocation2 + $0x48c] sm:$0xf]
        %v6096 = vld [vmem:[#allocation2 + $0x490] sm:$0xf]
        %v6097 = vld [vmem:[#allocation2 + $0x494] sm:$0xf]
        %v6098 = vld [vmem:[#allocation2 + $0x498] sm:$0xf]
        %v6099 = vld [vmem:[#allocation2 + $0x49c] sm:$0xf]
        %v6102 = vunpack.c.l.b16 %v5802
        %v6103 = vunpack.c.h.b16 %v5802
        %v6104 = vunpack.c.l.b16 %v5803
        %v6105 = vpack.c.b16 %v6102, %v6102
        %v6106 = vpack.c.b16 %v6103, %v6103
        %v6107 = vpack.c.b16 %v6104, %v6104
        %v6147 = vunpack.c.l.b16 %v5804
        %v6148 = vunpack.c.l.b16 %v5805
        %v6149 = vunpack.c.l.b16 %v5806
        %v6150 = vunpack.c.l.b16 %v5807
        %v6151 = vunpack.c.l.b16 %v5808
        %v6152 = vunpack.c.l.b16 %v5809
        %v6153 = vunpack.c.l.b16 %v5810
        %v6154 = vunpack.c.l.b16 %v5811
        %v6155 = vunpack.c.l.b16 %v5812
        %v6156 = vunpack.c.l.b16 %v5813
        %v6157 = vunpack.c.l.b16 %v5814
        %v6158 = vunpack.c.l.b16 %v5815
        %v6159 = vunpack.c.l.b16 %v5816
        %v6160 = vunpack.c.l.b16 %v5817
        %v6161 = vunpack.c.l.b16 %v5818
        %v6162 = vunpack.c.l.b16 %v5819
        %v6163 = vunpack.c.l.b16 %v5820
        %v6164 = vunpack.c.l.b16 %v5821
        %v6165 = vunpack.c.l.b16 %v5822
        %v6166 = vunpack.c.l.b16 %v5823
        %v6167 = vunpack.c.l.b16 %v5824
        %v6168 = vunpack.c.l.b16 %v5825
        %v6169 = vunpack.c.l.b16 %v5826
        %v6170 = vunpack.c.l.b16 %v5827
        %v6171 = vunpack.c.l.b16 %v5828
        %v6172 = vunpack.c.l.b16 %v5829
        %v6173 = vunpack.c.l.b16 %v5830
        %v6174 = vunpack.c.l.b16 %v5831
        %v6175 = vunpack.c.l.b16 %v5832
        %v6176 = vunpack.c.l.b16 %v5833
        %v6177 = vunpack.c.l.b16 %v5834
        %v6178 = vunpack.c.l.b16 %v5835
        %v6179 = vunpack.c.l.b16 %v5836
        %v6180 = vunpack.c.l.b16 %v5837
        %v6181 = vunpack.c.l.b16 %v5838
        %v6182 = vunpack.c.l.b16 %v5839
        %v6183 = vunpack.c.l.b16 %v5840
        %v6184 = vpack.c.b16 %v6148, %v6147
        %v6185 = vpack.c.b16 %v6150, %v6149
        %v6186 = vpack.c.b16 %v6152, %v6151
        %v6187 = vpack.c.b16 %v6154, %v6153
        %v6188 = vpack.c.b16 %v6156, %v6155
        %v6189 = vpack.c.b16 %v6158, %v6157
        %v6190 = vpack.c.b16 %v6160, %v6159
        %v6191 = vpack.c.b16 %v6162, %v6161
        %v6192 = vpack.c.b16 %v6164, %v6163
        %v6193 = vpack.c.b16 %v6166, %v6165
        %v6194 = vpack.c.b16 %v6168, %v6167
        %v6195 = vpack.c.b16 %v6170, %v6169
        %v6196 = vpack.c.b16 %v6172, %v6171
        %v6197 = vpack.c.b16 %v6174, %v6173
        %v6198 = vpack.c.b16 %v6176, %v6175
        %v6199 = vpack.c.b16 %v6178, %v6177
        %v6200 = vpack.c.b16 %v6180, %v6179
        %v6201 = vpack.c.b16 %v6182, %v6181
        %v6202 = vpack.c.b16 %v6183, %v6183
        %v6222 = vsel %vm1581, %v6107, 0
        %v6225 = vsel %vm1585, %v6202, 0
        %6227 = vmatprep.subr.bf16.mxu0 0
        %6228 = vmatpush1.bf16.msra.mxu0 %v6191
        %6229 = vmatprep.subr.bf16.mxu0 0
        %6230 = vmatpush1.bf16.msra.mxu0 %v6190
        %6231 = vmatprep.subr.bf16.mxu0 0
        %6232 = vmatpush1.bf16.msra.mxu0 %v6189
        %6233 = vmatprep.subr.bf16.mxu0 0
        %6234 = vmatpush1.bf16.msra.mxu0 %v6188
        %6235 = vmatprep.subr.bf16.mxu0 0
        %6236 = vmatpush1.bf16.msra.mxu0 %v6187
        %6237 = vmatprep.subr.bf16.mxu0 0
        %6238 = vmatpush1.bf16.msra.mxu0 %v6186
        %6239 = vmatprep.subr.bf16.mxu0 0
        %6240 = vmatpush1.bf16.msra.mxu0 %v6185
        %6241 = vmatprep.subr.bf16.mxu0 0
        %6242 = vmatpush1.bf16.msra.mxu0 %v6184
        %6243 = vmatprep.subr.bf16.mxu0 0
        %6244 = vmatpush2.bf16.msra.mxu0 %v6199
        %6245 = vmatprep.subr.bf16.mxu0 0
        %6246 = vmatpush2.bf16.msra.mxu0 %v6198
        %6247 = vmatprep.subr.bf16.mxu0 0
        %6248 = vmatpush2.bf16.msra.mxu0 %v6197
        %6249 = vmatprep.subr.bf16.mxu0 0
        %6250 = vmatpush2.bf16.msra.mxu0 %v6196
        %6251 = vmatprep.subr.bf16.mxu0 0
        %6252 = vmatpush2.bf16.msra.mxu0 %v6195
        %6253 = vmatprep.subr.bf16.mxu0 0
        %6254 = vmatpush2.bf16.msra.mxu0 %v6194
        %6255 = vmatprep.subr.bf16.mxu0 0
        %6256 = vmatpush2.bf16.msra.mxu0 %v6193
        %6257 = vmatprep.subr.bf16.mxu0 0
        %6258 = vmatpush2.bf16.msra.mxu0 %v6192
        %6259 = vmatprep.mubr.bf16.mxu0 %v6106
        %6260 = vmatmul.mubr.bf16.gmra.mxu0 %v6105
        %v6261 = vpop.f32.mrf.mxu0
        %v6262 = vadd.f32 0.0, %v6261
        %v6263 = vpop.f32.mrf.mxu0
        %v6264 = vpop.f32.mrf.mxu0
        %v6265 = vpop.f32.mrf.mxu0
        %6266 = vdwg.mxu0
        %6267 = vmatprep.subr.bf16.mxu0 0
        %6268 = vmatpush1.bf16.msra.mxu0 0
        %6269 = vmatprep.subr.bf16.mxu0 0
        %6270 = vmatpush1.bf16.msra.mxu0 0
        %6271 = vmatprep.subr.bf16.mxu0 0
        %6272 = vmatpush1.bf16.msra.mxu0 0
        %6273 = vmatprep.subr.bf16.mxu0 0
        %6274 = vmatpush1.bf16.msra.mxu0 0
        %6275 = vmatprep.subr.bf16.mxu0 0
        %6276 = vmatpush1.bf16.msra.mxu0 0
        %6277 = vmatprep.subr.bf16.mxu0 0
        %6278 = vmatpush1.bf16.msra.mxu0 %v6225
        %6279 = vmatprep.subr.bf16.mxu0 0
        %6280 = vmatpush1.bf16.msra.mxu0 %v6201
        %6281 = vmatprep.subr.bf16.mxu0 0
        %6282 = vmatpush1.bf16.msra.mxu0 %v6200
        %6283 = vmatprep.subr.bf16.mxu0 0
        %6284 = vmatpush2.bf16.msra.mxu0 0
        %6285 = vmatprep.subr.bf16.mxu0 0
        %6286 = vmatpush2.bf16.msra.mxu0 0
        %6287 = vmatprep.subr.bf16.mxu0 0
        %6288 = vmatpush2.bf16.msra.mxu0 0
        %6289 = vmatprep.subr.bf16.mxu0 0
        %6290 = vmatpush2.bf16.msra.mxu0 0
        %6291 = vmatprep.subr.bf16.mxu0 0
        %6292 = vmatpush2.bf16.msra.mxu0 0
        %6293 = vmatprep.subr.bf16.mxu0 0
        %6294 = vmatpush2.bf16.msra.mxu0 0
        %6295 = vmatprep.subr.bf16.mxu0 0
        %6296 = vmatpush2.bf16.msra.mxu0 0
        %6297 = vmatprep.subr.bf16.mxu0 0
        %6298 = vmatpush2.bf16.msra.mxu0 0
        %6299 = vmatprep.mubr.bf16.mxu0 0
        %6300 = vmatmul.mubr.bf16.gmra.mxu0 %v6222
        %v6301 = vpop.f32.mrf.mxu0
        %v6302 = vadd.f32 %v6262, %v6301
        %v6303 = vpop.f32.mrf.mxu0
        %v6304 = vpop.f32.mrf.mxu0
        %v6305 = vpop.f32.mrf.mxu0
        %6306 = vdwg.mxu0
        %v6344 = vunpack.c.l.b16 %v5841
        %v6345 = vunpack.c.l.b16 %v5842
        %v6346 = vunpack.c.l.b16 %v5843
        %v6347 = vunpack.c.l.b16 %v5844
        %v6348 = vunpack.c.l.b16 %v5845
        %v6349 = vunpack.c.l.b16 %v5846
        %v6350 = vunpack.c.l.b16 %v5847
        %v6351 = vunpack.c.l.b16 %v5848
        %v6352 = vunpack.c.l.b16 %v5849
        %v6353 = vunpack.c.l.b16 %v5850
        %v6354 = vunpack.c.l.b16 %v5851
        %v6355 = vunpack.c.l.b16 %v5852
        %v6356 = vunpack.c.l.b16 %v5853
        %v6357 = vunpack.c.l.b16 %v5854
        %v6358 = vunpack.c.l.b16 %v5855
        %v6359 = vunpack.c.l.b16 %v5856
        %v6360 = vunpack.c.l.b16 %v5857
        %v6361 = vunpack.c.l.b16 %v5858
        %v6362 = vunpack.c.l.b16 %v5859
        %v6363 = vunpack.c.l.b16 %v5860
        %v6364 = vunpack.c.l.b16 %v5861
        %v6365 = vunpack.c.l.b16 %v5862
        %v6366 = vunpack.c.l.b16 %v5863
        %v6367 = vunpack.c.l.b16 %v5864
        %v6368 = vunpack.c.l.b16 %v5865
        %v6369 = vunpack.c.l.b16 %v5866
        %v6370 = vunpack.c.l.b16 %v5867
        %v6371 = vunpack.c.l.b16 %v5868
        %v6372 = vunpack.c.l.b16 %v5869
        %v6373 = vunpack.c.l.b16 %v5870
        %v6374 = vunpack.c.l.b16 %v5871
        %v6375 = vunpack.c.l.b16 %v5872
        %v6376 = vunpack.c.l.b16 %v5873
        %v6377 = vunpack.c.l.b16 %v5874
        %v6378 = vunpack.c.l.b16 %v5875
        %v6379 = vunpack.c.l.b16 %v5876
        %v6380 = vunpack.c.l.b16 %v5877
        %v6381 = vpack.c.b16 %v6345, %v6344
        %v6382 = vpack.c.b16 %v6347, %v6346
        %v6383 = vpack.c.b16 %v6349, %v6348
        %v6384 = vpack.c.b16 %v6351, %v6350
        %v6385 = vpack.c.b16 %v6353, %v6352
        %v6386 = vpack.c.b16 %v6355, %v6354
        %v6387 = vpack.c.b16 %v6357, %v6356
        %v6388 = vpack.c.b16 %v6359, %v6358
        %v6389 = vpack.c.b16 %v6361, %v6360
        %v6390 = vpack.c.b16 %v6363, %v6362
        %v6391 = vpack.c.b16 %v6365, %v6364
        %v6392 = vpack.c.b16 %v6367, %v6366
        %v6393 = vpack.c.b16 %v6369, %v6368
        %v6394 = vpack.c.b16 %v6371, %v6370
        %v6395 = vpack.c.b16 %v6373, %v6372
        %v6396 = vpack.c.b16 %v6375, %v6374
        %v6397 = vpack.c.b16 %v6377, %v6376
        %v6398 = vpack.c.b16 %v6379, %v6378
        %v6399 = vpack.c.b16 %v6380, %v6380
        %v6419 = vsel %vm1585, %v6399, 0
        %6421 = vmatprep.subr.bf16.mxu0 0
        %6422 = vmatpush1.bf16.msra.mxu0 %v6388
        %6423 = vmatprep.subr.bf16.mxu0 0
        %6424 = vmatpush1.bf16.msra.mxu0 %v6387
        %6425 = vmatprep.subr.bf16.mxu0 0
        %6426 = vmatpush1.bf16.msra.mxu0 %v6386
        %6427 = vmatprep.subr.bf16.mxu0 0
        %6428 = vmatpush1.bf16.msra.mxu0 %v6385
        %6429 = vmatprep.subr.bf16.mxu0 0
        %6430 = vmatpush1.bf16.msra.mxu0 %v6384
        %6431 = vmatprep.subr.bf16.mxu0 0
        %6432 = vmatpush1.bf16.msra.mxu0 %v6383
        %6433 = vmatprep.subr.bf16.mxu0 0
        %6434 = vmatpush1.bf16.msra.mxu0 %v6382
        %6435 = vmatprep.subr.bf16.mxu0 0
        %6436 = vmatpush1.bf16.msra.mxu0 %v6381
        %6437 = vmatprep.subr.bf16.mxu0 0
        %6438 = vmatpush2.bf16.msra.mxu0 %v6396
        %6439 = vmatprep.subr.bf16.mxu0 0
        %6440 = vmatpush2.bf16.msra.mxu0 %v6395
        %6441 = vmatprep.subr.bf16.mxu0 0
        %6442 = vmatpush2.bf16.msra.mxu0 %v6394
        %6443 = vmatprep.subr.bf16.mxu0 0
        %6444 = vmatpush2.bf16.msra.mxu0 %v6393
        %6445 = vmatprep.subr.bf16.mxu0 0
        %6446 = vmatpush2.bf16.msra.mxu0 %v6392
        %6447 = vmatprep.subr.bf16.mxu0 0
        %6448 = vmatpush2.bf16.msra.mxu0 %v6391
        %6449 = vmatprep.subr.bf16.mxu0 0
        %6450 = vmatpush2.bf16.msra.mxu0 %v6390
        %6451 = vmatprep.subr.bf16.mxu0 0
        %6452 = vmatpush2.bf16.msra.mxu0 %v6389
        %6453 = vmatprep.mubr.bf16.mxu0 %v6106
        %6454 = vmatmul.mubr.bf16.gmra.mxu0 %v6105
        %v6455 = vpop.f32.mrf.mxu0
        %v6456 = vadd.f32 0.0, %v6455
        %v6457 = vpop.f32.mrf.mxu0
        %v6458 = vpop.f32.mrf.mxu0
        %v6459 = vpop.f32.mrf.mxu0
        %6460 = vdwg.mxu0
        %6461 = vmatprep.subr.bf16.mxu0 0
        %6462 = vmatpush1.bf16.msra.mxu0 0
        %6463 = vmatprep.subr.bf16.mxu0 0
        %6464 = vmatpush1.bf16.msra.mxu0 0
        %6465 = vmatprep.subr.bf16.mxu0 0
        %6466 = vmatpush1.bf16.msra.mxu0 0
        %6467 = vmatprep.subr.bf16.mxu0 0
        %6468 = vmatpush1.bf16.msra.mxu0 0
        %6469 = vmatprep.subr.bf16.mxu0 0
        %6470 = vmatpush1.bf16.msra.mxu0 0
        %6471 = vmatprep.subr.bf16.mxu0 0
        %6472 = vmatpush1.bf16.msra.mxu0 %v6419
        %6473 = vmatprep.subr.bf16.mxu0 0
        %6474 = vmatpush1.bf16.msra.mxu0 %v6398
        %6475 = vmatprep.subr.bf16.mxu0 0
        %6476 = vmatpush1.bf16.msra.mxu0 %v6397
        %6477 = vmatprep.subr.bf16.mxu0 0
        %6478 = vmatpush2.bf16.msra.mxu0 0
        %6479 = vmatprep.subr.bf16.mxu0 0
        %6480 = vmatpush2.bf16.msra.mxu0 0
        %6481 = vmatprep.subr.bf16.mxu0 0
        %6482 = vmatpush2.bf16.msra.mxu0 0
        %6483 = vmatprep.subr.bf16.mxu0 0
        %6484 = vmatpush2.bf16.msra.mxu0 0
        %6485 = vmatprep.subr.bf16.mxu0 0
        %6486 = vmatpush2.bf16.msra.mxu0 0
        %6487 = vmatprep.subr.bf16.mxu0 0
        %6488 = vmatpush2.bf16.msra.mxu0 0
        %6489 = vmatprep.subr.bf16.mxu0 0
        %6490 = vmatpush2.bf16.msra.mxu0 0
        %6491 = vmatprep.subr.bf16.mxu0 0
        %6492 = vmatpush2.bf16.msra.mxu0 0
        %6493 = vmatprep.mubr.bf16.mxu0 0
        %6494 = vmatmul.mubr.bf16.gmra.mxu0 %v6222
        %v6495 = vpop.f32.mrf.mxu0
        %v6496 = vadd.f32 %v6456, %v6495
        %v6497 = vpop.f32.mrf.mxu0
        %v6498 = vpop.f32.mrf.mxu0
        %v6499 = vpop.f32.mrf.mxu0
        %6500 = vdwg.mxu0
        %v6538 = vunpack.c.l.b16 %v5878
        %v6539 = vunpack.c.l.b16 %v5879
        %v6540 = vunpack.c.l.b16 %v5880
        %v6541 = vunpack.c.l.b16 %v5881
        %v6542 = vunpack.c.l.b16 %v5882
        %v6543 = vunpack.c.l.b16 %v5883
        %v6544 = vunpack.c.l.b16 %v5884
        %v6545 = vunpack.c.l.b16 %v5885
        %v6546 = vunpack.c.l.b16 %v5886
        %v6547 = vunpack.c.l.b16 %v5887
        %v6548 = vunpack.c.l.b16 %v5888
        %v6549 = vunpack.c.l.b16 %v5889
        %v6550 = vunpack.c.l.b16 %v5890
        %v6551 = vunpack.c.l.b16 %v5891
        %v6552 = vunpack.c.l.b16 %v5892
        %v6553 = vunpack.c.l.b16 %v5893
        %v6554 = vunpack.c.l.b16 %v5894
        %v6555 = vunpack.c.l.b16 %v5895
        %v6556 = vunpack.c.l.b16 %v5896
        %v6557 = vunpack.c.l.b16 %v5897
        %v6558 = vunpack.c.l.b16 %v5898
        %v6559 = vunpack.c.l.b16 %v5899
        %v6560 = vunpack.c.l.b16 %v5900
        %v6561 = vunpack.c.l.b16 %v5901
        %v6562 = vunpack.c.l.b16 %v5902
        %v6563 = vunpack.c.l.b16 %v5903
        %v6564 = vunpack.c.l.b16 %v5904
        %v6565 = vunpack.c.l.b16 %v5905
        %v6566 = vunpack.c.l.b16 %v5906
        %v6567 = vunpack.c.l.b16 %v5907
        %v6568 = vunpack.c.l.b16 %v5908
        %v6569 = vunpack.c.l.b16 %v5909
        %v6570 = vunpack.c.l.b16 %v5910
        %v6571 = vunpack.c.l.b16 %v5911
        %v6572 = vunpack.c.l.b16 %v5912
        %v6573 = vunpack.c.l.b16 %v5913
        %v6574 = vunpack.c.l.b16 %v5914
        %v6575 = vpack.c.b16 %v6539, %v6538
        %v6576 = vpack.c.b16 %v6541, %v6540
        %v6577 = vpack.c.b16 %v6543, %v6542
        %v6578 = vpack.c.b16 %v6545, %v6544
        %v6579 = vpack.c.b16 %v6547, %v6546
        %v6580 = vpack.c.b16 %v6549, %v6548
        %v6581 = vpack.c.b16 %v6551, %v6550
        %v6582 = vpack.c.b16 %v6553, %v6552
        %v6583 = vpack.c.b16 %v6555, %v6554
        %v6584 = vpack.c.b16 %v6557, %v6556
        %v6585 = vpack.c.b16 %v6559, %v6558
        %v6586 = vpack.c.b16 %v6561, %v6560
        %v6587 = vpack.c.b16 %v6563, %v6562
        %v6588 = vpack.c.b16 %v6565, %v6564
        %v6589 = vpack.c.b16 %v6567, %v6566
        %v6590 = vpack.c.b16 %v6569, %v6568
        %v6591 = vpack.c.b16 %v6571, %v6570
        %v6592 = vpack.c.b16 %v6573, %v6572
        %v6593 = vpack.c.b16 %v6574, %v6574
        %v6613 = vsel %vm1585, %v6593, 0
        %6615 = vmatprep.subr.bf16.mxu0 0
        %6616 = vmatpush1.bf16.msra.mxu0 %v6582
        %6617 = vmatprep.subr.bf16.mxu0 0
        %6618 = vmatpush1.bf16.msra.mxu0 %v6581
        %6619 = vmatprep.subr.bf16.mxu0 0
        %6620 = vmatpush1.bf16.msra.mxu0 %v6580
        %6621 = vmatprep.subr.bf16.mxu0 0
        %6622 = vmatpush1.bf16.msra.mxu0 %v6579
        %6623 = vmatprep.subr.bf16.mxu0 0
        %6624 = vmatpush1.bf16.msra.mxu0 %v6578
        %6625 = vmatprep.subr.bf16.mxu0 0
        %6626 = vmatpush1.bf16.msra.mxu0 %v6577
        %6627 = vmatprep.subr.bf16.mxu0 0
        %6628 = vmatpush1.bf16.msra.mxu0 %v6576
        %6629 = vmatprep.subr.bf16.mxu0 0
        %6630 = vmatpush1.bf16.msra.mxu0 %v6575
        %6631 = vmatprep.subr.bf16.mxu0 0
        %6632 = vmatpush2.bf16.msra.mxu0 %v6590
        %6633 = vmatprep.subr.bf16.mxu0 0
        %6634 = vmatpush2.bf16.msra.mxu0 %v6589
        %6635 = vmatprep.subr.bf16.mxu0 0
        %6636 = vmatpush2.bf16.msra.mxu0 %v6588
        %6637 = vmatprep.subr.bf16.mxu0 0
        %6638 = vmatpush2.bf16.msra.mxu0 %v6587
        %6639 = vmatprep.subr.bf16.mxu0 0
        %6640 = vmatpush2.bf16.msra.mxu0 %v6586
        %6641 = vmatprep.subr.bf16.mxu0 0
        %6642 = vmatpush2.bf16.msra.mxu0 %v6585
        %6643 = vmatprep.subr.bf16.mxu0 0
        %6644 = vmatpush2.bf16.msra.mxu0 %v6584
        %6645 = vmatprep.subr.bf16.mxu0 0
        %6646 = vmatpush2.bf16.msra.mxu0 %v6583
        %6647 = vmatprep.mubr.bf16.mxu0 %v6106
        %6648 = vmatmul.mubr.bf16.gmra.mxu0 %v6105
        %v6649 = vpop.f32.mrf.mxu0
        %v6650 = vadd.f32 0.0, %v6649
        %v6651 = vpop.f32.mrf.mxu0
        %v6652 = vpop.f32.mrf.mxu0
        %v6653 = vpop.f32.mrf.mxu0
        %6654 = vdwg.mxu0
        %6655 = vmatprep.subr.bf16.mxu0 0
        %6656 = vmatpush1.bf16.msra.mxu0 0
        %6657 = vmatprep.subr.bf16.mxu0 0
        %6658 = vmatpush1.bf16.msra.mxu0 0
        %6659 = vmatprep.subr.bf16.mxu0 0
        %6660 = vmatpush1.bf16.msra.mxu0 0
        %6661 = vmatprep.subr.bf16.mxu0 0
        %6662 = vmatpush1.bf16.msra.mxu0 0
        %6663 = vmatprep.subr.bf16.mxu0 0
        %6664 = vmatpush1.bf16.msra.mxu0 0
        %6665 = vmatprep.subr.bf16.mxu0 0
        %6666 = vmatpush1.bf16.msra.mxu0 %v6613
        %6667 = vmatprep.subr.bf16.mxu0 0
        %6668 = vmatpush1.bf16.msra.mxu0 %v6592
        %6669 = vmatprep.subr.bf16.mxu0 0
        %6670 = vmatpush1.bf16.msra.mxu0 %v6591
        %6671 = vmatprep.subr.bf16.mxu0 0
        %6672 = vmatpush2.bf16.msra.mxu0 0
        %6673 = vmatprep.subr.bf16.mxu0 0
        %6674 = vmatpush2.bf16.msra.mxu0 0
        %6675 = vmatprep.subr.bf16.mxu0 0
        %6676 = vmatpush2.bf16.msra.mxu0 0
        %6677 = vmatprep.subr.bf16.mxu0 0
        %6678 = vmatpush2.bf16.msra.mxu0 0
        %6679 = vmatprep.subr.bf16.mxu0 0
        %6680 = vmatpush2.bf16.msra.mxu0 0
        %6681 = vmatprep.subr.bf16.mxu0 0
        %6682 = vmatpush2.bf16.msra.mxu0 0
        %6683 = vmatprep.subr.bf16.mxu0 0
        %6684 = vmatpush2.bf16.msra.mxu0 0
        %6685 = vmatprep.subr.bf16.mxu0 0
        %6686 = vmatpush2.bf16.msra.mxu0 0
        %6687 = vmatprep.mubr.bf16.mxu0 0
        %6688 = vmatmul.mubr.bf16.gmra.mxu0 %v6222
        %v6689 = vpop.f32.mrf.mxu0
        %v6690 = vadd.f32 %v6650, %v6689
        %v6691 = vpop.f32.mrf.mxu0
        %v6692 = vpop.f32.mrf.mxu0
        %v6693 = vpop.f32.mrf.mxu0
        %6694 = vdwg.mxu0
        %v6732 = vunpack.c.l.b16 %v5915
        %v6733 = vunpack.c.l.b16 %v5916
        %v6734 = vunpack.c.l.b16 %v5917
        %v6735 = vunpack.c.l.b16 %v5918
        %v6736 = vunpack.c.l.b16 %v5919
        %v6737 = vunpack.c.l.b16 %v5920
        %v6738 = vunpack.c.l.b16 %v5921
        %v6739 = vunpack.c.l.b16 %v5922
        %v6740 = vunpack.c.l.b16 %v5923
        %v6741 = vunpack.c.l.b16 %v5924
        %v6742 = vunpack.c.l.b16 %v5925
        %v6743 = vunpack.c.l.b16 %v5926
        %v6744 = vunpack.c.l.b16 %v5927
        %v6745 = vunpack.c.l.b16 %v5928
        %v6746 = vunpack.c.l.b16 %v5929
        %v6747 = vunpack.c.l.b16 %v5930
        %v6748 = vunpack.c.l.b16 %v5931
        %v6749 = vunpack.c.l.b16 %v5932
        %v6750 = vunpack.c.l.b16 %v5933
        %v6751 = vunpack.c.l.b16 %v5934
        %v6752 = vunpack.c.l.b16 %v5935
        %v6753 = vunpack.c.l.b16 %v5936
        %v6754 = vunpack.c.l.b16 %v5937
        %v6755 = vunpack.c.l.b16 %v5938
        %v6756 = vunpack.c.l.b16 %v5939
        %v6757 = vunpack.c.l.b16 %v5940
        %v6758 = vunpack.c.l.b16 %v5941
        %v6759 = vunpack.c.l.b16 %v5942
        %v6760 = vunpack.c.l.b16 %v5943
        %v6761 = vunpack.c.l.b16 %v5944
        %v6762 = vunpack.c.l.b16 %v5945
        %v6763 = vunpack.c.l.b16 %v5946
        %v6764 = vunpack.c.l.b16 %v5947
        %v6765 = vunpack.c.l.b16 %v5948
        %v6766 = vunpack.c.l.b16 %v5949
        %v6767 = vunpack.c.l.b16 %v5950
        %v6768 = vunpack.c.l.b16 %v5951
        %v6769 = vpack.c.b16 %v6733, %v6732
        %v6770 = vpack.c.b16 %v6735, %v6734
        %v6771 = vpack.c.b16 %v6737, %v6736
        %v6772 = vpack.c.b16 %v6739, %v6738
        %v6773 = vpack.c.b16 %v6741, %v6740
        %v6774 = vpack.c.b16 %v6743, %v6742
        %v6775 = vpack.c.b16 %v6745, %v6744
        %v6776 = vpack.c.b16 %v6747, %v6746
        %v6777 = vpack.c.b16 %v6749, %v6748
        %v6778 = vpack.c.b16 %v6751, %v6750
        %v6779 = vpack.c.b16 %v6753, %v6752
        %v6780 = vpack.c.b16 %v6755, %v6754
        %v6781 = vpack.c.b16 %v6757, %v6756
        %v6782 = vpack.c.b16 %v6759, %v6758
        %v6783 = vpack.c.b16 %v6761, %v6760
        %v6784 = vpack.c.b16 %v6763, %v6762
        %v6785 = vpack.c.b16 %v6765, %v6764
        %v6786 = vpack.c.b16 %v6767, %v6766
        %v6787 = vpack.c.b16 %v6768, %v6768
        %v6807 = vsel %vm1585, %v6787, 0
        %6809 = vmatprep.subr.bf16.mxu0 0
        %6810 = vmatpush1.bf16.msra.mxu0 %v6776
        %6811 = vmatprep.subr.bf16.mxu0 0
        %6812 = vmatpush1.bf16.msra.mxu0 %v6775
        %6813 = vmatprep.subr.bf16.mxu0 0
        %6814 = vmatpush1.bf16.msra.mxu0 %v6774
        %6815 = vmatprep.subr.bf16.mxu0 0
        %6816 = vmatpush1.bf16.msra.mxu0 %v6773
        %6817 = vmatprep.subr.bf16.mxu0 0
        %6818 = vmatpush1.bf16.msra.mxu0 %v6772
        %6819 = vmatprep.subr.bf16.mxu0 0
        %6820 = vmatpush1.bf16.msra.mxu0 %v6771
        %6821 = vmatprep.subr.bf16.mxu0 0
        %6822 = vmatpush1.bf16.msra.mxu0 %v6770
        %6823 = vmatprep.subr.bf16.mxu0 0
        %6824 = vmatpush1.bf16.msra.mxu0 %v6769
        %6825 = vmatprep.subr.bf16.mxu0 0
        %6826 = vmatpush2.bf16.msra.mxu0 %v6784
        %6827 = vmatprep.subr.bf16.mxu0 0
        %6828 = vmatpush2.bf16.msra.mxu0 %v6783
        %6829 = vmatprep.subr.bf16.mxu0 0
        %6830 = vmatpush2.bf16.msra.mxu0 %v6782
        %6831 = vmatprep.subr.bf16.mxu0 0
        %6832 = vmatpush2.bf16.msra.mxu0 %v6781
        %6833 = vmatprep.subr.bf16.mxu0 0
        %6834 = vmatpush2.bf16.msra.mxu0 %v6780
        %6835 = vmatprep.subr.bf16.mxu0 0
        %6836 = vmatpush2.bf16.msra.mxu0 %v6779
        %6837 = vmatprep.subr.bf16.mxu0 0
        %6838 = vmatpush2.bf16.msra.mxu0 %v6778
        %6839 = vmatprep.subr.bf16.mxu0 0
        %6840 = vmatpush2.bf16.msra.mxu0 %v6777
        %6841 = vmatprep.mubr.bf16.mxu0 %v6106
        %6842 = vmatmul.mubr.bf16.gmra.mxu0 %v6105
        %v6843 = vpop.f32.mrf.mxu0
        %v6844 = vadd.f32 0.0, %v6843
        %v6845 = vpop.f32.mrf.mxu0
        %v6846 = vpop.f32.mrf.mxu0
        %v6847 = vpop.f32.mrf.mxu0
        %6848 = vdwg.mxu0
        %6849 = vmatprep.subr.bf16.mxu0 0
        %6850 = vmatpush1.bf16.msra.mxu0 0
        %6851 = vmatprep.subr.bf16.mxu0 0
        %6852 = vmatpush1.bf16.msra.mxu0 0
        %6853 = vmatprep.subr.bf16.mxu0 0
        %6854 = vmatpush1.bf16.msra.mxu0 0
        %6855 = vmatprep.subr.bf16.mxu0 0
        %6856 = vmatpush1.bf16.msra.mxu0 0
        %6857 = vmatprep.subr.bf16.mxu0 0
        %6858 = vmatpush1.bf16.msra.mxu0 0
        %6859 = vmatprep.subr.bf16.mxu0 0
        %6860 = vmatpush1.bf16.msra.mxu0 %v6807
        %6861 = vmatprep.subr.bf16.mxu0 0
        %6862 = vmatpush1.bf16.msra.mxu0 %v6786
        %6863 = vmatprep.subr.bf16.mxu0 0
        %6864 = vmatpush1.bf16.msra.mxu0 %v6785
        %6865 = vmatprep.subr.bf16.mxu0 0
        %6866 = vmatpush2.bf16.msra.mxu0 0
        %6867 = vmatprep.subr.bf16.mxu0 0
        %6868 = vmatpush2.bf16.msra.mxu0 0
        %6869 = vmatprep.subr.bf16.mxu0 0
        %6870 = vmatpush2.bf16.msra.mxu0 0
        %6871 = vmatprep.subr.bf16.mxu0 0
        %6872 = vmatpush2.bf16.msra.mxu0 0
        %6873 = vmatprep.subr.bf16.mxu0 0
        %6874 = vmatpush2.bf16.msra.mxu0 0
        %6875 = vmatprep.subr.bf16.mxu0 0
        %6876 = vmatpush2.bf16.msra.mxu0 0
        %6877 = vmatprep.subr.bf16.mxu0 0
        %6878 = vmatpush2.bf16.msra.mxu0 0
        %6879 = vmatprep.subr.bf16.mxu0 0
        %6880 = vmatpush2.bf16.msra.mxu0 0
        %6881 = vmatprep.mubr.bf16.mxu0 0
        %6882 = vmatmul.mubr.bf16.gmra.mxu0 %v6222
        %v6883 = vpop.f32.mrf.mxu0
        %v6884 = vadd.f32 %v6844, %v6883
        %v6885 = vpop.f32.mrf.mxu0
        %v6886 = vpop.f32.mrf.mxu0
        %v6887 = vpop.f32.mrf.mxu0
        %6888 = vdwg.mxu0
        %v6926 = vunpack.c.l.b16 %v5952
        %v6927 = vunpack.c.l.b16 %v5953
        %v6928 = vunpack.c.l.b16 %v5954
        %v6929 = vunpack.c.l.b16 %v5955
        %v6930 = vunpack.c.l.b16 %v5956
        %v6931 = vunpack.c.l.b16 %v5957
        %v6932 = vunpack.c.l.b16 %v5958
        %v6933 = vunpack.c.l.b16 %v5959
        %v6934 = vunpack.c.l.b16 %v5960
        %v6935 = vunpack.c.l.b16 %v5961
        %v6936 = vunpack.c.l.b16 %v5962
        %v6937 = vunpack.c.l.b16 %v5963
        %v6938 = vunpack.c.l.b16 %v5964
        %v6939 = vunpack.c.l.b16 %v5965
        %v6940 = vunpack.c.l.b16 %v5966
        %v6941 = vunpack.c.l.b16 %v5967
        %v6942 = vunpack.c.l.b16 %v5968
        %v6943 = vunpack.c.l.b16 %v5969
        %v6944 = vunpack.c.l.b16 %v5970
        %v6945 = vunpack.c.l.b16 %v5971
        %v6946 = vunpack.c.l.b16 %v5972
        %v6947 = vunpack.c.l.b16 %v5973
        %v6948 = vunpack.c.l.b16 %v5974
        %v6949 = vunpack.c.l.b16 %v5975
        %v6950 = vunpack.c.l.b16 %v5976
        %v6951 = vunpack.c.l.b16 %v5977
        %v6952 = vunpack.c.l.b16 %v5978
        %v6953 = vunpack.c.l.b16 %v5979
        %v6954 = vunpack.c.l.b16 %v5980
        %v6955 = vunpack.c.l.b16 %v5981
        %v6956 = vunpack.c.l.b16 %v5982
        %v6957 = vunpack.c.l.b16 %v5983
        %v6958 = vunpack.c.l.b16 %v5984
        %v6959 = vunpack.c.l.b16 %v5985
        %v6960 = vunpack.c.l.b16 %v5986
        %v6961 = vunpack.c.l.b16 %v5987
        %v6962 = vunpack.c.l.b16 %v5988
        %v6963 = vpack.c.b16 %v6927, %v6926
        %v6964 = vpack.c.b16 %v6929, %v6928
        %v6965 = vpack.c.b16 %v6931, %v6930
        %v6966 = vpack.c.b16 %v6933, %v6932
        %v6967 = vpack.c.b16 %v6935, %v6934
        %v6968 = vpack.c.b16 %v6937, %v6936
        %v6969 = vpack.c.b16 %v6939, %v6938
        %v6970 = vpack.c.b16 %v6941, %v6940
        %v6971 = vpack.c.b16 %v6943, %v6942
        %v6972 = vpack.c.b16 %v6945, %v6944
        %v6973 = vpack.c.b16 %v6947, %v6946
        %v6974 = vpack.c.b16 %v6949, %v6948
        %v6975 = vpack.c.b16 %v6951, %v6950
        %v6976 = vpack.c.b16 %v6953, %v6952
        %v6977 = vpack.c.b16 %v6955, %v6954
        %v6978 = vpack.c.b16 %v6957, %v6956
        %v6979 = vpack.c.b16 %v6959, %v6958
        %v6980 = vpack.c.b16 %v6961, %v6960
        %v6981 = vpack.c.b16 %v6962, %v6962
        %v7001 = vsel %vm1585, %v6981, 0
        %7003 = vmatprep.subr.bf16.mxu0 0
        %7004 = vmatpush1.bf16.msra.mxu0 %v6970
        %7005 = vmatprep.subr.bf16.mxu0 0
        %7006 = vmatpush1.bf16.msra.mxu0 %v6969
        %7007 = vmatprep.subr.bf16.mxu0 0
        %7008 = vmatpush1.bf16.msra.mxu0 %v6968
        %7009 = vmatprep.subr.bf16.mxu0 0
        %7010 = vmatpush1.bf16.msra.mxu0 %v6967
        %7011 = vmatprep.subr.bf16.mxu0 0
        %7012 = vmatpush1.bf16.msra.mxu0 %v6966
        %7013 = vmatprep.subr.bf16.mxu0 0
        %7014 = vmatpush1.bf16.msra.mxu0 %v6965
        %7015 = vmatprep.subr.bf16.mxu0 0
        %7016 = vmatpush1.bf16.msra.mxu0 %v6964
        %7017 = vmatprep.subr.bf16.mxu0 0
        %7018 = vmatpush1.bf16.msra.mxu0 %v6963
        %7019 = vmatprep.subr.bf16.mxu0 0
        %7020 = vmatpush2.bf16.msra.mxu0 %v6978
        %7021 = vmatprep.subr.bf16.mxu0 0
        %7022 = vmatpush2.bf16.msra.mxu0 %v6977
        %7023 = vmatprep.subr.bf16.mxu0 0
        %7024 = vmatpush2.bf16.msra.mxu0 %v6976
        %7025 = vmatprep.subr.bf16.mxu0 0
        %7026 = vmatpush2.bf16.msra.mxu0 %v6975
        %7027 = vmatprep.subr.bf16.mxu0 0
        %7028 = vmatpush2.bf16.msra.mxu0 %v6974
        %7029 = vmatprep.subr.bf16.mxu0 0
        %7030 = vmatpush2.bf16.msra.mxu0 %v6973
        %7031 = vmatprep.subr.bf16.mxu0 0
        %7032 = vmatpush2.bf16.msra.mxu0 %v6972
        %7033 = vmatprep.subr.bf16.mxu0 0
        %7034 = vmatpush2.bf16.msra.mxu0 %v6971
        %7035 = vmatprep.mubr.bf16.mxu0 %v6106
        %7036 = vmatmul.mubr.bf16.gmra.mxu0 %v6105
        %v7037 = vpop.f32.mrf.mxu0
        %v7038 = vadd.f32 0.0, %v7037
        %v7039 = vpop.f32.mrf.mxu0
        %v7040 = vpop.f32.mrf.mxu0
        %v7041 = vpop.f32.mrf.mxu0
        %7042 = vdwg.mxu0
        %7043 = vmatprep.subr.bf16.mxu0 0
        %7044 = vmatpush1.bf16.msra.mxu0 0
        %7045 = vmatprep.subr.bf16.mxu0 0
        %7046 = vmatpush1.bf16.msra.mxu0 0
        %7047 = vmatprep.subr.bf16.mxu0 0
        %7048 = vmatpush1.bf16.msra.mxu0 0
        %7049 = vmatprep.subr.bf16.mxu0 0
        %7050 = vmatpush1.bf16.msra.mxu0 0
        %7051 = vmatprep.subr.bf16.mxu0 0
        %7052 = vmatpush1.bf16.msra.mxu0 0
        %7053 = vmatprep.subr.bf16.mxu0 0
        %7054 = vmatpush1.bf16.msra.mxu0 %v7001
        %7055 = vmatprep.subr.bf16.mxu0 0
        %7056 = vmatpush1.bf16.msra.mxu0 %v6980
        %7057 = vmatprep.subr.bf16.mxu0 0
        %7058 = vmatpush1.bf16.msra.mxu0 %v6979
        %7059 = vmatprep.subr.bf16.mxu0 0
        %7060 = vmatpush2.bf16.msra.mxu0 0
        %7061 = vmatprep.subr.bf16.mxu0 0
        %7062 = vmatpush2.bf16.msra.mxu0 0
        %7063 = vmatprep.subr.bf16.mxu0 0
        %7064 = vmatpush2.bf16.msra.mxu0 0
        %7065 = vmatprep.subr.bf16.mxu0 0
        %7066 = vmatpush2.bf16.msra.mxu0 0
        %7067 = vmatprep.subr.bf16.mxu0 0
        %7068 = vmatpush2.bf16.msra.mxu0 0
        %7069 = vmatprep.subr.bf16.mxu0 0
        %7070 = vmatpush2.bf16.msra.mxu0 0
        %7071 = vmatprep.subr.bf16.mxu0 0
        %7072 = vmatpush2.bf16.msra.mxu0 0
        %7073 = vmatprep.subr.bf16.mxu0 0
        %7074 = vmatpush2.bf16.msra.mxu0 0
        %7075 = vmatprep.mubr.bf16.mxu0 0
        %7076 = vmatmul.mubr.bf16.gmra.mxu0 %v6222
        %v7077 = vpop.f32.mrf.mxu0
        %v7078 = vadd.f32 %v7038, %v7077
        %v7079 = vpop.f32.mrf.mxu0
        %v7080 = vpop.f32.mrf.mxu0
        %v7081 = vpop.f32.mrf.mxu0
        %7082 = vdwg.mxu0
        %v7120 = vunpack.c.l.b16 %v5989
        %v7121 = vunpack.c.l.b16 %v5990
        %v7122 = vunpack.c.l.b16 %v5991
        %v7123 = vunpack.c.l.b16 %v5992
        %v7124 = vunpack.c.l.b16 %v5993
        %v7125 = vunpack.c.l.b16 %v5994
        %v7126 = vunpack.c.l.b16 %v5995
        %v7127 = vunpack.c.l.b16 %v5996
        %v7128 = vunpack.c.l.b16 %v5997
        %v7129 = vunpack.c.l.b16 %v5998
        %v7130 = vunpack.c.l.b16 %v5999
        %v7131 = vunpack.c.l.b16 %v6000
        %v7132 = vunpack.c.l.b16 %v6001
        %v7133 = vunpack.c.l.b16 %v6002
        %v7134 = vunpack.c.l.b16 %v6003
        %v7135 = vunpack.c.l.b16 %v6004
        %v7136 = vunpack.c.l.b16 %v6005
        %v7137 = vunpack.c.l.b16 %v6006
        %v7138 = vunpack.c.l.b16 %v6007
        %v7139 = vunpack.c.l.b16 %v6008
        %v7140 = vunpack.c.l.b16 %v6009
        %v7141 = vunpack.c.l.b16 %v6010
        %v7142 = vunpack.c.l.b16 %v6011
        %v7143 = vunpack.c.l.b16 %v6012
        %v7144 = vunpack.c.l.b16 %v6013
        %v7145 = vunpack.c.l.b16 %v6014
        %v7146 = vunpack.c.l.b16 %v6015
        %v7147 = vunpack.c.l.b16 %v6016
        %v7148 = vunpack.c.l.b16 %v6017
        %v7149 = vunpack.c.l.b16 %v6018
        %v7150 = vunpack.c.l.b16 %v6019
        %v7151 = vunpack.c.l.b16 %v6020
        %v7152 = vunpack.c.l.b16 %v6021
        %v7153 = vunpack.c.l.b16 %v6022
        %v7154 = vunpack.c.l.b16 %v6023
        %v7155 = vunpack.c.l.b16 %v6024
        %v7156 = vunpack.c.l.b16 %v6025
        %v7157 = vpack.c.b16 %v7121, %v7120
        %v7158 = vpack.c.b16 %v7123, %v7122
        %v7159 = vpack.c.b16 %v7125, %v7124
        %v7160 = vpack.c.b16 %v7127, %v7126
        %v7161 = vpack.c.b16 %v7129, %v7128
        %v7162 = vpack.c.b16 %v7131, %v7130
        %v7163 = vpack.c.b16 %v7133, %v7132
        %v7164 = vpack.c.b16 %v7135, %v7134
        %v7165 = vpack.c.b16 %v7137, %v7136
        %v7166 = vpack.c.b16 %v7139, %v7138
        %v7167 = vpack.c.b16 %v7141, %v7140
        %v7168 = vpack.c.b16 %v7143, %v7142
        %v7169 = vpack.c.b16 %v7145, %v7144
        %v7170 = vpack.c.b16 %v7147, %v7146
        %v7171 = vpack.c.b16 %v7149, %v7148
        %v7172 = vpack.c.b16 %v7151, %v7150
        %v7173 = vpack.c.b16 %v7153, %v7152
        %v7174 = vpack.c.b16 %v7155, %v7154
        %v7175 = vpack.c.b16 %v7156, %v7156
        %v7195 = vsel %vm1585, %v7175, 0
        %7197 = vmatprep.subr.bf16.mxu0 0
        %7198 = vmatpush1.bf16.msra.mxu0 %v7164
        %7199 = vmatprep.subr.bf16.mxu0 0
        %7200 = vmatpush1.bf16.msra.mxu0 %v7163
        %7201 = vmatprep.subr.bf16.mxu0 0
        %7202 = vmatpush1.bf16.msra.mxu0 %v7162
        %7203 = vmatprep.subr.bf16.mxu0 0
        %7204 = vmatpush1.bf16.msra.mxu0 %v7161
        %7205 = vmatprep.subr.bf16.mxu0 0
        %7206 = vmatpush1.bf16.msra.mxu0 %v7160
        %7207 = vmatprep.subr.bf16.mxu0 0
        %7208 = vmatpush1.bf16.msra.mxu0 %v7159
        %7209 = vmatprep.subr.bf16.mxu0 0
        %7210 = vmatpush1.bf16.msra.mxu0 %v7158
        %7211 = vmatprep.subr.bf16.mxu0 0
        %7212 = vmatpush1.bf16.msra.mxu0 %v7157
        %7213 = vmatprep.subr.bf16.mxu0 0
        %7214 = vmatpush2.bf16.msra.mxu0 %v7172
        %7215 = vmatprep.subr.bf16.mxu0 0
        %7216 = vmatpush2.bf16.msra.mxu0 %v7171
        %7217 = vmatprep.subr.bf16.mxu0 0
        %7218 = vmatpush2.bf16.msra.mxu0 %v7170
        %7219 = vmatprep.subr.bf16.mxu0 0
        %7220 = vmatpush2.bf16.msra.mxu0 %v7169
        %7221 = vmatprep.subr.bf16.mxu0 0
        %7222 = vmatpush2.bf16.msra.mxu0 %v7168
        %7223 = vmatprep.subr.bf16.mxu0 0
        %7224 = vmatpush2.bf16.msra.mxu0 %v7167
        %7225 = vmatprep.subr.bf16.mxu0 0
        %7226 = vmatpush2.bf16.msra.mxu0 %v7166
        %7227 = vmatprep.subr.bf16.mxu0 0
        %7228 = vmatpush2.bf16.msra.mxu0 %v7165
        %7229 = vmatprep.mubr.bf16.mxu0 %v6106
        %7230 = vmatmul.mubr.bf16.gmra.mxu0 %v6105
        %v7231 = vpop.f32.mrf.mxu0
        %v7232 = vadd.f32 0.0, %v7231
        %v7233 = vpop.f32.mrf.mxu0
        %v7234 = vpop.f32.mrf.mxu0
        %v7235 = vpop.f32.mrf.mxu0
        %7236 = vdwg.mxu0
        %7237 = vmatprep.subr.bf16.mxu0 0
        %7238 = vmatpush1.bf16.msra.mxu0 0
        %7239 = vmatprep.subr.bf16.mxu0 0
        %7240 = vmatpush1.bf16.msra.mxu0 0
        %7241 = vmatprep.subr.bf16.mxu0 0
        %7242 = vmatpush1.bf16.msra.mxu0 0
        %7243 = vmatprep.subr.bf16.mxu0 0
        %7244 = vmatpush1.bf16.msra.mxu0 0
        %7245 = vmatprep.subr.bf16.mxu0 0
        %7246 = vmatpush1.bf16.msra.mxu0 0
        %7247 = vmatprep.subr.bf16.mxu0 0
        %7248 = vmatpush1.bf16.msra.mxu0 %v7195
        %7249 = vmatprep.subr.bf16.mxu0 0
        %7250 = vmatpush1.bf16.msra.mxu0 %v7174
        %7251 = vmatprep.subr.bf16.mxu0 0
        %7252 = vmatpush1.bf16.msra.mxu0 %v7173
        %7253 = vmatprep.subr.bf16.mxu0 0
        %7254 = vmatpush2.bf16.msra.mxu0 0
        %7255 = vmatprep.subr.bf16.mxu0 0
        %7256 = vmatpush2.bf16.msra.mxu0 0
        %7257 = vmatprep.subr.bf16.mxu0 0
        %7258 = vmatpush2.bf16.msra.mxu0 0
        %7259 = vmatprep.subr.bf16.mxu0 0
        %7260 = vmatpush2.bf16.msra.mxu0 0
        %7261 = vmatprep.subr.bf16.mxu0 0
        %7262 = vmatpush2.bf16.msra.mxu0 0
        %7263 = vmatprep.subr.bf16.mxu0 0
        %7264 = vmatpush2.bf16.msra.mxu0 0
        %7265 = vmatprep.subr.bf16.mxu0 0
        %7266 = vmatpush2.bf16.msra.mxu0 0
        %7267 = vmatprep.subr.bf16.mxu0 0
        %7268 = vmatpush2.bf16.msra.mxu0 0
        %7269 = vmatprep.mubr.bf16.mxu0 0
        %7270 = vmatmul.mubr.bf16.gmra.mxu0 %v6222
        %v7271 = vpop.f32.mrf.mxu0
        %v7272 = vadd.f32 %v7232, %v7271
        %v7273 = vpop.f32.mrf.mxu0
        %v7274 = vpop.f32.mrf.mxu0
        %v7275 = vpop.f32.mrf.mxu0
        %7276 = vdwg.mxu0
        %v7314 = vunpack.c.l.b16 %v6026
        %v7315 = vunpack.c.l.b16 %v6027
        %v7316 = vunpack.c.l.b16 %v6028
        %v7317 = vunpack.c.l.b16 %v6029
        %v7318 = vunpack.c.l.b16 %v6030
        %v7319 = vunpack.c.l.b16 %v6031
        %v7320 = vunpack.c.l.b16 %v6032
        %v7321 = vunpack.c.l.b16 %v6033
        %v7322 = vunpack.c.l.b16 %v6034
        %v7323 = vunpack.c.l.b16 %v6035
        %v7324 = vunpack.c.l.b16 %v6036
        %v7325 = vunpack.c.l.b16 %v6037
        %v7326 = vunpack.c.l.b16 %v6038
        %v7327 = vunpack.c.l.b16 %v6039
        %v7328 = vunpack.c.l.b16 %v6040
        %v7329 = vunpack.c.l.b16 %v6041
        %v7330 = vunpack.c.l.b16 %v6042
        %v7331 = vunpack.c.l.b16 %v6043
        %v7332 = vunpack.c.l.b16 %v6044
        %v7333 = vunpack.c.l.b16 %v6045
        %v7334 = vunpack.c.l.b16 %v6046
        %v7335 = vunpack.c.l.b16 %v6047
        %v7336 = vunpack.c.l.b16 %v6048
        %v7337 = vunpack.c.l.b16 %v6049
        %v7338 = vunpack.c.l.b16 %v6050
        %v7339 = vunpack.c.l.b16 %v6051
        %v7340 = vunpack.c.l.b16 %v6052
        %v7341 = vunpack.c.l.b16 %v6053
        %v7342 = vunpack.c.l.b16 %v6054
        %v7343 = vunpack.c.l.b16 %v6055
        %v7344 = vunpack.c.l.b16 %v6056
        %v7345 = vunpack.c.l.b16 %v6057
        %v7346 = vunpack.c.l.b16 %v6058
        %v7347 = vunpack.c.l.b16 %v6059
        %v7348 = vunpack.c.l.b16 %v6060
        %v7349 = vunpack.c.l.b16 %v6061
        %v7350 = vunpack.c.l.b16 %v6062
        %v7351 = vpack.c.b16 %v7315, %v7314
        %v7352 = vpack.c.b16 %v7317, %v7316
        %v7353 = vpack.c.b16 %v7319, %v7318
        %v7354 = vpack.c.b16 %v7321, %v7320
        %v7355 = vpack.c.b16 %v7323, %v7322
        %v7356 = vpack.c.b16 %v7325, %v7324
        %v7357 = vpack.c.b16 %v7327, %v7326
        %v7358 = vpack.c.b16 %v7329, %v7328
        %v7359 = vpack.c.b16 %v7331, %v7330
        %v7360 = vpack.c.b16 %v7333, %v7332
        %v7361 = vpack.c.b16 %v7335, %v7334
        %v7362 = vpack.c.b16 %v7337, %v7336
        %v7363 = vpack.c.b16 %v7339, %v7338
        %v7364 = vpack.c.b16 %v7341, %v7340
        %v7365 = vpack.c.b16 %v7343, %v7342
        %v7366 = vpack.c.b16 %v7345, %v7344
        %v7367 = vpack.c.b16 %v7347, %v7346
        %v7368 = vpack.c.b16 %v7349, %v7348
        %v7369 = vpack.c.b16 %v7350, %v7350
        %v7389 = vsel %vm1585, %v7369, 0
        %7391 = vmatprep.subr.bf16.mxu0 0
        %7392 = vmatpush1.bf16.msra.mxu0 %v7358
        %7393 = vmatprep.subr.bf16.mxu0 0
        %7394 = vmatpush1.bf16.msra.mxu0 %v7357
        %7395 = vmatprep.subr.bf16.mxu0 0
        %7396 = vmatpush1.bf16.msra.mxu0 %v7356
        %7397 = vmatprep.subr.bf16.mxu0 0
        %7398 = vmatpush1.bf16.msra.mxu0 %v7355
        %7399 = vmatprep.subr.bf16.mxu0 0
        %7400 = vmatpush1.bf16.msra.mxu0 %v7354
        %7401 = vmatprep.subr.bf16.mxu0 0
        %7402 = vmatpush1.bf16.msra.mxu0 %v7353
        %7403 = vmatprep.subr.bf16.mxu0 0
        %7404 = vmatpush1.bf16.msra.mxu0 %v7352
        %7405 = vmatprep.subr.bf16.mxu0 0
        %7406 = vmatpush1.bf16.msra.mxu0 %v7351
        %7407 = vmatprep.subr.bf16.mxu0 0
        %7408 = vmatpush2.bf16.msra.mxu0 %v7366
        %7409 = vmatprep.subr.bf16.mxu0 0
        %7410 = vmatpush2.bf16.msra.mxu0 %v7365
        %7411 = vmatprep.subr.bf16.mxu0 0
        %7412 = vmatpush2.bf16.msra.mxu0 %v7364
        %7413 = vmatprep.subr.bf16.mxu0 0
        %7414 = vmatpush2.bf16.msra.mxu0 %v7363
        %7415 = vmatprep.subr.bf16.mxu0 0
        %7416 = vmatpush2.bf16.msra.mxu0 %v7362
        %7417 = vmatprep.subr.bf16.mxu0 0
        %7418 = vmatpush2.bf16.msra.mxu0 %v7361
        %7419 = vmatprep.subr.bf16.mxu0 0
        %7420 = vmatpush2.bf16.msra.mxu0 %v7360
        %7421 = vmatprep.subr.bf16.mxu0 0
        %7422 = vmatpush2.bf16.msra.mxu0 %v7359
        %7423 = vmatprep.mubr.bf16.mxu0 %v6106
        %7424 = vmatmul.mubr.bf16.gmra.mxu0 %v6105
        %v7425 = vpop.f32.mrf.mxu0
        %v7426 = vadd.f32 0.0, %v7425
        %v7427 = vpop.f32.mrf.mxu0
        %v7428 = vpop.f32.mrf.mxu0
        %v7429 = vpop.f32.mrf.mxu0
        %7430 = vdwg.mxu0
        %7431 = vmatprep.subr.bf16.mxu0 0
        %7432 = vmatpush1.bf16.msra.mxu0 0
        %7433 = vmatprep.subr.bf16.mxu0 0
        %7434 = vmatpush1.bf16.msra.mxu0 0
        %7435 = vmatprep.subr.bf16.mxu0 0
        %7436 = vmatpush1.bf16.msra.mxu0 0
        %7437 = vmatprep.subr.bf16.mxu0 0
        %7438 = vmatpush1.bf16.msra.mxu0 0
        %7439 = vmatprep.subr.bf16.mxu0 0
        %7440 = vmatpush1.bf16.msra.mxu0 0
        %7441 = vmatprep.subr.bf16.mxu0 0
        %7442 = vmatpush1.bf16.msra.mxu0 %v7389
        %7443 = vmatprep.subr.bf16.mxu0 0
        %7444 = vmatpush1.bf16.msra.mxu0 %v7368
        %7445 = vmatprep.subr.bf16.mxu0 0
        %7446 = vmatpush1.bf16.msra.mxu0 %v7367
        %7447 = vmatprep.subr.bf16.mxu0 0
        %7448 = vmatpush2.bf16.msra.mxu0 0
        %7449 = vmatprep.subr.bf16.mxu0 0
        %7450 = vmatpush2.bf16.msra.mxu0 0
        %7451 = vmatprep.subr.bf16.mxu0 0
        %7452 = vmatpush2.bf16.msra.mxu0 0
        %7453 = vmatprep.subr.bf16.mxu0 0
        %7454 = vmatpush2.bf16.msra.mxu0 0
        %7455 = vmatprep.subr.bf16.mxu0 0
        %7456 = vmatpush2.bf16.msra.mxu0 0
        %7457 = vmatprep.subr.bf16.mxu0 0
        %7458 = vmatpush2.bf16.msra.mxu0 0
        %7459 = vmatprep.subr.bf16.mxu0 0
        %7460 = vmatpush2.bf16.msra.mxu0 0
        %7461 = vmatprep.subr.bf16.mxu0 0
        %7462 = vmatpush2.bf16.msra.mxu0 0
        %7463 = vmatprep.mubr.bf16.mxu0 0
        %7464 = vmatmul.mubr.bf16.gmra.mxu0 %v6222
        %v7465 = vpop.f32.mrf.mxu0
        %v7466 = vadd.f32 %v7426, %v7465
        %v7467 = vpop.f32.mrf.mxu0
        %v7468 = vpop.f32.mrf.mxu0
        %v7469 = vpop.f32.mrf.mxu0
        %7470 = vdwg.mxu0
        %v7508 = vunpack.c.l.b16 %v6063
        %v7509 = vunpack.c.l.b16 %v6064
        %v7510 = vunpack.c.l.b16 %v6065
        %v7511 = vunpack.c.l.b16 %v6066
        %v7512 = vunpack.c.l.b16 %v6067
        %v7513 = vunpack.c.l.b16 %v6068
        %v7514 = vunpack.c.l.b16 %v6069
        %v7515 = vunpack.c.l.b16 %v6070
        %v7516 = vunpack.c.l.b16 %v6071
        %v7517 = vunpack.c.l.b16 %v6072
        %v7518 = vunpack.c.l.b16 %v6073
        %v7519 = vunpack.c.l.b16 %v6074
        %v7520 = vunpack.c.l.b16 %v6075
        %v7521 = vunpack.c.l.b16 %v6076
        %v7522 = vunpack.c.l.b16 %v6077
        %v7523 = vunpack.c.l.b16 %v6078
        %v7524 = vunpack.c.l.b16 %v6079
        %v7525 = vunpack.c.l.b16 %v6080
        %v7526 = vunpack.c.l.b16 %v6081
        %v7527 = vunpack.c.l.b16 %v6082
        %v7528 = vunpack.c.l.b16 %v6083
        %v7529 = vunpack.c.l.b16 %v6084
        %v7530 = vunpack.c.l.b16 %v6085
        %v7531 = vunpack.c.l.b16 %v6086
        %v7532 = vunpack.c.l.b16 %v6087
        %v7533 = vunpack.c.l.b16 %v6088
        %v7534 = vunpack.c.l.b16 %v6089
        %v7535 = vunpack.c.l.b16 %v6090
        %v7536 = vunpack.c.l.b16 %v6091
        %v7537 = vunpack.c.l.b16 %v6092
        %v7538 = vunpack.c.l.b16 %v6093
        %v7539 = vunpack.c.l.b16 %v6094
        %v7540 = vunpack.c.l.b16 %v6095
        %v7541 = vunpack.c.l.b16 %v6096
        %v7542 = vunpack.c.l.b16 %v6097
        %v7543 = vunpack.c.l.b16 %v6098
        %v7544 = vunpack.c.l.b16 %v6099
        %v7545 = vpack.c.b16 %v7509, %v7508
        %v7546 = vpack.c.b16 %v7511, %v7510
        %v7547 = vpack.c.b16 %v7513, %v7512
        %v7548 = vpack.c.b16 %v7515, %v7514
        %v7549 = vpack.c.b16 %v7517, %v7516
        %v7550 = vpack.c.b16 %v7519, %v7518
        %v7551 = vpack.c.b16 %v7521, %v7520
        %v7552 = vpack.c.b16 %v7523, %v7522
        %v7553 = vpack.c.b16 %v7525, %v7524
        %v7554 = vpack.c.b16 %v7527, %v7526
        %v7555 = vpack.c.b16 %v7529, %v7528
        %v7556 = vpack.c.b16 %v7531, %v7530
        %v7557 = vpack.c.b16 %v7533, %v7532
        %v7558 = vpack.c.b16 %v7535, %v7534
        %v7559 = vpack.c.b16 %v7537, %v7536
        %v7560 = vpack.c.b16 %v7539, %v7538
        %v7561 = vpack.c.b16 %v7541, %v7540
        %v7562 = vpack.c.b16 %v7543, %v7542
        %v7563 = vpack.c.b16 %v7544, %v7544
        %v7583 = vsel %vm1585, %v7563, 0
        %7585 = vmatprep.subr.bf16.mxu0 0
        %7586 = vmatpush1.bf16.msra.mxu0 %v7552
        %7587 = vmatprep.subr.bf16.mxu0 0
        %7588 = vmatpush1.bf16.msra.mxu0 %v7551
        %7589 = vmatprep.subr.bf16.mxu0 0
        %7590 = vmatpush1.bf16.msra.mxu0 %v7550
        %7591 = vmatprep.subr.bf16.mxu0 0
        %7592 = vmatpush1.bf16.msra.mxu0 %v7549
        %7593 = vmatprep.subr.bf16.mxu0 0
        %7594 = vmatpush1.bf16.msra.mxu0 %v7548
        %7595 = vmatprep.subr.bf16.mxu0 0
        %7596 = vmatpush1.bf16.msra.mxu0 %v7547
        %7597 = vmatprep.subr.bf16.mxu0 0
        %7598 = vmatpush1.bf16.msra.mxu0 %v7546
        %7599 = vmatprep.subr.bf16.mxu0 0
        %7600 = vmatpush1.bf16.msra.mxu0 %v7545
        %7601 = vmatprep.subr.bf16.mxu0 0
        %7602 = vmatpush2.bf16.msra.mxu0 %v7560
        %7603 = vmatprep.subr.bf16.mxu0 0
        %7604 = vmatpush2.bf16.msra.mxu0 %v7559
        %7605 = vmatprep.subr.bf16.mxu0 0
        %7606 = vmatpush2.bf16.msra.mxu0 %v7558
        %7607 = vmatprep.subr.bf16.mxu0 0
        %7608 = vmatpush2.bf16.msra.mxu0 %v7557
        %7609 = vmatprep.subr.bf16.mxu0 0
        %7610 = vmatpush2.bf16.msra.mxu0 %v7556
        %7611 = vmatprep.subr.bf16.mxu0 0
        %7612 = vmatpush2.bf16.msra.mxu0 %v7555
        %7613 = vmatprep.subr.bf16.mxu0 0
        %7614 = vmatpush2.bf16.msra.mxu0 %v7554
        %7615 = vmatprep.subr.bf16.mxu0 0
        %7616 = vmatpush2.bf16.msra.mxu0 %v7553
        %7617 = vmatprep.mubr.bf16.mxu0 %v6106
        %7618 = vmatmul.mubr.bf16.gmra.mxu0 %v6105
        %v7619 = vpop.f32.mrf.mxu0
        %v7620 = vadd.f32 0.0, %v7619
        %v7621 = vpop.f32.mrf.mxu0
        %v7622 = vpop.f32.mrf.mxu0
        %v7623 = vpop.f32.mrf.mxu0
        %7624 = vdwg.mxu0
        %7625 = vmatprep.subr.bf16.mxu0 0
        %7626 = vmatpush1.bf16.msra.mxu0 0
        %7627 = vmatprep.subr.bf16.mxu0 0
        %7628 = vmatpush1.bf16.msra.mxu0 0
        %7629 = vmatprep.subr.bf16.mxu0 0
        %7630 = vmatpush1.bf16.msra.mxu0 0
        %7631 = vmatprep.subr.bf16.mxu0 0
        %7632 = vmatpush1.bf16.msra.mxu0 0
        %7633 = vmatprep.subr.bf16.mxu0 0
        %7634 = vmatpush1.bf16.msra.mxu0 0
        %7635 = vmatprep.subr.bf16.mxu0 0
        %7636 = vmatpush1.bf16.msra.mxu0 %v7583
        %7637 = vmatprep.subr.bf16.mxu0 0
        %7638 = vmatpush1.bf16.msra.mxu0 %v7562
        %7639 = vmatprep.subr.bf16.mxu0 0
        %7640 = vmatpush1.bf16.msra.mxu0 %v7561
        %7641 = vmatprep.subr.bf16.mxu0 0
        %7642 = vmatpush2.bf16.msra.mxu0 0
        %7643 = vmatprep.subr.bf16.mxu0 0
        %7644 = vmatpush2.bf16.msra.mxu0 0
        %7645 = vmatprep.subr.bf16.mxu0 0
        %7646 = vmatpush2.bf16.msra.mxu0 0
        %7647 = vmatprep.subr.bf16.mxu0 0
        %7648 = vmatpush2.bf16.msra.mxu0 0
        %7649 = vmatprep.subr.bf16.mxu0 0
        %7650 = vmatpush2.bf16.msra.mxu0 0
        %7651 = vmatprep.subr.bf16.mxu0 0
        %7652 = vmatpush2.bf16.msra.mxu0 0
        %7653 = vmatprep.subr.bf16.mxu0 0
        %7654 = vmatpush2.bf16.msra.mxu0 0
        %7655 = vmatprep.subr.bf16.mxu0 0
        %7656 = vmatpush2.bf16.msra.mxu0 0
        %7657 = vmatprep.mubr.bf16.mxu0 0
        %7658 = vmatmul.mubr.bf16.gmra.mxu0 %v6222
        %v7659 = vpop.f32.mrf.mxu0
        %v7660 = vadd.f32 %v7620, %v7659
        %v7661 = vpop.f32.mrf.mxu0
        %v7662 = vpop.f32.mrf.mxu0
        %v7663 = vpop.f32.mrf.mxu0
        %7664 = vdwg.mxu0
        %v7665 = vmax.f32 %v6302, 0.0
        %v7666 = vmax.f32 %v6496, 0.0
        %v7667 = vmax.f32 %v6690, 0.0
        %v7668 = vmax.f32 %v6884, 0.0
        %v7669 = vmax.f32 %v7078, 0.0
        %v7670 = vmax.f32 %v7272, 0.0
        %v7671 = vmax.f32 %v7466, 0.0
        %v7672 = vmax.f32 %v7660, 0.0
        %7673 = vst [vmem:[%s334 + $0x18] sm:$0xff] %v7665
        %7674 = vst [vmem:[%s334 + $0x40] sm:$0xff] %v7666
        %7675 = vst [vmem:[%s334 + $0x68] sm:$0xff] %v7667
        %7676 = vst [vmem:[%s334 + $0x90] sm:$0xff] %v7668
        %7677 = vst [vmem:[%s334 + $0xb8] sm:$0xff] %v7669
        %7678 = vst [vmem:[%s334 + $0xe0] sm:$0xff] %v7670
        %7679 = vst [vmem:[%s334 + $0x108] sm:$0xff] %v7671
        %7680 = vst [vmem:[%s334 + $0x130] sm:$0xff] %v7672
        %v7681 = vld [vmem:[%s334 + $0x18] sm:$0xff]
        %v7682 = vld [vmem:[%s334 + $0x40] sm:$0xff]
        %v7683 = vld [vmem:[%s334 + $0x68] sm:$0xff]
        %v7684 = vld [vmem:[%s334 + $0x90] sm:$0xff]
        %v7685 = vld [vmem:[%s334 + $0xb8] sm:$0xff]
        %v7686 = vld [vmem:[%s334 + $0xe0] sm:$0xff]
        %v7687 = vld [vmem:[%s334 + $0x108] sm:$0xff]
        %v7688 = vld [vmem:[%s334 + $0x130] sm:$0xff]
        %7689 = vadd.xlane.f32.xlu0 %v7681
        %v7690 = vpop.xlane.xlu0 %7689
        %7691 = vadd.xlane.f32.xlu0 %v7682
        %v7692 = vpop.xlane.xlu0 %7691
        %7693 = vadd.xlane.f32.xlu0 %v7683
        %v7694 = vpop.xlane.xlu0 %7693
        %7695 = vadd.xlane.f32.xlu0 %v7684
        %v7696 = vpop.xlane.xlu0 %7695
        %7697 = vadd.xlane.f32.xlu0 %v7685
        %v7698 = vpop.xlane.xlu0 %7697
        %7699 = vadd.xlane.f32.xlu0 %v7686
        %v7700 = vpop.xlane.xlu0 %7699
        %7701 = vadd.xlane.f32.xlu0 %v7687
        %v7702 = vpop.xlane.xlu0 %7701
        %7703 = vadd.xlane.f32.xlu0 %v7688
        %v7704 = vpop.xlane.xlu0 %7703
        %v7705 = vmul.f32 %v7690, 0.009090909
        %v7706 = vmul.f32 %v7692, 0.009090909
        %v7707 = vmul.f32 %v7694, 0.009090909
        %v7708 = vmul.f32 %v7696, 0.009090909
        %v7709 = vmul.f32 %v7698, 0.009090909
        %v7710 = vmul.f32 %v7700, 0.009090909
        %v7711 = vmul.f32 %v7702, 0.009090909
        %v7712 = vmul.f32 %v7704, 0.009090909
        %v7713 = vsub.f32 %v7681, %v7705
        %v7714 = vsub.f32 %v7682, %v7706
        %v7715 = vsub.f32 %v7683, %v7707
        %v7716 = vsub.f32 %v7684, %v7708
        %v7717 = vsub.f32 %v7685, %v7709
        %v7718 = vsub.f32 %v7686, %v7710
        %v7719 = vsub.f32 %v7687, %v7711
        %v7720 = vsub.f32 %v7688, %v7712
        %v7721 = vmul.f32 %v7713, %v729
        %v7722 = vmul.f32 %v7714, %v729
        %v7723 = vmul.f32 %v7715, %v729
        %v7724 = vmul.f32 %v7716, %v729
        %v7725 = vmul.f32 %v7717, %v729
        %v7726 = vmul.f32 %v7718, %v729
        %v7727 = vmul.f32 %v7719, %v729
        %v7728 = vmul.f32 %v7720, %v729
        %v7729 = vmul.f32 %v7721, %v7721
        %v7730 = vmul.f32 %v7722, %v7722
        %v7731 = vmul.f32 %v7723, %v7723
        %v7732 = vmul.f32 %v7724, %v7724
        %v7733 = vmul.f32 %v7725, %v7725
        %v7734 = vmul.f32 %v7726, %v7726
        %v7735 = vmul.f32 %v7727, %v7727
        %v7736 = vmul.f32 %v7728, %v7728
        %7737 = vadd.xlane.f32.xlu0 %v7729
        %v7738 = vpop.xlane.xlu0 %7737
        %7739 = vadd.xlane.f32.xlu0 %v7730
        %v7740 = vpop.xlane.xlu0 %7739
        %7741 = vadd.xlane.f32.xlu0 %v7731
        %v7742 = vpop.xlane.xlu0 %7741
        %7743 = vadd.xlane.f32.xlu0 %v7732
        %v7744 = vpop.xlane.xlu0 %7743
        %7745 = vadd.xlane.f32.xlu0 %v7733
        %v7746 = vpop.xlane.xlu0 %7745
        %7747 = vadd.xlane.f32.xlu0 %v7734
        %v7748 = vpop.xlane.xlu0 %7747
        %7749 = vadd.xlane.f32.xlu0 %v7735
        %v7750 = vpop.xlane.xlu0 %7749
        %7751 = vadd.xlane.f32.xlu0 %v7736
        %v7752 = vpop.xlane.xlu0 %7751
        %v7753 = vmul.f32 %v7738, 0.009090909
        %v7754 = vmul.f32 %v7740, 0.009090909
        %v7755 = vmul.f32 %v7742, 0.009090909
        %v7756 = vmul.f32 %v7744, 0.009090909
        %v7757 = vmul.f32 %v7746, 0.009090909
        %v7758 = vmul.f32 %v7748, 0.009090909
        %v7759 = vmul.f32 %v7750, 0.009090909
        %v7760 = vmul.f32 %v7752, 0.009090909
        %v7761 = vadd.f32 %v7753, 1e-05
        %v7762 = vadd.f32 %v7754, 1e-05
        %v7763 = vadd.f32 %v7755, 1e-05
        %v7764 = vadd.f32 %v7756, 1e-05
        %v7765 = vadd.f32 %v7757, 1e-05
        %v7766 = vadd.f32 %v7758, 1e-05
        %v7767 = vadd.f32 %v7759, 1e-05
        %v7768 = vadd.f32 %v7760, 1e-05
        %v7769 = vrsqrt.pop %v7761
        %v7770 = vrsqrt.pop %v7762
        %v7771 = vrsqrt.pop %v7763
        %v7772 = vrsqrt.pop %v7764
        %v7773 = vrsqrt.pop %v7765
        %v7774 = vrsqrt.pop %v7766
        %v7775 = vrsqrt.pop %v7767
        %v7776 = vrsqrt.pop %v7768
        %v7777 = vmul.f32 %v7721, %v7769
        %v7778 = vmul.f32 %v7722, %v7770
        %v7779 = vmul.f32 %v7723, %v7771
        %v7780 = vmul.f32 %v7724, %v7772
        %v7781 = vmul.f32 %v7725, %v7773
        %v7782 = vmul.f32 %v7726, %v7774
        %v7783 = vmul.f32 %v7727, %v7775
        %v7784 = vmul.f32 %v7728, %v7776
        %7785 = vrot.lane.b32.xlu0 %v7777, 12
        %v7786 = vpop.permute.xlu0 %7785
        %7787 = vrot.lane.b32.xlu0 %v7778, 12
        %v7788 = vpop.permute.xlu0 %7787
        %7789 = vrot.lane.b32.xlu0 %v7779, 12
        %v7790 = vpop.permute.xlu0 %7789
        %7791 = vrot.lane.b32.xlu0 %v7780, 12
        %v7792 = vpop.permute.xlu0 %7791
        %7793 = vrot.lane.b32.xlu0 %v7781, 12
        %v7794 = vpop.permute.xlu0 %7793
        %7795 = vrot.lane.b32.xlu0 %v7782, 12
        %v7796 = vpop.permute.xlu0 %7795
        %7797 = vrot.lane.b32.xlu0 %v7783, 12
        %v7798 = vpop.permute.xlu0 %7797
        %7799 = vrot.lane.b32.xlu0 %v7784, 12
        %v7800 = vpop.permute.xlu0 %7799
        %v7801 = vmul.f32 %v7786, %v813
        %v7802 = vmul.f32 %v7788, %v813
        %v7803 = vmul.f32 %v7790, %v813
        %v7804 = vmul.f32 %v7792, %v813
        %v7805 = vmul.f32 %v7794, %v813
        %v7806 = vmul.f32 %v7796, %v813
        %v7807 = vmul.f32 %v7798, %v813
        %v7808 = vmul.f32 %v7800, %v813
        %v7809 = vpack.c.bf16 %v7801, %v7801
        %v7810 = vpack.c.bf16 %v7802, %v7802
        %v7811 = vpack.c.bf16 %v7803, %v7803
        %v7812 = vpack.c.bf16 %v7804, %v7804
        %v7813 = vpack.c.bf16 %v7805, %v7805
        %v7814 = vpack.c.bf16 %v7806, %v7806
        %v7815 = vpack.c.bf16 %v7807, %v7807
        %v7816 = vpack.c.bf16 %v7808, %v7808
        %7817 = vst [vmem:[#allocation2 + $0xc] sm:$0xf] %v7809
        %7818 = vst [vmem:[#allocation2 + $0xa0] sm:$0xf] %v7810
        %7819 = vst [vmem:[#allocation2 + $0x134] sm:$0xf] %v7811
        %7820 = vst [vmem:[#allocation2 + $0x1c8] sm:$0xf] %v7812
        %7821 = vst [vmem:[#allocation2 + $0x25c] sm:$0xf] %v7813
        %7822 = vst [vmem:[#allocation2 + $0x2f0] sm:$0xf] %v7814
        %7823 = vst [vmem:[#allocation2 + $0x384] sm:$0xf] %v7815
        %7824 = vst [vmem:[#allocation2 + $0x418] sm:$0xf] %v7816
        %7825 = vrot.lane.b32.xlu0 %v7777, 11
        %v7826 = vpop.permute.xlu0 %7825
        %7827 = vrot.lane.b32.xlu0 %v7778, 11
        %v7828 = vpop.permute.xlu0 %7827
        %7829 = vrot.lane.b32.xlu0 %v7779, 11
        %v7830 = vpop.permute.xlu0 %7829
        %7831 = vrot.lane.b32.xlu0 %v7780, 11
        %v7832 = vpop.permute.xlu0 %7831
        %7833 = vrot.lane.b32.xlu0 %v7781, 11
        %v7834 = vpop.permute.xlu0 %7833
        %7835 = vrot.lane.b32.xlu0 %v7782, 11
        %v7836 = vpop.permute.xlu0 %7835
        %7837 = vrot.lane.b32.xlu0 %v7783, 11
        %v7838 = vpop.permute.xlu0 %7837
        %7839 = vrot.lane.b32.xlu0 %v7784, 11
        %v7840 = vpop.permute.xlu0 %7839
        %v7841 = vmul.f32 %v7826, %v857
        %v7842 = vmul.f32 %v7828, %v857
        %v7843 = vmul.f32 %v7830, %v857
        %v7844 = vmul.f32 %v7832, %v857
        %v7845 = vmul.f32 %v7834, %v857
        %v7846 = vmul.f32 %v7836, %v857
        %v7847 = vmul.f32 %v7838, %v857
        %v7848 = vmul.f32 %v7840, %v857
        %v7849 = vpack.c.bf16 %v7841, %v7841
        %v7850 = vpack.c.bf16 %v7842, %v7842
        %v7851 = vpack.c.bf16 %v7843, %v7843
        %v7852 = vpack.c.bf16 %v7844, %v7844
        %v7853 = vpack.c.bf16 %v7845, %v7845
        %v7854 = vpack.c.bf16 %v7846, %v7846
        %v7855 = vpack.c.bf16 %v7847, %v7847
        %v7856 = vpack.c.bf16 %v7848, %v7848
        %7857 = vst [vmem:[#allocation2 + $0x1c] sm:$0xf] %v7849
        %7858 = vst [vmem:[#allocation2 + $0xb0] sm:$0xf] %v7850
        %7859 = vst [vmem:[#allocation2 + $0x144] sm:$0xf] %v7851
        %7860 = vst [vmem:[#allocation2 + $0x1d8] sm:$0xf] %v7852
        %7861 = vst [vmem:[#allocation2 + $0x26c] sm:$0xf] %v7853
        %7862 = vst [vmem:[#allocation2 + $0x300] sm:$0xf] %v7854
        %7863 = vst [vmem:[#allocation2 + $0x394] sm:$0xf] %v7855
        %7864 = vst [vmem:[#allocation2 + $0x428] sm:$0xf] %v7856
        %7865 = vrot.lane.b32.xlu0 %v7777, 10
        %v7866 = vpop.permute.xlu0 %7865
        %7867 = vrot.lane.b32.xlu0 %v7778, 10
        %v7868 = vpop.permute.xlu0 %7867
        %7869 = vrot.lane.b32.xlu0 %v7779, 10
        %v7870 = vpop.permute.xlu0 %7869
        %7871 = vrot.lane.b32.xlu0 %v7780, 10
        %v7872 = vpop.permute.xlu0 %7871
        %7873 = vrot.lane.b32.xlu0 %v7781, 10
        %v7874 = vpop.permute.xlu0 %7873
        %7875 = vrot.lane.b32.xlu0 %v7782, 10
        %v7876 = vpop.permute.xlu0 %7875
        %7877 = vrot.lane.b32.xlu0 %v7783, 10
        %v7878 = vpop.permute.xlu0 %7877
        %7879 = vrot.lane.b32.xlu0 %v7784, 10
        %v7880 = vpop.permute.xlu0 %7879
        %v7881 = vmul.f32 %v7866, %v901
        %v7882 = vmul.f32 %v7868, %v901
        %v7883 = vmul.f32 %v7870, %v901
        %v7884 = vmul.f32 %v7872, %v901
        %v7885 = vmul.f32 %v7874, %v901
        %v7886 = vmul.f32 %v7876, %v901
        %v7887 = vmul.f32 %v7878, %v901
        %v7888 = vmul.f32 %v7880, %v901
        %v7889 = vpack.c.bf16 %v7881, %v7881
        %v7890 = vpack.c.bf16 %v7882, %v7882
        %v7891 = vpack.c.bf16 %v7883, %v7883
        %v7892 = vpack.c.bf16 %v7884, %v7884
        %v7893 = vpack.c.bf16 %v7885, %v7885
        %v7894 = vpack.c.bf16 %v7886, %v7886
        %v7895 = vpack.c.bf16 %v7887, %v7887
        %v7896 = vpack.c.bf16 %v7888, %v7888
        %7897 = vst [vmem:[#allocation2 + $0x2c] sm:$0xf] %v7889
        %7898 = vst [vmem:[#allocation2 + $0xc0] sm:$0xf] %v7890
        %7899 = vst [vmem:[#allocation2 + $0x154] sm:$0xf] %v7891
        %7900 = vst [vmem:[#allocation2 + $0x1e8] sm:$0xf] %v7892
        %7901 = vst [vmem:[#allocation2 + $0x27c] sm:$0xf] %v7893
        %7902 = vst [vmem:[#allocation2 + $0x310] sm:$0xf] %v7894
        %7903 = vst [vmem:[#allocation2 + $0x3a4] sm:$0xf] %v7895
        %7904 = vst [vmem:[#allocation2 + $0x438] sm:$0xf] %v7896
        %7905 = vrot.lane.b32.xlu0 %v7777, 1
        %v7906 = vpop.permute.xlu0 %7905
        %7907 = vrot.lane.b32.xlu0 %v7778, 1
        %v7908 = vpop.permute.xlu0 %7907
        %7909 = vrot.lane.b32.xlu0 %v7779, 1
        %v7910 = vpop.permute.xlu0 %7909
        %7911 = vrot.lane.b32.xlu0 %v7780, 1
        %v7912 = vpop.permute.xlu0 %7911
        %7913 = vrot.lane.b32.xlu0 %v7781, 1
        %v7914 = vpop.permute.xlu0 %7913
        %7915 = vrot.lane.b32.xlu0 %v7782, 1
        %v7916 = vpop.permute.xlu0 %7915
        %7917 = vrot.lane.b32.xlu0 %v7783, 1
        %v7918 = vpop.permute.xlu0 %7917
        %7919 = vrot.lane.b32.xlu0 %v7784, 1
        %v7920 = vpop.permute.xlu0 %7919
        %v7921 = vmul.f32 %v7906, %v945
        %v7922 = vmul.f32 %v7908, %v945
        %v7923 = vmul.f32 %v7910, %v945
        %v7924 = vmul.f32 %v7912, %v945
        %v7925 = vmul.f32 %v7914, %v945
        %v7926 = vmul.f32 %v7916, %v945
        %v7927 = vmul.f32 %v7918, %v945
        %v7928 = vmul.f32 %v7920, %v945
        %v7929 = vpack.c.bf16 %v7921, %v7921
        %v7930 = vpack.c.bf16 %v7922, %v7922
        %v7931 = vpack.c.bf16 %v7923, %v7923
        %v7932 = vpack.c.bf16 %v7924, %v7924
        %v7933 = vpack.c.bf16 %v7925, %v7925
        %v7934 = vpack.c.bf16 %v7926, %v7926
        %v7935 = vpack.c.bf16 %v7927, %v7927
        %v7936 = vpack.c.bf16 %v7928, %v7928
        %7937 = vst [vmem:[#allocation2 + $0x3c] sm:$0xf] %v7929
        %7938 = vst [vmem:[#allocation2 + $0xd0] sm:$0xf] %v7930
        %7939 = vst [vmem:[#allocation2 + $0x164] sm:$0xf] %v7931
        %7940 = vst [vmem:[#allocation2 + $0x1f8] sm:$0xf] %v7932
        %7941 = vst [vmem:[#allocation2 + $0x28c] sm:$0xf] %v7933
        %7942 = vst [vmem:[#allocation2 + $0x320] sm:$0xf] %v7934
        %7943 = vst [vmem:[#allocation2 + $0x3b4] sm:$0xf] %v7935
        %7944 = vst [vmem:[#allocation2 + $0x448] sm:$0xf] %v7936
        %v7945 = vpack.c.bf16 %v7777, %v7777
        %v7946 = vpack.c.bf16 %v7778, %v7778
        %v7947 = vpack.c.bf16 %v7779, %v7779
        %v7948 = vpack.c.bf16 %v7780, %v7780
        %v7949 = vpack.c.bf16 %v7781, %v7781
        %v7950 = vpack.c.bf16 %v7782, %v7782
        %v7951 = vpack.c.bf16 %v7783, %v7783
        %v7952 = vpack.c.bf16 %v7784, %v7784
        %7953 = vst [vmem:[#allocation2 + $0x4c] sm:$0xf] %v7945
        %7954 = vst [vmem:[#allocation2 + $0xe0] sm:$0xf] %v7946
        %7955 = vst [vmem:[#allocation2 + $0x174] sm:$0xf] %v7947
        %7956 = vst [vmem:[#allocation2 + $0x208] sm:$0xf] %v7948
        %7957 = vst [vmem:[#allocation2 + $0x29c] sm:$0xf] %v7949
        %7958 = vst [vmem:[#allocation2 + $0x330] sm:$0xf] %v7950
        %7959 = vst [vmem:[#allocation2 + $0x3c4] sm:$0xf] %v7951
        %7960 = vst [vmem:[#allocation2 + $0x458] sm:$0xf] %v7952
        %7961 = vrot.lane.b32.xlu0 %v7777, 127
        %v7962 = vpop.permute.xlu0 %7961
        %7963 = vrot.lane.b32.xlu0 %v7778, 127
        %v7964 = vpop.permute.xlu0 %7963
        %7965 = vrot.lane.b32.xlu0 %v7779, 127
        %v7966 = vpop.permute.xlu0 %7965
        %7967 = vrot.lane.b32.xlu0 %v7780, 127
        %v7968 = vpop.permute.xlu0 %7967
        %7969 = vrot.lane.b32.xlu0 %v7781, 127
        %v7970 = vpop.permute.xlu0 %7969
        %7971 = vrot.lane.b32.xlu0 %v7782, 127
        %v7972 = vpop.permute.xlu0 %7971
        %7973 = vrot.lane.b32.xlu0 %v7783, 127
        %v7974 = vpop.permute.xlu0 %7973
        %7975 = vrot.lane.b32.xlu0 %v7784, 127
        %v7976 = vpop.permute.xlu0 %7975
        %v7977 = vmul.f32 %v7962, %v1005
        %v7978 = vmul.f32 %v7964, %v1005
        %v7979 = vmul.f32 %v7966, %v1005
        %v7980 = vmul.f32 %v7968, %v1005
        %v7981 = vmul.f32 %v7970, %v1005
        %v7982 = vmul.f32 %v7972, %v1005
        %v7983 = vmul.f32 %v7974, %v1005
        %v7984 = vmul.f32 %v7976, %v1005
        %v7985 = vpack.c.bf16 %v7977, %v7977
        %v7986 = vpack.c.bf16 %v7978, %v7978
        %v7987 = vpack.c.bf16 %v7979, %v7979
        %v7988 = vpack.c.bf16 %v7980, %v7980
        %v7989 = vpack.c.bf16 %v7981, %v7981
        %v7990 = vpack.c.bf16 %v7982, %v7982
        %v7991 = vpack.c.bf16 %v7983, %v7983
        %v7992 = vpack.c.bf16 %v7984, %v7984
        %7993 = vst [vmem:[#allocation2 + $0x5c] sm:$0xf] %v7985
        %7994 = vst [vmem:[#allocation2 + $0xf0] sm:$0xf] %v7986
        %7995 = vst [vmem:[#allocation2 + $0x184] sm:$0xf] %v7987
        %7996 = vst [vmem:[#allocation2 + $0x218] sm:$0xf] %v7988
        %7997 = vst [vmem:[#allocation2 + $0x2ac] sm:$0xf] %v7989
        %7998 = vst [vmem:[#allocation2 + $0x340] sm:$0xf] %v7990
        %7999 = vst [vmem:[#allocation2 + $0x3d4] sm:$0xf] %v7991
        %8000 = vst [vmem:[#allocation2 + $0x468] sm:$0xf] %v7992
        %8001 = vrot.lane.b32.xlu0 %v7777, 118
        %v8002 = vpop.permute.xlu0 %8001
        %8003 = vrot.lane.b32.xlu0 %v7778, 118
        %v8004 = vpop.permute.xlu0 %8003
        %8005 = vrot.lane.b32.xlu0 %v7779, 118
        %v8006 = vpop.permute.xlu0 %8005
        %8007 = vrot.lane.b32.xlu0 %v7780, 118
        %v8008 = vpop.permute.xlu0 %8007
        %8009 = vrot.lane.b32.xlu0 %v7781, 118
        %v8010 = vpop.permute.xlu0 %8009
        %8011 = vrot.lane.b32.xlu0 %v7782, 118
        %v8012 = vpop.permute.xlu0 %8011
        %8013 = vrot.lane.b32.xlu0 %v7783, 118
        %v8014 = vpop.permute.xlu0 %8013
        %8015 = vrot.lane.b32.xlu0 %v7784, 118
        %v8016 = vpop.permute.xlu0 %8015
        %v8017 = vmul.f32 %v8002, %v1049
        %v8018 = vmul.f32 %v8004, %v1049
        %v8019 = vmul.f32 %v8006, %v1049
        %v8020 = vmul.f32 %v8008, %v1049
        %v8021 = vmul.f32 %v8010, %v1049
        %v8022 = vmul.f32 %v8012, %v1049
        %v8023 = vmul.f32 %v8014, %v1049
        %v8024 = vmul.f32 %v8016, %v1049
        %v8025 = vpack.c.bf16 %v8017, %v8017
        %v8026 = vpack.c.bf16 %v8018, %v8018
        %v8027 = vpack.c.bf16 %v8019, %v8019
        %v8028 = vpack.c.bf16 %v8020, %v8020
        %v8029 = vpack.c.bf16 %v8021, %v8021
        %v8030 = vpack.c.bf16 %v8022, %v8022
        %v8031 = vpack.c.bf16 %v8023, %v8023
        %v8032 = vpack.c.bf16 %v8024, %v8024
        %8033 = vst [vmem:[#allocation2 + $0x6c] sm:$0xf] %v8025
        %8034 = vst [vmem:[#allocation2 + $0x100] sm:$0xf] %v8026
        %8035 = vst [vmem:[#allocation2 + $0x194] sm:$0xf] %v8027
        %8036 = vst [vmem:[#allocation2 + $0x228] sm:$0xf] %v8028
        %8037 = vst [vmem:[#allocation2 + $0x2bc] sm:$0xf] %v8029
        %8038 = vst [vmem:[#allocation2 + $0x350] sm:$0xf] %v8030
        %8039 = vst [vmem:[#allocation2 + $0x3e4] sm:$0xf] %v8031
        %8040 = vst [vmem:[#allocation2 + $0x478] sm:$0xf] %v8032
        %8041 = vrot.lane.b32.xlu0 %v7777, 117
        %v8042 = vpop.permute.xlu0 %8041
        %8043 = vrot.lane.b32.xlu0 %v7778, 117
        %v8044 = vpop.permute.xlu0 %8043
        %8045 = vrot.lane.b32.xlu0 %v7779, 117
        %v8046 = vpop.permute.xlu0 %8045
        %8047 = vrot.lane.b32.xlu0 %v7780, 117
        %v8048 = vpop.permute.xlu0 %8047
        %8049 = vrot.lane.b32.xlu0 %v7781, 117
        %v8050 = vpop.permute.xlu0 %8049
        %8051 = vrot.lane.b32.xlu0 %v7782, 117
        %v8052 = vpop.permute.xlu0 %8051
        %8053 = vrot.lane.b32.xlu0 %v7783, 117
        %v8054 = vpop.permute.xlu0 %8053
        %8055 = vrot.lane.b32.xlu0 %v7784, 117
        %v8056 = vpop.permute.xlu0 %8055
        %v8057 = vmul.f32 %v8042, %v1093
        %v8058 = vmul.f32 %v8044, %v1093
        %v8059 = vmul.f32 %v8046, %v1093
        %v8060 = vmul.f32 %v8048, %v1093
        %v8061 = vmul.f32 %v8050, %v1093
        %v8062 = vmul.f32 %v8052, %v1093
        %v8063 = vmul.f32 %v8054, %v1093
        %v8064 = vmul.f32 %v8056, %v1093
        %v8065 = vpack.c.bf16 %v8057, %v8057
        %v8066 = vpack.c.bf16 %v8058, %v8058
        %v8067 = vpack.c.bf16 %v8059, %v8059
        %v8068 = vpack.c.bf16 %v8060, %v8060
        %v8069 = vpack.c.bf16 %v8061, %v8061
        %v8070 = vpack.c.bf16 %v8062, %v8062
        %v8071 = vpack.c.bf16 %v8063, %v8063
        %v8072 = vpack.c.bf16 %v8064, %v8064
        %8073 = vst [vmem:[#allocation2 + $0x7c] sm:$0xf] %v8065
        %8074 = vst [vmem:[#allocation2 + $0x110] sm:$0xf] %v8066
        %8075 = vst [vmem:[#allocation2 + $0x1a4] sm:$0xf] %v8067
        %8076 = vst [vmem:[#allocation2 + $0x238] sm:$0xf] %v8068
        %8077 = vst [vmem:[#allocation2 + $0x2cc] sm:$0xf] %v8069
        %8078 = vst [vmem:[#allocation2 + $0x360] sm:$0xf] %v8070
        %8079 = vst [vmem:[#allocation2 + $0x3f4] sm:$0xf] %v8071
        %8080 = vst [vmem:[#allocation2 + $0x488] sm:$0xf] %v8072
        %8081 = vrot.lane.b32.xlu0 %v7777, 116
        %v8082 = vpop.permute.xlu0 %8081
        %8083 = vrot.lane.b32.xlu0 %v7778, 116
        %v8084 = vpop.permute.xlu0 %8083
        %8085 = vrot.lane.b32.xlu0 %v7779, 116
        %v8086 = vpop.permute.xlu0 %8085
        %8087 = vrot.lane.b32.xlu0 %v7780, 116
        %v8088 = vpop.permute.xlu0 %8087
        %8089 = vrot.lane.b32.xlu0 %v7781, 116
        %v8090 = vpop.permute.xlu0 %8089
        %8091 = vrot.lane.b32.xlu0 %v7782, 116
        %v8092 = vpop.permute.xlu0 %8091
        %8093 = vrot.lane.b32.xlu0 %v7783, 116
        %v8094 = vpop.permute.xlu0 %8093
        %8095 = vrot.lane.b32.xlu0 %v7784, 116
        %v8096 = vpop.permute.xlu0 %8095
        %v8097 = vmul.f32 %v8082, %v1137
        %v8098 = vmul.f32 %v8084, %v1137
        %v8099 = vmul.f32 %v8086, %v1137
        %v8100 = vmul.f32 %v8088, %v1137
        %v8101 = vmul.f32 %v8090, %v1137
        %v8102 = vmul.f32 %v8092, %v1137
        %v8103 = vmul.f32 %v8094, %v1137
        %v8104 = vmul.f32 %v8096, %v1137
        %v8105 = vpack.c.bf16 %v8097, %v8097
        %v8106 = vpack.c.bf16 %v8098, %v8098
        %v8107 = vpack.c.bf16 %v8099, %v8099
        %v8108 = vpack.c.bf16 %v8100, %v8100
        %v8109 = vpack.c.bf16 %v8101, %v8101
        %v8110 = vpack.c.bf16 %v8102, %v8102
        %v8111 = vpack.c.bf16 %v8103, %v8103
        %v8112 = vpack.c.bf16 %v8104, %v8104
        %8113 = vst [vmem:[#allocation2 + $0x8c] sm:$0xf] %v8105
        %8114 = vst [vmem:[#allocation2 + $0x120] sm:$0xf] %v8106
        %8115 = vst [vmem:[#allocation2 + $0x1b4] sm:$0xf] %v8107
        %8116 = vst [vmem:[#allocation2 + $0x248] sm:$0xf] %v8108
        %8117 = vst [vmem:[#allocation2 + $0x2dc] sm:$0xf] %v8109
        %8118 = vst [vmem:[#allocation2 + $0x370] sm:$0xf] %v8110
        %8119 = vst [vmem:[#allocation2 + $0x404] sm:$0xf] %v8111
        %8120 = vst [vmem:[#allocation2 + $0x498] sm:$0xf] %v8112
        %v8121 = vld [vmem:[#allocation12] sm:$0xff]
        %v8122 = vld [vmem:[#allocation12 + $0x8] sm:$0xf]
        %v8123 = vld [vmem:[#allocation2] sm:$0xf]
        %v8124 = vld [vmem:[#allocation2 + $0x4] sm:$0xf]
        %v8125 = vld [vmem:[#allocation2 + $0x8] sm:$0xf]
        %v8126 = vld [vmem:[#allocation2 + $0xc] sm:$0xf]
        %v8127 = vld [vmem:[#allocation2 + $0x10] sm:$0xf]
        %v8128 = vld [vmem:[#allocation2 + $0x14] sm:$0xf]
        %v8129 = vld [vmem:[#allocation2 + $0x18] sm:$0xf]
        %v8130 = vld [vmem:[#allocation2 + $0x1c] sm:$0xf]
        %v8131 = vld [vmem:[#allocation2 + $0x20] sm:$0xf]
        %v8132 = vld [vmem:[#allocation2 + $0x24] sm:$0xf]
        %v8133 = vld [vmem:[#allocation2 + $0x28] sm:$0xf]
        %v8134 = vld [vmem:[#allocation2 + $0x2c] sm:$0xf]
        %v8135 = vld [vmem:[#allocation2 + $0x30] sm:$0xf]
        %v8136 = vld [vmem:[#allocation2 + $0x34] sm:$0xf]
        %v8137 = vld [vmem:[#allocation2 + $0x38] sm:$0xf]
        %v8138 = vld [vmem:[#allocation2 + $0x3c] sm:$0xf]
        %v8139 = vld [vmem:[#allocation2 + $0x40] sm:$0xf]
        %v8140 = vld [vmem:[#allocation2 + $0x44] sm:$0xf]
        %v8141 = vld [vmem:[#allocation2 + $0x48] sm:$0xf]
        %v8142 = vld [vmem:[#allocation2 + $0x4c] sm:$0xf]
        %v8143 = vld [vmem:[#allocation2 + $0x50] sm:$0xf]
        %v8144 = vld [vmem:[#allocation2 + $0x54] sm:$0xf]
        %v8145 = vld [vmem:[#allocation2 + $0x58] sm:$0xf]
        %v8146 = vld [vmem:[#allocation2 + $0x5c] sm:$0xf]
        %v8147 = vld [vmem:[#allocation2 + $0x60] sm:$0xf]
        %v8148 = vld [vmem:[#allocation2 + $0x64] sm:$0xf]
        %v8149 = vld [vmem:[#allocation2 + $0x68] sm:$0xf]
        %v8150 = vld [vmem:[#allocation2 + $0x6c] sm:$0xf]
        %v8151 = vld [vmem:[#allocation2 + $0x70] sm:$0xf]
        %v8152 = vld [vmem:[#allocation2 + $0x74] sm:$0xf]
        %v8153 = vld [vmem:[#allocation2 + $0x78] sm:$0xf]
        %v8154 = vld [vmem:[#allocation2 + $0x7c] sm:$0xf]
        %v8155 = vld [vmem:[#allocation2 + $0x80] sm:$0xf]
        %v8156 = vld [vmem:[#allocation2 + $0x84] sm:$0xf]
        %v8157 = vld [vmem:[#allocation2 + $0x88] sm:$0xf]
        %v8158 = vld [vmem:[#allocation2 + $0x8c] sm:$0xf]
        %v8159 = vld [vmem:[#allocation2 + $0x90] sm:$0xf]
        %v8160 = vld [vmem:[#allocation2 + $0x94] sm:$0xf]
        %v8161 = vld [vmem:[#allocation2 + $0x98] sm:$0xf]
        %v8162 = vld [vmem:[#allocation2 + $0x9c] sm:$0xf]
        %v8163 = vld [vmem:[#allocation2 + $0xa0] sm:$0xf]
        %v8164 = vld [vmem:[#allocation2 + $0xa4] sm:$0xf]
        %v8165 = vld [vmem:[#allocation2 + $0xa8] sm:$0xf]
        %v8166 = vld [vmem:[#allocation2 + $0xac] sm:$0xf]
        %v8167 = vld [vmem:[#allocation2 + $0xb0] sm:$0xf]
        %v8168 = vld [vmem:[#allocation2 + $0xb4] sm:$0xf]
        %v8169 = vld [vmem:[#allocation2 + $0xb8] sm:$0xf]
        %v8170 = vld [vmem:[#allocation2 + $0xbc] sm:$0xf]
        %v8171 = vld [vmem:[#allocation2 + $0xc0] sm:$0xf]
        %v8172 = vld [vmem:[#allocation2 + $0xc4] sm:$0xf]
        %v8173 = vld [vmem:[#allocation2 + $0xc8] sm:$0xf]
        %v8174 = vld [vmem:[#allocation2 + $0xcc] sm:$0xf]
        %v8175 = vld [vmem:[#allocation2 + $0xd0] sm:$0xf]
        %v8176 = vld [vmem:[#allocation2 + $0xd4] sm:$0xf]
        %v8177 = vld [vmem:[#allocation2 + $0xd8] sm:$0xf]
        %v8178 = vld [vmem:[#allocation2 + $0xdc] sm:$0xf]
        %v8179 = vld [vmem:[#allocation2 + $0xe0] sm:$0xf]
        %v8180 = vld [vmem:[#allocation2 + $0xe4] sm:$0xf]
        %v8181 = vld [vmem:[#allocation2 + $0xe8] sm:$0xf]
        %v8182 = vld [vmem:[#allocation2 + $0xec] sm:$0xf]
        %v8183 = vld [vmem:[#allocation2 + $0xf0] sm:$0xf]
        %v8184 = vld [vmem:[#allocation2 + $0xf4] sm:$0xf]
        %v8185 = vld [vmem:[#allocation2 + $0xf8] sm:$0xf]
        %v8186 = vld [vmem:[#allocation2 + $0xfc] sm:$0xf]
        %v8187 = vld [vmem:[#allocation2 + $0x100] sm:$0xf]
        %v8188 = vld [vmem:[#allocation2 + $0x104] sm:$0xf]
        %v8189 = vld [vmem:[#allocation2 + $0x108] sm:$0xf]
        %v8190 = vld [vmem:[#allocation2 + $0x10c] sm:$0xf]
        %v8191 = vld [vmem:[#allocation2 + $0x110] sm:$0xf]
        %v8192 = vld [vmem:[#allocation2 + $0x114] sm:$0xf]
        %v8193 = vld [vmem:[#allocation2 + $0x118] sm:$0xf]
        %v8194 = vld [vmem:[#allocation2 + $0x11c] sm:$0xf]
        %v8195 = vld [vmem:[#allocation2 + $0x120] sm:$0xf]
        %v8196 = vld [vmem:[#allocation2 + $0x124] sm:$0xf]
        %v8197 = vld [vmem:[#allocation2 + $0x128] sm:$0xf]
        %v8198 = vld [vmem:[#allocation2 + $0x12c] sm:$0xf]
        %v8199 = vld [vmem:[#allocation2 + $0x130] sm:$0xf]
        %v8200 = vld [vmem:[#allocation2 + $0x134] sm:$0xf]
        %v8201 = vld [vmem:[#allocation2 + $0x138] sm:$0xf]
        %v8202 = vld [vmem:[#allocation2 + $0x13c] sm:$0xf]
        %v8203 = vld [vmem:[#allocation2 + $0x140] sm:$0xf]
        %v8204 = vld [vmem:[#allocation2 + $0x144] sm:$0xf]
        %v8205 = vld [vmem:[#allocation2 + $0x148] sm:$0xf]
        %v8206 = vld [vmem:[#allocation2 + $0x14c] sm:$0xf]
        %v8207 = vld [vmem:[#allocation2 + $0x150] sm:$0xf]
        %v8208 = vld [vmem:[#allocation2 + $0x154] sm:$0xf]
        %v8209 = vld [vmem:[#allocation2 + $0x158] sm:$0xf]
        %v8210 = vld [vmem:[#allocation2 + $0x15c] sm:$0xf]
        %v8211 = vld [vmem:[#allocation2 + $0x160] sm:$0xf]
        %v8212 = vld [vmem:[#allocation2 + $0x164] sm:$0xf]
        %v8213 = vld [vmem:[#allocation2 + $0x168] sm:$0xf]
        %v8214 = vld [vmem:[#allocation2 + $0x16c] sm:$0xf]
        %v8215 = vld [vmem:[#allocation2 + $0x170] sm:$0xf]
        %v8216 = vld [vmem:[#allocation2 + $0x174] sm:$0xf]
        %v8217 = vld [vmem:[#allocation2 + $0x178] sm:$0xf]
        %v8218 = vld [vmem:[#allocation2 + $0x17c] sm:$0xf]
        %v8219 = vld [vmem:[#allocation2 + $0x180] sm:$0xf]
        %v8220 = vld [vmem:[#allocation2 + $0x184] sm:$0xf]
        %v8221 = vld [vmem:[#allocation2 + $0x188] sm:$0xf]
        %v8222 = vld [vmem:[#allocation2 + $0x18c] sm:$0xf]
        %v8223 = vld [vmem:[#allocation2 + $0x190] sm:$0xf]
        %v8224 = vld [vmem:[#allocation2 + $0x194] sm:$0xf]
        %v8225 = vld [vmem:[#allocation2 + $0x198] sm:$0xf]
        %v8226 = vld [vmem:[#allocation2 + $0x19c] sm:$0xf]
        %v8227 = vld [vmem:[#allocation2 + $0x1a0] sm:$0xf]
        %v8228 = vld [vmem:[#allocation2 + $0x1a4] sm:$0xf]
        %v8229 = vld [vmem:[#allocation2 + $0x1a8] sm:$0xf]
        %v8230 = vld [vmem:[#allocation2 + $0x1ac] sm:$0xf]
        %v8231 = vld [vmem:[#allocation2 + $0x1b0] sm:$0xf]
        %v8232 = vld [vmem:[#allocation2 + $0x1b4] sm:$0xf]
        %v8233 = vld [vmem:[#allocation2 + $0x1b8] sm:$0xf]
        %v8234 = vld [vmem:[#allocation2 + $0x1bc] sm:$0xf]
        %v8235 = vld [vmem:[#allocation2 + $0x1c0] sm:$0xf]
        %v8236 = vld [vmem:[#allocation2 + $0x1c4] sm:$0xf]
        %v8237 = vld [vmem:[#allocation2 + $0x1c8] sm:$0xf]
        %v8238 = vld [vmem:[#allocation2 + $0x1cc] sm:$0xf]
        %v8239 = vld [vmem:[#allocation2 + $0x1d0] sm:$0xf]
        %v8240 = vld [vmem:[#allocation2 + $0x1d4] sm:$0xf]
        %v8241 = vld [vmem:[#allocation2 + $0x1d8] sm:$0xf]
        %v8242 = vld [vmem:[#allocation2 + $0x1dc] sm:$0xf]
        %v8243 = vld [vmem:[#allocation2 + $0x1e0] sm:$0xf]
        %v8244 = vld [vmem:[#allocation2 + $0x1e4] sm:$0xf]
        %v8245 = vld [vmem:[#allocation2 + $0x1e8] sm:$0xf]
        %v8246 = vld [vmem:[#allocation2 + $0x1ec] sm:$0xf]
        %v8247 = vld [vmem:[#allocation2 + $0x1f0] sm:$0xf]
        %v8248 = vld [vmem:[#allocation2 + $0x1f4] sm:$0xf]
        %v8249 = vld [vmem:[#allocation2 + $0x1f8] sm:$0xf]
        %v8250 = vld [vmem:[#allocation2 + $0x1fc] sm:$0xf]
        %v8251 = vld [vmem:[#allocation2 + $0x200] sm:$0xf]
        %v8252 = vld [vmem:[#allocation2 + $0x204] sm:$0xf]
        %v8253 = vld [vmem:[#allocation2 + $0x208] sm:$0xf]
        %v8254 = vld [vmem:[#allocation2 + $0x20c] sm:$0xf]
        %v8255 = vld [vmem:[#allocation2 + $0x210] sm:$0xf]
        %v8256 = vld [vmem:[#allocation2 + $0x214] sm:$0xf]
        %v8257 = vld [vmem:[#allocation2 + $0x218] sm:$0xf]
        %v8258 = vld [vmem:[#allocation2 + $0x21c] sm:$0xf]
        %v8259 = vld [vmem:[#allocation2 + $0x220] sm:$0xf]
        %v8260 = vld [vmem:[#allocation2 + $0x224] sm:$0xf]
        %v8261 = vld [vmem:[#allocation2 + $0x228] sm:$0xf]
        %v8262 = vld [vmem:[#allocation2 + $0x22c] sm:$0xf]
        %v8263 = vld [vmem:[#allocation2 + $0x230] sm:$0xf]
        %v8264 = vld [vmem:[#allocation2 + $0x234] sm:$0xf]
        %v8265 = vld [vmem:[#allocation2 + $0x238] sm:$0xf]
        %v8266 = vld [vmem:[#allocation2 + $0x23c] sm:$0xf]
        %v8267 = vld [vmem:[#allocation2 + $0x240] sm:$0xf]
        %v8268 = vld [vmem:[#allocation2 + $0x244] sm:$0xf]
        %v8269 = vld [vmem:[#allocation2 + $0x248] sm:$0xf]
        %v8270 = vld [vmem:[#allocation2 + $0x24c] sm:$0xf]
        %v8271 = vld [vmem:[#allocation2 + $0x250] sm:$0xf]
        %v8272 = vld [vmem:[#allocation2 + $0x254] sm:$0xf]
        %v8273 = vld [vmem:[#allocation2 + $0x258] sm:$0xf]
        %v8274 = vld [vmem:[#allocation2 + $0x25c] sm:$0xf]
        %v8275 = vld [vmem:[#allocation2 + $0x260] sm:$0xf]
        %v8276 = vld [vmem:[#allocation2 + $0x264] sm:$0xf]
        %v8277 = vld [vmem:[#allocation2 + $0x268] sm:$0xf]
        %v8278 = vld [vmem:[#allocation2 + $0x26c] sm:$0xf]
        %v8279 = vld [vmem:[#allocation2 + $0x270] sm:$0xf]
        %v8280 = vld [vmem:[#allocation2 + $0x274] sm:$0xf]
        %v8281 = vld [vmem:[#allocation2 + $0x278] sm:$0xf]
        %v8282 = vld [vmem:[#allocation2 + $0x27c] sm:$0xf]
        %v8283 = vld [vmem:[#allocation2 + $0x280] sm:$0xf]
        %v8284 = vld [vmem:[#allocation2 + $0x284] sm:$0xf]
        %v8285 = vld [vmem:[#allocation2 + $0x288] sm:$0xf]
        %v8286 = vld [vmem:[#allocation2 + $0x28c] sm:$0xf]
        %v8287 = vld [vmem:[#allocation2 + $0x290] sm:$0xf]
        %v8288 = vld [vmem:[#allocation2 + $0x294] sm:$0xf]
        %v8289 = vld [vmem:[#allocation2 + $0x298] sm:$0xf]
        %v8290 = vld [vmem:[#allocation2 + $0x29c] sm:$0xf]
        %v8291 = vld [vmem:[#allocation2 + $0x2a0] sm:$0xf]
        %v8292 = vld [vmem:[#allocation2 + $0x2a4] sm:$0xf]
        %v8293 = vld [vmem:[#allocation2 + $0x2a8] sm:$0xf]
        %v8294 = vld [vmem:[#allocation2 + $0x2ac] sm:$0xf]
        %v8295 = vld [vmem:[#allocation2 + $0x2b0] sm:$0xf]
        %v8296 = vld [vmem:[#allocation2 + $0x2b4] sm:$0xf]
        %v8297 = vld [vmem:[#allocation2 + $0x2b8] sm:$0xf]
        %v8298 = vld [vmem:[#allocation2 + $0x2bc] sm:$0xf]
        %v8299 = vld [vmem:[#allocation2 + $0x2c0] sm:$0xf]
        %v8300 = vld [vmem:[#allocation2 + $0x2c4] sm:$0xf]
        %v8301 = vld [vmem:[#allocation2 + $0x2c8] sm:$0xf]
        %v8302 = vld [vmem:[#allocation2 + $0x2cc] sm:$0xf]
        %v8303 = vld [vmem:[#allocation2 + $0x2d0] sm:$0xf]
        %v8304 = vld [vmem:[#allocation2 + $0x2d4] sm:$0xf]
        %v8305 = vld [vmem:[#allocation2 + $0x2d8] sm:$0xf]
        %v8306 = vld [vmem:[#allocation2 + $0x2dc] sm:$0xf]
        %v8307 = vld [vmem:[#allocation2 + $0x2e0] sm:$0xf]
        %v8308 = vld [vmem:[#allocation2 + $0x2e4] sm:$0xf]
        %v8309 = vld [vmem:[#allocation2 + $0x2e8] sm:$0xf]
        %v8310 = vld [vmem:[#allocation2 + $0x2ec] sm:$0xf]
        %v8311 = vld [vmem:[#allocation2 + $0x2f0] sm:$0xf]
        %v8312 = vld [vmem:[#allocation2 + $0x2f4] sm:$0xf]
        %v8313 = vld [vmem:[#allocation2 + $0x2f8] sm:$0xf]
        %v8314 = vld [vmem:[#allocation2 + $0x2fc] sm:$0xf]
        %v8315 = vld [vmem:[#allocation2 + $0x300] sm:$0xf]
        %v8316 = vld [vmem:[#allocation2 + $0x304] sm:$0xf]
        %v8317 = vld [vmem:[#allocation2 + $0x308] sm:$0xf]
        %v8318 = vld [vmem:[#allocation2 + $0x30c] sm:$0xf]
        %v8319 = vld [vmem:[#allocation2 + $0x310] sm:$0xf]
        %v8320 = vld [vmem:[#allocation2 + $0x314] sm:$0xf]
        %v8321 = vld [vmem:[#allocation2 + $0x318] sm:$0xf]
        %v8322 = vld [vmem:[#allocation2 + $0x31c] sm:$0xf]
        %v8323 = vld [vmem:[#allocation2 + $0x320] sm:$0xf]
        %v8324 = vld [vmem:[#allocation2 + $0x324] sm:$0xf]
        %v8325 = vld [vmem:[#allocation2 + $0x328] sm:$0xf]
        %v8326 = vld [vmem:[#allocation2 + $0x32c] sm:$0xf]
        %v8327 = vld [vmem:[#allocation2 + $0x330] sm:$0xf]
        %v8328 = vld [vmem:[#allocation2 + $0x334] sm:$0xf]
        %v8329 = vld [vmem:[#allocation2 + $0x338] sm:$0xf]
        %v8330 = vld [vmem:[#allocation2 + $0x33c] sm:$0xf]
        %v8331 = vld [vmem:[#allocation2 + $0x340] sm:$0xf]
        %v8332 = vld [vmem:[#allocation2 + $0x344] sm:$0xf]
        %v8333 = vld [vmem:[#allocation2 + $0x348] sm:$0xf]
        %v8334 = vld [vmem:[#allocation2 + $0x34c] sm:$0xf]
        %v8335 = vld [vmem:[#allocation2 + $0x350] sm:$0xf]
        %v8336 = vld [vmem:[#allocation2 + $0x354] sm:$0xf]
        %v8337 = vld [vmem:[#allocation2 + $0x358] sm:$0xf]
        %v8338 = vld [vmem:[#allocation2 + $0x35c] sm:$0xf]
        %v8339 = vld [vmem:[#allocation2 + $0x360] sm:$0xf]
        %v8340 = vld [vmem:[#allocation2 + $0x364] sm:$0xf]
        %v8341 = vld [vmem:[#allocation2 + $0x368] sm:$0xf]
        %v8342 = vld [vmem:[#allocation2 + $0x36c] sm:$0xf]
        %v8343 = vld [vmem:[#allocation2 + $0x370] sm:$0xf]
        %v8344 = vld [vmem:[#allocation2 + $0x374] sm:$0xf]
        %v8345 = vld [vmem:[#allocation2 + $0x378] sm:$0xf]
        %v8346 = vld [vmem:[#allocation2 + $0x37c] sm:$0xf]
        %v8347 = vld [vmem:[#allocation2 + $0x380] sm:$0xf]
        %v8348 = vld [vmem:[#allocation2 + $0x384] sm:$0xf]
        %v8349 = vld [vmem:[#allocation2 + $0x388] sm:$0xf]
        %v8350 = vld [vmem:[#allocation2 + $0x38c] sm:$0xf]
        %v8351 = vld [vmem:[#allocation2 + $0x390] sm:$0xf]
        %v8352 = vld [vmem:[#allocation2 + $0x394] sm:$0xf]
        %v8353 = vld [vmem:[#allocation2 + $0x398] sm:$0xf]
        %v8354 = vld [vmem:[#allocation2 + $0x39c] sm:$0xf]
        %v8355 = vld [vmem:[#allocation2 + $0x3a0] sm:$0xf]
        %v8356 = vld [vmem:[#allocation2 + $0x3a4] sm:$0xf]
        %v8357 = vld [vmem:[#allocation2 + $0x3a8] sm:$0xf]
        %v8358 = vld [vmem:[#allocation2 + $0x3ac] sm:$0xf]
        %v8359 = vld [vmem:[#allocation2 + $0x3b0] sm:$0xf]
        %v8360 = vld [vmem:[#allocation2 + $0x3b4] sm:$0xf]
        %v8361 = vld [vmem:[#allocation2 + $0x3b8] sm:$0xf]
        %v8362 = vld [vmem:[#allocation2 + $0x3bc] sm:$0xf]
        %v8363 = vld [vmem:[#allocation2 + $0x3c0] sm:$0xf]
        %v8364 = vld [vmem:[#allocation2 + $0x3c4] sm:$0xf]
        %v8365 = vld [vmem:[#allocation2 + $0x3c8] sm:$0xf]
        %v8366 = vld [vmem:[#allocation2 + $0x3cc] sm:$0xf]
        %v8367 = vld [vmem:[#allocation2 + $0x3d0] sm:$0xf]
        %v8368 = vld [vmem:[#allocation2 + $0x3d4] sm:$0xf]
        %v8369 = vld [vmem:[#allocation2 + $0x3d8] sm:$0xf]
        %v8370 = vld [vmem:[#allocation2 + $0x3dc] sm:$0xf]
        %v8371 = vld [vmem:[#allocation2 + $0x3e0] sm:$0xf]
        %v8372 = vld [vmem:[#allocation2 + $0x3e4] sm:$0xf]
        %v8373 = vld [vmem:[#allocation2 + $0x3e8] sm:$0xf]
        %v8374 = vld [vmem:[#allocation2 + $0x3ec] sm:$0xf]
        %v8375 = vld [vmem:[#allocation2 + $0x3f0] sm:$0xf]
        %v8376 = vld [vmem:[#allocation2 + $0x3f4] sm:$0xf]
        %v8377 = vld [vmem:[#allocation2 + $0x3f8] sm:$0xf]
        %v8378 = vld [vmem:[#allocation2 + $0x3fc] sm:$0xf]
        %v8379 = vld [vmem:[#allocation2 + $0x400] sm:$0xf]
        %v8380 = vld [vmem:[#allocation2 + $0x404] sm:$0xf]
        %v8381 = vld [vmem:[#allocation2 + $0x408] sm:$0xf]
        %v8382 = vld [vmem:[#allocation2 + $0x40c] sm:$0xf]
        %v8383 = vld [vmem:[#allocation2 + $0x410] sm:$0xf]
        %v8384 = vld [vmem:[#allocation2 + $0x414] sm:$0xf]
        %v8385 = vld [vmem:[#allocation2 + $0x418] sm:$0xf]
        %v8386 = vld [vmem:[#allocation2 + $0x41c] sm:$0xf]
        %v8387 = vld [vmem:[#allocation2 + $0x420] sm:$0xf]
        %v8388 = vld [vmem:[#allocation2 + $0x424] sm:$0xf]
        %v8389 = vld [vmem:[#allocation2 + $0x428] sm:$0xf]
        %v8390 = vld [vmem:[#allocation2 + $0x42c] sm:$0xf]
        %v8391 = vld [vmem:[#allocation2 + $0x430] sm:$0xf]
        %v8392 = vld [vmem:[#allocation2 + $0x434] sm:$0xf]
        %v8393 = vld [vmem:[#allocation2 + $0x438] sm:$0xf]
        %v8394 = vld [vmem:[#allocation2 + $0x43c] sm:$0xf]
        %v8395 = vld [vmem:[#allocation2 + $0x440] sm:$0xf]
        %v8396 = vld [vmem:[#allocation2 + $0x444] sm:$0xf]
        %v8397 = vld [vmem:[#allocation2 + $0x448] sm:$0xf]
        %v8398 = vld [vmem:[#allocation2 + $0x44c] sm:$0xf]
        %v8399 = vld [vmem:[#allocation2 + $0x450] sm:$0xf]
        %v8400 = vld [vmem:[#allocation2 + $0x454] sm:$0xf]
        %v8401 = vld [vmem:[#allocation2 + $0x458] sm:$0xf]
        %v8402 = vld [vmem:[#allocation2 + $0x45c] sm:$0xf]
        %v8403 = vld [vmem:[#allocation2 + $0x460] sm:$0xf]
        %v8404 = vld [vmem:[#allocation2 + $0x464] sm:$0xf]
        %v8405 = vld [vmem:[#allocation2 + $0x468] sm:$0xf]
        %v8406 = vld [vmem:[#allocation2 + $0x46c] sm:$0xf]
        %v8407 = vld [vmem:[#allocation2 + $0x470] sm:$0xf]
        %v8408 = vld [vmem:[#allocation2 + $0x474] sm:$0xf]
        %v8409 = vld [vmem:[#allocation2 + $0x478] sm:$0xf]
        %v8410 = vld [vmem:[#allocation2 + $0x47c] sm:$0xf]
        %v8411 = vld [vmem:[#allocation2 + $0x480] sm:$0xf]
        %v8412 = vld [vmem:[#allocation2 + $0x484] sm:$0xf]
        %v8413 = vld [vmem:[#allocation2 + $0x488] sm:$0xf]
        %v8414 = vld [vmem:[#allocation2 + $0x48c] sm:$0xf]
        %v8415 = vld [vmem:[#allocation2 + $0x490] sm:$0xf]
        %v8416 = vld [vmem:[#allocation2 + $0x494] sm:$0xf]
        %v8417 = vld [vmem:[#allocation2 + $0x498] sm:$0xf]
        %v8418 = vld [vmem:[#allocation2 + $0x49c] sm:$0xf]
        %v8421 = vunpack.c.l.b16 %v8121
        %v8422 = vunpack.c.h.b16 %v8121
        %v8423 = vunpack.c.l.b16 %v8122
        %v8424 = vpack.c.b16 %v8421, %v8421
        %v8425 = vpack.c.b16 %v8422, %v8422
        %v8426 = vpack.c.b16 %v8423, %v8423
        %v8466 = vunpack.c.l.b16 %v8123
        %v8467 = vunpack.c.l.b16 %v8124
        %v8468 = vunpack.c.l.b16 %v8125
        %v8469 = vunpack.c.l.b16 %v8126
        %v8470 = vunpack.c.l.b16 %v8127
        %v8471 = vunpack.c.l.b16 %v8128
        %v8472 = vunpack.c.l.b16 %v8129
        %v8473 = vunpack.c.l.b16 %v8130
        %v8474 = vunpack.c.l.b16 %v8131
        %v8475 = vunpack.c.l.b16 %v8132
        %v8476 = vunpack.c.l.b16 %v8133
        %v8477 = vunpack.c.l.b16 %v8134
        %v8478 = vunpack.c.l.b16 %v8135
        %v8479 = vunpack.c.l.b16 %v8136
        %v8480 = vunpack.c.l.b16 %v8137
        %v8481 = vunpack.c.l.b16 %v8138
        %v8482 = vunpack.c.l.b16 %v8139
        %v8483 = vunpack.c.l.b16 %v8140
        %v8484 = vunpack.c.l.b16 %v8141
        %v8485 = vunpack.c.l.b16 %v8142
        %v8486 = vunpack.c.l.b16 %v8143
        %v8487 = vunpack.c.l.b16 %v8144
        %v8488 = vunpack.c.l.b16 %v8145
        %v8489 = vunpack.c.l.b16 %v8146
        %v8490 = vunpack.c.l.b16 %v8147
        %v8491 = vunpack.c.l.b16 %v8148
        %v8492 = vunpack.c.l.b16 %v8149
        %v8493 = vunpack.c.l.b16 %v8150
        %v8494 = vunpack.c.l.b16 %v8151
        %v8495 = vunpack.c.l.b16 %v8152
        %v8496 = vunpack.c.l.b16 %v8153
        %v8497 = vunpack.c.l.b16 %v8154
        %v8498 = vunpack.c.l.b16 %v8155
        %v8499 = vunpack.c.l.b16 %v8156
        %v8500 = vunpack.c.l.b16 %v8157
        %v8501 = vunpack.c.l.b16 %v8158
        %v8502 = vunpack.c.l.b16 %v8159
        %v8503 = vpack.c.b16 %v8467, %v8466
        %v8504 = vpack.c.b16 %v8469, %v8468
        %v8505 = vpack.c.b16 %v8471, %v8470
        %v8506 = vpack.c.b16 %v8473, %v8472
        %v8507 = vpack.c.b16 %v8475, %v8474
        %v8508 = vpack.c.b16 %v8477, %v8476
        %v8509 = vpack.c.b16 %v8479, %v8478
        %v8510 = vpack.c.b16 %v8481, %v8480
        %v8511 = vpack.c.b16 %v8483, %v8482
        %v8512 = vpack.c.b16 %v8485, %v8484
        %v8513 = vpack.c.b16 %v8487, %v8486
        %v8514 = vpack.c.b16 %v8489, %v8488
        %v8515 = vpack.c.b16 %v8491, %v8490
        %v8516 = vpack.c.b16 %v8493, %v8492
        %v8517 = vpack.c.b16 %v8495, %v8494
        %v8518 = vpack.c.b16 %v8497, %v8496
        %v8519 = vpack.c.b16 %v8499, %v8498
        %v8520 = vpack.c.b16 %v8501, %v8500
        %v8521 = vpack.c.b16 %v8502, %v8502
        %v8541 = vsel %vm1581, %v8426, 0
        %v8544 = vsel %vm1585, %v8521, 0
        %8546 = vmatprep.subr.bf16.mxu0 0
        %8547 = vmatpush1.bf16.msra.mxu0 %v8510
        %8548 = vmatprep.subr.bf16.mxu0 0
        %8549 = vmatpush1.bf16.msra.mxu0 %v8509
        %8550 = vmatprep.subr.bf16.mxu0 0
        %8551 = vmatpush1.bf16.msra.mxu0 %v8508
        %8552 = vmatprep.subr.bf16.mxu0 0
        %8553 = vmatpush1.bf16.msra.mxu0 %v8507
        %8554 = vmatprep.subr.bf16.mxu0 0
        %8555 = vmatpush1.bf16.msra.mxu0 %v8506
        %8556 = vmatprep.subr.bf16.mxu0 0
        %8557 = vmatpush1.bf16.msra.mxu0 %v8505
        %8558 = vmatprep.subr.bf16.mxu0 0
        %8559 = vmatpush1.bf16.msra.mxu0 %v8504
        %8560 = vmatprep.subr.bf16.mxu0 0
        %8561 = vmatpush1.bf16.msra.mxu0 %v8503
        %8562 = vmatprep.subr.bf16.mxu0 0
        %8563 = vmatpush2.bf16.msra.mxu0 %v8518
        %8564 = vmatprep.subr.bf16.mxu0 0
        %8565 = vmatpush2.bf16.msra.mxu0 %v8517
        %8566 = vmatprep.subr.bf16.mxu0 0
        %8567 = vmatpush2.bf16.msra.mxu0 %v8516
        %8568 = vmatprep.subr.bf16.mxu0 0
        %8569 = vmatpush2.bf16.msra.mxu0 %v8515
        %8570 = vmatprep.subr.bf16.mxu0 0
        %8571 = vmatpush2.bf16.msra.mxu0 %v8514
        %8572 = vmatprep.subr.bf16.mxu0 0
        %8573 = vmatpush2.bf16.msra.mxu0 %v8513
        %8574 = vmatprep.subr.bf16.mxu0 0
        %8575 = vmatpush2.bf16.msra.mxu0 %v8512
        %8576 = vmatprep.subr.bf16.mxu0 0
        %8577 = vmatpush2.bf16.msra.mxu0 %v8511
        %8578 = vmatprep.mubr.bf16.mxu0 %v8425
        %8579 = vmatmul.mubr.bf16.gmra.mxu0 %v8424
        %v8580 = vpop.f32.mrf.mxu0
        %v8581 = vadd.f32 0.0, %v8580
        %v8582 = vpop.f32.mrf.mxu0
        %v8583 = vpop.f32.mrf.mxu0
        %v8584 = vpop.f32.mrf.mxu0
        %8585 = vdwg.mxu0
        %8586 = vmatprep.subr.bf16.mxu0 0
        %8587 = vmatpush1.bf16.msra.mxu0 0
        %8588 = vmatprep.subr.bf16.mxu0 0
        %8589 = vmatpush1.bf16.msra.mxu0 0
        %8590 = vmatprep.subr.bf16.mxu0 0
        %8591 = vmatpush1.bf16.msra.mxu0 0
        %8592 = vmatprep.subr.bf16.mxu0 0
        %8593 = vmatpush1.bf16.msra.mxu0 0
        %8594 = vmatprep.subr.bf16.mxu0 0
        %8595 = vmatpush1.bf16.msra.mxu0 0
        %8596 = vmatprep.subr.bf16.mxu0 0
        %8597 = vmatpush1.bf16.msra.mxu0 %v8544
        %8598 = vmatprep.subr.bf16.mxu0 0
        %8599 = vmatpush1.bf16.msra.mxu0 %v8520
        %8600 = vmatprep.subr.bf16.mxu0 0
        %8601 = vmatpush1.bf16.msra.mxu0 %v8519
        %8602 = vmatprep.subr.bf16.mxu0 0
        %8603 = vmatpush2.bf16.msra.mxu0 0
        %8604 = vmatprep.subr.bf16.mxu0 0
        %8605 = vmatpush2.bf16.msra.mxu0 0
        %8606 = vmatprep.subr.bf16.mxu0 0
        %8607 = vmatpush2.bf16.msra.mxu0 0
        %8608 = vmatprep.subr.bf16.mxu0 0
        %8609 = vmatpush2.bf16.msra.mxu0 0
        %8610 = vmatprep.subr.bf16.mxu0 0
        %8611 = vmatpush2.bf16.msra.mxu0 0
        %8612 = vmatprep.subr.bf16.mxu0 0
        %8613 = vmatpush2.bf16.msra.mxu0 0
        %8614 = vmatprep.subr.bf16.mxu0 0
        %8615 = vmatpush2.bf16.msra.mxu0 0
        %8616 = vmatprep.subr.bf16.mxu0 0
        %8617 = vmatpush2.bf16.msra.mxu0 0
        %8618 = vmatprep.mubr.bf16.mxu0 0
        %8619 = vmatmul.mubr.bf16.gmra.mxu0 %v8541
        %v8620 = vpop.f32.mrf.mxu0
        %v8621 = vadd.f32 %v8581, %v8620
        %v8622 = vpop.f32.mrf.mxu0
        %v8623 = vpop.f32.mrf.mxu0
        %v8624 = vpop.f32.mrf.mxu0
        %8625 = vdwg.mxu0
        %v8663 = vunpack.c.l.b16 %v8160
        %v8664 = vunpack.c.l.b16 %v8161
        %v8665 = vunpack.c.l.b16 %v8162
        %v8666 = vunpack.c.l.b16 %v8163
        %v8667 = vunpack.c.l.b16 %v8164
        %v8668 = vunpack.c.l.b16 %v8165
        %v8669 = vunpack.c.l.b16 %v8166
        %v8670 = vunpack.c.l.b16 %v8167
        %v8671 = vunpack.c.l.b16 %v8168
        %v8672 = vunpack.c.l.b16 %v8169
        %v8673 = vunpack.c.l.b16 %v8170
        %v8674 = vunpack.c.l.b16 %v8171
        %v8675 = vunpack.c.l.b16 %v8172
        %v8676 = vunpack.c.l.b16 %v8173
        %v8677 = vunpack.c.l.b16 %v8174
        %v8678 = vunpack.c.l.b16 %v8175
        %v8679 = vunpack.c.l.b16 %v8176
        %v8680 = vunpack.c.l.b16 %v8177
        %v8681 = vunpack.c.l.b16 %v8178
        %v8682 = vunpack.c.l.b16 %v8179
        %v8683 = vunpack.c.l.b16 %v8180
        %v8684 = vunpack.c.l.b16 %v8181
        %v8685 = vunpack.c.l.b16 %v8182
        %v8686 = vunpack.c.l.b16 %v8183
        %v8687 = vunpack.c.l.b16 %v8184
        %v8688 = vunpack.c.l.b16 %v8185
        %v8689 = vunpack.c.l.b16 %v8186
        %v8690 = vunpack.c.l.b16 %v8187
        %v8691 = vunpack.c.l.b16 %v8188
        %v8692 = vunpack.c.l.b16 %v8189
        %v8693 = vunpack.c.l.b16 %v8190
        %v8694 = vunpack.c.l.b16 %v8191
        %v8695 = vunpack.c.l.b16 %v8192
        %v8696 = vunpack.c.l.b16 %v8193
        %v8697 = vunpack.c.l.b16 %v8194
        %v8698 = vunpack.c.l.b16 %v8195
        %v8699 = vunpack.c.l.b16 %v8196
        %v8700 = vpack.c.b16 %v8664, %v8663
        %v8701 = vpack.c.b16 %v8666, %v8665
        %v8702 = vpack.c.b16 %v8668, %v8667
        %v8703 = vpack.c.b16 %v8670, %v8669
        %v8704 = vpack.c.b16 %v8672, %v8671
        %v8705 = vpack.c.b16 %v8674, %v8673
        %v8706 = vpack.c.b16 %v8676, %v8675
        %v8707 = vpack.c.b16 %v8678, %v8677
        %v8708 = vpack.c.b16 %v8680, %v8679
        %v8709 = vpack.c.b16 %v8682, %v8681
        %v8710 = vpack.c.b16 %v8684, %v8683
        %v8711 = vpack.c.b16 %v8686, %v8685
        %v8712 = vpack.c.b16 %v8688, %v8687
        %v8713 = vpack.c.b16 %v8690, %v8689
        %v8714 = vpack.c.b16 %v8692, %v8691
        %v8715 = vpack.c.b16 %v8694, %v8693
        %v8716 = vpack.c.b16 %v8696, %v8695
        %v8717 = vpack.c.b16 %v8698, %v8697
        %v8718 = vpack.c.b16 %v8699, %v8699
        %v8738 = vsel %vm1585, %v8718, 0
        %8740 = vmatprep.subr.bf16.mxu0 0
        %8741 = vmatpush1.bf16.msra.mxu0 %v8707
        %8742 = vmatprep.subr.bf16.mxu0 0
        %8743 = vmatpush1.bf16.msra.mxu0 %v8706
        %8744 = vmatprep.subr.bf16.mxu0 0
        %8745 = vmatpush1.bf16.msra.mxu0 %v8705
        %8746 = vmatprep.subr.bf16.mxu0 0
        %8747 = vmatpush1.bf16.msra.mxu0 %v8704
        %8748 = vmatprep.subr.bf16.mxu0 0
        %8749 = vmatpush1.bf16.msra.mxu0 %v8703
        %8750 = vmatprep.subr.bf16.mxu0 0
        %8751 = vmatpush1.bf16.msra.mxu0 %v8702
        %8752 = vmatprep.subr.bf16.mxu0 0
        %8753 = vmatpush1.bf16.msra.mxu0 %v8701
        %8754 = vmatprep.subr.bf16.mxu0 0
        %8755 = vmatpush1.bf16.msra.mxu0 %v8700
        %8756 = vmatprep.subr.bf16.mxu0 0
        %8757 = vmatpush2.bf16.msra.mxu0 %v8715
        %8758 = vmatprep.subr.bf16.mxu0 0
        %8759 = vmatpush2.bf16.msra.mxu0 %v8714
        %8760 = vmatprep.subr.bf16.mxu0 0
        %8761 = vmatpush2.bf16.msra.mxu0 %v8713
        %8762 = vmatprep.subr.bf16.mxu0 0
        %8763 = vmatpush2.bf16.msra.mxu0 %v8712
        %8764 = vmatprep.subr.bf16.mxu0 0
        %8765 = vmatpush2.bf16.msra.mxu0 %v8711
        %8766 = vmatprep.subr.bf16.mxu0 0
        %8767 = vmatpush2.bf16.msra.mxu0 %v8710
        %8768 = vmatprep.subr.bf16.mxu0 0
        %8769 = vmatpush2.bf16.msra.mxu0 %v8709
        %8770 = vmatprep.subr.bf16.mxu0 0
        %8771 = vmatpush2.bf16.msra.mxu0 %v8708
        %8772 = vmatprep.mubr.bf16.mxu0 %v8425
        %8773 = vmatmul.mubr.bf16.gmra.mxu0 %v8424
        %v8774 = vpop.f32.mrf.mxu0
        %v8775 = vadd.f32 0.0, %v8774
        %v8776 = vpop.f32.mrf.mxu0
        %v8777 = vpop.f32.mrf.mxu0
        %v8778 = vpop.f32.mrf.mxu0
        %8779 = vdwg.mxu0
        %8780 = vmatprep.subr.bf16.mxu0 0
        %8781 = vmatpush1.bf16.msra.mxu0 0
        %8782 = vmatprep.subr.bf16.mxu0 0
        %8783 = vmatpush1.bf16.msra.mxu0 0
        %8784 = vmatprep.subr.bf16.mxu0 0
        %8785 = vmatpush1.bf16.msra.mxu0 0
        %8786 = vmatprep.subr.bf16.mxu0 0
        %8787 = vmatpush1.bf16.msra.mxu0 0
        %8788 = vmatprep.subr.bf16.mxu0 0
        %8789 = vmatpush1.bf16.msra.mxu0 0
        %8790 = vmatprep.subr.bf16.mxu0 0
        %8791 = vmatpush1.bf16.msra.mxu0 %v8738
        %8792 = vmatprep.subr.bf16.mxu0 0
        %8793 = vmatpush1.bf16.msra.mxu0 %v8717
        %8794 = vmatprep.subr.bf16.mxu0 0
        %8795 = vmatpush1.bf16.msra.mxu0 %v8716
        %8796 = vmatprep.subr.bf16.mxu0 0
        %8797 = vmatpush2.bf16.msra.mxu0 0
        %8798 = vmatprep.subr.bf16.mxu0 0
        %8799 = vmatpush2.bf16.msra.mxu0 0
        %8800 = vmatprep.subr.bf16.mxu0 0
        %8801 = vmatpush2.bf16.msra.mxu0 0
        %8802 = vmatprep.subr.bf16.mxu0 0
        %8803 = vmatpush2.bf16.msra.mxu0 0
        %8804 = vmatprep.subr.bf16.mxu0 0
        %8805 = vmatpush2.bf16.msra.mxu0 0
        %8806 = vmatprep.subr.bf16.mxu0 0
        %8807 = vmatpush2.bf16.msra.mxu0 0
        %8808 = vmatprep.subr.bf16.mxu0 0
        %8809 = vmatpush2.bf16.msra.mxu0 0
        %8810 = vmatprep.subr.bf16.mxu0 0
        %8811 = vmatpush2.bf16.msra.mxu0 0
        %8812 = vmatprep.mubr.bf16.mxu0 0
        %8813 = vmatmul.mubr.bf16.gmra.mxu0 %v8541
        %v8814 = vpop.f32.mrf.mxu0
        %v8815 = vadd.f32 %v8775, %v8814
        %v8816 = vpop.f32.mrf.mxu0
        %v8817 = vpop.f32.mrf.mxu0
        %v8818 = vpop.f32.mrf.mxu0
        %8819 = vdwg.mxu0
        %v8857 = vunpack.c.l.b16 %v8197
        %v8858 = vunpack.c.l.b16 %v8198
        %v8859 = vunpack.c.l.b16 %v8199
        %v8860 = vunpack.c.l.b16 %v8200
        %v8861 = vunpack.c.l.b16 %v8201
        %v8862 = vunpack.c.l.b16 %v8202
        %v8863 = vunpack.c.l.b16 %v8203
        %v8864 = vunpack.c.l.b16 %v8204
        %v8865 = vunpack.c.l.b16 %v8205
        %v8866 = vunpack.c.l.b16 %v8206
        %v8867 = vunpack.c.l.b16 %v8207
        %v8868 = vunpack.c.l.b16 %v8208
        %v8869 = vunpack.c.l.b16 %v8209
        %v8870 = vunpack.c.l.b16 %v8210
        %v8871 = vunpack.c.l.b16 %v8211
        %v8872 = vunpack.c.l.b16 %v8212
        %v8873 = vunpack.c.l.b16 %v8213
        %v8874 = vunpack.c.l.b16 %v8214
        %v8875 = vunpack.c.l.b16 %v8215
        %v8876 = vunpack.c.l.b16 %v8216
        %v8877 = vunpack.c.l.b16 %v8217
        %v8878 = vunpack.c.l.b16 %v8218
        %v8879 = vunpack.c.l.b16 %v8219
        %v8880 = vunpack.c.l.b16 %v8220
        %v8881 = vunpack.c.l.b16 %v8221
        %v8882 = vunpack.c.l.b16 %v8222
        %v8883 = vunpack.c.l.b16 %v8223
        %v8884 = vunpack.c.l.b16 %v8224
        %v8885 = vunpack.c.l.b16 %v8225
        %v8886 = vunpack.c.l.b16 %v8226
        %v8887 = vunpack.c.l.b16 %v8227
        %v8888 = vunpack.c.l.b16 %v8228
        %v8889 = vunpack.c.l.b16 %v8229
        %v8890 = vunpack.c.l.b16 %v8230
        %v8891 = vunpack.c.l.b16 %v8231
        %v8892 = vunpack.c.l.b16 %v8232
        %v8893 = vunpack.c.l.b16 %v8233
        %v8894 = vpack.c.b16 %v8858, %v8857
        %v8895 = vpack.c.b16 %v8860, %v8859
        %v8896 = vpack.c.b16 %v8862, %v8861
        %v8897 = vpack.c.b16 %v8864, %v8863
        %v8898 = vpack.c.b16 %v8866, %v8865
        %v8899 = vpack.c.b16 %v8868, %v8867
        %v8900 = vpack.c.b16 %v8870, %v8869
        %v8901 = vpack.c.b16 %v8872, %v8871
        %v8902 = vpack.c.b16 %v8874, %v8873
        %v8903 = vpack.c.b16 %v8876, %v8875
        %v8904 = vpack.c.b16 %v8878, %v8877
        %v8905 = vpack.c.b16 %v8880, %v8879
        %v8906 = vpack.c.b16 %v8882, %v8881
        %v8907 = vpack.c.b16 %v8884, %v8883
        %v8908 = vpack.c.b16 %v8886, %v8885
        %v8909 = vpack.c.b16 %v8888, %v8887
        %v8910 = vpack.c.b16 %v8890, %v8889
        %v8911 = vpack.c.b16 %v8892, %v8891
        %v8912 = vpack.c.b16 %v8893, %v8893
        %v8932 = vsel %vm1585, %v8912, 0
        %8934 = vmatprep.subr.bf16.mxu0 0
        %8935 = vmatpush1.bf16.msra.mxu0 %v8901
        %8936 = vmatprep.subr.bf16.mxu0 0
        %8937 = vmatpush1.bf16.msra.mxu0 %v8900
        %8938 = vmatprep.subr.bf16.mxu0 0
        %8939 = vmatpush1.bf16.msra.mxu0 %v8899
        %8940 = vmatprep.subr.bf16.mxu0 0
        %8941 = vmatpush1.bf16.msra.mxu0 %v8898
        %8942 = vmatprep.subr.bf16.mxu0 0
        %8943 = vmatpush1.bf16.msra.mxu0 %v8897
        %8944 = vmatprep.subr.bf16.mxu0 0
        %8945 = vmatpush1.bf16.msra.mxu0 %v8896
        %8946 = vmatprep.subr.bf16.mxu0 0
        %8947 = vmatpush1.bf16.msra.mxu0 %v8895
        %8948 = vmatprep.subr.bf16.mxu0 0
        %8949 = vmatpush1.bf16.msra.mxu0 %v8894
        %8950 = vmatprep.subr.bf16.mxu0 0
        %8951 = vmatpush2.bf16.msra.mxu0 %v8909
        %8952 = vmatprep.subr.bf16.mxu0 0
        %8953 = vmatpush2.bf16.msra.mxu0 %v8908
        %8954 = vmatprep.subr.bf16.mxu0 0
        %8955 = vmatpush2.bf16.msra.mxu0 %v8907
        %8956 = vmatprep.subr.bf16.mxu0 0
        %8957 = vmatpush2.bf16.msra.mxu0 %v8906
        %8958 = vmatprep.subr.bf16.mxu0 0
        %8959 = vmatpush2.bf16.msra.mxu0 %v8905
        %8960 = vmatprep.subr.bf16.mxu0 0
        %8961 = vmatpush2.bf16.msra.mxu0 %v8904
        %8962 = vmatprep.subr.bf16.mxu0 0
        %8963 = vmatpush2.bf16.msra.mxu0 %v8903
        %8964 = vmatprep.subr.bf16.mxu0 0
        %8965 = vmatpush2.bf16.msra.mxu0 %v8902
        %8966 = vmatprep.mubr.bf16.mxu0 %v8425
        %8967 = vmatmul.mubr.bf16.gmra.mxu0 %v8424
        %v8968 = vpop.f32.mrf.mxu0
        %v8969 = vadd.f32 0.0, %v8968
        %v8970 = vpop.f32.mrf.mxu0
        %v8971 = vpop.f32.mrf.mxu0
        %v8972 = vpop.f32.mrf.mxu0
        %8973 = vdwg.mxu0
        %8974 = vmatprep.subr.bf16.mxu0 0
        %8975 = vmatpush1.bf16.msra.mxu0 0
        %8976 = vmatprep.subr.bf16.mxu0 0
        %8977 = vmatpush1.bf16.msra.mxu0 0
        %8978 = vmatprep.subr.bf16.mxu0 0
        %8979 = vmatpush1.bf16.msra.mxu0 0
        %8980 = vmatprep.subr.bf16.mxu0 0
        %8981 = vmatpush1.bf16.msra.mxu0 0
        %8982 = vmatprep.subr.bf16.mxu0 0
        %8983 = vmatpush1.bf16.msra.mxu0 0
        %8984 = vmatprep.subr.bf16.mxu0 0
        %8985 = vmatpush1.bf16.msra.mxu0 %v8932
        %8986 = vmatprep.subr.bf16.mxu0 0
        %8987 = vmatpush1.bf16.msra.mxu0 %v8911
        %8988 = vmatprep.subr.bf16.mxu0 0
        %8989 = vmatpush1.bf16.msra.mxu0 %v8910
        %8990 = vmatprep.subr.bf16.mxu0 0
        %8991 = vmatpush2.bf16.msra.mxu0 0
        %8992 = vmatprep.subr.bf16.mxu0 0
        %8993 = vmatpush2.bf16.msra.mxu0 0
        %8994 = vmatprep.subr.bf16.mxu0 0
        %8995 = vmatpush2.bf16.msra.mxu0 0
        %8996 = vmatprep.subr.bf16.mxu0 0
        %8997 = vmatpush2.bf16.msra.mxu0 0
        %8998 = vmatprep.subr.bf16.mxu0 0
        %8999 = vmatpush2.bf16.msra.mxu0 0
        %9000 = vmatprep.subr.bf16.mxu0 0
        %9001 = vmatpush2.bf16.msra.mxu0 0
        %9002 = vmatprep.subr.bf16.mxu0 0
        %9003 = vmatpush2.bf16.msra.mxu0 0
        %9004 = vmatprep.subr.bf16.mxu0 0
        %9005 = vmatpush2.bf16.msra.mxu0 0
        %9006 = vmatprep.mubr.bf16.mxu0 0
        %9007 = vmatmul.mubr.bf16.gmra.mxu0 %v8541
        %v9008 = vpop.f32.mrf.mxu0
        %v9009 = vadd.f32 %v8969, %v9008
        %v9010 = vpop.f32.mrf.mxu0
        %v9011 = vpop.f32.mrf.mxu0
        %v9012 = vpop.f32.mrf.mxu0
        %9013 = vdwg.mxu0
        %v9051 = vunpack.c.l.b16 %v8234
        %v9052 = vunpack.c.l.b16 %v8235
        %v9053 = vunpack.c.l.b16 %v8236
        %v9054 = vunpack.c.l.b16 %v8237
        %v9055 = vunpack.c.l.b16 %v8238
        %v9056 = vunpack.c.l.b16 %v8239
        %v9057 = vunpack.c.l.b16 %v8240
        %v9058 = vunpack.c.l.b16 %v8241
        %v9059 = vunpack.c.l.b16 %v8242
        %v9060 = vunpack.c.l.b16 %v8243
        %v9061 = vunpack.c.l.b16 %v8244
        %v9062 = vunpack.c.l.b16 %v8245
        %v9063 = vunpack.c.l.b16 %v8246
        %v9064 = vunpack.c.l.b16 %v8247
        %v9065 = vunpack.c.l.b16 %v8248
        %v9066 = vunpack.c.l.b16 %v8249
        %v9067 = vunpack.c.l.b16 %v8250
        %v9068 = vunpack.c.l.b16 %v8251
        %v9069 = vunpack.c.l.b16 %v8252
        %v9070 = vunpack.c.l.b16 %v8253
        %v9071 = vunpack.c.l.b16 %v8254
        %v9072 = vunpack.c.l.b16 %v8255
        %v9073 = vunpack.c.l.b16 %v8256
        %v9074 = vunpack.c.l.b16 %v8257
        %v9075 = vunpack.c.l.b16 %v8258
        %v9076 = vunpack.c.l.b16 %v8259
        %v9077 = vunpack.c.l.b16 %v8260
        %v9078 = vunpack.c.l.b16 %v8261
        %v9079 = vunpack.c.l.b16 %v8262
        %v9080 = vunpack.c.l.b16 %v8263
        %v9081 = vunpack.c.l.b16 %v8264
        %v9082 = vunpack.c.l.b16 %v8265
        %v9083 = vunpack.c.l.b16 %v8266
        %v9084 = vunpack.c.l.b16 %v8267
        %v9085 = vunpack.c.l.b16 %v8268
        %v9086 = vunpack.c.l.b16 %v8269
        %v9087 = vunpack.c.l.b16 %v8270
        %v9088 = vpack.c.b16 %v9052, %v9051
        %v9089 = vpack.c.b16 %v9054, %v9053
        %v9090 = vpack.c.b16 %v9056, %v9055
        %v9091 = vpack.c.b16 %v9058, %v9057
        %v9092 = vpack.c.b16 %v9060, %v9059
        %v9093 = vpack.c.b16 %v9062, %v9061
        %v9094 = vpack.c.b16 %v9064, %v9063
        %v9095 = vpack.c.b16 %v9066, %v9065
        %v9096 = vpack.c.b16 %v9068, %v9067
        %v9097 = vpack.c.b16 %v9070, %v9069
        %v9098 = vpack.c.b16 %v9072, %v9071
        %v9099 = vpack.c.b16 %v9074, %v9073
        %v9100 = vpack.c.b16 %v9076, %v9075
        %v9101 = vpack.c.b16 %v9078, %v9077
        %v9102 = vpack.c.b16 %v9080, %v9079
        %v9103 = vpack.c.b16 %v9082, %v9081
        %v9104 = vpack.c.b16 %v9084, %v9083
        %v9105 = vpack.c.b16 %v9086, %v9085
        %v9106 = vpack.c.b16 %v9087, %v9087
        %v9126 = vsel %vm1585, %v9106, 0
        %9128 = vmatprep.subr.bf16.mxu0 0
        %9129 = vmatpush1.bf16.msra.mxu0 %v9095
        %9130 = vmatprep.subr.bf16.mxu0 0
        %9131 = vmatpush1.bf16.msra.mxu0 %v9094
        %9132 = vmatprep.subr.bf16.mxu0 0
        %9133 = vmatpush1.bf16.msra.mxu0 %v9093
        %9134 = vmatprep.subr.bf16.mxu0 0
        %9135 = vmatpush1.bf16.msra.mxu0 %v9092
        %9136 = vmatprep.subr.bf16.mxu0 0
        %9137 = vmatpush1.bf16.msra.mxu0 %v9091
        %9138 = vmatprep.subr.bf16.mxu0 0
        %9139 = vmatpush1.bf16.msra.mxu0 %v9090
        %9140 = vmatprep.subr.bf16.mxu0 0
        %9141 = vmatpush1.bf16.msra.mxu0 %v9089
        %9142 = vmatprep.subr.bf16.mxu0 0
        %9143 = vmatpush1.bf16.msra.mxu0 %v9088
        %9144 = vmatprep.subr.bf16.mxu0 0
        %9145 = vmatpush2.bf16.msra.mxu0 %v9103
        %9146 = vmatprep.subr.bf16.mxu0 0
        %9147 = vmatpush2.bf16.msra.mxu0 %v9102
        %9148 = vmatprep.subr.bf16.mxu0 0
        %9149 = vmatpush2.bf16.msra.mxu0 %v9101
        %9150 = vmatprep.subr.bf16.mxu0 0
        %9151 = vmatpush2.bf16.msra.mxu0 %v9100
        %9152 = vmatprep.subr.bf16.mxu0 0
        %9153 = vmatpush2.bf16.msra.mxu0 %v9099
        %9154 = vmatprep.subr.bf16.mxu0 0
        %9155 = vmatpush2.bf16.msra.mxu0 %v9098
        %9156 = vmatprep.subr.bf16.mxu0 0
        %9157 = vmatpush2.bf16.msra.mxu0 %v9097
        %9158 = vmatprep.subr.bf16.mxu0 0
        %9159 = vmatpush2.bf16.msra.mxu0 %v9096
        %9160 = vmatprep.mubr.bf16.mxu0 %v8425
        %9161 = vmatmul.mubr.bf16.gmra.mxu0 %v8424
        %v9162 = vpop.f32.mrf.mxu0
        %v9163 = vadd.f32 0.0, %v9162
        %v9164 = vpop.f32.mrf.mxu0
        %v9165 = vpop.f32.mrf.mxu0
        %v9166 = vpop.f32.mrf.mxu0
        %9167 = vdwg.mxu0
        %9168 = vmatprep.subr.bf16.mxu0 0
        %9169 = vmatpush1.bf16.msra.mxu0 0
        %9170 = vmatprep.subr.bf16.mxu0 0
        %9171 = vmatpush1.bf16.msra.mxu0 0
        %9172 = vmatprep.subr.bf16.mxu0 0
        %9173 = vmatpush1.bf16.msra.mxu0 0
        %9174 = vmatprep.subr.bf16.mxu0 0
        %9175 = vmatpush1.bf16.msra.mxu0 0
        %9176 = vmatprep.subr.bf16.mxu0 0
        %9177 = vmatpush1.bf16.msra.mxu0 0
        %9178 = vmatprep.subr.bf16.mxu0 0
        %9179 = vmatpush1.bf16.msra.mxu0 %v9126
        %9180 = vmatprep.subr.bf16.mxu0 0
        %9181 = vmatpush1.bf16.msra.mxu0 %v9105
        %9182 = vmatprep.subr.bf16.mxu0 0
        %9183 = vmatpush1.bf16.msra.mxu0 %v9104
        %9184 = vmatprep.subr.bf16.mxu0 0
        %9185 = vmatpush2.bf16.msra.mxu0 0
        %9186 = vmatprep.subr.bf16.mxu0 0
        %9187 = vmatpush2.bf16.msra.mxu0 0
        %9188 = vmatprep.subr.bf16.mxu0 0
        %9189 = vmatpush2.bf16.msra.mxu0 0
        %9190 = vmatprep.subr.bf16.mxu0 0
        %9191 = vmatpush2.bf16.msra.mxu0 0
        %9192 = vmatprep.subr.bf16.mxu0 0
        %9193 = vmatpush2.bf16.msra.mxu0 0
        %9194 = vmatprep.subr.bf16.mxu0 0
        %9195 = vmatpush2.bf16.msra.mxu0 0
        %9196 = vmatprep.subr.bf16.mxu0 0
        %9197 = vmatpush2.bf16.msra.mxu0 0
        %9198 = vmatprep.subr.bf16.mxu0 0
        %9199 = vmatpush2.bf16.msra.mxu0 0
        %9200 = vmatprep.mubr.bf16.mxu0 0
        %9201 = vmatmul.mubr.bf16.gmra.mxu0 %v8541
        %v9202 = vpop.f32.mrf.mxu0
        %v9203 = vadd.f32 %v9163, %v9202
        %v9204 = vpop.f32.mrf.mxu0
        %v9205 = vpop.f32.mrf.mxu0
        %v9206 = vpop.f32.mrf.mxu0
        %9207 = vdwg.mxu0
        %v9245 = vunpack.c.l.b16 %v8271
        %v9246 = vunpack.c.l.b16 %v8272
        %v9247 = vunpack.c.l.b16 %v8273
        %v9248 = vunpack.c.l.b16 %v8274
        %v9249 = vunpack.c.l.b16 %v8275
        %v9250 = vunpack.c.l.b16 %v8276
        %v9251 = vunpack.c.l.b16 %v8277
        %v9252 = vunpack.c.l.b16 %v8278
        %v9253 = vunpack.c.l.b16 %v8279
        %v9254 = vunpack.c.l.b16 %v8280
        %v9255 = vunpack.c.l.b16 %v8281
        %v9256 = vunpack.c.l.b16 %v8282
        %v9257 = vunpack.c.l.b16 %v8283
        %v9258 = vunpack.c.l.b16 %v8284
        %v9259 = vunpack.c.l.b16 %v8285
        %v9260 = vunpack.c.l.b16 %v8286
        %v9261 = vunpack.c.l.b16 %v8287
        %v9262 = vunpack.c.l.b16 %v8288
        %v9263 = vunpack.c.l.b16 %v8289
        %v9264 = vunpack.c.l.b16 %v8290
        %v9265 = vunpack.c.l.b16 %v8291
        %v9266 = vunpack.c.l.b16 %v8292
        %v9267 = vunpack.c.l.b16 %v8293
        %v9268 = vunpack.c.l.b16 %v8294
        %v9269 = vunpack.c.l.b16 %v8295
        %v9270 = vunpack.c.l.b16 %v8296
        %v9271 = vunpack.c.l.b16 %v8297
        %v9272 = vunpack.c.l.b16 %v8298
        %v9273 = vunpack.c.l.b16 %v8299
        %v9274 = vunpack.c.l.b16 %v8300
        %v9275 = vunpack.c.l.b16 %v8301
        %v9276 = vunpack.c.l.b16 %v8302
        %v9277 = vunpack.c.l.b16 %v8303
        %v9278 = vunpack.c.l.b16 %v8304
        %v9279 = vunpack.c.l.b16 %v8305
        %v9280 = vunpack.c.l.b16 %v8306
        %v9281 = vunpack.c.l.b16 %v8307
        %v9282 = vpack.c.b16 %v9246, %v9245
        %v9283 = vpack.c.b16 %v9248, %v9247
        %v9284 = vpack.c.b16 %v9250, %v9249
        %v9285 = vpack.c.b16 %v9252, %v9251
        %v9286 = vpack.c.b16 %v9254, %v9253
        %v9287 = vpack.c.b16 %v9256, %v9255
        %v9288 = vpack.c.b16 %v9258, %v9257
        %v9289 = vpack.c.b16 %v9260, %v9259
        %v9290 = vpack.c.b16 %v9262, %v9261
        %v9291 = vpack.c.b16 %v9264, %v9263
        %v9292 = vpack.c.b16 %v9266, %v9265
        %v9293 = vpack.c.b16 %v9268, %v9267
        %v9294 = vpack.c.b16 %v9270, %v9269
        %v9295 = vpack.c.b16 %v9272, %v9271
        %v9296 = vpack.c.b16 %v9274, %v9273
        %v9297 = vpack.c.b16 %v9276, %v9275
        %v9298 = vpack.c.b16 %v9278, %v9277
        %v9299 = vpack.c.b16 %v9280, %v9279
        %v9300 = vpack.c.b16 %v9281, %v9281
        %v9320 = vsel %vm1585, %v9300, 0
        %9322 = vmatprep.subr.bf16.mxu0 0
        %9323 = vmatpush1.bf16.msra.mxu0 %v9289
        %9324 = vmatprep.subr.bf16.mxu0 0
        %9325 = vmatpush1.bf16.msra.mxu0 %v9288
        %9326 = vmatprep.subr.bf16.mxu0 0
        %9327 = vmatpush1.bf16.msra.mxu0 %v9287
        %9328 = vmatprep.subr.bf16.mxu0 0
        %9329 = vmatpush1.bf16.msra.mxu0 %v9286
        %9330 = vmatprep.subr.bf16.mxu0 0
        %9331 = vmatpush1.bf16.msra.mxu0 %v9285
        %9332 = vmatprep.subr.bf16.mxu0 0
        %9333 = vmatpush1.bf16.msra.mxu0 %v9284
        %9334 = vmatprep.subr.bf16.mxu0 0
        %9335 = vmatpush1.bf16.msra.mxu0 %v9283
        %9336 = vmatprep.subr.bf16.mxu0 0
        %9337 = vmatpush1.bf16.msra.mxu0 %v9282
        %9338 = vmatprep.subr.bf16.mxu0 0
        %9339 = vmatpush2.bf16.msra.mxu0 %v9297
        %9340 = vmatprep.subr.bf16.mxu0 0
        %9341 = vmatpush2.bf16.msra.mxu0 %v9296
        %9342 = vmatprep.subr.bf16.mxu0 0
        %9343 = vmatpush2.bf16.msra.mxu0 %v9295
        %9344 = vmatprep.subr.bf16.mxu0 0
        %9345 = vmatpush2.bf16.msra.mxu0 %v9294
        %9346 = vmatprep.subr.bf16.mxu0 0
        %9347 = vmatpush2.bf16.msra.mxu0 %v9293
        %9348 = vmatprep.subr.bf16.mxu0 0
        %9349 = vmatpush2.bf16.msra.mxu0 %v9292
        %9350 = vmatprep.subr.bf16.mxu0 0
        %9351 = vmatpush2.bf16.msra.mxu0 %v9291
        %9352 = vmatprep.subr.bf16.mxu0 0
        %9353 = vmatpush2.bf16.msra.mxu0 %v9290
        %9354 = vmatprep.mubr.bf16.mxu0 %v8425
        %9355 = vmatmul.mubr.bf16.gmra.mxu0 %v8424
        %v9356 = vpop.f32.mrf.mxu0
        %v9357 = vadd.f32 0.0, %v9356
        %v9358 = vpop.f32.mrf.mxu0
        %v9359 = vpop.f32.mrf.mxu0
        %v9360 = vpop.f32.mrf.mxu0
        %9361 = vdwg.mxu0
        %9362 = vmatprep.subr.bf16.mxu0 0
        %9363 = vmatpush1.bf16.msra.mxu0 0
        %9364 = vmatprep.subr.bf16.mxu0 0
        %9365 = vmatpush1.bf16.msra.mxu0 0
        %9366 = vmatprep.subr.bf16.mxu0 0
        %9367 = vmatpush1.bf16.msra.mxu0 0
        %9368 = vmatprep.subr.bf16.mxu0 0
        %9369 = vmatpush1.bf16.msra.mxu0 0
        %9370 = vmatprep.subr.bf16.mxu0 0
        %9371 = vmatpush1.bf16.msra.mxu0 0
        %9372 = vmatprep.subr.bf16.mxu0 0
        %9373 = vmatpush1.bf16.msra.mxu0 %v9320
        %9374 = vmatprep.subr.bf16.mxu0 0
        %9375 = vmatpush1.bf16.msra.mxu0 %v9299
        %9376 = vmatprep.subr.bf16.mxu0 0
        %9377 = vmatpush1.bf16.msra.mxu0 %v9298
        %9378 = vmatprep.subr.bf16.mxu0 0
        %9379 = vmatpush2.bf16.msra.mxu0 0
        %9380 = vmatprep.subr.bf16.mxu0 0
        %9381 = vmatpush2.bf16.msra.mxu0 0
        %9382 = vmatprep.subr.bf16.mxu0 0
        %9383 = vmatpush2.bf16.msra.mxu0 0
        %9384 = vmatprep.subr.bf16.mxu0 0
        %9385 = vmatpush2.bf16.msra.mxu0 0
        %9386 = vmatprep.subr.bf16.mxu0 0
        %9387 = vmatpush2.bf16.msra.mxu0 0
        %9388 = vmatprep.subr.bf16.mxu0 0
        %9389 = vmatpush2.bf16.msra.mxu0 0
        %9390 = vmatprep.subr.bf16.mxu0 0
        %9391 = vmatpush2.bf16.msra.mxu0 0
        %9392 = vmatprep.subr.bf16.mxu0 0
        %9393 = vmatpush2.bf16.msra.mxu0 0
        %9394 = vmatprep.mubr.bf16.mxu0 0
        %9395 = vmatmul.mubr.bf16.gmra.mxu0 %v8541
        %v9396 = vpop.f32.mrf.mxu0
        %v9397 = vadd.f32 %v9357, %v9396
        %v9398 = vpop.f32.mrf.mxu0
        %v9399 = vpop.f32.mrf.mxu0
        %v9400 = vpop.f32.mrf.mxu0
        %9401 = vdwg.mxu0
        %v9439 = vunpack.c.l.b16 %v8308
        %v9440 = vunpack.c.l.b16 %v8309
        %v9441 = vunpack.c.l.b16 %v8310
        %v9442 = vunpack.c.l.b16 %v8311
        %v9443 = vunpack.c.l.b16 %v8312
        %v9444 = vunpack.c.l.b16 %v8313
        %v9445 = vunpack.c.l.b16 %v8314
        %v9446 = vunpack.c.l.b16 %v8315
        %v9447 = vunpack.c.l.b16 %v8316
        %v9448 = vunpack.c.l.b16 %v8317
        %v9449 = vunpack.c.l.b16 %v8318
        %v9450 = vunpack.c.l.b16 %v8319
        %v9451 = vunpack.c.l.b16 %v8320
        %v9452 = vunpack.c.l.b16 %v8321
        %v9453 = vunpack.c.l.b16 %v8322
        %v9454 = vunpack.c.l.b16 %v8323
        %v9455 = vunpack.c.l.b16 %v8324
        %v9456 = vunpack.c.l.b16 %v8325
        %v9457 = vunpack.c.l.b16 %v8326
        %v9458 = vunpack.c.l.b16 %v8327
        %v9459 = vunpack.c.l.b16 %v8328
        %v9460 = vunpack.c.l.b16 %v8329
        %v9461 = vunpack.c.l.b16 %v8330
        %v9462 = vunpack.c.l.b16 %v8331
        %v9463 = vunpack.c.l.b16 %v8332
        %v9464 = vunpack.c.l.b16 %v8333
        %v9465 = vunpack.c.l.b16 %v8334
        %v9466 = vunpack.c.l.b16 %v8335
        %v9467 = vunpack.c.l.b16 %v8336
        %v9468 = vunpack.c.l.b16 %v8337
        %v9469 = vunpack.c.l.b16 %v8338
        %v9470 = vunpack.c.l.b16 %v8339
        %v9471 = vunpack.c.l.b16 %v8340
        %v9472 = vunpack.c.l.b16 %v8341
        %v9473 = vunpack.c.l.b16 %v8342
        %v9474 = vunpack.c.l.b16 %v8343
        %v9475 = vunpack.c.l.b16 %v8344
        %v9476 = vpack.c.b16 %v9440, %v9439
        %v9477 = vpack.c.b16 %v9442, %v9441
        %v9478 = vpack.c.b16 %v9444, %v9443
        %v9479 = vpack.c.b16 %v9446, %v9445
        %v9480 = vpack.c.b16 %v9448, %v9447
        %v9481 = vpack.c.b16 %v9450, %v9449
        %v9482 = vpack.c.b16 %v9452, %v9451
        %v9483 = vpack.c.b16 %v9454, %v9453
        %v9484 = vpack.c.b16 %v9456, %v9455
        %v9485 = vpack.c.b16 %v9458, %v9457
        %v9486 = vpack.c.b16 %v9460, %v9459
        %v9487 = vpack.c.b16 %v9462, %v9461
        %v9488 = vpack.c.b16 %v9464, %v9463
        %v9489 = vpack.c.b16 %v9466, %v9465
        %v9490 = vpack.c.b16 %v9468, %v9467
        %v9491 = vpack.c.b16 %v9470, %v9469
        %v9492 = vpack.c.b16 %v9472, %v9471
        %v9493 = vpack.c.b16 %v9474, %v9473
        %v9494 = vpack.c.b16 %v9475, %v9475
        %v9514 = vsel %vm1585, %v9494, 0
        %9516 = vmatprep.subr.bf16.mxu0 0
        %9517 = vmatpush1.bf16.msra.mxu0 %v9483
        %9518 = vmatprep.subr.bf16.mxu0 0
        %9519 = vmatpush1.bf16.msra.mxu0 %v9482
        %9520 = vmatprep.subr.bf16.mxu0 0
        %9521 = vmatpush1.bf16.msra.mxu0 %v9481
        %9522 = vmatprep.subr.bf16.mxu0 0
        %9523 = vmatpush1.bf16.msra.mxu0 %v9480
        %9524 = vmatprep.subr.bf16.mxu0 0
        %9525 = vmatpush1.bf16.msra.mxu0 %v9479
        %9526 = vmatprep.subr.bf16.mxu0 0
        %9527 = vmatpush1.bf16.msra.mxu0 %v9478
        %9528 = vmatprep.subr.bf16.mxu0 0
        %9529 = vmatpush1.bf16.msra.mxu0 %v9477
        %9530 = vmatprep.subr.bf16.mxu0 0
        %9531 = vmatpush1.bf16.msra.mxu0 %v9476
        %9532 = vmatprep.subr.bf16.mxu0 0
        %9533 = vmatpush2.bf16.msra.mxu0 %v9491
        %9534 = vmatprep.subr.bf16.mxu0 0
        %9535 = vmatpush2.bf16.msra.mxu0 %v9490
        %9536 = vmatprep.subr.bf16.mxu0 0
        %9537 = vmatpush2.bf16.msra.mxu0 %v9489
        %9538 = vmatprep.subr.bf16.mxu0 0
        %9539 = vmatpush2.bf16.msra.mxu0 %v9488
        %9540 = vmatprep.subr.bf16.mxu0 0
        %9541 = vmatpush2.bf16.msra.mxu0 %v9487
        %9542 = vmatprep.subr.bf16.mxu0 0
        %9543 = vmatpush2.bf16.msra.mxu0 %v9486
        %9544 = vmatprep.subr.bf16.mxu0 0
        %9545 = vmatpush2.bf16.msra.mxu0 %v9485
        %9546 = vmatprep.subr.bf16.mxu0 0
        %9547 = vmatpush2.bf16.msra.mxu0 %v9484
        %9548 = vmatprep.mubr.bf16.mxu0 %v8425
        %9549 = vmatmul.mubr.bf16.gmra.mxu0 %v8424
        %v9550 = vpop.f32.mrf.mxu0
        %v9551 = vadd.f32 0.0, %v9550
        %v9552 = vpop.f32.mrf.mxu0
        %v9553 = vpop.f32.mrf.mxu0
        %v9554 = vpop.f32.mrf.mxu0
        %9555 = vdwg.mxu0
        %9556 = vmatprep.subr.bf16.mxu0 0
        %9557 = vmatpush1.bf16.msra.mxu0 0
        %9558 = vmatprep.subr.bf16.mxu0 0
        %9559 = vmatpush1.bf16.msra.mxu0 0
        %9560 = vmatprep.subr.bf16.mxu0 0
        %9561 = vmatpush1.bf16.msra.mxu0 0
        %9562 = vmatprep.subr.bf16.mxu0 0
        %9563 = vmatpush1.bf16.msra.mxu0 0
        %9564 = vmatprep.subr.bf16.mxu0 0
        %9565 = vmatpush1.bf16.msra.mxu0 0
        %9566 = vmatprep.subr.bf16.mxu0 0
        %9567 = vmatpush1.bf16.msra.mxu0 %v9514
        %9568 = vmatprep.subr.bf16.mxu0 0
        %9569 = vmatpush1.bf16.msra.mxu0 %v9493
        %9570 = vmatprep.subr.bf16.mxu0 0
        %9571 = vmatpush1.bf16.msra.mxu0 %v9492
        %9572 = vmatprep.subr.bf16.mxu0 0
        %9573 = vmatpush2.bf16.msra.mxu0 0
        %9574 = vmatprep.subr.bf16.mxu0 0
        %9575 = vmatpush2.bf16.msra.mxu0 0
        %9576 = vmatprep.subr.bf16.mxu0 0
        %9577 = vmatpush2.bf16.msra.mxu0 0
        %9578 = vmatprep.subr.bf16.mxu0 0
        %9579 = vmatpush2.bf16.msra.mxu0 0
        %9580 = vmatprep.subr.bf16.mxu0 0
        %9581 = vmatpush2.bf16.msra.mxu0 0
        %9582 = vmatprep.subr.bf16.mxu0 0
        %9583 = vmatpush2.bf16.msra.mxu0 0
        %9584 = vmatprep.subr.bf16.mxu0 0
        %9585 = vmatpush2.bf16.msra.mxu0 0
        %9586 = vmatprep.subr.bf16.mxu0 0
        %9587 = vmatpush2.bf16.msra.mxu0 0
        %9588 = vmatprep.mubr.bf16.mxu0 0
        %9589 = vmatmul.mubr.bf16.gmra.mxu0 %v8541
        %v9590 = vpop.f32.mrf.mxu0
        %v9591 = vadd.f32 %v9551, %v9590
        %v9592 = vpop.f32.mrf.mxu0
        %v9593 = vpop.f32.mrf.mxu0
        %v9594 = vpop.f32.mrf.mxu0
        %9595 = vdwg.mxu0
        %v9633 = vunpack.c.l.b16 %v8345
        %v9634 = vunpack.c.l.b16 %v8346
        %v9635 = vunpack.c.l.b16 %v8347
        %v9636 = vunpack.c.l.b16 %v8348
        %v9637 = vunpack.c.l.b16 %v8349
        %v9638 = vunpack.c.l.b16 %v8350
        %v9639 = vunpack.c.l.b16 %v8351
        %v9640 = vunpack.c.l.b16 %v8352
        %v9641 = vunpack.c.l.b16 %v8353
        %v9642 = vunpack.c.l.b16 %v8354
        %v9643 = vunpack.c.l.b16 %v8355
        %v9644 = vunpack.c.l.b16 %v8356
        %v9645 = vunpack.c.l.b16 %v8357
        %v9646 = vunpack.c.l.b16 %v8358
        %v9647 = vunpack.c.l.b16 %v8359
        %v9648 = vunpack.c.l.b16 %v8360
        %v9649 = vunpack.c.l.b16 %v8361
        %v9650 = vunpack.c.l.b16 %v8362
        %v9651 = vunpack.c.l.b16 %v8363
        %v9652 = vunpack.c.l.b16 %v8364
        %v9653 = vunpack.c.l.b16 %v8365
        %v9654 = vunpack.c.l.b16 %v8366
        %v9655 = vunpack.c.l.b16 %v8367
        %v9656 = vunpack.c.l.b16 %v8368
        %v9657 = vunpack.c.l.b16 %v8369
        %v9658 = vunpack.c.l.b16 %v8370
        %v9659 = vunpack.c.l.b16 %v8371
        %v9660 = vunpack.c.l.b16 %v8372
        %v9661 = vunpack.c.l.b16 %v8373
        %v9662 = vunpack.c.l.b16 %v8374
        %v9663 = vunpack.c.l.b16 %v8375
        %v9664 = vunpack.c.l.b16 %v8376
        %v9665 = vunpack.c.l.b16 %v8377
        %v9666 = vunpack.c.l.b16 %v8378
        %v9667 = vunpack.c.l.b16 %v8379
        %v9668 = vunpack.c.l.b16 %v8380
        %v9669 = vunpack.c.l.b16 %v8381
        %v9670 = vpack.c.b16 %v9634, %v9633
        %v9671 = vpack.c.b16 %v9636, %v9635
        %v9672 = vpack.c.b16 %v9638, %v9637
        %v9673 = vpack.c.b16 %v9640, %v9639
        %v9674 = vpack.c.b16 %v9642, %v9641
        %v9675 = vpack.c.b16 %v9644, %v9643
        %v9676 = vpack.c.b16 %v9646, %v9645
        %v9677 = vpack.c.b16 %v9648, %v9647
        %v9678 = vpack.c.b16 %v9650, %v9649
        %v9679 = vpack.c.b16 %v9652, %v9651
        %v9680 = vpack.c.b16 %v9654, %v9653
        %v9681 = vpack.c.b16 %v9656, %v9655
        %v9682 = vpack.c.b16 %v9658, %v9657
        %v9683 = vpack.c.b16 %v9660, %v9659
        %v9684 = vpack.c.b16 %v9662, %v9661
        %v9685 = vpack.c.b16 %v9664, %v9663
        %v9686 = vpack.c.b16 %v9666, %v9665
        %v9687 = vpack.c.b16 %v9668, %v9667
        %v9688 = vpack.c.b16 %v9669, %v9669
        %v9708 = vsel %vm1585, %v9688, 0
        %9710 = vmatprep.subr.bf16.mxu0 0
        %9711 = vmatpush1.bf16.msra.mxu0 %v9677
        %9712 = vmatprep.subr.bf16.mxu0 0
        %9713 = vmatpush1.bf16.msra.mxu0 %v9676
        %9714 = vmatprep.subr.bf16.mxu0 0
        %9715 = vmatpush1.bf16.msra.mxu0 %v9675
        %9716 = vmatprep.subr.bf16.mxu0 0
        %9717 = vmatpush1.bf16.msra.mxu0 %v9674
        %9718 = vmatprep.subr.bf16.mxu0 0
        %9719 = vmatpush1.bf16.msra.mxu0 %v9673
        %9720 = vmatprep.subr.bf16.mxu0 0
        %9721 = vmatpush1.bf16.msra.mxu0 %v9672
        %9722 = vmatprep.subr.bf16.mxu0 0
        %9723 = vmatpush1.bf16.msra.mxu0 %v9671
        %9724 = vmatprep.subr.bf16.mxu0 0
        %9725 = vmatpush1.bf16.msra.mxu0 %v9670
        %9726 = vmatprep.subr.bf16.mxu0 0
        %9727 = vmatpush2.bf16.msra.mxu0 %v9685
        %9728 = vmatprep.subr.bf16.mxu0 0
        %9729 = vmatpush2.bf16.msra.mxu0 %v9684
        %9730 = vmatprep.subr.bf16.mxu0 0
        %9731 = vmatpush2.bf16.msra.mxu0 %v9683
        %9732 = vmatprep.subr.bf16.mxu0 0
        %9733 = vmatpush2.bf16.msra.mxu0 %v9682
        %9734 = vmatprep.subr.bf16.mxu0 0
        %9735 = vmatpush2.bf16.msra.mxu0 %v9681
        %9736 = vmatprep.subr.bf16.mxu0 0
        %9737 = vmatpush2.bf16.msra.mxu0 %v9680
        %9738 = vmatprep.subr.bf16.mxu0 0
        %9739 = vmatpush2.bf16.msra.mxu0 %v9679
        %9740 = vmatprep.subr.bf16.mxu0 0
        %9741 = vmatpush2.bf16.msra.mxu0 %v9678
        %9742 = vmatprep.mubr.bf16.mxu0 %v8425
        %9743 = vmatmul.mubr.bf16.gmra.mxu0 %v8424
        %v9744 = vpop.f32.mrf.mxu0
        %v9745 = vadd.f32 0.0, %v9744
        %v9746 = vpop.f32.mrf.mxu0
        %v9747 = vpop.f32.mrf.mxu0
        %v9748 = vpop.f32.mrf.mxu0
        %9749 = vdwg.mxu0
        %9750 = vmatprep.subr.bf16.mxu0 0
        %9751 = vmatpush1.bf16.msra.mxu0 0
        %9752 = vmatprep.subr.bf16.mxu0 0
        %9753 = vmatpush1.bf16.msra.mxu0 0
        %9754 = vmatprep.subr.bf16.mxu0 0
        %9755 = vmatpush1.bf16.msra.mxu0 0
        %9756 = vmatprep.subr.bf16.mxu0 0
        %9757 = vmatpush1.bf16.msra.mxu0 0
        %9758 = vmatprep.subr.bf16.mxu0 0
        %9759 = vmatpush1.bf16.msra.mxu0 0
        %9760 = vmatprep.subr.bf16.mxu0 0
        %9761 = vmatpush1.bf16.msra.mxu0 %v9708
        %9762 = vmatprep.subr.bf16.mxu0 0
        %9763 = vmatpush1.bf16.msra.mxu0 %v9687
        %9764 = vmatprep.subr.bf16.mxu0 0
        %9765 = vmatpush1.bf16.msra.mxu0 %v9686
        %9766 = vmatprep.subr.bf16.mxu0 0
        %9767 = vmatpush2.bf16.msra.mxu0 0
        %9768 = vmatprep.subr.bf16.mxu0 0
        %9769 = vmatpush2.bf16.msra.mxu0 0
        %9770 = vmatprep.subr.bf16.mxu0 0
        %9771 = vmatpush2.bf16.msra.mxu0 0
        %9772 = vmatprep.subr.bf16.mxu0 0
        %9773 = vmatpush2.bf16.msra.mxu0 0
        %9774 = vmatprep.subr.bf16.mxu0 0
        %9775 = vmatpush2.bf16.msra.mxu0 0
        %9776 = vmatprep.subr.bf16.mxu0 0
        %9777 = vmatpush2.bf16.msra.mxu0 0
        %9778 = vmatprep.subr.bf16.mxu0 0
        %9779 = vmatpush2.bf16.msra.mxu0 0
        %9780 = vmatprep.subr.bf16.mxu0 0
        %9781 = vmatpush2.bf16.msra.mxu0 0
        %9782 = vmatprep.mubr.bf16.mxu0 0
        %9783 = vmatmul.mubr.bf16.gmra.mxu0 %v8541
        %v9784 = vpop.f32.mrf.mxu0
        %v9785 = vadd.f32 %v9745, %v9784
        %v9786 = vpop.f32.mrf.mxu0
        %v9787 = vpop.f32.mrf.mxu0
        %v9788 = vpop.f32.mrf.mxu0
        %9789 = vdwg.mxu0
        %v9827 = vunpack.c.l.b16 %v8382
        %v9828 = vunpack.c.l.b16 %v8383
        %v9829 = vunpack.c.l.b16 %v8384
        %v9830 = vunpack.c.l.b16 %v8385
        %v9831 = vunpack.c.l.b16 %v8386
        %v9832 = vunpack.c.l.b16 %v8387
        %v9833 = vunpack.c.l.b16 %v8388
        %v9834 = vunpack.c.l.b16 %v8389
        %v9835 = vunpack.c.l.b16 %v8390
        %v9836 = vunpack.c.l.b16 %v8391
        %v9837 = vunpack.c.l.b16 %v8392
        %v9838 = vunpack.c.l.b16 %v8393
        %v9839 = vunpack.c.l.b16 %v8394
        %v9840 = vunpack.c.l.b16 %v8395
        %v9841 = vunpack.c.l.b16 %v8396
        %v9842 = vunpack.c.l.b16 %v8397
        %v9843 = vunpack.c.l.b16 %v8398
        %v9844 = vunpack.c.l.b16 %v8399
        %v9845 = vunpack.c.l.b16 %v8400
        %v9846 = vunpack.c.l.b16 %v8401
        %v9847 = vunpack.c.l.b16 %v8402
        %v9848 = vunpack.c.l.b16 %v8403
        %v9849 = vunpack.c.l.b16 %v8404
        %v9850 = vunpack.c.l.b16 %v8405
        %v9851 = vunpack.c.l.b16 %v8406
        %v9852 = vunpack.c.l.b16 %v8407
        %v9853 = vunpack.c.l.b16 %v8408
        %v9854 = vunpack.c.l.b16 %v8409
        %v9855 = vunpack.c.l.b16 %v8410
        %v9856 = vunpack.c.l.b16 %v8411
        %v9857 = vunpack.c.l.b16 %v8412
        %v9858 = vunpack.c.l.b16 %v8413
        %v9859 = vunpack.c.l.b16 %v8414
        %v9860 = vunpack.c.l.b16 %v8415
        %v9861 = vunpack.c.l.b16 %v8416
        %v9862 = vunpack.c.l.b16 %v8417
        %v9863 = vunpack.c.l.b16 %v8418
        %v9864 = vpack.c.b16 %v9828, %v9827
        %v9865 = vpack.c.b16 %v9830, %v9829
        %v9866 = vpack.c.b16 %v9832, %v9831
        %v9867 = vpack.c.b16 %v9834, %v9833
        %v9868 = vpack.c.b16 %v9836, %v9835
        %v9869 = vpack.c.b16 %v9838, %v9837
        %v9870 = vpack.c.b16 %v9840, %v9839
        %v9871 = vpack.c.b16 %v9842, %v9841
        %v9872 = vpack.c.b16 %v9844, %v9843
        %v9873 = vpack.c.b16 %v9846, %v9845
        %v9874 = vpack.c.b16 %v9848, %v9847
        %v9875 = vpack.c.b16 %v9850, %v9849
        %v9876 = vpack.c.b16 %v9852, %v9851
        %v9877 = vpack.c.b16 %v9854, %v9853
        %v9878 = vpack.c.b16 %v9856, %v9855
        %v9879 = vpack.c.b16 %v9858, %v9857
        %v9880 = vpack.c.b16 %v9860, %v9859
        %v9881 = vpack.c.b16 %v9862, %v9861
        %v9882 = vpack.c.b16 %v9863, %v9863
        %v9902 = vsel %vm1585, %v9882, 0
        %9904 = vmatprep.subr.bf16.mxu0 0
        %9905 = vmatpush1.bf16.msra.mxu0 %v9871
        %9906 = vmatprep.subr.bf16.mxu0 0
        %9907 = vmatpush1.bf16.msra.mxu0 %v9870
        %9908 = vmatprep.subr.bf16.mxu0 0
        %9909 = vmatpush1.bf16.msra.mxu0 %v9869
        %9910 = vmatprep.subr.bf16.mxu0 0
        %9911 = vmatpush1.bf16.msra.mxu0 %v9868
        %9912 = vmatprep.subr.bf16.mxu0 0
        %9913 = vmatpush1.bf16.msra.mxu0 %v9867
        %9914 = vmatprep.subr.bf16.mxu0 0
        %9915 = vmatpush1.bf16.msra.mxu0 %v9866
        %9916 = vmatprep.subr.bf16.mxu0 0
        %9917 = vmatpush1.bf16.msra.mxu0 %v9865
        %9918 = vmatprep.subr.bf16.mxu0 0
        %9919 = vmatpush1.bf16.msra.mxu0 %v9864
        %9920 = vmatprep.subr.bf16.mxu0 0
        %9921 = vmatpush2.bf16.msra.mxu0 %v9879
        %9922 = vmatprep.subr.bf16.mxu0 0
        %9923 = vmatpush2.bf16.msra.mxu0 %v9878
        %9924 = vmatprep.subr.bf16.mxu0 0
        %9925 = vmatpush2.bf16.msra.mxu0 %v9877
        %9926 = vmatprep.subr.bf16.mxu0 0
        %9927 = vmatpush2.bf16.msra.mxu0 %v9876
        %9928 = vmatprep.subr.bf16.mxu0 0
        %9929 = vmatpush2.bf16.msra.mxu0 %v9875
        %9930 = vmatprep.subr.bf16.mxu0 0
        %9931 = vmatpush2.bf16.msra.mxu0 %v9874
        %9932 = vmatprep.subr.bf16.mxu0 0
        %9933 = vmatpush2.bf16.msra.mxu0 %v9873
        %9934 = vmatprep.subr.bf16.mxu0 0
        %9935 = vmatpush2.bf16.msra.mxu0 %v9872
        %9936 = vmatprep.mubr.bf16.mxu0 %v8425
        %9937 = vmatmul.mubr.bf16.gmra.mxu0 %v8424
        %v9938 = vpop.f32.mrf.mxu0
        %v9939 = vadd.f32 0.0, %v9938
        %v9940 = vpop.f32.mrf.mxu0
        %v9941 = vpop.f32.mrf.mxu0
        %v9942 = vpop.f32.mrf.mxu0
        %9943 = vdwg.mxu0
        %9944 = vmatprep.subr.bf16.mxu0 0
        %9945 = vmatpush1.bf16.msra.mxu0 0
        %9946 = vmatprep.subr.bf16.mxu0 0
        %9947 = vmatpush1.bf16.msra.mxu0 0
        %9948 = vmatprep.subr.bf16.mxu0 0
        %9949 = vmatpush1.bf16.msra.mxu0 0
        %9950 = vmatprep.subr.bf16.mxu0 0
        %9951 = vmatpush1.bf16.msra.mxu0 0
        %9952 = vmatprep.subr.bf16.mxu0 0
        %9953 = vmatpush1.bf16.msra.mxu0 0
        %9954 = vmatprep.subr.bf16.mxu0 0
        %9955 = vmatpush1.bf16.msra.mxu0 %v9902
        %9956 = vmatprep.subr.bf16.mxu0 0
        %9957 = vmatpush1.bf16.msra.mxu0 %v9881
        %9958 = vmatprep.subr.bf16.mxu0 0
        %9959 = vmatpush1.bf16.msra.mxu0 %v9880
        %9960 = vmatprep.subr.bf16.mxu0 0
        %9961 = vmatpush2.bf16.msra.mxu0 0
        %9962 = vmatprep.subr.bf16.mxu0 0
        %9963 = vmatpush2.bf16.msra.mxu0 0
        %9964 = vmatprep.subr.bf16.mxu0 0
        %9965 = vmatpush2.bf16.msra.mxu0 0
        %9966 = vmatprep.subr.bf16.mxu0 0
        %9967 = vmatpush2.bf16.msra.mxu0 0
        %9968 = vmatprep.subr.bf16.mxu0 0
        %9969 = vmatpush2.bf16.msra.mxu0 0
        %9970 = vmatprep.subr.bf16.mxu0 0
        %9971 = vmatpush2.bf16.msra.mxu0 0
        %9972 = vmatprep.subr.bf16.mxu0 0
        %9973 = vmatpush2.bf16.msra.mxu0 0
        %9974 = vmatprep.subr.bf16.mxu0 0
        %9975 = vmatpush2.bf16.msra.mxu0 0
        %9976 = vmatprep.mubr.bf16.mxu0 0
        %9977 = vmatmul.mubr.bf16.gmra.mxu0 %v8541
        %v9978 = vpop.f32.mrf.mxu0
        %v9979 = vadd.f32 %v9939, %v9978
        %v9980 = vpop.f32.mrf.mxu0
        %v9981 = vpop.f32.mrf.mxu0
        %v9982 = vpop.f32.mrf.mxu0
        %9983 = vdwg.mxu0
        %v9984 = vmax.f32 %v8621, 0.0
        %v9985 = vmax.f32 %v8815, 0.0
        %v9986 = vmax.f32 %v9009, 0.0
        %v9987 = vmax.f32 %v9203, 0.0
        %v9988 = vmax.f32 %v9397, 0.0
        %v9989 = vmax.f32 %v9591, 0.0
        %v9990 = vmax.f32 %v9785, 0.0
        %v9991 = vmax.f32 %v9979, 0.0
        %9992 = vst [vmem:[%s334 + $0x20] sm:$0xff] %v9984
        %9993 = vst [vmem:[%s334 + $0x48] sm:$0xff] %v9985
        %9994 = vst [vmem:[%s334 + $0x70] sm:$0xff] %v9986
        %9995 = vst [vmem:[%s334 + $0x98] sm:$0xff] %v9987
        %9996 = vst [vmem:[%s334 + $0xc0] sm:$0xff] %v9988
        %9997 = vst [vmem:[%s334 + $0xe8] sm:$0xff] %v9989
        %9998 = vst [vmem:[%s334 + $0x110] sm:$0xff] %v9990
        %9999 = vst [vmem:[%s334 + $0x138] sm:$0xff] %v9991
        %s10000 = sand.u32 %s165, 1
        %s10001 = scalar_lea.sflag [#allocation5], %s10000
        %s10002 = sand.u32 %s165, 1
        %s10003 = smul.addr %s10002, 320
        %s10004 = scalar_lea.vmem [#allocation14], %s10003
        // Predicated region
        $region69: #{tpu_custom_call.1} parent=43 // pred_check
          %p10005 = pneg %p175
        $region70: #{tpu_custom_call.1} parent=43 // pred_check_branch
          %10007 = sbr.rel (%p10005) target = $region72
        $region71: #{tpu_custom_call.1} parent=43 // pred_region
          %s10008 = smul.u32 8, %s26
          %s10010 = ssub.s32 5120, 5120
          %10011 = vsyncadd %s10001, %s10010
          %s10012 = smul.addr %s10008, 5
          %s10013 = smul.addr %s10012, 128
          %s10014 = scalar_lea.hbm %s6, %s10013
          %s10015 = sshll.u32 %s10004, 4
          %s10016 = int_to_ptr.vmem [resolvable:$true] %s10015
          %10021 = dma.vmem_to_hbm [thread:$0]  %s10016, 5120, %s10014, %s10001, 128, 128, 8
        $region72: #{tpu_custom_call.1} parent=43 // pred_fallthru
          _
      $region44: #{tpu_custom_call.1} parent=5 // pred_fallthru
        _
      %p10022 = scmp.le.s32.totalorder 2, %s21
      // Predicated region
      $region73: #{tpu_custom_call.1} parent=5 // pred_check
        %p10023 = pneg %p10022
      $region74: #{tpu_custom_call.1} parent=5 // pred_check_branch
        %10025 = sbr.rel (%p10023) target = $region76
      $region75: #{tpu_custom_call.1} parent=5 // pred_region
        %s10026 = ssub.s32 %s21, 2
        // Predicated region
        $region77: #{tpu_custom_call.1} parent=75 // pred_check
          %p10027 = pneg %p181
        $region78: #{tpu_custom_call.1} parent=75 // pred_check_branch
          %10029 = sbr.rel (%p10027) target = $region80
        $region79: #{tpu_custom_call.1} parent=75 // pred_region
          %s10030 = sand.u32 %s166, 1
          %s10031 = scalar_lea.sflag [#allocation5], %s10030
          %s10032 = sand.u32 %s166, 1
          %s10033 = smul.addr %s10032, 320
          %s10034 = scalar_lea.vmem [#allocation14], %s10033
          %10035 = dma.done %s10031, 5120
        $region80: #{tpu_custom_call.1} parent=75 // pred_fallthru
          _
      $region76: #{tpu_custom_call.1} parent=5 // pred_fallthru
        _
    $region6: #{tpu_custom_call.1} parent=1 // loop_footer
      %s25 = sadd.s32 1, %s21
    $region7: #{tpu_custom_call.1} parent=1 // loop_footer_branch
      %20 = sbr.rel target = $region3
    $region8: #{tpu_custom_call.1} parent=1 // loop_exit
      _
    %10036 = vsyncpa [#allocation4], 1
    %s10037 = scalar_lea.sflag [#allocation4], 1
    %10038 = vsyncpa %s10037, 1
    %10039 = vsyncpa [#allocation7], 1
    %10040 = vsyncpa [#allocation10], 1
    %10041 = vsyncpa [#allocation13], 1
    %10042 = vsyncpa [#allocation5], 1
    %s10043 = scalar_lea.sflag [#allocation5], 1
    %10044 = vsyncpa %s10043, 1

</llo_original>
